<compile_context>
chip_gen: v7x
topology: tpu7x:2x2x1
jax: 0.10.0
libtpu: 0.0.40
codegen_flags: <defaults>
</compile_context>

<pallas_src>
import jax
import jax.numpy as jnp
from jax.experimental import pallas as pl
from jax.experimental.pallas import tpu as pltpu


# ------------------------------ helpers ------------------------------------ #

def _round_up(x, m):
    return ((x + m - 1) // m) * m


def _pick_row_tile(h2):
    """Pick an output-row tile size that divides 2H, multiple of 8 when possible."""
    for th in (32, 16, 8):
        if h2 % th == 0 and h2 // th >= 2:
            return th
    return h2


def _bilinear_matrix(out_size, in_size):
    """(out_size, in_size) interpolation matrix, align_corners=True."""
    if out_size == 1:
        return jnp.ones((1, in_size), jnp.float32) / in_size if in_size == 1 else \
            jax.nn.one_hot(jnp.zeros((1,), jnp.int32), in_size, dtype=jnp.float32)
    s = (in_size - 1) / (out_size - 1)
    c = jnp.arange(out_size, dtype=jnp.float32) * s
    i0 = jnp.clip(jnp.floor(c).astype(jnp.int32), 0, in_size - 1)
    i1 = jnp.clip(i0 + 1, 0, in_size - 1)
    f = c - i0.astype(jnp.float32)
    return ((1.0 - f)[:, None] * jax.nn.one_hot(i0, in_size, dtype=jnp.float32)
            + f[:, None] * jax.nn.one_hot(i1, in_size, dtype=jnp.float32))


def upsample_bilinear_x2_align_corners(x_nhwc):
    """nn.UpsamplingBilinear2d(scale_factor=2) via interpolation-matrix matmuls."""
    N, H, W, C = x_nhwc.shape
    mr = _bilinear_matrix(2 * H, H)
    mc = _bilinear_matrix(2 * W, W)
    y = jnp.einsum("ri,niwc->nrwc", mr, x_nhwc)
    y = jnp.einsum("sk,nrkc->nrsc", mc, y)
    return y


# ----------------------------- Pallas kernel ------------------------------- #

def _fused_double_conv_kernel(u_ref, w1_ref, s1_ref, b1_ref,
                              w2_ref, s2_ref, b2_ref, o_ref, mid_ref):
    # u_ref  : (1, 2H+4, 2W+2, Cin) bf16 zero-padded upsampled image (full per batch)
    # w1_ref : (9, Cin, Cp) bf16   conv1 weights, one (Cin, Cp) matrix per 3x3 tap
    # s1/b1  : (1, Cp) f32         folded BN1 scale / bias (conv bias folded in)
    # w2_ref : (9, Cp, Cp) bf16    conv2 weights per tap
    # s2/b2  : (1, Cp) f32
    # o_ref  : (1, TH, 2W, Cp) f32 output row-tile (lane-dense, Cp multiple of 128)
    # mid_ref: (TH+2, 2W+2, Cp) bf16 scratch: conv1 output with 1-pixel zero halo
    t = pl.program_id(1)
    TH = o_ref.shape[1]
    W2 = o_ref.shape[2]
    Cp = o_ref.shape[3]

    r0 = pl.multiple_of(t * TH, TH)

    def conv3x3(src, w_taps_ref, n_rows):
        # src: (n_rows+2, W2+2, C) -> (n_rows*W2, Cp) f32 accumulator
        acc = None
        for dw in range(3):
            cs = src[:, dw:dw + W2, :]                       # one column shift per dw
            for dh in range(3):
                patch = cs[dh:dh + n_rows].reshape(n_rows * W2, -1)
                part = jnp.dot(patch, w_taps_ref[dh * 3 + dw],
                               preferred_element_type=jnp.float32)
                acc = part if acc is None else acc + part
        return acc

    # ---- conv1 + BN + ReLU over the tile's rows plus a 1-row halo ----
    # src1 rows r0..r0+TH+3 of u_pad == upsampled rows r0-2 .. r0+TH+1 (zero padded)
    src1 = u_ref[0, pl.ds(r0, TH + 4), :, :]                 # (TH+4, W2+2, Cin)
    acc1 = conv3x3(src1, w1_ref, TH + 2)                     # (TH+2)*W2 x Cp, f32
    y1 = jnp.maximum(acc1 * s1_ref[...] + b1_ref[...], 0.0)

    # mid rows 0..TH+1 == conv1 output rows r0-1 .. r0+TH; cols 0 and W2+1 are the
    # conv2 zero padding.
    mid_ref[...] = jnp.zeros_like(mid_ref)
    mid_ref[:, 1:W2 + 1, :] = y1.reshape(TH + 2, W2, Cp).astype(mid_ref.dtype)

    @pl.when(t == 0)
    def _():  # conv1-output row -1 does not exist -> conv2 top zero padding
        mid_ref[0, :, :] = jnp.zeros((W2 + 2, Cp), mid_ref.dtype)

    @pl.when(t == pl.num_programs(1) - 1)
    def _():  # conv1-output row 2H does not exist -> conv2 bottom zero padding
        mid_ref[TH + 1, :, :] = jnp.zeros((W2 + 2, Cp), mid_ref.dtype)

    # ---- conv2 + BN + ReLU directly from the VMEM-resident conv1 output ----
    acc2 = conv3x3(mid_ref[...], w2_ref, TH)                 # TH*W2 x Cp, f32
    y2 = jnp.maximum(acc2 * s2_ref[...] + b2_ref[...], 0.0)
    o_ref[0] = y2.reshape(TH, W2, Cp).astype(o_ref.dtype)


# ------------------------------- wrapper ----------------------------------- #

def _fold_bn(scale_g, beta, mean, var, conv_b, eps):
    s = scale_g / jnp.sqrt(var + eps)
    b = (conv_b - mean) * s + beta
    return s, b


def fused_double_conv(u_nhwc, p, eps=1e-5):
    """Fused (conv3x3 + BN + ReLU) x2 on an NHWC activation via one Pallas kernel."""
    N, H2, W2, Cin = u_nhwc.shape
    Cout = p["w1"].shape[0]
    Cp = _round_up(Cout, 128)
    TH = _pick_row_tile(H2)
    T = H2 // TH

    s1, b1 = _fold_bn(p["g1"], p["be1"], p["m1"], p["v1"], p["b1"], eps)
    s2, b2 = _fold_bn(p["g2"], p["be2"], p["m2"], p["v2"], p["b2"], eps)

    # Per-tap weight matrices (kh, kw major), output channels padded to Cp.
    w1 = jnp.transpose(p["w1"], (2, 3, 1, 0)).reshape(9, Cin, Cout)
    w1 = jnp.pad(w1, ((0, 0), (0, 0), (0, Cp - Cout))).astype(jnp.bfloat16)
    w2 = jnp.transpose(p["w2"], (2, 3, 1, 0)).reshape(9, Cout, Cout)
    w2 = jnp.pad(w2, ((0, 0), (0, Cp - Cout), (0, Cp - Cout))).astype(jnp.bfloat16)
    s1p = jnp.pad(s1, (0, Cp - Cout)).reshape(1, Cp).astype(jnp.float32)
    b1p = jnp.pad(b1, (0, Cp - Cout)).reshape(1, Cp).astype(jnp.float32)
    s2p = jnp.pad(s2, (0, Cp - Cout)).reshape(1, Cp).astype(jnp.float32)
    b2p = jnp.pad(b2, (0, Cp - Cout)).reshape(1, Cp).astype(jnp.float32)

    # Zero-pad: 1 col each side (conv1 padding) and 2 rows each side
    # (conv1 padding + the extra row halo conv2 needs); bf16 for the MXU.
    u_pad = jnp.pad(u_nhwc, ((0, 0), (2, 2), (1, 1), (0, 0))).astype(jnp.bfloat16)

    out = pl.pallas_call(
        _fused_double_conv_kernel,
        out_shape=jax.ShapeDtypeStruct((N, H2, W2, Cp), jnp.float32),
        grid=(N, T),
        in_specs=[
            # full (padded, un-tiled) image per batch; constant over the row-tile
            # axis so it is DMA'd once per batch element.
            pl.BlockSpec((1, H2 + 4, W2 + 2, Cin), lambda n, t: (n, 0, 0, 0)),
            # weights / folded BN params: constant block index -> resident.
            pl.BlockSpec((9, Cin, Cp), lambda n, t: (0, 0, 0)),
            pl.BlockSpec((1, Cp), lambda n, t: (0, 0)),
            pl.BlockSpec((1, Cp), lambda n, t: (0, 0)),
            pl.BlockSpec((9, Cp, Cp), lambda n, t: (0, 0, 0)),
            pl.BlockSpec((1, Cp), lambda n, t: (0, 0)),
            pl.BlockSpec((1, Cp), lambda n, t: (0, 0)),
        ],
        out_specs=pl.BlockSpec((1, TH, W2, Cp), lambda n, t: (n, t, 0, 0)),
        scratch_shapes=[pltpu.VMEM((TH + 2, W2 + 2, Cp), jnp.bfloat16)],
        compiler_params=pltpu.CompilerParams(
            dimension_semantics=("parallel", "parallel")),
    )(u_pad, w1, s1p, b1p, w2, s2p, b2p)

    return out[..., :Cout]


def up_forward(x_nchw, params):
    """Forward of `up(in_ch, out_ch, bilinear=True)`. Input/output are NCHW."""
    x = jnp.transpose(x_nchw, (0, 2, 3, 1))          # NCHW -> NHWC
    u = upsample_bilinear_x2_align_corners(x)        # (N, 2H, 2W, Cin), f32
    y = fused_double_conv(u, params)                 # (N, 2H, 2W, Cout)
    return jnp.transpose(y, (0, 3, 1, 2))            # NHWC -> NCHW
# TODO(synk): BatchNorm is eval/inference mode (running stats folded); training-mode
# batch statistics and the bilinear=False ConvTranspose2d branch are not implemented.


# ------------------------------ params ------------------------------------- #

def init_params(key, in_ch, out_ch):
    ks = jax.random.split(key, 12)
    return {
        "w1": jax.random.normal(ks[0], (out_ch, in_ch, 3, 3), jnp.float32) * 0.1,
        "b1": jax.random.normal(ks[1], (out_ch,), jnp.float32) * 0.1,
        "g1": 1.0 + 0.1 * jax.random.normal(ks[2], (out_ch,), jnp.float32),
        "be1": 0.1 * jax.random.normal(ks[3], (out_ch,), jnp.float32),
        "m1": 0.1 * jax.random.normal(ks[4], (out_ch,), jnp.float32),
        "v1": jax.random.uniform(ks[5], (out_ch,), jnp.float32, 0.5, 1.5),
        "w2": jax.random.normal(ks[6], (out_ch, out_ch, 3, 3), jnp.float32) * 0.1,
        "b2": jax.random.normal(ks[7], (out_ch,), jnp.float32) * 0.1,
        "g2": 1.0 + 0.1 * jax.random.normal(ks[8], (out_ch,), jnp.float32),
        "be2": 0.1 * jax.random.normal(ks[9], (out_ch,), jnp.float32),
        "m2": 0.1 * jax.random.normal(ks[10], (out_ch,), jnp.float32),
        "v2": jax.random.uniform(ks[11], (out_ch,), jnp.float32, 0.5, 1.5),
    }


# --------------------------- reference (JAX) -------------------------------- #
# Mirrors the kernel's quantization points (bf16 MXU inputs, f32 accumulation,
# bf16 intermediate feature map) so the comparison isolates kernel bugs.

def up_forward_ref(x_nchw, p, eps=1e-5):
    x = jnp.transpose(x_nchw, (0, 2, 3, 1))
    u = upsample_bilinear_x2_align_corners(x)

    def conv_bn_relu(inp, w, b, g, be, m, v):
        w_hwio = jnp.transpose(w, (2, 3, 1, 0)).astype(jnp.bfloat16)
        y = jax.lax.conv_general_dilated(
            inp.astype(jnp.bfloat16), w_hwio, (1, 1), "SAME",
            dimension_numbers=("NHWC", "HWIO", "NHWC"),
            preferred_element_type=jnp.float32)
        s = g / jnp.sqrt(v + eps)
        y = y * s + ((b - m) * s + be)
        return jnp.maximum(y, 0.0)

    h = conv_bn_relu(u, p["w1"], p["b1"], p["g1"], p["be1"], p["m1"], p["v1"])
    h = h.astype(jnp.bfloat16).astype(jnp.float32)   # mirror bf16 VMEM mid buffer
    h = conv_bn_relu(h, p["w2"], p["b2"], p["g2"], p["be2"], p["m2"], p["v2"])
    return jnp.transpose(h, (0, 3, 1, 2))


# ----------------------------------- main ----------------------------------- #

if __name__ == "__main__":
    N, in_ch, out_ch, H, W = 2, 4, 8, 16, 16
    key = jax.random.PRNGKey(0)
    kx, kp = jax.random.split(key)
    x = jax.random.normal(kx, (N, in_ch, H, W), jnp.float32)   # NCHW like PyTorch
    params = init_params(kp, in_ch, out_ch)

    out = jax.block_until_ready(jax.jit(up_forward)(x, params))
    assert out.shape == (N, out_ch, 2 * H, 2 * W), out.shape

    ref = jax.block_until_ready(jax.jit(up_forward_ref)(x, params))
    max_err = float(jnp.max(jnp.abs(out - ref)))
    assert jnp.allclose(out, ref, atol=1e-2, rtol=1e-2), max_err

    print("KERNEL_OK")
</pallas_src>

<mosaic_0001>
module attributes {stable_mosaic.version = 11 : i64} {
  func.func @_fused_double_conv_kernel(%arg0: i32, %arg1: i32, %arg2: memref<1x36x34x4xbf16, #tpu.memory_space<vmem>>, %arg3: memref<9x4x128xbf16, #tpu.memory_space<vmem>>, %arg4: memref<1x128xf32, #tpu.memory_space<vmem>>, %arg5: memref<1x128xf32, #tpu.memory_space<vmem>>, %arg6: memref<9x128x128xbf16, #tpu.memory_space<vmem>>, %arg7: memref<1x128xf32, #tpu.memory_space<vmem>>, %arg8: memref<1x128xf32, #tpu.memory_space<vmem>>, %arg9: memref<1x16x32x128xf32, #tpu.memory_space<vmem>>, %arg10: memref<18x34x128xbf16, #tpu.memory_space<vmem>>) attributes {dimension_semantics = [#tpu.dimension_semantics<parallel>, #tpu.dimension_semantics<parallel>], iteration_bounds = array<i64: 2, 2>, scalar_prefetch = 0 : i64, scratch_operands = 1 : i64, tpu.core_type = #tpu.core_type<tc>, window_params = [{transform_indices = @transform_0, window_bounds = array<i64: 1, 36, 34, 4>}, {pipeline_mode = #tpu.pipeline_mode<synchronous>, transform_indices = @transform_1, window_bounds = array<i64: 9, 4, 128>}, {pipeline_mode = #tpu.pipeline_mode<synchronous>, transform_indices = @transform_2, window_bounds = array<i64: 1, 128>}, {pipeline_mode = #tpu.pipeline_mode<synchronous>, transform_indices = @transform_3, window_bounds = array<i64: 1, 128>}, {pipeline_mode = #tpu.pipeline_mode<synchronous>, transform_indices = @transform_4, window_bounds = array<i64: 9, 128, 128>}, {pipeline_mode = #tpu.pipeline_mode<synchronous>, transform_indices = @transform_5, window_bounds = array<i64: 1, 128>}, {pipeline_mode = #tpu.pipeline_mode<synchronous>, transform_indices = @transform_6, window_bounds = array<i64: 1, 128>}, {transform_indices = @transform_7, window_bounds = array<i64: 1, 16, 32, 128>}]} {
    %c16_i32 = arith.constant 16 : i32
    %0 = arith.muli %arg1, %c16_i32 : i32
    %1 = tpu.assume_multiple %0, 16 : i32
    %c0 = arith.constant 0 : index
    %2 = arith.index_cast %1 : i32 to index
    %c0_0 = arith.constant 0 : index
    %c0_1 = arith.constant 0 : index
    %3 = vector.load %arg2[%c0, %2, %c0_0, %c0_1] : memref<1x36x34x4xbf16, #tpu.memory_space<vmem>>, vector<1x20x34x4xbf16>
    %4 = vector.shape_cast %3 : vector<1x20x34x4xbf16> to vector<20x34x4xbf16>
    %5 = vector.extract_strided_slice %4 {offsets = [0, 0, 0], sizes = [20, 32, 4], strides = [1, 1, 1]} : vector<20x34x4xbf16> to vector<20x32x4xbf16>
    %6 = vector.extract_strided_slice %5 {offsets = [0, 0, 0], sizes = [18, 32, 4], strides = [1, 1, 1]} : vector<20x32x4xbf16> to vector<18x32x4xbf16>
    %7 = vector.shape_cast %6 : vector<18x32x4xbf16> to vector<576x4xbf16>
    %c0_2 = arith.constant 0 : index
    %c0_3 = arith.constant 0 : index
    %c0_4 = arith.constant 0 : index
    %8 = vector.load %arg3[%c0_2, %c0_3, %c0_4] : memref<9x4x128xbf16, #tpu.memory_space<vmem>>, vector<1x4x128xbf16>
    %9 = vector.shape_cast %8 : vector<1x4x128xbf16> to vector<4x128xbf16>
    %cst = arith.constant dense<0.000000e+00> : vector<576x128xf32>
    %10 = tpu.matmul %7, %9, %cst {dimension_numbers = #tpu.dot_dimension_numbers<[1], [0], [0], [1], [0, 0, 1, 1], [], []>} : vector<576x4xbf16>, vector<4x128xbf16>, vector<576x128xf32> -> vector<576x128xf32>
    %11 = vector.extract_strided_slice %5 {offsets = [1, 0, 0], sizes = [18, 32, 4], strides = [1, 1, 1]} : vector<20x32x4xbf16> to vector<18x32x4xbf16>
    %12 = vector.shape_cast %11 : vector<18x32x4xbf16> to vector<576x4xbf16>
    %c3 = arith.constant 3 : index
    %c0_5 = arith.constant 0 : index
    %c0_6 = arith.constant 0 : index
    %13 = vector.load %arg3[%c3, %c0_5, %c0_6] : memref<9x4x128xbf16, #tpu.memory_space<vmem>>, vector<1x4x128xbf16>
    %14 = vector.shape_cast %13 : vector<1x4x128xbf16> to vector<4x128xbf16>
    %cst_7 = arith.constant dense<0.000000e+00> : vector<576x128xf32>
    %15 = tpu.matmul %12, %14, %cst_7 {dimension_numbers = #tpu.dot_dimension_numbers<[1], [0], [0], [1], [0, 0, 1, 1], [], []>} : vector<576x4xbf16>, vector<4x128xbf16>, vector<576x128xf32> -> vector<576x128xf32>
    %16 = arith.addf %10, %15 : vector<576x128xf32>
    %17 = vector.extract_strided_slice %5 {offsets = [2, 0, 0], sizes = [18, 32, 4], strides = [1, 1, 1]} : vector<20x32x4xbf16> to vector<18x32x4xbf16>
    %18 = vector.shape_cast %17 : vector<18x32x4xbf16> to vector<576x4xbf16>
    %c6 = arith.constant 6 : index
    %c0_8 = arith.constant 0 : index
    %c0_9 = arith.constant 0 : index
    %19 = vector.load %arg3[%c6, %c0_8, %c0_9] : memref<9x4x128xbf16, #tpu.memory_space<vmem>>, vector<1x4x128xbf16>
    %20 = vector.shape_cast %19 : vector<1x4x128xbf16> to vector<4x128xbf16>
    %cst_10 = arith.constant dense<0.000000e+00> : vector<576x128xf32>
    %21 = tpu.matmul %18, %20, %cst_10 {dimension_numbers = #tpu.dot_dimension_numbers<[1], [0], [0], [1], [0, 0, 1, 1], [], []>} : vector<576x4xbf16>, vector<4x128xbf16>, vector<576x128xf32> -> vector<576x128xf32>
    %22 = arith.addf %16, %21 : vector<576x128xf32>
    %23 = vector.extract_strided_slice %4 {offsets = [0, 1, 0], sizes = [20, 32, 4], strides = [1, 1, 1]} : vector<20x34x4xbf16> to vector<20x32x4xbf16>
    %24 = vector.extract_strided_slice %23 {offsets = [0, 0, 0], sizes = [18, 32, 4], strides = [1, 1, 1]} : vector<20x32x4xbf16> to vector<18x32x4xbf16>
    %25 = vector.shape_cast %24 : vector<18x32x4xbf16> to vector<576x4xbf16>
    %c1 = arith.constant 1 : index
    %c0_11 = arith.constant 0 : index
    %c0_12 = arith.constant 0 : index
    %26 = vector.load %arg3[%c1, %c0_11, %c0_12] : memref<9x4x128xbf16, #tpu.memory_space<vmem>>, vector<1x4x128xbf16>
    %27 = vector.shape_cast %26 : vector<1x4x128xbf16> to vector<4x128xbf16>
    %cst_13 = arith.constant dense<0.000000e+00> : vector<576x128xf32>
    %28 = tpu.matmul %25, %27, %cst_13 {dimension_numbers = #tpu.dot_dimension_numbers<[1], [0], [0], [1], [0, 0, 1, 1], [], []>} : vector<576x4xbf16>, vector<4x128xbf16>, vector<576x128xf32> -> vector<576x128xf32>
    %29 = arith.addf %22, %28 : vector<576x128xf32>
    %30 = vector.extract_strided_slice %23 {offsets = [1, 0, 0], sizes = [18, 32, 4], strides = [1, 1, 1]} : vector<20x32x4xbf16> to vector<18x32x4xbf16>
    %31 = vector.shape_cast %30 : vector<18x32x4xbf16> to vector<576x4xbf16>
    %c4 = arith.constant 4 : index
    %c0_14 = arith.constant 0 : index
    %c0_15 = arith.constant 0 : index
    %32 = vector.load %arg3[%c4, %c0_14, %c0_15] : memref<9x4x128xbf16, #tpu.memory_space<vmem>>, vector<1x4x128xbf16>
    %33 = vector.shape_cast %32 : vector<1x4x128xbf16> to vector<4x128xbf16>
    %cst_16 = arith.constant dense<0.000000e+00> : vector<576x128xf32>
    %34 = tpu.matmul %31, %33, %cst_16 {dimension_numbers = #tpu.dot_dimension_numbers<[1], [0], [0], [1], [0, 0, 1, 1], [], []>} : vector<576x4xbf16>, vector<4x128xbf16>, vector<576x128xf32> -> vector<576x128xf32>
    %35 = arith.addf %29, %34 : vector<576x128xf32>
    %36 = vector.extract_strided_slice %23 {offsets = [2, 0, 0], sizes = [18, 32, 4], strides = [1, 1, 1]} : vector<20x32x4xbf16> to vector<18x32x4xbf16>
    %37 = vector.shape_cast %36 : vector<18x32x4xbf16> to vector<576x4xbf16>
    %c7 = arith.constant 7 : index
    %c0_17 = arith.constant 0 : index
    %c0_18 = arith.constant 0 : index
    %38 = vector.load %arg3[%c7, %c0_17, %c0_18] : memref<9x4x128xbf16, #tpu.memory_space<vmem>>, vector<1x4x128xbf16>
    %39 = vector.shape_cast %38 : vector<1x4x128xbf16> to vector<4x128xbf16>
    %cst_19 = arith.constant dense<0.000000e+00> : vector<576x128xf32>
    %40 = tpu.matmul %37, %39, %cst_19 {dimension_numbers = #tpu.dot_dimension_numbers<[1], [0], [0], [1], [0, 0, 1, 1], [], []>} : vector<576x4xbf16>, vector<4x128xbf16>, vector<576x128xf32> -> vector<576x128xf32>
    %41 = arith.addf %35, %40 : vector<576x128xf32>
    %42 = vector.extract_strided_slice %4 {offsets = [0, 2, 0], sizes = [20, 32, 4], strides = [1, 1, 1]} : vector<20x34x4xbf16> to vector<20x32x4xbf16>
    %43 = vector.extract_strided_slice %42 {offsets = [0, 0, 0], sizes = [18, 32, 4], strides = [1, 1, 1]} : vector<20x32x4xbf16> to vector<18x32x4xbf16>
    %44 = vector.shape_cast %43 : vector<18x32x4xbf16> to vector<576x4xbf16>
    %c2 = arith.constant 2 : index
    %c0_20 = arith.constant 0 : index
    %c0_21 = arith.constant 0 : index
    %45 = vector.load %arg3[%c2, %c0_20, %c0_21] : memref<9x4x128xbf16, #tpu.memory_space<vmem>>, vector<1x4x128xbf16>
    %46 = vector.shape_cast %45 : vector<1x4x128xbf16> to vector<4x128xbf16>
    %cst_22 = arith.constant dense<0.000000e+00> : vector<576x128xf32>
    %47 = tpu.matmul %44, %46, %cst_22 {dimension_numbers = #tpu.dot_dimension_numbers<[1], [0], [0], [1], [0, 0, 1, 1], [], []>} : vector<576x4xbf16>, vector<4x128xbf16>, vector<576x128xf32> -> vector<576x128xf32>
    %48 = arith.addf %41, %47 : vector<576x128xf32>
    %49 = vector.extract_strided_slice %42 {offsets = [1, 0, 0], sizes = [18, 32, 4], strides = [1, 1, 1]} : vector<20x32x4xbf16> to vector<18x32x4xbf16>
    %50 = vector.shape_cast %49 : vector<18x32x4xbf16> to vector<576x4xbf16>
    %c5 = arith.constant 5 : index
    %c0_23 = arith.constant 0 : index
    %c0_24 = arith.constant 0 : index
    %51 = vector.load %arg3[%c5, %c0_23, %c0_24] : memref<9x4x128xbf16, #tpu.memory_space<vmem>>, vector<1x4x128xbf16>
    %52 = vector.shape_cast %51 : vector<1x4x128xbf16> to vector<4x128xbf16>
    %cst_25 = arith.constant dense<0.000000e+00> : vector<576x128xf32>
    %53 = tpu.matmul %50, %52, %cst_25 {dimension_numbers = #tpu.dot_dimension_numbers<[1], [0], [0], [1], [0, 0, 1, 1], [], []>} : vector<576x4xbf16>, vector<4x128xbf16>, vector<576x128xf32> -> vector<576x128xf32>
    %54 = arith.addf %48, %53 : vector<576x128xf32>
    %55 = vector.extract_strided_slice %42 {offsets = [2, 0, 0], sizes = [18, 32, 4], strides = [1, 1, 1]} : vector<20x32x4xbf16> to vector<18x32x4xbf16>
    %56 = vector.shape_cast %55 : vector<18x32x4xbf16> to vector<576x4xbf16>
    %c8 = arith.constant 8 : index
    %c0_26 = arith.constant 0 : index
    %c0_27 = arith.constant 0 : index
    %57 = vector.load %arg3[%c8, %c0_26, %c0_27] : memref<9x4x128xbf16, #tpu.memory_space<vmem>>, vector<1x4x128xbf16>
    %58 = vector.shape_cast %57 : vector<1x4x128xbf16> to vector<4x128xbf16>
    %cst_28 = arith.constant dense<0.000000e+00> : vector<576x128xf32>
    %59 = tpu.matmul %56, %58, %cst_28 {dimension_numbers = #tpu.dot_dimension_numbers<[1], [0], [0], [1], [0, 0, 1, 1], [], []>} : vector<576x4xbf16>, vector<4x128xbf16>, vector<576x128xf32> -> vector<576x128xf32>
    %60 = arith.addf %54, %59 : vector<576x128xf32>
    %c0_29 = arith.constant 0 : index
    %c0_30 = arith.constant 0 : index
    %61 = vector.load %arg4[%c0_29, %c0_30] : memref<1x128xf32, #tpu.memory_space<vmem>>, vector<1x128xf32>
    %62 = vector.broadcast %61 : vector<1x128xf32> to vector<576x128xf32>
    %63 = arith.mulf %60, %62 : vector<576x128xf32>
    %c0_31 = arith.constant 0 : index
    %c0_32 = arith.constant 0 : index
    %64 = vector.load %arg5[%c0_31, %c0_32] : memref<1x128xf32, #tpu.memory_space<vmem>>, vector<1x128xf32>
    %65 = vector.broadcast %64 : vector<1x128xf32> to vector<576x128xf32>
    %66 = arith.addf %63, %65 : vector<576x128xf32>
    %cst_33 = arith.constant 0.000000e+00 : f32
    %67 = vector.broadcast %cst_33 : f32 to vector<576x128xf32>
    %68 = arith.maximumf %66, %67 : vector<576x128xf32>
    %cst_34 = arith.constant 0.000000e+00 : bf16
    %69 = vector.broadcast %cst_34 : bf16 to vector<18x34x128xbf16>
    %c0_35 = arith.constant 0 : index
    %c0_36 = arith.constant 0 : index
    %c0_37 = arith.constant 0 : index
    %70 = vector.load %arg10[%c0_35, %c0_36, %c0_37] : memref<18x34x128xbf16, #tpu.memory_space<vmem>>, vector<18x34x128xbf16>
    tpu.vector_store %arg10[%c0_35, %c0_36, %c0_37], %69 {strides = array<i32>} : memref<18x34x128xbf16, #tpu.memory_space<vmem>>, vector<18x34x128xbf16>,
    %71 = vector.shape_cast %68 : vector<576x128xf32> to vector<18x32x128xf32>
    %72 = arith.truncf %71 : vector<18x32x128xf32> to vector<18x32x128xbf16>
    %c0_38 = arith.constant 0 : index
    %c1_39 = arith.constant 1 : index
    %c0_40 = arith.constant 0 : index
    %73 = vector.load %arg10[%c0_38, %c1_39, %c0_40] : memref<18x34x128xbf16, #tpu.memory_space<vmem>>, vector<18x32x128xbf16>
    tpu.vector_store %arg10[%c0_38, %c1_39, %c0_40], %72 {strides = array<i32>} : memref<18x34x128xbf16, #tpu.memory_space<vmem>>, vector<18x32x128xbf16>,
    %c0_i32 = arith.constant 0 : i32
    %74 = arith.cmpi eq, %arg1, %c0_i32 : i32
    %75 = arith.extui %74 : i1 to i32
    %c0_i32_41 = arith.constant 0 : i32
    %76 = arith.cmpi ne, %75, %c0_i32_41 : i32
    scf.if %76 {
      %cst_91 = arith.constant 0.000000e+00 : bf16
      %149 = vector.broadcast %cst_91 : bf16 to vector<34x128xbf16>
      %c0_92 = arith.constant 0 : index
      %c0_93 = arith.constant 0 : index
      %c0_94 = arith.constant 0 : index
      %150 = vector.load %arg10[%c0_92, %c0_93, %c0_94] : memref<18x34x128xbf16, #tpu.memory_space<vmem>>, vector<1x34x128xbf16>
      %151 = vector.shape_cast %150 : vector<1x34x128xbf16> to vector<34x128xbf16>
      %152 = vector.shape_cast %149 : vector<34x128xbf16> to vector<1x34x128xbf16>
      tpu.vector_store %arg10[%c0_92, %c0_93, %c0_94], %152 {strides = array<i32>} : memref<18x34x128xbf16, #tpu.memory_space<vmem>>, vector<1x34x128xbf16>,
    } else {
    }
    %c1_i32 = arith.constant 1 : i32
    %77 = arith.cmpi eq, %arg1, %c1_i32 : i32
    %78 = arith.extui %77 : i1 to i32
    %c0_i32_42 = arith.constant 0 : i32
    %79 = arith.cmpi ne, %78, %c0_i32_42 : i32
    scf.if %79 {
      %cst_91 = arith.constant 0.000000e+00 : bf16
      %149 = vector.broadcast %cst_91 : bf16 to vector<34x128xbf16>
      %c17 = arith.constant 17 : index
      %c0_92 = arith.constant 0 : index
      %c0_93 = arith.constant 0 : index
      %150 = vector.load %arg10[%c17, %c0_92, %c0_93] : memref<18x34x128xbf16, #tpu.memory_space<vmem>>, vector<1x34x128xbf16>
      %151 = vector.shape_cast %150 : vector<1x34x128xbf16> to vector<34x128xbf16>
      %152 = vector.shape_cast %149 : vector<34x128xbf16> to vector<1x34x128xbf16>
      tpu.vector_store %arg10[%c17, %c0_92, %c0_93], %152 {strides = array<i32>} : memref<18x34x128xbf16, #tpu.memory_space<vmem>>, vector<1x34x128xbf16>,
    } else {
    }
    %c0_43 = arith.constant 0 : index
    %c0_44 = arith.constant 0 : index
    %c0_45 = arith.constant 0 : index
    %80 = vector.load %arg10[%c0_43, %c0_44, %c0_45] : memref<18x34x128xbf16, #tpu.memory_space<vmem>>, vector<18x34x128xbf16>
    %81 = vector.extract_strided_slice %80 {offsets = [0, 0, 0], sizes = [18, 32, 128], strides = [1, 1, 1]} : vector<18x34x128xbf16> to vector<18x32x128xbf16>
    %82 = vector.extract_strided_slice %81 {offsets = [0, 0, 0], sizes = [16, 32, 128], strides = [1, 1, 1]} : vector<18x32x128xbf16> to vector<16x32x128xbf16>
    %83 = vector.shape_cast %82 : vector<16x32x128xbf16> to vector<512x128xbf16>
    %c0_46 = arith.constant 0 : index
    %c0_47 = arith.constant 0 : index
    %c0_48 = arith.constant 0 : index
    %84 = vector.load %arg6[%c0_46, %c0_47, %c0_48] : memref<9x128x128xbf16, #tpu.memory_space<vmem>>, vector<1x128x128xbf16>
    %85 = vector.shape_cast %84 : vector<1x128x128xbf16> to vector<128x128xbf16>
    %cst_49 = arith.constant dense<0.000000e+00> : vector<512x128xf32>
    %86 = tpu.matmul %83, %85, %cst_49 {dimension_numbers = #tpu.dot_dimension_numbers<[1], [0], [0], [1], [0, 0, 1, 1], [], []>} : vector<512x128xbf16>, vector<128x128xbf16>, vector<512x128xf32> -> vector<512x128xf32>
    %87 = vector.extract_strided_slice %81 {offsets = [1, 0, 0], sizes = [16, 32, 128], strides = [1, 1, 1]} : vector<18x32x128xbf16> to vector<16x32x128xbf16>
    %88 = vector.shape_cast %87 : vector<16x32x128xbf16> to vector<512x128xbf16>
    %c3_50 = arith.constant 3 : index
    %c0_51 = arith.constant 0 : index
    %c0_52 = arith.constant 0 : index
    %89 = vector.load %arg6[%c3_50, %c0_51, %c0_52] : memref<9x128x128xbf16, #tpu.memory_space<vmem>>, vector<1x128x128xbf16>
    %90 = vector.shape_cast %89 : vector<1x128x128xbf16> to vector<128x128xbf16>
    %cst_53 = arith.constant dense<0.000000e+00> : vector<512x128xf32>
    %91 = tpu.matmul %88, %90, %cst_53 {dimension_numbers = #tpu.dot_dimension_numbers<[1], [0], [0], [1], [0, 0, 1, 1], [], []>} : vector<512x128xbf16>, vector<128x128xbf16>, vector<512x128xf32> -> vector<512x128xf32>
    %92 = arith.addf %86, %91 : vector<512x128xf32>
    %93 = vector.extract_strided_slice %81 {offsets = [2, 0, 0], sizes = [16, 32, 128], strides = [1, 1, 1]} : vector<18x32x128xbf16> to vector<16x32x128xbf16>
    %94 = vector.shape_cast %93 : vector<16x32x128xbf16> to vector<512x128xbf16>
    %c6_54 = arith.constant 6 : index
    %c0_55 = arith.constant 0 : index
    %c0_56 = arith.constant 0 : index
    %95 = vector.load %arg6[%c6_54, %c0_55, %c0_56] : memref<9x128x128xbf16, #tpu.memory_space<vmem>>, vector<1x128x128xbf16>
    %96 = vector.shape_cast %95 : vector<1x128x128xbf16> to vector<128x128xbf16>
    %cst_57 = arith.constant dense<0.000000e+00> : vector<512x128xf32>
    %97 = tpu.matmul %94, %96, %cst_57 {dimension_numbers = #tpu.dot_dimension_numbers<[1], [0], [0], [1], [0, 0, 1, 1], [], []>} : vector<512x128xbf16>, vector<128x128xbf16>, vector<512x128xf32> -> vector<512x128xf32>
    %98 = arith.addf %92, %97 : vector<512x128xf32>
    %99 = vector.extract_strided_slice %80 {offsets = [0, 1, 0], sizes = [18, 32, 128], strides = [1, 1, 1]} : vector<18x34x128xbf16> to vector<18x32x128xbf16>
    %100 = vector.extract_strided_slice %99 {offsets = [0, 0, 0], sizes = [16, 32, 128], strides = [1, 1, 1]} : vector<18x32x128xbf16> to vector<16x32x128xbf16>
    %101 = vector.shape_cast %100 : vector<16x32x128xbf16> to vector<512x128xbf16>
    %c1_58 = arith.constant 1 : index
    %c0_59 = arith.constant 0 : index
    %c0_60 = arith.constant 0 : index
    %102 = vector.load %arg6[%c1_58, %c0_59, %c0_60] : memref<9x128x128xbf16, #tpu.memory_space<vmem>>, vector<1x128x128xbf16>
    %103 = vector.shape_cast %102 : vector<1x128x128xbf16> to vector<128x128xbf16>
    %cst_61 = arith.constant dense<0.000000e+00> : vector<512x128xf32>
    %104 = tpu.matmul %101, %103, %cst_61 {dimension_numbers = #tpu.dot_dimension_numbers<[1], [0], [0], [1], [0, 0, 1, 1], [], []>} : vector<512x128xbf16>, vector<128x128xbf16>, vector<512x128xf32> -> vector<512x128xf32>
    %105 = arith.addf %98, %104 : vector<512x128xf32>
    %106 = vector.extract_strided_slice %99 {offsets = [1, 0, 0], sizes = [16, 32, 128], strides = [1, 1, 1]} : vector<18x32x128xbf16> to vector<16x32x128xbf16>
    %107 = vector.shape_cast %106 : vector<16x32x128xbf16> to vector<512x128xbf16>
    %c4_62 = arith.constant 4 : index
    %c0_63 = arith.constant 0 : index
    %c0_64 = arith.constant 0 : index
    %108 = vector.load %arg6[%c4_62, %c0_63, %c0_64] : memref<9x128x128xbf16, #tpu.memory_space<vmem>>, vector<1x128x128xbf16>
    %109 = vector.shape_cast %108 : vector<1x128x128xbf16> to vector<128x128xbf16>
    %cst_65 = arith.constant dense<0.000000e+00> : vector<512x128xf32>
    %110 = tpu.matmul %107, %109, %cst_65 {dimension_numbers = #tpu.dot_dimension_numbers<[1], [0], [0], [1], [0, 0, 1, 1], [], []>} : vector<512x128xbf16>, vector<128x128xbf16>, vector<512x128xf32> -> vector<512x128xf32>
    %111 = arith.addf %105, %110 : vector<512x128xf32>
    %112 = vector.extract_strided_slice %99 {offsets = [2, 0, 0], sizes = [16, 32, 128], strides = [1, 1, 1]} : vector<18x32x128xbf16> to vector<16x32x128xbf16>
    %113 = vector.shape_cast %112 : vector<16x32x128xbf16> to vector<512x128xbf16>
    %c7_66 = arith.constant 7 : index
    %c0_67 = arith.constant 0 : index
    %c0_68 = arith.constant 0 : index
    %114 = vector.load %arg6[%c7_66, %c0_67, %c0_68] : memref<9x128x128xbf16, #tpu.memory_space<vmem>>, vector<1x128x128xbf16>
    %115 = vector.shape_cast %114 : vector<1x128x128xbf16> to vector<128x128xbf16>
    %cst_69 = arith.constant dense<0.000000e+00> : vector<512x128xf32>
    %116 = tpu.matmul %113, %115, %cst_69 {dimension_numbers = #tpu.dot_dimension_numbers<[1], [0], [0], [1], [0, 0, 1, 1], [], []>} : vector<512x128xbf16>, vector<128x128xbf16>, vector<512x128xf32> -> vector<512x128xf32>
    %117 = arith.addf %111, %116 : vector<512x128xf32>
    %118 = vector.extract_strided_slice %80 {offsets = [0, 2, 0], sizes = [18, 32, 128], strides = [1, 1, 1]} : vector<18x34x128xbf16> to vector<18x32x128xbf16>
    %119 = vector.extract_strided_slice %118 {offsets = [0, 0, 0], sizes = [16, 32, 128], strides = [1, 1, 1]} : vector<18x32x128xbf16> to vector<16x32x128xbf16>
    %120 = vector.shape_cast %119 : vector<16x32x128xbf16> to vector<512x128xbf16>
    %c2_70 = arith.constant 2 : index
    %c0_71 = arith.constant 0 : index
    %c0_72 = arith.constant 0 : index
    %121 = vector.load %arg6[%c2_70, %c0_71, %c0_72] : memref<9x128x128xbf16, #tpu.memory_space<vmem>>, vector<1x128x128xbf16>
    %122 = vector.shape_cast %121 : vector<1x128x128xbf16> to vector<128x128xbf16>
    %cst_73 = arith.constant dense<0.000000e+00> : vector<512x128xf32>
    %123 = tpu.matmul %120, %122, %cst_73 {dimension_numbers = #tpu.dot_dimension_numbers<[1], [0], [0], [1], [0, 0, 1, 1], [], []>} : vector<512x128xbf16>, vector<128x128xbf16>, vector<512x128xf32> -> vector<512x128xf32>
    %124 = arith.addf %117, %123 : vector<512x128xf32>
    %125 = vector.extract_strided_slice %118 {offsets = [1, 0, 0], sizes = [16, 32, 128], strides = [1, 1, 1]} : vector<18x32x128xbf16> to vector<16x32x128xbf16>
    %126 = vector.shape_cast %125 : vector<16x32x128xbf16> to vector<512x128xbf16>
    %c5_74 = arith.constant 5 : index
    %c0_75 = arith.constant 0 : index
    %c0_76 = arith.constant 0 : index
    %127 = vector.load %arg6[%c5_74, %c0_75, %c0_76] : memref<9x128x128xbf16, #tpu.memory_space<vmem>>, vector<1x128x128xbf16>
    %128 = vector.shape_cast %127 : vector<1x128x128xbf16> to vector<128x128xbf16>
    %cst_77 = arith.constant dense<0.000000e+00> : vector<512x128xf32>
    %129 = tpu.matmul %126, %128, %cst_77 {dimension_numbers = #tpu.dot_dimension_numbers<[1], [0], [0], [1], [0, 0, 1, 1], [], []>} : vector<512x128xbf16>, vector<128x128xbf16>, vector<512x128xf32> -> vector<512x128xf32>
    %130 = arith.addf %124, %129 : vector<512x128xf32>
    %131 = vector.extract_strided_slice %118 {offsets = [2, 0, 0], sizes = [16, 32, 128], strides = [1, 1, 1]} : vector<18x32x128xbf16> to vector<16x32x128xbf16>
    %132 = vector.shape_cast %131 : vector<16x32x128xbf16> to vector<512x128xbf16>
    %c8_78 = arith.constant 8 : index
    %c0_79 = arith.constant 0 : index
    %c0_80 = arith.constant 0 : index
    %133 = vector.load %arg6[%c8_78, %c0_79, %c0_80] : memref<9x128x128xbf16, #tpu.memory_space<vmem>>, vector<1x128x128xbf16>
    %134 = vector.shape_cast %133 : vector<1x128x128xbf16> to vector<128x128xbf16>
    %cst_81 = arith.constant dense<0.000000e+00> : vector<512x128xf32>
    %135 = tpu.matmul %132, %134, %cst_81 {dimension_numbers = #tpu.dot_dimension_numbers<[1], [0], [0], [1], [0, 0, 1, 1], [], []>} : vector<512x128xbf16>, vector<128x128xbf16>, vector<512x128xf32> -> vector<512x128xf32>
    %136 = arith.addf %130, %135 : vector<512x128xf32>
    %c0_82 = arith.constant 0 : index
    %c0_83 = arith.constant 0 : index
    %137 = vector.load %arg7[%c0_82, %c0_83] : memref<1x128xf32, #tpu.memory_space<vmem>>, vector<1x128xf32>
    %138 = vector.broadcast %137 : vector<1x128xf32> to vector<512x128xf32>
    %139 = arith.mulf %136, %138 : vector<512x128xf32>
    %c0_84 = arith.constant 0 : index
    %c0_85 = arith.constant 0 : index
    %140 = vector.load %arg8[%c0_84, %c0_85] : memref<1x128xf32, #tpu.memory_space<vmem>>, vector<1x128xf32>
    %141 = vector.broadcast %140 : vector<1x128xf32> to vector<512x128xf32>
    %142 = arith.addf %139, %141 : vector<512x128xf32>
    %cst_86 = arith.constant 0.000000e+00 : f32
    %143 = vector.broadcast %cst_86 : f32 to vector<512x128xf32>
    %144 = arith.maximumf %142, %143 : vector<512x128xf32>
    %145 = vector.shape_cast %144 : vector<512x128xf32> to vector<16x32x128xf32>
    %c0_87 = arith.constant 0 : index
    %c0_88 = arith.constant 0 : index
    %c0_89 = arith.constant 0 : index
    %c0_90 = arith.constant 0 : index
    %146 = vector.load %arg9[%c0_87, %c0_88, %c0_89, %c0_90] : memref<1x16x32x128xf32, #tpu.memory_space<vmem>>, vector<1x16x32x128xf32>
    %147 = vector.shape_cast %146 : vector<1x16x32x128xf32> to vector<16x32x128xf32>
    %148 = vector.shape_cast %145 : vector<16x32x128xf32> to vector<1x16x32x128xf32>
    tpu.vector_store %arg9[%c0_87, %c0_88, %c0_89, %c0_90], %148 {strides = array<i32>} : memref<1x16x32x128xf32, #tpu.memory_space<vmem>>, vector<1x16x32x128xf32>,
    return
  }
  func.func @transform_0(%arg0: i32, %arg1: i32) -> (i32, i32, i32, i32) {
    %c0_i32 = arith.constant 0 : i32
    %c0_i32_0 = arith.constant 0 : i32
    %c0_i32_1 = arith.constant 0 : i32
    %c0_i32_2 = arith.constant 0 : i32
    return %arg0, %c0_i32, %c0_i32_0, %c0_i32_1 : i32, i32, i32, i32
  }
  func.func @transform_1(%arg0: i32, %arg1: i32) -> (i32, i32, i32) {
    %c0_i32 = arith.constant 0 : i32
    %c0_i32_0 = arith.constant 0 : i32
    %c0_i32_1 = arith.constant 0 : i32
    %c0_i32_2 = arith.constant 0 : i32
    return %c0_i32, %c0_i32_0, %c0_i32_1 : i32, i32, i32
  }
  func.func @transform_2(%arg0: i32, %arg1: i32) -> (i32, i32) {
    %c0_i32 = arith.constant 0 : i32
    %c0_i32_0 = arith.constant 0 : i32
    %c0_i32_1 = arith.constant 0 : i32
    return %c0_i32, %c0_i32_0 : i32, i32
  }
  func.func @transform_3(%arg0: i32, %arg1: i32) -> (i32, i32) {
    %c0_i32 = arith.constant 0 : i32
    %c0_i32_0 = arith.constant 0 : i32
    %c0_i32_1 = arith.constant 0 : i32
    return %c0_i32, %c0_i32_0 : i32, i32
  }
  func.func @transform_4(%arg0: i32, %arg1: i32) -> (i32, i32, i32) {
    %c0_i32 = arith.constant 0 : i32
    %c0_i32_0 = arith.constant 0 : i32
    %c0_i32_1 = arith.constant 0 : i32
    %c0_i32_2 = arith.constant 0 : i32
    return %c0_i32, %c0_i32_0, %c0_i32_1 : i32, i32, i32
  }
  func.func @transform_5(%arg0: i32, %arg1: i32) -> (i32, i32) {
    %c0_i32 = arith.constant 0 : i32
    %c0_i32_0 = arith.constant 0 : i32
    %c0_i32_1 = arith.constant 0 : i32
    return %c0_i32, %c0_i32_0 : i32, i32
  }
  func.func @transform_6(%arg0: i32, %arg1: i32) -> (i32, i32) {
    %c0_i32 = arith.constant 0 : i32
    %c0_i32_0 = arith.constant 0 : i32
    %c0_i32_1 = arith.constant 0 : i32
    return %c0_i32, %c0_i32_0 : i32, i32
  }
  func.func @transform_7(%arg0: i32, %arg1: i32) -> (i32, i32, i32, i32) {
    %c0_i32 = arith.constant 0 : i32
    %c0_i32_0 = arith.constant 0 : i32
    %c0_i32_1 = arith.constant 0 : i32
    return %arg0, %arg1, %c0_i32, %c0_i32_0 : i32, i32, i32, i32
  }
}

</mosaic_0001>

<llo_original>
// kernel: up_forward.1
$region0: #{up_forward.1}
  #allocation0 [shape = 'u32[]', space=smem, size = 0x4, offset = 0x4, fixed_abs, tag = 'smem constant byte address 0x4 - core index']
  #allocation1 [shape = 'u32[144,128]{1,0:T(1,128)}', space=vmem, size = 0x12000, scoped, tag = 'internal scratch']
  #allocation2 [shape = 'bf16[18,34,128]{2,1,0:T(8,128)(2,1)}', space=vmem, size = 0x2d000, scoped, tag = 'scratch operand']
  %s0 = inlined_call_operand.vmem [shape: bf16[2,36,34,4], index: 0, kind: input, shape index: {}]
  %s1 = inlined_call_operand.vmem [shape: bf16[9,4,128], index: 1, kind: input, shape index: {}]
  %s2 = inlined_call_operand.vmem [shape: f32[1,128], index: 2, kind: input, shape index: {}]
  %s3 = inlined_call_operand.vmem [shape: f32[1,128], index: 3, kind: input, shape index: {}]
  %s4 = inlined_call_operand.vmem [shape: bf16[9,128,128], index: 4, kind: input, shape index: {}]
  %s5 = inlined_call_operand.vmem [shape: f32[1,128], index: 5, kind: input, shape index: {}]
  %s6 = inlined_call_operand.vmem [shape: f32[1,128], index: 6, kind: input, shape index: {}]
  %s7 = inlined_call_operand.vmem [shape: f32[2,32,32,128], index: 7, kind: output, shape index: {}]
  %s8 = sld [smem:[#allocation0]]
  $region69: #{up_forward.1} parent=0
    _
  %s10 = ssub.s32 1, %s8
  %s11 = scalar_select 0, %s10, %s8
  loop: start=0, step=1, limit=6
  $region2: #{up_forward.1} parent=0 // loop_pre_header
    _
  $region3: #{up_forward.1} parent=0 // loop_header
    %s13 = sphi 0, %s17
    %p14 = scmp.ge.s32.totalorder %s13, 6
    %s20 = sphi 0, %s32
    %s21 = sphi 0, %s28
    %s22 = sphi 0, %s20
    %s23 = sphi 0, %s21
    %s24 = sphi 0, %s22
    %s25 = sphi 0, %s23
    %s35 = sphi 0, %s37
    %s38 = sphi 0, %s35
    %s39 = sphi 0, %s38
    %s55 = sphi 0, %s39
    %s59 = sphi 0, %s59
    %s61 = sphi 0, %s59
    %s62 = sphi 0, %s61
    %s76 = sphi 0, %s62
    %s80 = sphi 0, %s80
    %s82 = sphi 0, %s80
    %s83 = sphi 0, %s82
    %s97 = sphi 0, %s83
    %s101 = sphi 0, %s101
    %s103 = sphi 0, %s101
    %s104 = sphi 0, %s103
    %s118 = sphi 0, %s104
    %s122 = sphi 0, %s122
    %s124 = sphi 0, %s122
    %s125 = sphi 0, %s124
    %s139 = sphi 0, %s125
    %s143 = sphi 0, %s143
    %s145 = sphi 0, %s143
    %s146 = sphi 0, %s145
    %s160 = sphi 0, %s146
    %s164 = sphi 0, %s164
    %s166 = sphi 0, %s164
    %s167 = sphi 0, %s166
    %s181 = sphi 0, %s167
    %s189 = sphi 0, %s191
    %s192 = sphi 0, %s189
    %s193 = sphi 0, %s192
    %s209 = sphi 0, %s193
  $region4: #{up_forward.1} parent=0 // loop_header_branch
    %16 = sbr.rel (%p14) target = $region8
  $region5: #{up_forward.1} parent=0 // loop_body
    %s18 = ssub.s32 %s13, 1
    %s19 = ssub.s32 %s13, 2
    %s26 = sadd.s32 1, %s21
    %p27 = scmp.ge.s32.totalorder %s26, 2
    %s28 = scalar_select %p27, 0, %s26
    %s29 = sadd.s32 1, %s20
    %s30 = scalar_select %p27, %s29, %s20
    %p31 = scmp.ge.s32.totalorder %s30, 2
    %s32 = scalar_select %p31, 0, %s30
    %s33 = ssub.s32 %s20, %s32
    %p34 = scmp.eq.s32.totalorder %s33, 0
    %s36 = sadd.s32 %s35, 1
    %s37 = scalar_select %p34, %s35, %s36
    %p40 = pneg %p34
    %p41 = scmp.eq.s32.totalorder %s13, 3
    %p42 = por %p40, %p41
    %p43 = scmp.ne.s32.totalorder %s35, %s38
    %p44 = scmp.eq.s32.totalorder %s13, 0
    %p45 = por %p43, %p44
    %p46 = scmp.ne.s32.totalorder %s35, %s38
    %p47 = scmp.eq.s32.totalorder %s18, 3
    %p48 = por %p46, %p47
    %p49 = scmp.ne.s32.totalorder %s38, %s39
    %p50 = scmp.eq.s32.totalorder %s18, 0
    %p51 = por %p49, %p50
    %p52 = scmp.ne.s32.totalorder %s38, %s39
    %p53 = scmp.eq.s32.totalorder %s19, 3
    %p54 = por %p52, %p53
    %p56 = scmp.ne.s32.totalorder %s39, %s55
    %p57 = scmp.eq.s32.totalorder %s19, 0
    %p58 = por %p56, %p57
    %s60 = sadd.s32 %s59, 1
    %p63 = scmp.eq.s32.totalorder %s13, 3
    %p64 = scmp.ne.s32.totalorder %s59, %s61
    %p65 = scmp.eq.s32.totalorder %s13, 0
    %p66 = por %p64, %p65
    %p67 = scmp.ne.s32.totalorder %s59, %s61
    %p68 = scmp.eq.s32.totalorder %s18, 3
    %p69 = por %p67, %p68
    %p70 = scmp.ne.s32.totalorder %s61, %s62
    %p71 = scmp.eq.s32.totalorder %s18, 0
    %p72 = por %p70, %p71
    %p73 = scmp.ne.s32.totalorder %s61, %s62
    %p74 = scmp.eq.s32.totalorder %s19, 3
    %p75 = por %p73, %p74
    %p77 = scmp.ne.s32.totalorder %s62, %s76
    %p78 = scmp.eq.s32.totalorder %s19, 0
    %p79 = por %p77, %p78
    %s81 = sadd.s32 %s80, 1
    %p84 = scmp.eq.s32.totalorder %s13, 3
    %p85 = scmp.ne.s32.totalorder %s80, %s82
    %p86 = scmp.eq.s32.totalorder %s13, 0
    %p87 = por %p85, %p86
    %p88 = scmp.ne.s32.totalorder %s80, %s82
    %p89 = scmp.eq.s32.totalorder %s18, 3
    %p90 = por %p88, %p89
    %p91 = scmp.ne.s32.totalorder %s82, %s83
    %p92 = scmp.eq.s32.totalorder %s18, 0
    %p93 = por %p91, %p92
    %p94 = scmp.ne.s32.totalorder %s82, %s83
    %p95 = scmp.eq.s32.totalorder %s19, 3
    %p96 = por %p94, %p95
    %p98 = scmp.ne.s32.totalorder %s83, %s97
    %p99 = scmp.eq.s32.totalorder %s19, 0
    %p100 = por %p98, %p99
    %s102 = sadd.s32 %s101, 1
    %p105 = scmp.eq.s32.totalorder %s13, 3
    %p106 = scmp.ne.s32.totalorder %s101, %s103
    %p107 = scmp.eq.s32.totalorder %s13, 0
    %p108 = por %p106, %p107
    %p109 = scmp.ne.s32.totalorder %s101, %s103
    %p110 = scmp.eq.s32.totalorder %s18, 3
    %p111 = por %p109, %p110
    %p112 = scmp.ne.s32.totalorder %s103, %s104
    %p113 = scmp.eq.s32.totalorder %s18, 0
    %p114 = por %p112, %p113
    %p115 = scmp.ne.s32.totalorder %s103, %s104
    %p116 = scmp.eq.s32.totalorder %s19, 3
    %p117 = por %p115, %p116
    %p119 = scmp.ne.s32.totalorder %s104, %s118
    %p120 = scmp.eq.s32.totalorder %s19, 0
    %p121 = por %p119, %p120
    %s123 = sadd.s32 %s122, 1
    %p126 = scmp.eq.s32.totalorder %s13, 3
    %p127 = scmp.ne.s32.totalorder %s122, %s124
    %p128 = scmp.eq.s32.totalorder %s13, 0
    %p129 = por %p127, %p128
    %p130 = scmp.ne.s32.totalorder %s122, %s124
    %p131 = scmp.eq.s32.totalorder %s18, 3
    %p132 = por %p130, %p131
    %p133 = scmp.ne.s32.totalorder %s124, %s125
    %p134 = scmp.eq.s32.totalorder %s18, 0
    %p135 = por %p133, %p134
    %p136 = scmp.ne.s32.totalorder %s124, %s125
    %p137 = scmp.eq.s32.totalorder %s19, 3
    %p138 = por %p136, %p137
    %p140 = scmp.ne.s32.totalorder %s125, %s139
    %p141 = scmp.eq.s32.totalorder %s19, 0
    %p142 = por %p140, %p141
    %s144 = sadd.s32 %s143, 1
    %p147 = scmp.eq.s32.totalorder %s13, 3
    %p148 = scmp.ne.s32.totalorder %s143, %s145
    %p149 = scmp.eq.s32.totalorder %s13, 0
    %p150 = por %p148, %p149
    %p151 = scmp.ne.s32.totalorder %s143, %s145
    %p152 = scmp.eq.s32.totalorder %s18, 3
    %p153 = por %p151, %p152
    %p154 = scmp.ne.s32.totalorder %s145, %s146
    %p155 = scmp.eq.s32.totalorder %s18, 0
    %p156 = por %p154, %p155
    %p157 = scmp.ne.s32.totalorder %s145, %s146
    %p158 = scmp.eq.s32.totalorder %s19, 3
    %p159 = por %p157, %p158
    %p161 = scmp.ne.s32.totalorder %s146, %s160
    %p162 = scmp.eq.s32.totalorder %s19, 0
    %p163 = por %p161, %p162
    %s165 = sadd.s32 %s164, 1
    %p168 = scmp.eq.s32.totalorder %s13, 3
    %p169 = scmp.ne.s32.totalorder %s164, %s166
    %p170 = scmp.eq.s32.totalorder %s13, 0
    %p171 = por %p169, %p170
    %p172 = scmp.ne.s32.totalorder %s164, %s166
    %p173 = scmp.eq.s32.totalorder %s18, 3
    %p174 = por %p172, %p173
    %p175 = scmp.ne.s32.totalorder %s166, %s167
    %p176 = scmp.eq.s32.totalorder %s18, 0
    %p177 = por %p175, %p176
    %p178 = scmp.ne.s32.totalorder %s166, %s167
    %p179 = scmp.eq.s32.totalorder %s19, 3
    %p180 = por %p178, %p179
    %p182 = scmp.ne.s32.totalorder %s167, %s181
    %p183 = scmp.eq.s32.totalorder %s19, 0
    %p184 = por %p182, %p183
    %s185 = ssub.s32 %s20, %s32
    %s186 = ssub.s32 %s21, %s28
    %s187 = sor.u32 %s185, %s186
    %p188 = scmp.eq.s32.totalorder %s187, 0
    %s190 = sadd.s32 %s189, 1
    %s191 = scalar_select %p188, %s189, %s190
    %p194 = pneg %p188
    %p195 = scmp.eq.s32.totalorder %s13, 3
    %p196 = por %p194, %p195
    %p197 = scmp.ne.s32.totalorder %s189, %s192
    %p198 = scmp.eq.s32.totalorder %s13, 0
    %p199 = por %p197, %p198
    %p200 = scmp.ne.s32.totalorder %s189, %s192
    %p201 = scmp.eq.s32.totalorder %s18, 3
    %p202 = por %p200, %p201
    %p203 = scmp.ne.s32.totalorder %s192, %s193
    %p204 = scmp.eq.s32.totalorder %s18, 0
    %p205 = por %p203, %p204
    %p206 = scmp.ne.s32.totalorder %s192, %s193
    %p207 = scmp.eq.s32.totalorder %s19, 3
    %p208 = por %p206, %p207
    %p210 = scmp.ne.s32.totalorder %s193, %s209
    %p211 = scmp.eq.s32.totalorder %s19, 0
    %p212 = por %p210, %p211
    %p213 = scmp.le.s32.totalorder 1, %s13
    %p214 = scmp.lt.s32.totalorder %s13, 5
    %p215 = pnand %p213, %p214
    %p216 = pneg %p215
    // Predicated region
    $region9: #{up_forward.1} parent=5 // pred_check
      _
    $region10: #{up_forward.1} parent=5 // pred_check_branch
      %218 = sbr.rel (%p215) target = $region12
    $region11: #{up_forward.1} parent=5 // pred_region
      %s219 = ssub.s32 %s13, 1
      // Predicated region
      $region13: #{up_forward.1} parent=11 // pred_check
        %p220 = pneg %p72
      $region14: #{up_forward.1} parent=11 // pred_check_branch
        %222 = sbr.rel (%p220) target = $region16
      $region15: #{up_forward.1} parent=11 // pred_region
        _
      $region16: #{up_forward.1} parent=11 // pred_fallthru
        _
      // Predicated region
      $region17: #{up_forward.1} parent=11 // pred_check
        %p223 = pneg %p93
      $region18: #{up_forward.1} parent=11 // pred_check_branch
        %225 = sbr.rel (%p223) target = $region20
      $region19: #{up_forward.1} parent=11 // pred_region
        _
      $region20: #{up_forward.1} parent=11 // pred_fallthru
        _
      // Predicated region
      $region21: #{up_forward.1} parent=11 // pred_check
        %p226 = pneg %p114
      $region22: #{up_forward.1} parent=11 // pred_check_branch
        %228 = sbr.rel (%p226) target = $region24
      $region23: #{up_forward.1} parent=11 // pred_region
        _
      $region24: #{up_forward.1} parent=11 // pred_fallthru
        _
      // Predicated region
      $region25: #{up_forward.1} parent=11 // pred_check
        %p229 = pneg %p135
      $region26: #{up_forward.1} parent=11 // pred_check_branch
        %231 = sbr.rel (%p229) target = $region28
      $region27: #{up_forward.1} parent=11 // pred_region
        _
      $region28: #{up_forward.1} parent=11 // pred_fallthru
        _
      // Predicated region
      $region29: #{up_forward.1} parent=11 // pred_check
        %p232 = pneg %p156
      $region30: #{up_forward.1} parent=11 // pred_check_branch
        %234 = sbr.rel (%p232) target = $region32
      $region31: #{up_forward.1} parent=11 // pred_region
        _
      $region32: #{up_forward.1} parent=11 // pred_fallthru
        _
      // Predicated region
      $region33: #{up_forward.1} parent=11 // pred_check
        %p235 = pneg %p177
      $region34: #{up_forward.1} parent=11 // pred_check_branch
        %237 = sbr.rel (%p235) target = $region36
      $region35: #{up_forward.1} parent=11 // pred_region
        _
      $region36: #{up_forward.1} parent=11 // pred_fallthru
        _
    $region12: #{up_forward.1} parent=5 // pred_fallthru
      _
    %p238 = scmp.lt.s32.totalorder %s13, 4
    // Predicated region
    $region37: #{up_forward.1} parent=5 // pred_check
      %p239 = pneg %p238
    $region38: #{up_forward.1} parent=5 // pred_check_branch
      %241 = sbr.rel (%p239) target = $region40
    $region39: #{up_forward.1} parent=5 // pred_region
      // Predicated region
      $region41: #{up_forward.1} parent=39 // pred_check
        %p242 = pneg %p45
      $region42: #{up_forward.1} parent=39 // pred_check_branch
        %244 = sbr.rel (%p242) target = $region44
      $region43: #{up_forward.1} parent=39 // pred_region
        %p245 = scmp.lt.s32.totalorder %s20, 1
        %s246 = scalar_select %p245, %s20, 1
        %s247 = smul.addr %s246, 180
        %s248 = smul.addr %s247, 4
        %s249 = scalar_lea.vmem %s0, %s248
      $region44: #{up_forward.1} parent=39 // pred_fallthru
        _
    $region40: #{up_forward.1} parent=5 // pred_fallthru
      _
    %p250 = scmp.le.s32.totalorder 1, %s13
    %p251 = scmp.lt.s32.totalorder %s13, 5
    %p252 = pnand %p250, %p251
    %p253 = pneg %p252
    // Predicated region
    $region45: #{up_forward.1} parent=5 // pred_check
      _
    $region46: #{up_forward.1} parent=5 // pred_check_branch
      %255 = sbr.rel (%p252) target = $region48
    $region47: #{up_forward.1} parent=5 // pred_region
      %s256 = ssub.s32 %s13, 1
      %p257 = scmp.lt.s32.totalorder %s22, 1
      %s258 = scalar_select %p257, %s22, 1
      %s259 = smul.addr %s258, 180
      %s260 = smul.addr %s259, 4
      %s261 = scalar_lea.vmem %s0, %s260
      %p262 = pneg %p51
      %p263 = pneg %p48
      %p264 = pneg %p72
      %p265 = pneg %p69
      %p266 = pneg %p93
      %p267 = pneg %p90
      %p268 = pneg %p114
      %p269 = pneg %p111
      %p270 = pneg %p135
      %p271 = pneg %p132
      %p272 = pneg %p156
      %p273 = pneg %p153
      %p274 = pneg %p177
      %p275 = pneg %p174
      %p276 = pneg %p205
      %p277 = pneg %p202
      %s278 = smul.u32 16, %s23
      %p279 = scmp.lt.s32.totalorder %s22, 1
      %s280 = scalar_select %p279, %s22, 1
      %p281 = scmp.lt.s32.totalorder %s278, 31
      %s282 = scalar_select %p281, %s278, 31
      %s283 = smul.addr %s282, 4
      %s284 = smul.addr %s280, 128
      %s285 = sadd.s32 %s283, %s284
      %s286 = smul.addr %s285, 8
      %s287 = scalar_lea.vmem %s7, %s286
      %p288 = scmp.lt.s32.totalorder %s22, 1
      %s289 = scalar_select %p288, %s22, 1
      %s290 = smul.addr %s289, 180
      %s291 = smul.addr %s290, 4
      %s292 = scalar_lea.vmem %s0, %s291
      %s293 = smul.u32 16, %s23
      %p294 = scmp.lt.s32.totalorder %s22, 1
      %s295 = scalar_select %p294, %s22, 1
      %p296 = scmp.lt.s32.totalorder %s293, 31
      %s297 = scalar_select %p296, %s293, 31
      %s298 = smul.addr %s297, 4
      %s299 = smul.addr %s295, 128
      %s300 = sadd.s32 %s298, %s299
      %s301 = smul.addr %s300, 8
      %s302 = scalar_lea.vmem %s7, %s301
      %s303 = smul.u32 16, %s23
      %s305 = smul.u32 %s23, 16
      %s306 = smul.u32 %s305, 5
      %s307 = smul.addr %s306, 4
      %s308 = scalar_lea.vmem %s292, %s307
      %v309 = vld [vmem:[%s308] sm:$0xf]
      %v310 = vld [vmem:[%s308 + $0x4] sm:$0xf]
      %v311 = vld [vmem:[%s308 + $0x8] sm:$0xf]
      %v312 = vld [vmem:[%s308 + $0xc] sm:$0xf]
      %v313 = vld [vmem:[%s308 + $0x10] sm:$0x1]
      %v314 = vld [vmem:[%s308 + $0x14] sm:$0xf]
      %v315 = vld [vmem:[%s308 + $0x18] sm:$0xf]
      %v316 = vld [vmem:[%s308 + $0x1c] sm:$0xf]
      %v317 = vld [vmem:[%s308 + $0x20] sm:$0xf]
      %v318 = vld [vmem:[%s308 + $0x24] sm:$0x1]
      %v319 = vld [vmem:[%s308 + $0x28] sm:$0xf]
      %v320 = vld [vmem:[%s308 + $0x2c] sm:$0xf]
      %v321 = vld [vmem:[%s308 + $0x30] sm:$0xf]
      %v322 = vld [vmem:[%s308 + $0x34] sm:$0xf]
      %v323 = vld [vmem:[%s308 + $0x38] sm:$0x1]
      %v324 = vld [vmem:[%s308 + $0x3c] sm:$0xf]
      %v325 = vld [vmem:[%s308 + $0x40] sm:$0xf]
      %v326 = vld [vmem:[%s308 + $0x44] sm:$0xf]
      %v327 = vld [vmem:[%s308 + $0x48] sm:$0xf]
      %v328 = vld [vmem:[%s308 + $0x4c] sm:$0x1]
      %v329 = vld [vmem:[%s308 + $0x50] sm:$0xf]
      %v330 = vld [vmem:[%s308 + $0x54] sm:$0xf]
      %v331 = vld [vmem:[%s308 + $0x58] sm:$0xf]
      %v332 = vld [vmem:[%s308 + $0x5c] sm:$0xf]
      %v333 = vld [vmem:[%s308 + $0x60] sm:$0x1]
      %v334 = vld [vmem:[%s308 + $0x64] sm:$0xf]
      %v335 = vld [vmem:[%s308 + $0x68] sm:$0xf]
      %v336 = vld [vmem:[%s308 + $0x6c] sm:$0xf]
      %v337 = vld [vmem:[%s308 + $0x70] sm:$0xf]
      %v338 = vld [vmem:[%s308 + $0x74] sm:$0x1]
      %v339 = vld [vmem:[%s308 + $0x78] sm:$0xf]
      %v340 = vld [vmem:[%s308 + $0x7c] sm:$0xf]
      %v341 = vld [vmem:[%s308 + $0x80] sm:$0xf]
      %v342 = vld [vmem:[%s308 + $0x84] sm:$0xf]
      %v343 = vld [vmem:[%s308 + $0x88] sm:$0x1]
      %v344 = vld [vmem:[%s308 + $0x8c] sm:$0xf]
      %v345 = vld [vmem:[%s308 + $0x90] sm:$0xf]
      %v346 = vld [vmem:[%s308 + $0x94] sm:$0xf]
      %v347 = vld [vmem:[%s308 + $0x98] sm:$0xf]
      %v348 = vld [vmem:[%s308 + $0x9c] sm:$0x1]
      %v349 = vld [vmem:[%s308 + $0xa0] sm:$0xf]
      %v350 = vld [vmem:[%s308 + $0xa4] sm:$0xf]
      %v351 = vld [vmem:[%s308 + $0xa8] sm:$0xf]
      %v352 = vld [vmem:[%s308 + $0xac] sm:$0xf]
      %v353 = vld [vmem:[%s308 + $0xb0] sm:$0x1]
      %v354 = vld [vmem:[%s308 + $0xb4] sm:$0xf]
      %v355 = vld [vmem:[%s308 + $0xb8] sm:$0xf]
      %v356 = vld [vmem:[%s308 + $0xbc] sm:$0xf]
      %v357 = vld [vmem:[%s308 + $0xc0] sm:$0xf]
      %v358 = vld [vmem:[%s308 + $0xc4] sm:$0x1]
      %v359 = vld [vmem:[%s308 + $0xc8] sm:$0xf]
      %v360 = vld [vmem:[%s308 + $0xcc] sm:$0xf]
      %v361 = vld [vmem:[%s308 + $0xd0] sm:$0xf]
      %v362 = vld [vmem:[%s308 + $0xd4] sm:$0xf]
      %v363 = vld [vmem:[%s308 + $0xd8] sm:$0x1]
      %v364 = vld [vmem:[%s308 + $0xdc] sm:$0xf]
      %v365 = vld [vmem:[%s308 + $0xe0] sm:$0xf]
      %v366 = vld [vmem:[%s308 + $0xe4] sm:$0xf]
      %v367 = vld [vmem:[%s308 + $0xe8] sm:$0xf]
      %v368 = vld [vmem:[%s308 + $0xec] sm:$0x1]
      %v369 = vld [vmem:[%s308 + $0xf0] sm:$0xf]
      %v370 = vld [vmem:[%s308 + $0xf4] sm:$0xf]
      %v371 = vld [vmem:[%s308 + $0xf8] sm:$0xf]
      %v372 = vld [vmem:[%s308 + $0xfc] sm:$0xf]
      %v373 = vld [vmem:[%s308 + $0x100] sm:$0x1]
      %v374 = vld [vmem:[%s308 + $0x104] sm:$0xf]
      %v375 = vld [vmem:[%s308 + $0x108] sm:$0xf]
      %v376 = vld [vmem:[%s308 + $0x10c] sm:$0xf]
      %v377 = vld [vmem:[%s308 + $0x110] sm:$0xf]
      %v378 = vld [vmem:[%s308 + $0x114] sm:$0x1]
      %v379 = vld [vmem:[%s308 + $0x118] sm:$0xf]
      %v380 = vld [vmem:[%s308 + $0x11c] sm:$0xf]
      %v381 = vld [vmem:[%s308 + $0x120] sm:$0xf]
      %v382 = vld [vmem:[%s308 + $0x124] sm:$0xf]
      %v383 = vld [vmem:[%s308 + $0x128] sm:$0x1]
      %v384 = vld [vmem:[%s308 + $0x12c] sm:$0xf]
      %v385 = vld [vmem:[%s308 + $0x130] sm:$0xf]
      %v386 = vld [vmem:[%s308 + $0x134] sm:$0xf]
      %v387 = vld [vmem:[%s308 + $0x138] sm:$0xf]
      %v388 = vld [vmem:[%s308 + $0x13c] sm:$0x1]
      %v389 = vld [vmem:[%s308 + $0x140] sm:$0xf]
      %v390 = vld [vmem:[%s308 + $0x144] sm:$0xf]
      %v391 = vld [vmem:[%s308 + $0x148] sm:$0xf]
      %v392 = vld [vmem:[%s308 + $0x14c] sm:$0xf]
      %v393 = vld [vmem:[%s308 + $0x150] sm:$0x1]
      %v394 = vld [vmem:[%s308 + $0x154] sm:$0xf]
      %v395 = vld [vmem:[%s308 + $0x158] sm:$0xf]
      %v396 = vld [vmem:[%s308 + $0x15c] sm:$0xf]
      %v397 = vld [vmem:[%s308 + $0x160] sm:$0xf]
      %v398 = vld [vmem:[%s308 + $0x164] sm:$0x1]
      %v399 = vld [vmem:[%s308 + $0x168] sm:$0xf]
      %v400 = vld [vmem:[%s308 + $0x16c] sm:$0xf]
      %v401 = vld [vmem:[%s308 + $0x170] sm:$0xf]
      %v402 = vld [vmem:[%s308 + $0x174] sm:$0xf]
      %v403 = vld [vmem:[%s308 + $0x178] sm:$0x1]
      %v404 = vld [vmem:[%s308 + $0x17c] sm:$0xf]
      %v405 = vld [vmem:[%s308 + $0x180] sm:$0xf]
      %v406 = vld [vmem:[%s308 + $0x184] sm:$0xf]
      %v407 = vld [vmem:[%s308 + $0x188] sm:$0xf]
      %v408 = vld [vmem:[%s308 + $0x18c] sm:$0x1]
      %v409 = vld [vmem:[%s1] sm:$0x3]
      %s410 = scalar_lea.vmem %s1, 6
      %v411 = vld [vmem:[%s410] sm:$0x3]
      %v484 = vunpack.c.l.b16 %v314
      %v485 = vunpack.c.l.b16 %v315
      %v486 = vunpack.c.l.b16 %v316
      %v487 = vunpack.c.l.b16 %v317
      %v488 = vunpack.c.l.b16 %v319
      %v489 = vunpack.c.l.b16 %v320
      %v490 = vunpack.c.l.b16 %v321
      %v491 = vunpack.c.l.b16 %v322
      %v492 = vunpack.c.l.b16 %v324
      %v493 = vunpack.c.l.b16 %v325
      %v494 = vunpack.c.l.b16 %v326
      %v495 = vunpack.c.l.b16 %v327
      %v496 = vunpack.c.l.b16 %v329
      %v497 = vunpack.c.l.b16 %v330
      %v498 = vunpack.c.l.b16 %v331
      %v499 = vunpack.c.l.b16 %v332
      %v500 = vunpack.c.l.b16 %v334
      %v501 = vunpack.c.l.b16 %v335
      %v502 = vunpack.c.l.b16 %v336
      %v503 = vunpack.c.l.b16 %v337
      %v504 = vunpack.c.l.b16 %v339
      %v505 = vunpack.c.l.b16 %v340
      %v506 = vunpack.c.l.b16 %v341
      %v507 = vunpack.c.l.b16 %v342
      %v508 = vunpack.c.l.b16 %v344
      %v509 = vunpack.c.l.b16 %v345
      %v510 = vunpack.c.l.b16 %v346
      %v511 = vunpack.c.l.b16 %v347
      %v512 = vunpack.c.l.b16 %v349
      %v513 = vunpack.c.l.b16 %v350
      %v514 = vunpack.c.l.b16 %v351
      %v515 = vunpack.c.l.b16 %v352
      %v516 = vunpack.c.l.b16 %v354
      %v517 = vunpack.c.l.b16 %v355
      %v518 = vunpack.c.l.b16 %v356
      %v519 = vunpack.c.l.b16 %v357
      %v520 = vunpack.c.l.b16 %v359
      %v521 = vunpack.c.l.b16 %v360
      %v522 = vunpack.c.l.b16 %v361
      %v523 = vunpack.c.l.b16 %v362
      %v524 = vunpack.c.l.b16 %v364
      %v525 = vunpack.c.l.b16 %v365
      %v526 = vunpack.c.l.b16 %v366
      %v527 = vunpack.c.l.b16 %v367
      %v528 = vunpack.c.l.b16 %v369
      %v529 = vunpack.c.l.b16 %v370
      %v530 = vunpack.c.l.b16 %v371
      %v531 = vunpack.c.l.b16 %v372
      %v532 = vunpack.c.l.b16 %v374
      %v533 = vunpack.c.l.b16 %v375
      %v534 = vunpack.c.l.b16 %v376
      %v535 = vunpack.c.l.b16 %v377
      %v536 = vunpack.c.l.b16 %v379
      %v537 = vunpack.c.l.b16 %v380
      %v538 = vunpack.c.l.b16 %v381
      %v539 = vunpack.c.l.b16 %v382
      %v540 = vunpack.c.l.b16 %v384
      %v541 = vunpack.c.l.b16 %v385
      %v542 = vunpack.c.l.b16 %v386
      %v543 = vunpack.c.l.b16 %v387
      %v544 = vunpack.c.l.b16 %v389
      %v545 = vunpack.c.l.b16 %v390
      %v546 = vunpack.c.l.b16 %v391
      %v547 = vunpack.c.l.b16 %v392
      %v548 = vunpack.c.l.b16 %v394
      %v549 = vunpack.c.l.b16 %v395
      %v550 = vunpack.c.l.b16 %v396
      %v551 = vunpack.c.l.b16 %v397
      %v552 = vunpack.c.l.b16 %v399
      %v553 = vunpack.c.l.b16 %v400
      %v554 = vunpack.c.l.b16 %v401
      %v555 = vunpack.c.l.b16 %v402
      %v556 = vpack.c.b16 %v485, %v484
      %v557 = vpack.c.b16 %v487, %v486
      %v558 = vpack.c.b16 %v489, %v488
      %v559 = vpack.c.b16 %v491, %v490
      %v560 = vpack.c.b16 %v493, %v492
      %v561 = vpack.c.b16 %v495, %v494
      %v562 = vpack.c.b16 %v497, %v496
      %v563 = vpack.c.b16 %v499, %v498
      %v564 = vpack.c.b16 %v501, %v500
      %v565 = vpack.c.b16 %v503, %v502
      %v566 = vpack.c.b16 %v505, %v504
      %v567 = vpack.c.b16 %v507, %v506
      %v568 = vpack.c.b16 %v509, %v508
      %v569 = vpack.c.b16 %v511, %v510
      %v570 = vpack.c.b16 %v513, %v512
      %v571 = vpack.c.b16 %v515, %v514
      %v572 = vpack.c.b16 %v517, %v516
      %v573 = vpack.c.b16 %v519, %v518
      %v574 = vpack.c.b16 %v521, %v520
      %v575 = vpack.c.b16 %v523, %v522
      %v576 = vpack.c.b16 %v525, %v524
      %v577 = vpack.c.b16 %v527, %v526
      %v578 = vpack.c.b16 %v529, %v528
      %v579 = vpack.c.b16 %v531, %v530
      %v580 = vpack.c.b16 %v533, %v532
      %v581 = vpack.c.b16 %v535, %v534
      %v582 = vpack.c.b16 %v537, %v536
      %v583 = vpack.c.b16 %v539, %v538
      %v584 = vpack.c.b16 %v541, %v540
      %v585 = vpack.c.b16 %v543, %v542
      %v586 = vpack.c.b16 %v545, %v544
      %v587 = vpack.c.b16 %v547, %v546
      %v588 = vpack.c.b16 %v549, %v548
      %v589 = vpack.c.b16 %v551, %v550
      %v590 = vpack.c.b16 %v553, %v552
      %v591 = vpack.c.b16 %v555, %v554
      %vm592 = vcmask 31744
      %v594 = vsel %vm592, %v556, 0
      %v597 = vsel %vm592, %v557, 0
      %v600 = vsel %vm592, %v558, 0
      %v603 = vsel %vm592, %v559, 0
      %v606 = vsel %vm592, %v560, 0
      %v609 = vsel %vm592, %v561, 0
      %v612 = vsel %vm592, %v562, 0
      %v615 = vsel %vm592, %v563, 0
      %v618 = vsel %vm592, %v564, 0
      %v621 = vsel %vm592, %v565, 0
      %v624 = vsel %vm592, %v566, 0
      %v627 = vsel %vm592, %v567, 0
      %v630 = vsel %vm592, %v568, 0
      %v633 = vsel %vm592, %v569, 0
      %v636 = vsel %vm592, %v570, 0
      %v639 = vsel %vm592, %v571, 0
      %v642 = vsel %vm592, %v572, 0
      %v645 = vsel %vm592, %v573, 0
      %v648 = vsel %vm592, %v574, 0
      %v651 = vsel %vm592, %v575, 0
      %v654 = vsel %vm592, %v576, 0
      %v657 = vsel %vm592, %v577, 0
      %v660 = vsel %vm592, %v578, 0
      %v663 = vsel %vm592, %v579, 0
      %v666 = vsel %vm592, %v580, 0
      %v669 = vsel %vm592, %v581, 0
      %v672 = vsel %vm592, %v582, 0
      %v675 = vsel %vm592, %v583, 0
      %v678 = vsel %vm592, %v584, 0
      %v681 = vsel %vm592, %v585, 0
      %v684 = vsel %vm592, %v586, 0
      %v687 = vsel %vm592, %v587, 0
      %v690 = vsel %vm592, %v588, 0
      %v693 = vsel %vm592, %v589, 0
      %v696 = vsel %vm592, %v590, 0
      %v699 = vsel %vm592, %v591, 0
      %vm701 = vcmask 1041408
      %v703 = vsel %vm701, %v411, 0
      %705 = vmatprep.subr.bf16.mxu0 0
      %706 = vmatpush1.bf16.msra.mxu0 %v703
      %707 = vmatprep.subr.bf16.mxu0 0
      %708 = vmatpush1.bf16.msra.mxu0 0
      %709 = vmatprep.subr.bf16.mxu0 0
      %710 = vmatpush1.bf16.msra.mxu0 0
      %711 = vmatprep.subr.bf16.mxu0 0
      %712 = vmatpush1.bf16.msra.mxu0 0
      %713 = vmatprep.subr.bf16.mxu0 0
      %714 = vmatpush1.bf16.msra.mxu0 0
      %715 = vmatprep.subr.bf16.mxu0 0
      %716 = vmatpush1.bf16.msra.mxu0 0
      %717 = vmatprep.subr.bf16.mxu0 0
      %718 = vmatpush1.bf16.msra.mxu0 0
      %719 = vmatprep.subr.bf16.mxu0 0
      %720 = vmatpush1.bf16.msra.mxu0 0
      %721 = vmatprep.subr.bf16.mxu0 0
      %722 = vmatpush1.bf16.msra.mxu0 0
      %723 = vmatprep.subr.bf16.mxu0 0
      %724 = vmatpush1.bf16.msra.mxu0 0
      %725 = vmatprep.subr.bf16.mxu0 0
      %726 = vmatpush1.bf16.msra.mxu0 0
      %727 = vmatprep.subr.bf16.mxu0 0
      %728 = vmatpush1.bf16.msra.mxu0 0
      %729 = vmatprep.subr.bf16.mxu0 0
      %730 = vmatpush1.bf16.msra.mxu0 0
      %731 = vmatprep.subr.bf16.mxu0 0
      %732 = vmatpush1.bf16.msra.mxu0 0
      %733 = vmatprep.subr.bf16.mxu0 0
      %734 = vmatpush1.bf16.msra.mxu0 0
      %735 = vmatprep.subr.bf16.mxu0 0
      %736 = vmatpush1.bf16.msra.mxu0 0
      %737 = vmatprep.mubr.bf16.mxu0 0
      %738 = vmatmul.mubr.bf16.gmra.mrb[0].mxu0 %v594
      %v739 = vpop.f32.mrb[0].mxu0
      %v740 = vadd.f32 0.0, %v739
      %v741 = vpop.f32.mrb[0].mxu0
      %v742 = vpop.f32.mrb[0].mxu0
      %v743 = vadd.f32 0.0, %v742
      %v744 = vpop.f32.mrb[0].mxu0
      %745 = vmatprep.mubr.bf16.mxu0 0
      %746 = vmatmul.mubr.bf16.gmra.mrb[0].mxu0 %v597
      %v747 = vpop.f32.mrb[0].mxu0
      %v748 = vadd.f32 0.0, %v747
      %v749 = vpop.f32.mrb[0].mxu0
      %v750 = vpop.f32.mrb[0].mxu0
      %v751 = vadd.f32 0.0, %v750
      %v752 = vpop.f32.mrb[0].mxu0
      %753 = vmatprep.mubr.bf16.mxu0 0
      %754 = vmatmul.mubr.bf16.gmra.mrb[0].mxu0 %v600
      %v755 = vpop.f32.mrb[0].mxu0
      %v756 = vadd.f32 0.0, %v755
      %v757 = vpop.f32.mrb[0].mxu0
      %v758 = vpop.f32.mrb[0].mxu0
      %v759 = vadd.f32 0.0, %v758
      %v760 = vpop.f32.mrb[0].mxu0
      %761 = vmatprep.mubr.bf16.mxu0 0
      %762 = vmatmul.mubr.bf16.gmra.mrb[0].mxu0 %v603
      %v763 = vpop.f32.mrb[0].mxu0
      %v764 = vadd.f32 0.0, %v763
      %v765 = vpop.f32.mrb[0].mxu0
      %v766 = vpop.f32.mrb[0].mxu0
      %v767 = vadd.f32 0.0, %v766
      %v768 = vpop.f32.mrb[0].mxu0
      %769 = vmatprep.mubr.bf16.mxu0 0
      %770 = vmatmul.mubr.bf16.gmra.mrb[0].mxu0 %v606
      %v771 = vpop.f32.mrb[0].mxu0
      %v772 = vadd.f32 0.0, %v771
      %v773 = vpop.f32.mrb[0].mxu0
      %v774 = vpop.f32.mrb[0].mxu0
      %v775 = vadd.f32 0.0, %v774
      %v776 = vpop.f32.mrb[0].mxu0
      %777 = vmatprep.mubr.bf16.mxu0 0
      %778 = vmatmul.mubr.bf16.gmra.mrb[0].mxu0 %v609
      %v779 = vpop.f32.mrb[0].mxu0
      %v780 = vadd.f32 0.0, %v779
      %v781 = vpop.f32.mrb[0].mxu0
      %v782 = vpop.f32.mrb[0].mxu0
      %v783 = vadd.f32 0.0, %v782
      %v784 = vpop.f32.mrb[0].mxu0
      %785 = vmatprep.mubr.bf16.mxu0 0
      %786 = vmatmul.mubr.bf16.gmra.mrb[0].mxu0 %v612
      %v787 = vpop.f32.mrb[0].mxu0
      %v788 = vadd.f32 0.0, %v787
      %v789 = vpop.f32.mrb[0].mxu0
      %v790 = vpop.f32.mrb[0].mxu0
      %v791 = vadd.f32 0.0, %v790
      %v792 = vpop.f32.mrb[0].mxu0
      %793 = vmatprep.mubr.bf16.mxu0 0
      %794 = vmatmul.mubr.bf16.gmra.mrb[0].mxu0 %v615
      %v795 = vpop.f32.mrb[0].mxu0
      %v796 = vadd.f32 0.0, %v795
      %v797 = vpop.f32.mrb[0].mxu0
      %v798 = vpop.f32.mrb[0].mxu0
      %v799 = vadd.f32 0.0, %v798
      %v800 = vpop.f32.mrb[0].mxu0
      %801 = vmatprep.mubr.bf16.mxu0 0
      %802 = vmatmul.mubr.bf16.gmra.mrb[0].mxu0 %v618
      %v803 = vpop.f32.mrb[0].mxu0
      %v804 = vadd.f32 0.0, %v803
      %v805 = vpop.f32.mrb[0].mxu0
      %v806 = vpop.f32.mrb[0].mxu0
      %v807 = vadd.f32 0.0, %v806
      %v808 = vpop.f32.mrb[0].mxu0
      %809 = vmatprep.mubr.bf16.mxu0 0
      %810 = vmatmul.mubr.bf16.gmra.mrb[0].mxu0 %v621
      %v811 = vpop.f32.mrb[0].mxu0
      %v812 = vadd.f32 0.0, %v811
      %v813 = vpop.f32.mrb[0].mxu0
      %v814 = vpop.f32.mrb[0].mxu0
      %v815 = vadd.f32 0.0, %v814
      %v816 = vpop.f32.mrb[0].mxu0
      %817 = vmatprep.mubr.bf16.mxu0 0
      %818 = vmatmul.mubr.bf16.gmra.mrb[0].mxu0 %v624
      %v819 = vpop.f32.mrb[0].mxu0
      %v820 = vadd.f32 0.0, %v819
      %v821 = vpop.f32.mrb[0].mxu0
      %v822 = vpop.f32.mrb[0].mxu0
      %v823 = vadd.f32 0.0, %v822
      %v824 = vpop.f32.mrb[0].mxu0
      %825 = vmatprep.mubr.bf16.mxu0 0
      %826 = vmatmul.mubr.bf16.gmra.mrb[0].mxu0 %v627
      %v827 = vpop.f32.mrb[0].mxu0
      %v828 = vadd.f32 0.0, %v827
      %v829 = vpop.f32.mrb[0].mxu0
      %v830 = vpop.f32.mrb[0].mxu0
      %v831 = vadd.f32 0.0, %v830
      %v832 = vpop.f32.mrb[0].mxu0
      %833 = vmatprep.mubr.bf16.mxu0 0
      %834 = vmatmul.mubr.bf16.gmra.mrb[0].mxu0 %v630
      %v835 = vpop.f32.mrb[0].mxu0
      %v836 = vadd.f32 0.0, %v835
      %v837 = vpop.f32.mrb[0].mxu0
      %v838 = vpop.f32.mrb[0].mxu0
      %v839 = vadd.f32 0.0, %v838
      %v840 = vpop.f32.mrb[0].mxu0
      %841 = vmatprep.mubr.bf16.mxu0 0
      %842 = vmatmul.mubr.bf16.gmra.mrb[0].mxu0 %v633
      %v843 = vpop.f32.mrb[0].mxu0
      %v844 = vadd.f32 0.0, %v843
      %v845 = vpop.f32.mrb[0].mxu0
      %v846 = vpop.f32.mrb[0].mxu0
      %v847 = vadd.f32 0.0, %v846
      %v848 = vpop.f32.mrb[0].mxu0
      %849 = vmatprep.mubr.bf16.mxu0 0
      %850 = vmatmul.mubr.bf16.gmra.mrb[0].mxu0 %v636
      %v851 = vpop.f32.mrb[0].mxu0
      %v852 = vadd.f32 0.0, %v851
      %v853 = vpop.f32.mrb[0].mxu0
      %v854 = vpop.f32.mrb[0].mxu0
      %v855 = vadd.f32 0.0, %v854
      %v856 = vpop.f32.mrb[0].mxu0
      %857 = vmatprep.mubr.bf16.mxu0 0
      %858 = vmatmul.mubr.bf16.gmra.mrb[0].mxu0 %v639
      %v859 = vpop.f32.mrb[0].mxu0
      %v860 = vadd.f32 0.0, %v859
      %v861 = vpop.f32.mrb[0].mxu0
      %v862 = vpop.f32.mrb[0].mxu0
      %v863 = vadd.f32 0.0, %v862
      %v864 = vpop.f32.mrb[0].mxu0
      %865 = vmatprep.mubr.bf16.mxu0 0
      %866 = vmatmul.mubr.bf16.gmra.mrb[0].mxu0 %v642
      %v867 = vpop.f32.mrb[0].mxu0
      %v868 = vadd.f32 0.0, %v867
      %v869 = vpop.f32.mrb[0].mxu0
      %v870 = vpop.f32.mrb[0].mxu0
      %v871 = vadd.f32 0.0, %v870
      %v872 = vpop.f32.mrb[0].mxu0
      %873 = vmatprep.mubr.bf16.mxu0 0
      %874 = vmatmul.mubr.bf16.gmra.mrb[0].mxu0 %v645
      %v875 = vpop.f32.mrb[0].mxu0
      %v876 = vadd.f32 0.0, %v875
      %v877 = vpop.f32.mrb[0].mxu0
      %v878 = vpop.f32.mrb[0].mxu0
      %v879 = vadd.f32 0.0, %v878
      %v880 = vpop.f32.mrb[0].mxu0
      %881 = vmatprep.mubr.bf16.mxu0 0
      %882 = vmatmul.mubr.bf16.gmra.mrb[0].mxu0 %v648
      %v883 = vpop.f32.mrb[0].mxu0
      %v884 = vadd.f32 0.0, %v883
      %v885 = vpop.f32.mrb[0].mxu0
      %v886 = vpop.f32.mrb[0].mxu0
      %v887 = vadd.f32 0.0, %v886
      %v888 = vpop.f32.mrb[0].mxu0
      %889 = vmatprep.mubr.bf16.mxu0 0
      %890 = vmatmul.mubr.bf16.gmra.mrb[0].mxu0 %v651
      %v891 = vpop.f32.mrb[0].mxu0
      %v892 = vadd.f32 0.0, %v891
      %v893 = vpop.f32.mrb[0].mxu0
      %v894 = vpop.f32.mrb[0].mxu0
      %v895 = vadd.f32 0.0, %v894
      %v896 = vpop.f32.mrb[0].mxu0
      %897 = vmatprep.mubr.bf16.mxu0 0
      %898 = vmatmul.mubr.bf16.gmra.mrb[0].mxu0 %v654
      %v899 = vpop.f32.mrb[0].mxu0
      %v900 = vadd.f32 0.0, %v899
      %v901 = vpop.f32.mrb[0].mxu0
      %v902 = vpop.f32.mrb[0].mxu0
      %v903 = vadd.f32 0.0, %v902
      %v904 = vpop.f32.mrb[0].mxu0
      %905 = vmatprep.mubr.bf16.mxu0 0
      %906 = vmatmul.mubr.bf16.gmra.mrb[0].mxu0 %v657
      %v907 = vpop.f32.mrb[0].mxu0
      %v908 = vadd.f32 0.0, %v907
      %v909 = vpop.f32.mrb[0].mxu0
      %v910 = vpop.f32.mrb[0].mxu0
      %v911 = vadd.f32 0.0, %v910
      %v912 = vpop.f32.mrb[0].mxu0
      %913 = vmatprep.mubr.bf16.mxu0 0
      %914 = vmatmul.mubr.bf16.gmra.mrb[0].mxu0 %v660
      %v915 = vpop.f32.mrb[0].mxu0
      %v916 = vadd.f32 0.0, %v915
      %v917 = vpop.f32.mrb[0].mxu0
      %v918 = vpop.f32.mrb[0].mxu0
      %v919 = vadd.f32 0.0, %v918
      %v920 = vpop.f32.mrb[0].mxu0
      %921 = vmatprep.mubr.bf16.mxu0 0
      %922 = vmatmul.mubr.bf16.gmra.mrb[0].mxu0 %v663
      %v923 = vpop.f32.mrb[0].mxu0
      %v924 = vadd.f32 0.0, %v923
      %v925 = vpop.f32.mrb[0].mxu0
      %v926 = vpop.f32.mrb[0].mxu0
      %v927 = vadd.f32 0.0, %v926
      %v928 = vpop.f32.mrb[0].mxu0
      %929 = vmatprep.mubr.bf16.mxu0 0
      %930 = vmatmul.mubr.bf16.gmra.mrb[0].mxu0 %v666
      %v931 = vpop.f32.mrb[0].mxu0
      %v932 = vadd.f32 0.0, %v931
      %v933 = vpop.f32.mrb[0].mxu0
      %v934 = vpop.f32.mrb[0].mxu0
      %v935 = vadd.f32 0.0, %v934
      %v936 = vpop.f32.mrb[0].mxu0
      %937 = vmatprep.mubr.bf16.mxu0 0
      %938 = vmatmul.mubr.bf16.gmra.mrb[0].mxu0 %v669
      %v939 = vpop.f32.mrb[0].mxu0
      %v940 = vadd.f32 0.0, %v939
      %v941 = vpop.f32.mrb[0].mxu0
      %v942 = vpop.f32.mrb[0].mxu0
      %v943 = vadd.f32 0.0, %v942
      %v944 = vpop.f32.mrb[0].mxu0
      %945 = vmatprep.mubr.bf16.mxu0 0
      %946 = vmatmul.mubr.bf16.gmra.mrb[0].mxu0 %v672
      %v947 = vpop.f32.mrb[0].mxu0
      %v948 = vadd.f32 0.0, %v947
      %v949 = vpop.f32.mrb[0].mxu0
      %v950 = vpop.f32.mrb[0].mxu0
      %v951 = vadd.f32 0.0, %v950
      %v952 = vpop.f32.mrb[0].mxu0
      %953 = vmatprep.mubr.bf16.mxu0 0
      %954 = vmatmul.mubr.bf16.gmra.mrb[0].mxu0 %v675
      %v955 = vpop.f32.mrb[0].mxu0
      %v956 = vadd.f32 0.0, %v955
      %v957 = vpop.f32.mrb[0].mxu0
      %v958 = vpop.f32.mrb[0].mxu0
      %v959 = vadd.f32 0.0, %v958
      %v960 = vpop.f32.mrb[0].mxu0
      %961 = vmatprep.mubr.bf16.mxu0 0
      %962 = vmatmul.mubr.bf16.gmra.mrb[0].mxu0 %v678
      %v963 = vpop.f32.mrb[0].mxu0
      %v964 = vadd.f32 0.0, %v963
      %v965 = vpop.f32.mrb[0].mxu0
      %v966 = vpop.f32.mrb[0].mxu0
      %v967 = vadd.f32 0.0, %v966
      %v968 = vpop.f32.mrb[0].mxu0
      %969 = vmatprep.mubr.bf16.mxu0 0
      %970 = vmatmul.mubr.bf16.gmra.mrb[0].mxu0 %v681
      %v971 = vpop.f32.mrb[0].mxu0
      %v972 = vadd.f32 0.0, %v971
      %v973 = vpop.f32.mrb[0].mxu0
      %v974 = vpop.f32.mrb[0].mxu0
      %v975 = vadd.f32 0.0, %v974
      %v976 = vpop.f32.mrb[0].mxu0
      %977 = vmatprep.mubr.bf16.mxu0 0
      %978 = vmatmul.mubr.bf16.gmra.mrb[0].mxu0 %v684
      %v979 = vpop.f32.mrb[0].mxu0
      %v980 = vadd.f32 0.0, %v979
      %v981 = vpop.f32.mrb[0].mxu0
      %v982 = vpop.f32.mrb[0].mxu0
      %v983 = vadd.f32 0.0, %v982
      %v984 = vpop.f32.mrb[0].mxu0
      %985 = vmatprep.mubr.bf16.mxu0 0
      %986 = vmatmul.mubr.bf16.gmra.mrb[0].mxu0 %v687
      %v987 = vpop.f32.mrb[0].mxu0
      %v988 = vadd.f32 0.0, %v987
      %v989 = vpop.f32.mrb[0].mxu0
      %v990 = vpop.f32.mrb[0].mxu0
      %v991 = vadd.f32 0.0, %v990
      %v992 = vpop.f32.mrb[0].mxu0
      %993 = vmatprep.mubr.bf16.mxu0 0
      %994 = vmatmul.mubr.bf16.gmra.mrb[0].mxu0 %v690
      %v995 = vpop.f32.mrb[0].mxu0
      %v996 = vadd.f32 0.0, %v995
      %v997 = vpop.f32.mrb[0].mxu0
      %v998 = vpop.f32.mrb[0].mxu0
      %v999 = vadd.f32 0.0, %v998
      %v1000 = vpop.f32.mrb[0].mxu0
      %1001 = vmatprep.mubr.bf16.mxu0 0
      %1002 = vmatmul.mubr.bf16.gmra.mrb[0].mxu0 %v693
      %v1003 = vpop.f32.mrb[0].mxu0
      %v1004 = vadd.f32 0.0, %v1003
      %v1005 = vpop.f32.mrb[0].mxu0
      %v1006 = vpop.f32.mrb[0].mxu0
      %v1007 = vadd.f32 0.0, %v1006
      %v1008 = vpop.f32.mrb[0].mxu0
      %1009 = vmatprep.mubr.bf16.mxu0 0
      %1010 = vmatmul.mubr.bf16.gmra.mrb[0].mxu0 %v696
      %v1011 = vpop.f32.mrb[0].mxu0
      %v1012 = vadd.f32 0.0, %v1011
      %v1013 = vpop.f32.mrb[0].mxu0
      %v1014 = vpop.f32.mrb[0].mxu0
      %v1015 = vadd.f32 0.0, %v1014
      %v1016 = vpop.f32.mrb[0].mxu0
      %1017 = vmatprep.mubr.bf16.mxu0 0
      %1018 = vmatmul.mubr.bf16.gmra.mrb[0].mxu0 %v699
      %v1019 = vpop.f32.mrb[0].mxu0
      %v1020 = vadd.f32 0.0, %v1019
      %v1021 = vpop.f32.mrb[0].mxu0
      %v1022 = vpop.f32.mrb[0].mxu0
      %v1023 = vadd.f32 0.0, %v1022
      %v1024 = vpop.f32.mrb[0].mxu0
      %1025 = vdwg.mxu0
      %v1030 = vunpack.c.l.b16 %v309
      %v1031 = vunpack.c.l.b16 %v310
      %v1032 = vunpack.c.l.b16 %v311
      %v1033 = vunpack.c.l.b16 %v312
      %v1034 = vpack.c.b16 %v1031, %v1030
      %v1035 = vpack.c.b16 %v1033, %v1032
      %v1037 = vsel %vm592, %v1034, 0
      %v1040 = vsel %vm592, %v1035, 0
      %v1043 = vsel %vm701, %v409, 0
      %1045 = vmatprep.subr.bf16.mxu0 0
      %1046 = vmatpush1.bf16.msra.mxu0 %v1043
      %1047 = vmatprep.subr.bf16.mxu0 0
      %1048 = vmatpush1.bf16.msra.mxu0 0
      %1049 = vmatprep.subr.bf16.mxu0 0
      %1050 = vmatpush1.bf16.msra.mxu0 0
      %1051 = vmatprep.subr.bf16.mxu0 0
      %1052 = vmatpush1.bf16.msra.mxu0 0
      %1053 = vmatprep.subr.bf16.mxu0 0
      %1054 = vmatpush1.bf16.msra.mxu0 0
      %1055 = vmatprep.subr.bf16.mxu0 0
      %1056 = vmatpush1.bf16.msra.mxu0 0
      %1057 = vmatprep.subr.bf16.mxu0 0
      %1058 = vmatpush1.bf16.msra.mxu0 0
      %1059 = vmatprep.subr.bf16.mxu0 0
      %1060 = vmatpush1.bf16.msra.mxu0 0
      %1061 = vmatprep.subr.bf16.mxu0 0
      %1062 = vmatpush1.bf16.msra.mxu0 0
      %1063 = vmatprep.subr.bf16.mxu0 0
      %1064 = vmatpush1.bf16.msra.mxu0 0
      %1065 = vmatprep.subr.bf16.mxu0 0
      %1066 = vmatpush1.bf16.msra.mxu0 0
      %1067 = vmatprep.subr.bf16.mxu0 0
      %1068 = vmatpush1.bf16.msra.mxu0 0
      %1069 = vmatprep.subr.bf16.mxu0 0
      %1070 = vmatpush1.bf16.msra.mxu0 0
      %1071 = vmatprep.subr.bf16.mxu0 0
      %1072 = vmatpush1.bf16.msra.mxu0 0
      %1073 = vmatprep.subr.bf16.mxu0 0
      %1074 = vmatpush1.bf16.msra.mxu0 0
      %1075 = vmatprep.subr.bf16.mxu0 0
      %1076 = vmatpush1.bf16.msra.mxu0 0
      %1077 = vmatprep.mubr.bf16.mxu0 0
      %1078 = vmatmul.mubr.bf16.gmra.mrb[0].mxu0 %v1037
      %v1079 = vpop.f32.mrb[0].mxu0
      %v1080 = vadd.f32 %v740, %v1079
      %v1081 = vpop.f32.mrb[0].mxu0
      %v1082 = vpop.f32.mrb[0].mxu0
      %v1083 = vadd.f32 %v743, %v1082
      %v1084 = vpop.f32.mrb[0].mxu0
      %1085 = vmatprep.mubr.bf16.mxu0 0
      %1086 = vmatmul.mubr.bf16.gmra.mrb[0].mxu0 %v1040
      %v1087 = vpop.f32.mrb[0].mxu0
      %v1088 = vadd.f32 %v748, %v1087
      %v1089 = vpop.f32.mrb[0].mxu0
      %v1090 = vpop.f32.mrb[0].mxu0
      %v1091 = vadd.f32 %v751, %v1090
      %v1092 = vpop.f32.mrb[0].mxu0
      %1093 = vmatprep.mubr.bf16.mxu0 0
      %1094 = vmatmul.mubr.bf16.gmra.mrb[0].mxu0 %v594
      %v1095 = vpop.f32.mrb[0].mxu0
      %v1096 = vadd.f32 %v756, %v1095
      %v1097 = vpop.f32.mrb[0].mxu0
      %v1098 = vpop.f32.mrb[0].mxu0
      %v1099 = vadd.f32 %v759, %v1098
      %v1100 = vpop.f32.mrb[0].mxu0
      %1101 = vmatprep.mubr.bf16.mxu0 0
      %1102 = vmatmul.mubr.bf16.gmra.mrb[0].mxu0 %v597
      %v1103 = vpop.f32.mrb[0].mxu0
      %v1104 = vadd.f32 %v764, %v1103
      %v1105 = vpop.f32.mrb[0].mxu0
      %v1106 = vpop.f32.mrb[0].mxu0
      %v1107 = vadd.f32 %v767, %v1106
      %v1108 = vpop.f32.mrb[0].mxu0
      %1109 = vmatprep.mubr.bf16.mxu0 0
      %1110 = vmatmul.mubr.bf16.gmra.mrb[0].mxu0 %v600
      %v1111 = vpop.f32.mrb[0].mxu0
      %v1112 = vadd.f32 %v772, %v1111
      %v1113 = vpop.f32.mrb[0].mxu0
      %v1114 = vpop.f32.mrb[0].mxu0
      %v1115 = vadd.f32 %v775, %v1114
      %v1116 = vpop.f32.mrb[0].mxu0
      %1117 = vmatprep.mubr.bf16.mxu0 0
      %1118 = vmatmul.mubr.bf16.gmra.mrb[0].mxu0 %v603
      %v1119 = vpop.f32.mrb[0].mxu0
      %v1120 = vadd.f32 %v780, %v1119
      %v1121 = vpop.f32.mrb[0].mxu0
      %v1122 = vpop.f32.mrb[0].mxu0
      %v1123 = vadd.f32 %v783, %v1122
      %v1124 = vpop.f32.mrb[0].mxu0
      %1125 = vmatprep.mubr.bf16.mxu0 0
      %1126 = vmatmul.mubr.bf16.gmra.mrb[0].mxu0 %v606
      %v1127 = vpop.f32.mrb[0].mxu0
      %v1128 = vadd.f32 %v788, %v1127
      %v1129 = vpop.f32.mrb[0].mxu0
      %v1130 = vpop.f32.mrb[0].mxu0
      %v1131 = vadd.f32 %v791, %v1130
      %v1132 = vpop.f32.mrb[0].mxu0
      %1133 = vmatprep.mubr.bf16.mxu0 0
      %1134 = vmatmul.mubr.bf16.gmra.mrb[0].mxu0 %v609
      %v1135 = vpop.f32.mrb[0].mxu0
      %v1136 = vadd.f32 %v796, %v1135
      %v1137 = vpop.f32.mrb[0].mxu0
      %v1138 = vpop.f32.mrb[0].mxu0
      %v1139 = vadd.f32 %v799, %v1138
      %v1140 = vpop.f32.mrb[0].mxu0
      %1141 = vmatprep.mubr.bf16.mxu0 0
      %1142 = vmatmul.mubr.bf16.gmra.mrb[0].mxu0 %v612
      %v1143 = vpop.f32.mrb[0].mxu0
      %v1144 = vadd.f32 %v804, %v1143
      %v1145 = vpop.f32.mrb[0].mxu0
      %v1146 = vpop.f32.mrb[0].mxu0
      %v1147 = vadd.f32 %v807, %v1146
      %v1148 = vpop.f32.mrb[0].mxu0
      %1149 = vmatprep.mubr.bf16.mxu0 0
      %1150 = vmatmul.mubr.bf16.gmra.mrb[0].mxu0 %v615
      %v1151 = vpop.f32.mrb[0].mxu0
      %v1152 = vadd.f32 %v812, %v1151
      %v1153 = vpop.f32.mrb[0].mxu0
      %v1154 = vpop.f32.mrb[0].mxu0
      %v1155 = vadd.f32 %v815, %v1154
      %v1156 = vpop.f32.mrb[0].mxu0
      %1157 = vmatprep.mubr.bf16.mxu0 0
      %1158 = vmatmul.mubr.bf16.gmra.mrb[0].mxu0 %v618
      %v1159 = vpop.f32.mrb[0].mxu0
      %v1160 = vadd.f32 %v820, %v1159
      %v1161 = vpop.f32.mrb[0].mxu0
      %v1162 = vpop.f32.mrb[0].mxu0
      %v1163 = vadd.f32 %v823, %v1162
      %v1164 = vpop.f32.mrb[0].mxu0
      %1165 = vmatprep.mubr.bf16.mxu0 0
      %1166 = vmatmul.mubr.bf16.gmra.mrb[0].mxu0 %v621
      %v1167 = vpop.f32.mrb[0].mxu0
      %v1168 = vadd.f32 %v828, %v1167
      %v1169 = vpop.f32.mrb[0].mxu0
      %v1170 = vpop.f32.mrb[0].mxu0
      %v1171 = vadd.f32 %v831, %v1170
      %v1172 = vpop.f32.mrb[0].mxu0
      %1173 = vmatprep.mubr.bf16.mxu0 0
      %1174 = vmatmul.mubr.bf16.gmra.mrb[0].mxu0 %v624
      %v1175 = vpop.f32.mrb[0].mxu0
      %v1176 = vadd.f32 %v836, %v1175
      %v1177 = vpop.f32.mrb[0].mxu0
      %v1178 = vpop.f32.mrb[0].mxu0
      %v1179 = vadd.f32 %v839, %v1178
      %v1180 = vpop.f32.mrb[0].mxu0
      %1181 = vmatprep.mubr.bf16.mxu0 0
      %1182 = vmatmul.mubr.bf16.gmra.mrb[0].mxu0 %v627
      %v1183 = vpop.f32.mrb[0].mxu0
      %v1184 = vadd.f32 %v844, %v1183
      %v1185 = vpop.f32.mrb[0].mxu0
      %v1186 = vpop.f32.mrb[0].mxu0
      %v1187 = vadd.f32 %v847, %v1186
      %v1188 = vpop.f32.mrb[0].mxu0
      %1189 = vmatprep.mubr.bf16.mxu0 0
      %1190 = vmatmul.mubr.bf16.gmra.mrb[0].mxu0 %v630
      %v1191 = vpop.f32.mrb[0].mxu0
      %v1192 = vadd.f32 %v852, %v1191
      %v1193 = vpop.f32.mrb[0].mxu0
      %v1194 = vpop.f32.mrb[0].mxu0
      %v1195 = vadd.f32 %v855, %v1194
      %v1196 = vpop.f32.mrb[0].mxu0
      %1197 = vmatprep.mubr.bf16.mxu0 0
      %1198 = vmatmul.mubr.bf16.gmra.mrb[0].mxu0 %v633
      %v1199 = vpop.f32.mrb[0].mxu0
      %v1200 = vadd.f32 %v860, %v1199
      %v1201 = vpop.f32.mrb[0].mxu0
      %v1202 = vpop.f32.mrb[0].mxu0
      %v1203 = vadd.f32 %v863, %v1202
      %v1204 = vpop.f32.mrb[0].mxu0
      %1205 = vmatprep.mubr.bf16.mxu0 0
      %1206 = vmatmul.mubr.bf16.gmra.mrb[0].mxu0 %v636
      %v1207 = vpop.f32.mrb[0].mxu0
      %v1208 = vadd.f32 %v868, %v1207
      %v1209 = vpop.f32.mrb[0].mxu0
      %v1210 = vpop.f32.mrb[0].mxu0
      %v1211 = vadd.f32 %v871, %v1210
      %v1212 = vpop.f32.mrb[0].mxu0
      %1213 = vmatprep.mubr.bf16.mxu0 0
      %1214 = vmatmul.mubr.bf16.gmra.mrb[0].mxu0 %v639
      %v1215 = vpop.f32.mrb[0].mxu0
      %v1216 = vadd.f32 %v876, %v1215
      %v1217 = vpop.f32.mrb[0].mxu0
      %v1218 = vpop.f32.mrb[0].mxu0
      %v1219 = vadd.f32 %v879, %v1218
      %v1220 = vpop.f32.mrb[0].mxu0
      %1221 = vmatprep.mubr.bf16.mxu0 0
      %1222 = vmatmul.mubr.bf16.gmra.mrb[0].mxu0 %v642
      %v1223 = vpop.f32.mrb[0].mxu0
      %v1224 = vadd.f32 %v884, %v1223
      %v1225 = vpop.f32.mrb[0].mxu0
      %v1226 = vpop.f32.mrb[0].mxu0
      %v1227 = vadd.f32 %v887, %v1226
      %v1228 = vpop.f32.mrb[0].mxu0
      %1229 = vmatprep.mubr.bf16.mxu0 0
      %1230 = vmatmul.mubr.bf16.gmra.mrb[0].mxu0 %v645
      %v1231 = vpop.f32.mrb[0].mxu0
      %v1232 = vadd.f32 %v892, %v1231
      %v1233 = vpop.f32.mrb[0].mxu0
      %v1234 = vpop.f32.mrb[0].mxu0
      %v1235 = vadd.f32 %v895, %v1234
      %v1236 = vpop.f32.mrb[0].mxu0
      %1237 = vmatprep.mubr.bf16.mxu0 0
      %1238 = vmatmul.mubr.bf16.gmra.mrb[0].mxu0 %v648
      %v1239 = vpop.f32.mrb[0].mxu0
      %v1240 = vadd.f32 %v900, %v1239
      %v1241 = vpop.f32.mrb[0].mxu0
      %v1242 = vpop.f32.mrb[0].mxu0
      %v1243 = vadd.f32 %v903, %v1242
      %v1244 = vpop.f32.mrb[0].mxu0
      %1245 = vmatprep.mubr.bf16.mxu0 0
      %1246 = vmatmul.mubr.bf16.gmra.mrb[0].mxu0 %v651
      %v1247 = vpop.f32.mrb[0].mxu0
      %v1248 = vadd.f32 %v908, %v1247
      %v1249 = vpop.f32.mrb[0].mxu0
      %v1250 = vpop.f32.mrb[0].mxu0
      %v1251 = vadd.f32 %v911, %v1250
      %v1252 = vpop.f32.mrb[0].mxu0
      %1253 = vmatprep.mubr.bf16.mxu0 0
      %1254 = vmatmul.mubr.bf16.gmra.mrb[0].mxu0 %v654
      %v1255 = vpop.f32.mrb[0].mxu0
      %v1256 = vadd.f32 %v916, %v1255
      %v1257 = vpop.f32.mrb[0].mxu0
      %v1258 = vpop.f32.mrb[0].mxu0
      %v1259 = vadd.f32 %v919, %v1258
      %v1260 = vpop.f32.mrb[0].mxu0
      %1261 = vmatprep.mubr.bf16.mxu0 0
      %1262 = vmatmul.mubr.bf16.gmra.mrb[0].mxu0 %v657
      %v1263 = vpop.f32.mrb[0].mxu0
      %v1264 = vadd.f32 %v924, %v1263
      %v1265 = vpop.f32.mrb[0].mxu0
      %v1266 = vpop.f32.mrb[0].mxu0
      %v1267 = vadd.f32 %v927, %v1266
      %v1268 = vpop.f32.mrb[0].mxu0
      %1269 = vmatprep.mubr.bf16.mxu0 0
      %1270 = vmatmul.mubr.bf16.gmra.mrb[0].mxu0 %v660
      %v1271 = vpop.f32.mrb[0].mxu0
      %v1272 = vadd.f32 %v932, %v1271
      %v1273 = vpop.f32.mrb[0].mxu0
      %v1274 = vpop.f32.mrb[0].mxu0
      %v1275 = vadd.f32 %v935, %v1274
      %v1276 = vpop.f32.mrb[0].mxu0
      %1277 = vmatprep.mubr.bf16.mxu0 0
      %1278 = vmatmul.mubr.bf16.gmra.mrb[0].mxu0 %v663
      %v1279 = vpop.f32.mrb[0].mxu0
      %v1280 = vadd.f32 %v940, %v1279
      %v1281 = vpop.f32.mrb[0].mxu0
      %v1282 = vpop.f32.mrb[0].mxu0
      %v1283 = vadd.f32 %v943, %v1282
      %v1284 = vpop.f32.mrb[0].mxu0
      %1285 = vmatprep.mubr.bf16.mxu0 0
      %1286 = vmatmul.mubr.bf16.gmra.mrb[0].mxu0 %v666
      %v1287 = vpop.f32.mrb[0].mxu0
      %v1288 = vadd.f32 %v948, %v1287
      %v1289 = vpop.f32.mrb[0].mxu0
      %v1290 = vpop.f32.mrb[0].mxu0
      %v1291 = vadd.f32 %v951, %v1290
      %v1292 = vpop.f32.mrb[0].mxu0
      %1293 = vmatprep.mubr.bf16.mxu0 0
      %1294 = vmatmul.mubr.bf16.gmra.mrb[0].mxu0 %v669
      %v1295 = vpop.f32.mrb[0].mxu0
      %v1296 = vadd.f32 %v956, %v1295
      %v1297 = vpop.f32.mrb[0].mxu0
      %v1298 = vpop.f32.mrb[0].mxu0
      %v1299 = vadd.f32 %v959, %v1298
      %v1300 = vpop.f32.mrb[0].mxu0
      %1301 = vmatprep.mubr.bf16.mxu0 0
      %1302 = vmatmul.mubr.bf16.gmra.mrb[0].mxu0 %v672
      %v1303 = vpop.f32.mrb[0].mxu0
      %v1304 = vadd.f32 %v964, %v1303
      %v1305 = vpop.f32.mrb[0].mxu0
      %v1306 = vpop.f32.mrb[0].mxu0
      %v1307 = vadd.f32 %v967, %v1306
      %v1308 = vpop.f32.mrb[0].mxu0
      %1309 = vmatprep.mubr.bf16.mxu0 0
      %1310 = vmatmul.mubr.bf16.gmra.mrb[0].mxu0 %v675
      %v1311 = vpop.f32.mrb[0].mxu0
      %v1312 = vadd.f32 %v972, %v1311
      %v1313 = vpop.f32.mrb[0].mxu0
      %v1314 = vpop.f32.mrb[0].mxu0
      %v1315 = vadd.f32 %v975, %v1314
      %v1316 = vpop.f32.mrb[0].mxu0
      %1317 = vmatprep.mubr.bf16.mxu0 0
      %1318 = vmatmul.mubr.bf16.gmra.mrb[0].mxu0 %v678
      %v1319 = vpop.f32.mrb[0].mxu0
      %v1320 = vadd.f32 %v980, %v1319
      %v1321 = vpop.f32.mrb[0].mxu0
      %v1322 = vpop.f32.mrb[0].mxu0
      %v1323 = vadd.f32 %v983, %v1322
      %v1324 = vpop.f32.mrb[0].mxu0
      %1325 = vmatprep.mubr.bf16.mxu0 0
      %1326 = vmatmul.mubr.bf16.gmra.mrb[0].mxu0 %v681
      %v1327 = vpop.f32.mrb[0].mxu0
      %v1328 = vadd.f32 %v988, %v1327
      %v1329 = vpop.f32.mrb[0].mxu0
      %v1330 = vpop.f32.mrb[0].mxu0
      %v1331 = vadd.f32 %v991, %v1330
      %v1332 = vpop.f32.mrb[0].mxu0
      %1333 = vmatprep.mubr.bf16.mxu0 0
      %1334 = vmatmul.mubr.bf16.gmra.mrb[0].mxu0 %v684
      %v1335 = vpop.f32.mrb[0].mxu0
      %v1336 = vadd.f32 %v996, %v1335
      %v1337 = vpop.f32.mrb[0].mxu0
      %v1338 = vpop.f32.mrb[0].mxu0
      %v1339 = vadd.f32 %v999, %v1338
      %v1340 = vpop.f32.mrb[0].mxu0
      %1341 = vmatprep.mubr.bf16.mxu0 0
      %1342 = vmatmul.mubr.bf16.gmra.mrb[0].mxu0 %v687
      %v1343 = vpop.f32.mrb[0].mxu0
      %v1344 = vadd.f32 %v1004, %v1343
      %v1345 = vpop.f32.mrb[0].mxu0
      %v1346 = vpop.f32.mrb[0].mxu0
      %v1347 = vadd.f32 %v1007, %v1346
      %v1348 = vpop.f32.mrb[0].mxu0
      %1349 = vmatprep.mubr.bf16.mxu0 0
      %1350 = vmatmul.mubr.bf16.gmra.mrb[0].mxu0 %v690
      %v1351 = vpop.f32.mrb[0].mxu0
      %v1352 = vadd.f32 %v1012, %v1351
      %v1353 = vpop.f32.mrb[0].mxu0
      %v1354 = vpop.f32.mrb[0].mxu0
      %v1355 = vadd.f32 %v1015, %v1354
      %v1356 = vpop.f32.mrb[0].mxu0
      %1357 = vmatprep.mubr.bf16.mxu0 0
      %1358 = vmatmul.mubr.bf16.gmra.mrb[0].mxu0 %v693
      %v1359 = vpop.f32.mrb[0].mxu0
      %v1360 = vadd.f32 %v1020, %v1359
      %v1361 = vpop.f32.mrb[0].mxu0
      %v1362 = vpop.f32.mrb[0].mxu0
      %v1363 = vadd.f32 %v1023, %v1362
      %v1364 = vpop.f32.mrb[0].mxu0
      %1365 = vdwg.mxu0
      %s1366 = scalar_lea.vmem %s1, 12
      %v1367 = vld [vmem:[%s1366] sm:$0x3]
      %v1372 = vunpack.c.l.b16 %v404
      %v1373 = vunpack.c.l.b16 %v405
      %v1374 = vunpack.c.l.b16 %v406
      %v1375 = vunpack.c.l.b16 %v407
      %v1376 = vpack.c.b16 %v1373, %v1372
      %v1377 = vpack.c.b16 %v1375, %v1374
      %v1379 = vsel %vm592, %v1376, 0
      %v1382 = vsel %vm592, %v1377, 0
      %v1385 = vsel %vm701, %v1367, 0
      %1387 = vmatprep.subr.bf16.mxu0 0
      %1388 = vmatpush1.bf16.msra.mxu0 %v1385
      %1389 = vmatprep.subr.bf16.mxu0 0
      %1390 = vmatpush1.bf16.msra.mxu0 0
      %1391 = vmatprep.subr.bf16.mxu0 0
      %1392 = vmatpush1.bf16.msra.mxu0 0
      %1393 = vmatprep.subr.bf16.mxu0 0
      %1394 = vmatpush1.bf16.msra.mxu0 0
      %1395 = vmatprep.subr.bf16.mxu0 0
      %1396 = vmatpush1.bf16.msra.mxu0 0
      %1397 = vmatprep.subr.bf16.mxu0 0
      %1398 = vmatpush1.bf16.msra.mxu0 0
      %1399 = vmatprep.subr.bf16.mxu0 0
      %1400 = vmatpush1.bf16.msra.mxu0 0
      %1401 = vmatprep.subr.bf16.mxu0 0
      %1402 = vmatpush1.bf16.msra.mxu0 0
      %1403 = vmatprep.subr.bf16.mxu0 0
      %1404 = vmatpush1.bf16.msra.mxu0 0
      %1405 = vmatprep.subr.bf16.mxu0 0
      %1406 = vmatpush1.bf16.msra.mxu0 0
      %1407 = vmatprep.subr.bf16.mxu0 0
      %1408 = vmatpush1.bf16.msra.mxu0 0
      %1409 = vmatprep.subr.bf16.mxu0 0
      %1410 = vmatpush1.bf16.msra.mxu0 0
      %1411 = vmatprep.subr.bf16.mxu0 0
      %1412 = vmatpush1.bf16.msra.mxu0 0
      %1413 = vmatprep.subr.bf16.mxu0 0
      %1414 = vmatpush1.bf16.msra.mxu0 0
      %1415 = vmatprep.subr.bf16.mxu0 0
      %1416 = vmatpush1.bf16.msra.mxu0 0
      %1417 = vmatprep.subr.bf16.mxu0 0
      %1418 = vmatpush1.bf16.msra.mxu0 0
      %1419 = vmatprep.mubr.bf16.mxu0 0
      %1420 = vmatmul.mubr.bf16.gmra.mrb[0].mxu0 %v600
      %v1421 = vpop.f32.mrb[0].mxu0
      %v1422 = vadd.f32 0.0, %v1421
      %v1423 = vpop.f32.mrb[0].mxu0
      %v1424 = vpop.f32.mrb[0].mxu0
      %v1425 = vadd.f32 0.0, %v1424
      %v1426 = vpop.f32.mrb[0].mxu0
      %1427 = vmatprep.mubr.bf16.mxu0 0
      %1428 = vmatmul.mubr.bf16.gmra.mrb[0].mxu0 %v603
      %v1429 = vpop.f32.mrb[0].mxu0
      %v1430 = vadd.f32 0.0, %v1429
      %v1431 = vpop.f32.mrb[0].mxu0
      %v1432 = vpop.f32.mrb[0].mxu0
      %v1433 = vadd.f32 0.0, %v1432
      %v1434 = vpop.f32.mrb[0].mxu0
      %1435 = vmatprep.mubr.bf16.mxu0 0
      %1436 = vmatmul.mubr.bf16.gmra.mrb[0].mxu0 %v606
      %v1437 = vpop.f32.mrb[0].mxu0
      %v1438 = vadd.f32 0.0, %v1437
      %v1439 = vpop.f32.mrb[0].mxu0
      %v1440 = vpop.f32.mrb[0].mxu0
      %v1441 = vadd.f32 0.0, %v1440
      %v1442 = vpop.f32.mrb[0].mxu0
      %1443 = vmatprep.mubr.bf16.mxu0 0
      %1444 = vmatmul.mubr.bf16.gmra.mrb[0].mxu0 %v609
      %v1445 = vpop.f32.mrb[0].mxu0
      %v1446 = vadd.f32 0.0, %v1445
      %v1447 = vpop.f32.mrb[0].mxu0
      %v1448 = vpop.f32.mrb[0].mxu0
      %v1449 = vadd.f32 0.0, %v1448
      %v1450 = vpop.f32.mrb[0].mxu0
      %1451 = vmatprep.mubr.bf16.mxu0 0
      %1452 = vmatmul.mubr.bf16.gmra.mrb[0].mxu0 %v612
      %v1453 = vpop.f32.mrb[0].mxu0
      %v1454 = vadd.f32 0.0, %v1453
      %v1455 = vpop.f32.mrb[0].mxu0
      %v1456 = vpop.f32.mrb[0].mxu0
      %v1457 = vadd.f32 0.0, %v1456
      %v1458 = vpop.f32.mrb[0].mxu0
      %1459 = vmatprep.mubr.bf16.mxu0 0
      %1460 = vmatmul.mubr.bf16.gmra.mrb[0].mxu0 %v615
      %v1461 = vpop.f32.mrb[0].mxu0
      %v1462 = vadd.f32 0.0, %v1461
      %v1463 = vpop.f32.mrb[0].mxu0
      %v1464 = vpop.f32.mrb[0].mxu0
      %v1465 = vadd.f32 0.0, %v1464
      %v1466 = vpop.f32.mrb[0].mxu0
      %1467 = vmatprep.mubr.bf16.mxu0 0
      %1468 = vmatmul.mubr.bf16.gmra.mrb[0].mxu0 %v618
      %v1469 = vpop.f32.mrb[0].mxu0
      %v1470 = vadd.f32 0.0, %v1469
      %v1471 = vpop.f32.mrb[0].mxu0
      %v1472 = vpop.f32.mrb[0].mxu0
      %v1473 = vadd.f32 0.0, %v1472
      %v1474 = vpop.f32.mrb[0].mxu0
      %1475 = vmatprep.mubr.bf16.mxu0 0
      %1476 = vmatmul.mubr.bf16.gmra.mrb[0].mxu0 %v621
      %v1477 = vpop.f32.mrb[0].mxu0
      %v1478 = vadd.f32 0.0, %v1477
      %v1479 = vpop.f32.mrb[0].mxu0
      %v1480 = vpop.f32.mrb[0].mxu0
      %v1481 = vadd.f32 0.0, %v1480
      %v1482 = vpop.f32.mrb[0].mxu0
      %1483 = vmatprep.mubr.bf16.mxu0 0
      %1484 = vmatmul.mubr.bf16.gmra.mrb[0].mxu0 %v624
      %v1485 = vpop.f32.mrb[0].mxu0
      %v1486 = vadd.f32 0.0, %v1485
      %v1487 = vpop.f32.mrb[0].mxu0
      %v1488 = vpop.f32.mrb[0].mxu0
      %v1489 = vadd.f32 0.0, %v1488
      %v1490 = vpop.f32.mrb[0].mxu0
      %1491 = vmatprep.mubr.bf16.mxu0 0
      %1492 = vmatmul.mubr.bf16.gmra.mrb[0].mxu0 %v627
      %v1493 = vpop.f32.mrb[0].mxu0
      %v1494 = vadd.f32 0.0, %v1493
      %v1495 = vpop.f32.mrb[0].mxu0
      %v1496 = vpop.f32.mrb[0].mxu0
      %v1497 = vadd.f32 0.0, %v1496
      %v1498 = vpop.f32.mrb[0].mxu0
      %1499 = vmatprep.mubr.bf16.mxu0 0
      %1500 = vmatmul.mubr.bf16.gmra.mrb[0].mxu0 %v630
      %v1501 = vpop.f32.mrb[0].mxu0
      %v1502 = vadd.f32 0.0, %v1501
      %v1503 = vpop.f32.mrb[0].mxu0
      %v1504 = vpop.f32.mrb[0].mxu0
      %v1505 = vadd.f32 0.0, %v1504
      %v1506 = vpop.f32.mrb[0].mxu0
      %1507 = vmatprep.mubr.bf16.mxu0 0
      %1508 = vmatmul.mubr.bf16.gmra.mrb[0].mxu0 %v633
      %v1509 = vpop.f32.mrb[0].mxu0
      %v1510 = vadd.f32 0.0, %v1509
      %v1511 = vpop.f32.mrb[0].mxu0
      %v1512 = vpop.f32.mrb[0].mxu0
      %v1513 = vadd.f32 0.0, %v1512
      %v1514 = vpop.f32.mrb[0].mxu0
      %1515 = vmatprep.mubr.bf16.mxu0 0
      %1516 = vmatmul.mubr.bf16.gmra.mrb[0].mxu0 %v636
      %v1517 = vpop.f32.mrb[0].mxu0
      %v1518 = vadd.f32 0.0, %v1517
      %v1519 = vpop.f32.mrb[0].mxu0
      %v1520 = vpop.f32.mrb[0].mxu0
      %v1521 = vadd.f32 0.0, %v1520
      %v1522 = vpop.f32.mrb[0].mxu0
      %1523 = vmatprep.mubr.bf16.mxu0 0
      %1524 = vmatmul.mubr.bf16.gmra.mrb[0].mxu0 %v639
      %v1525 = vpop.f32.mrb[0].mxu0
      %v1526 = vadd.f32 0.0, %v1525
      %v1527 = vpop.f32.mrb[0].mxu0
      %v1528 = vpop.f32.mrb[0].mxu0
      %v1529 = vadd.f32 0.0, %v1528
      %v1530 = vpop.f32.mrb[0].mxu0
      %1531 = vmatprep.mubr.bf16.mxu0 0
      %1532 = vmatmul.mubr.bf16.gmra.mrb[0].mxu0 %v642
      %v1533 = vpop.f32.mrb[0].mxu0
      %v1534 = vadd.f32 0.0, %v1533
      %v1535 = vpop.f32.mrb[0].mxu0
      %v1536 = vpop.f32.mrb[0].mxu0
      %v1537 = vadd.f32 0.0, %v1536
      %v1538 = vpop.f32.mrb[0].mxu0
      %1539 = vmatprep.mubr.bf16.mxu0 0
      %1540 = vmatmul.mubr.bf16.gmra.mrb[0].mxu0 %v645
      %v1541 = vpop.f32.mrb[0].mxu0
      %v1542 = vadd.f32 0.0, %v1541
      %v1543 = vpop.f32.mrb[0].mxu0
      %v1544 = vpop.f32.mrb[0].mxu0
      %v1545 = vadd.f32 0.0, %v1544
      %v1546 = vpop.f32.mrb[0].mxu0
      %1547 = vmatprep.mubr.bf16.mxu0 0
      %1548 = vmatmul.mubr.bf16.gmra.mrb[0].mxu0 %v648
      %v1549 = vpop.f32.mrb[0].mxu0
      %v1550 = vadd.f32 0.0, %v1549
      %v1551 = vpop.f32.mrb[0].mxu0
      %v1552 = vpop.f32.mrb[0].mxu0
      %v1553 = vadd.f32 0.0, %v1552
      %v1554 = vpop.f32.mrb[0].mxu0
      %1555 = vmatprep.mubr.bf16.mxu0 0
      %1556 = vmatmul.mubr.bf16.gmra.mrb[0].mxu0 %v651
      %v1557 = vpop.f32.mrb[0].mxu0
      %v1558 = vadd.f32 0.0, %v1557
      %v1559 = vpop.f32.mrb[0].mxu0
      %v1560 = vpop.f32.mrb[0].mxu0
      %v1561 = vadd.f32 0.0, %v1560
      %v1562 = vpop.f32.mrb[0].mxu0
      %1563 = vmatprep.mubr.bf16.mxu0 0
      %1564 = vmatmul.mubr.bf16.gmra.mrb[0].mxu0 %v654
      %v1565 = vpop.f32.mrb[0].mxu0
      %v1566 = vadd.f32 0.0, %v1565
      %v1567 = vpop.f32.mrb[0].mxu0
      %v1568 = vpop.f32.mrb[0].mxu0
      %v1569 = vadd.f32 0.0, %v1568
      %v1570 = vpop.f32.mrb[0].mxu0
      %1571 = vmatprep.mubr.bf16.mxu0 0
      %1572 = vmatmul.mubr.bf16.gmra.mrb[0].mxu0 %v657
      %v1573 = vpop.f32.mrb[0].mxu0
      %v1574 = vadd.f32 0.0, %v1573
      %v1575 = vpop.f32.mrb[0].mxu0
      %v1576 = vpop.f32.mrb[0].mxu0
      %v1577 = vadd.f32 0.0, %v1576
      %v1578 = vpop.f32.mrb[0].mxu0
      %1579 = vmatprep.mubr.bf16.mxu0 0
      %1580 = vmatmul.mubr.bf16.gmra.mrb[0].mxu0 %v660
      %v1581 = vpop.f32.mrb[0].mxu0
      %v1582 = vadd.f32 0.0, %v1581
      %v1583 = vpop.f32.mrb[0].mxu0
      %v1584 = vpop.f32.mrb[0].mxu0
      %v1585 = vadd.f32 0.0, %v1584
      %v1586 = vpop.f32.mrb[0].mxu0
      %1587 = vmatprep.mubr.bf16.mxu0 0
      %1588 = vmatmul.mubr.bf16.gmra.mrb[0].mxu0 %v663
      %v1589 = vpop.f32.mrb[0].mxu0
      %v1590 = vadd.f32 0.0, %v1589
      %v1591 = vpop.f32.mrb[0].mxu0
      %v1592 = vpop.f32.mrb[0].mxu0
      %v1593 = vadd.f32 0.0, %v1592
      %v1594 = vpop.f32.mrb[0].mxu0
      %1595 = vmatprep.mubr.bf16.mxu0 0
      %1596 = vmatmul.mubr.bf16.gmra.mrb[0].mxu0 %v666
      %v1597 = vpop.f32.mrb[0].mxu0
      %v1598 = vadd.f32 0.0, %v1597
      %v1599 = vpop.f32.mrb[0].mxu0
      %v1600 = vpop.f32.mrb[0].mxu0
      %v1601 = vadd.f32 0.0, %v1600
      %v1602 = vpop.f32.mrb[0].mxu0
      %1603 = vmatprep.mubr.bf16.mxu0 0
      %1604 = vmatmul.mubr.bf16.gmra.mrb[0].mxu0 %v669
      %v1605 = vpop.f32.mrb[0].mxu0
      %v1606 = vadd.f32 0.0, %v1605
      %v1607 = vpop.f32.mrb[0].mxu0
      %v1608 = vpop.f32.mrb[0].mxu0
      %v1609 = vadd.f32 0.0, %v1608
      %v1610 = vpop.f32.mrb[0].mxu0
      %1611 = vmatprep.mubr.bf16.mxu0 0
      %1612 = vmatmul.mubr.bf16.gmra.mrb[0].mxu0 %v672
      %v1613 = vpop.f32.mrb[0].mxu0
      %v1614 = vadd.f32 0.0, %v1613
      %v1615 = vpop.f32.mrb[0].mxu0
      %v1616 = vpop.f32.mrb[0].mxu0
      %v1617 = vadd.f32 0.0, %v1616
      %v1618 = vpop.f32.mrb[0].mxu0
      %1619 = vmatprep.mubr.bf16.mxu0 0
      %1620 = vmatmul.mubr.bf16.gmra.mrb[0].mxu0 %v675
      %v1621 = vpop.f32.mrb[0].mxu0
      %v1622 = vadd.f32 0.0, %v1621
      %v1623 = vpop.f32.mrb[0].mxu0
      %v1624 = vpop.f32.mrb[0].mxu0
      %v1625 = vadd.f32 0.0, %v1624
      %v1626 = vpop.f32.mrb[0].mxu0
      %1627 = vmatprep.mubr.bf16.mxu0 0
      %1628 = vmatmul.mubr.bf16.gmra.mrb[0].mxu0 %v678
      %v1629 = vpop.f32.mrb[0].mxu0
      %v1630 = vadd.f32 0.0, %v1629
      %v1631 = vpop.f32.mrb[0].mxu0
      %v1632 = vpop.f32.mrb[0].mxu0
      %v1633 = vadd.f32 0.0, %v1632
      %v1634 = vpop.f32.mrb[0].mxu0
      %1635 = vmatprep.mubr.bf16.mxu0 0
      %1636 = vmatmul.mubr.bf16.gmra.mrb[0].mxu0 %v681
      %v1637 = vpop.f32.mrb[0].mxu0
      %v1638 = vadd.f32 0.0, %v1637
      %v1639 = vpop.f32.mrb[0].mxu0
      %v1640 = vpop.f32.mrb[0].mxu0
      %v1641 = vadd.f32 0.0, %v1640
      %v1642 = vpop.f32.mrb[0].mxu0
      %1643 = vmatprep.mubr.bf16.mxu0 0
      %1644 = vmatmul.mubr.bf16.gmra.mrb[0].mxu0 %v684
      %v1645 = vpop.f32.mrb[0].mxu0
      %v1646 = vadd.f32 0.0, %v1645
      %v1647 = vpop.f32.mrb[0].mxu0
      %v1648 = vpop.f32.mrb[0].mxu0
      %v1649 = vadd.f32 0.0, %v1648
      %v1650 = vpop.f32.mrb[0].mxu0
      %1651 = vmatprep.mubr.bf16.mxu0 0
      %1652 = vmatmul.mubr.bf16.gmra.mrb[0].mxu0 %v687
      %v1653 = vpop.f32.mrb[0].mxu0
      %v1654 = vadd.f32 0.0, %v1653
      %v1655 = vpop.f32.mrb[0].mxu0
      %v1656 = vpop.f32.mrb[0].mxu0
      %v1657 = vadd.f32 0.0, %v1656
      %v1658 = vpop.f32.mrb[0].mxu0
      %1659 = vmatprep.mubr.bf16.mxu0 0
      %1660 = vmatmul.mubr.bf16.gmra.mrb[0].mxu0 %v690
      %v1661 = vpop.f32.mrb[0].mxu0
      %v1662 = vadd.f32 0.0, %v1661
      %v1663 = vpop.f32.mrb[0].mxu0
      %v1664 = vpop.f32.mrb[0].mxu0
      %v1665 = vadd.f32 0.0, %v1664
      %v1666 = vpop.f32.mrb[0].mxu0
      %1667 = vmatprep.mubr.bf16.mxu0 0
      %1668 = vmatmul.mubr.bf16.gmra.mrb[0].mxu0 %v693
      %v1669 = vpop.f32.mrb[0].mxu0
      %v1670 = vadd.f32 0.0, %v1669
      %v1671 = vpop.f32.mrb[0].mxu0
      %v1672 = vpop.f32.mrb[0].mxu0
      %v1673 = vadd.f32 0.0, %v1672
      %v1674 = vpop.f32.mrb[0].mxu0
      %1675 = vmatprep.mubr.bf16.mxu0 0
      %1676 = vmatmul.mubr.bf16.gmra.mrb[0].mxu0 %v696
      %v1677 = vpop.f32.mrb[0].mxu0
      %v1678 = vadd.f32 0.0, %v1677
      %v1679 = vpop.f32.mrb[0].mxu0
      %v1680 = vpop.f32.mrb[0].mxu0
      %v1681 = vadd.f32 0.0, %v1680
      %v1682 = vpop.f32.mrb[0].mxu0
      %1683 = vmatprep.mubr.bf16.mxu0 0
      %1684 = vmatmul.mubr.bf16.gmra.mrb[0].mxu0 %v699
      %v1685 = vpop.f32.mrb[0].mxu0
      %v1686 = vadd.f32 0.0, %v1685
      %v1687 = vpop.f32.mrb[0].mxu0
      %v1688 = vpop.f32.mrb[0].mxu0
      %v1689 = vadd.f32 0.0, %v1688
      %v1690 = vpop.f32.mrb[0].mxu0
      %1691 = vmatprep.mubr.bf16.mxu0 0
      %1692 = vmatmul.mubr.bf16.gmra.mrb[0].mxu0 %v1379
      %v1693 = vpop.f32.mrb[0].mxu0
      %v1694 = vadd.f32 0.0, %v1693
      %v1695 = vpop.f32.mrb[0].mxu0
      %v1696 = vpop.f32.mrb[0].mxu0
      %v1697 = vadd.f32 0.0, %v1696
      %v1698 = vpop.f32.mrb[0].mxu0
      %1699 = vmatprep.mubr.bf16.mxu0 0
      %1700 = vmatmul.mubr.bf16.gmra.mrb[0].mxu0 %v1382
      %v1701 = vpop.f32.mrb[0].mxu0
      %v1702 = vadd.f32 0.0, %v1701
      %v1703 = vpop.f32.mrb[0].mxu0
      %v1704 = vpop.f32.mrb[0].mxu0
      %v1705 = vadd.f32 0.0, %v1704
      %v1706 = vpop.f32.mrb[0].mxu0
      %1707 = vdwg.mxu0
      %v1708 = vadd.f32 %v1080, %v1422
      %v1709 = vadd.f32 %v1083, %v1425
      %v1710 = vadd.f32 %v1088, %v1430
      %v1711 = vadd.f32 %v1091, %v1433
      %v1712 = vadd.f32 %v1096, %v1438
      %v1713 = vadd.f32 %v1099, %v1441
      %v1714 = vadd.f32 %v1104, %v1446
      %v1715 = vadd.f32 %v1107, %v1449
      %v1716 = vadd.f32 %v1112, %v1454
      %v1717 = vadd.f32 %v1115, %v1457
      %v1718 = vadd.f32 %v1120, %v1462
      %v1719 = vadd.f32 %v1123, %v1465
      %v1720 = vadd.f32 %v1128, %v1470
      %v1721 = vadd.f32 %v1131, %v1473
      %v1722 = vadd.f32 %v1136, %v1478
      %v1723 = vadd.f32 %v1139, %v1481
      %v1724 = vadd.f32 %v1144, %v1486
      %v1725 = vadd.f32 %v1147, %v1489
      %v1726 = vadd.f32 %v1152, %v1494
      %v1727 = vadd.f32 %v1155, %v1497
      %v1728 = vadd.f32 %v1160, %v1502
      %v1729 = vadd.f32 %v1163, %v1505
      %v1730 = vadd.f32 %v1168, %v1510
      %v1731 = vadd.f32 %v1171, %v1513
      %v1732 = vadd.f32 %v1176, %v1518
      %v1733 = vadd.f32 %v1179, %v1521
      %v1734 = vadd.f32 %v1184, %v1526
      %v1735 = vadd.f32 %v1187, %v1529
      %v1736 = vadd.f32 %v1192, %v1534
      %v1737 = vadd.f32 %v1195, %v1537
      %v1738 = vadd.f32 %v1200, %v1542
      %v1739 = vadd.f32 %v1203, %v1545
      %v1740 = vadd.f32 %v1208, %v1550
      %v1741 = vadd.f32 %v1211, %v1553
      %v1742 = vadd.f32 %v1216, %v1558
      %v1743 = vadd.f32 %v1219, %v1561
      %v1744 = vadd.f32 %v1224, %v1566
      %v1745 = vadd.f32 %v1227, %v1569
      %v1746 = vadd.f32 %v1232, %v1574
      %v1747 = vadd.f32 %v1235, %v1577
      %v1748 = vadd.f32 %v1240, %v1582
      %v1749 = vadd.f32 %v1243, %v1585
      %v1750 = vadd.f32 %v1248, %v1590
      %v1751 = vadd.f32 %v1251, %v1593
      %v1752 = vadd.f32 %v1256, %v1598
      %v1753 = vadd.f32 %v1259, %v1601
      %v1754 = vadd.f32 %v1264, %v1606
      %v1755 = vadd.f32 %v1267, %v1609
      %v1756 = vadd.f32 %v1272, %v1614
      %v1757 = vadd.f32 %v1275, %v1617
      %v1758 = vadd.f32 %v1280, %v1622
      %v1759 = vadd.f32 %v1283, %v1625
      %v1760 = vadd.f32 %v1288, %v1630
      %v1761 = vadd.f32 %v1291, %v1633
      %v1762 = vadd.f32 %v1296, %v1638
      %v1763 = vadd.f32 %v1299, %v1641
      %v1764 = vadd.f32 %v1304, %v1646
      %v1765 = vadd.f32 %v1307, %v1649
      %v1766 = vadd.f32 %v1312, %v1654
      %v1767 = vadd.f32 %v1315, %v1657
      %v1768 = vadd.f32 %v1320, %v1662
      %v1769 = vadd.f32 %v1323, %v1665
      %v1770 = vadd.f32 %v1328, %v1670
      %v1771 = vadd.f32 %v1331, %v1673
      %v1772 = vadd.f32 %v1336, %v1678
      %v1773 = vadd.f32 %v1339, %v1681
      %v1774 = vadd.f32 %v1344, %v1686
      %v1775 = vadd.f32 %v1347, %v1689
      %v1776 = vadd.f32 %v1352, %v1694
      %v1777 = vadd.f32 %v1355, %v1697
      %v1778 = vadd.f32 %v1360, %v1702
      %v1779 = vadd.f32 %v1363, %v1705
      %vm1780 = vsmask.f32 3328
      %vm1781 = vsmask.f32 7440
      %vm1782 = vmor %vm1780, %vm1781
      %v1784 = vshrl.u32 %v309, 16
      %v1786 = vrot.slane %v1784, 4
      %v1787 = vshll.u32 %v309, 16
      %v1789 = vrot.slane %v1787, 5
      %v1790 = vor.u32 %v1786, %v1789
      %v1791 = vrot.slane %v1790, 4
      %v1793 = vshll.u32 %v310, 16
      %v1795 = vrot.slane %v1793, 5
      %v1796 = vsel %vm1782, %v1791, %v1795
      %v1797 = vshrl.u32 %v310, 16
      %v1799 = vrot.slane %v1797, 4
      %v1800 = vor.u32 %v1799, %v1795
      %v1801 = vrot.slane %v1800, 4
      %v1803 = vshll.u32 %v311, 16
      %v1805 = vrot.slane %v1803, 5
      %v1806 = vsel %vm1782, %v1801, %v1805
      %v1807 = vshrl.u32 %v311, 16
      %v1809 = vrot.slane %v1807, 4
      %v1810 = vor.u32 %v1809, %v1805
      %v1811 = vrot.slane %v1810, 4
      %v1813 = vshll.u32 %v312, 16
      %v1815 = vrot.slane %v1813, 5
      %v1816 = vsel %vm1782, %v1811, %v1815
      %v1817 = vshrl.u32 %v312, 16
      %v1819 = vrot.slane %v1817, 4
      %v1820 = vor.u32 %v1819, %v1815
      %v1821 = vrot.slane %v1820, 4
      %v1823 = vshll.u32 %v313, 16
      %v1825 = vrot.slane %v1823, 5
      %v1826 = vsel %vm1782, %v1821, %v1825
      %v1828 = vshrl.u32 %v314, 16
      %v1830 = vrot.slane %v1828, 4
      %v1831 = vshll.u32 %v314, 16
      %v1833 = vrot.slane %v1831, 5
      %v1834 = vor.u32 %v1830, %v1833
      %v1835 = vrot.slane %v1834, 4
      %v1837 = vshll.u32 %v315, 16
      %v1839 = vrot.slane %v1837, 5
      %v1840 = vsel %vm1782, %v1835, %v1839
      %v1841 = vshrl.u32 %v315, 16
      %v1843 = vrot.slane %v1841, 4
      %v1844 = vor.u32 %v1843, %v1839
      %v1845 = vrot.slane %v1844, 4
      %v1847 = vshll.u32 %v316, 16
      %v1849 = vrot.slane %v1847, 5
      %v1850 = vsel %vm1782, %v1845, %v1849
      %v1851 = vshrl.u32 %v316, 16
      %v1853 = vrot.slane %v1851, 4
      %v1854 = vor.u32 %v1853, %v1849
      %v1855 = vrot.slane %v1854, 4
      %v1857 = vshll.u32 %v317, 16
      %v1859 = vrot.slane %v1857, 5
      %v1860 = vsel %vm1782, %v1855, %v1859
      %v1861 = vshrl.u32 %v317, 16
      %v1863 = vrot.slane %v1861, 4
      %v1864 = vor.u32 %v1863, %v1859
      %v1865 = vrot.slane %v1864, 4
      %v1867 = vshll.u32 %v318, 16
      %v1869 = vrot.slane %v1867, 5
      %v1870 = vsel %vm1782, %v1865, %v1869
      %v1872 = vshrl.u32 %v319, 16
      %v1874 = vrot.slane %v1872, 4
      %v1875 = vshll.u32 %v319, 16
      %v1877 = vrot.slane %v1875, 5
      %v1878 = vor.u32 %v1874, %v1877
      %v1879 = vrot.slane %v1878, 4
      %v1881 = vshll.u32 %v320, 16
      %v1883 = vrot.slane %v1881, 5
      %v1884 = vsel %vm1782, %v1879, %v1883
      %v1885 = vshrl.u32 %v320, 16
      %v1887 = vrot.slane %v1885, 4
      %v1888 = vor.u32 %v1887, %v1883
      %v1889 = vrot.slane %v1888, 4
      %v1891 = vshll.u32 %v321, 16
      %v1893 = vrot.slane %v1891, 5
      %v1894 = vsel %vm1782, %v1889, %v1893
      %v1895 = vshrl.u32 %v321, 16
      %v1897 = vrot.slane %v1895, 4
      %v1898 = vor.u32 %v1897, %v1893
      %v1899 = vrot.slane %v1898, 4
      %v1901 = vshll.u32 %v322, 16
      %v1903 = vrot.slane %v1901, 5
      %v1904 = vsel %vm1782, %v1899, %v1903
      %v1905 = vshrl.u32 %v322, 16
      %v1907 = vrot.slane %v1905, 4
      %v1908 = vor.u32 %v1907, %v1903
      %v1909 = vrot.slane %v1908, 4
      %v1911 = vshll.u32 %v323, 16
      %v1913 = vrot.slane %v1911, 5
      %v1914 = vsel %vm1782, %v1909, %v1913
      %v1916 = vshrl.u32 %v324, 16
      %v1918 = vrot.slane %v1916, 4
      %v1919 = vshll.u32 %v324, 16
      %v1921 = vrot.slane %v1919, 5
      %v1922 = vor.u32 %v1918, %v1921
      %v1923 = vrot.slane %v1922, 4
      %v1925 = vshll.u32 %v325, 16
      %v1927 = vrot.slane %v1925, 5
      %v1928 = vsel %vm1782, %v1923, %v1927
      %v1929 = vshrl.u32 %v325, 16
      %v1931 = vrot.slane %v1929, 4
      %v1932 = vor.u32 %v1931, %v1927
      %v1933 = vrot.slane %v1932, 4
      %v1935 = vshll.u32 %v326, 16
      %v1937 = vrot.slane %v1935, 5
      %v1938 = vsel %vm1782, %v1933, %v1937
      %v1939 = vshrl.u32 %v326, 16
      %v1941 = vrot.slane %v1939, 4
      %v1942 = vor.u32 %v1941, %v1937
      %v1943 = vrot.slane %v1942, 4
      %v1945 = vshll.u32 %v327, 16
      %v1947 = vrot.slane %v1945, 5
      %v1948 = vsel %vm1782, %v1943, %v1947
      %v1949 = vshrl.u32 %v327, 16
      %v1951 = vrot.slane %v1949, 4
      %v1952 = vor.u32 %v1951, %v1947
      %v1953 = vrot.slane %v1952, 4
      %v1955 = vshll.u32 %v328, 16
      %v1957 = vrot.slane %v1955, 5
      %v1958 = vsel %vm1782, %v1953, %v1957
      %v1960 = vshrl.u32 %v329, 16
      %v1962 = vrot.slane %v1960, 4
      %v1963 = vshll.u32 %v329, 16
      %v1965 = vrot.slane %v1963, 5
      %v1966 = vor.u32 %v1962, %v1965
      %v1967 = vrot.slane %v1966, 4
      %v1969 = vshll.u32 %v330, 16
      %v1971 = vrot.slane %v1969, 5
      %v1972 = vsel %vm1782, %v1967, %v1971
      %v1973 = vshrl.u32 %v330, 16
      %v1975 = vrot.slane %v1973, 4
      %v1976 = vor.u32 %v1975, %v1971
      %v1977 = vrot.slane %v1976, 4
      %v1979 = vshll.u32 %v331, 16
      %v1981 = vrot.slane %v1979, 5
      %v1982 = vsel %vm1782, %v1977, %v1981
      %v1983 = vshrl.u32 %v331, 16
      %v1985 = vrot.slane %v1983, 4
      %v1986 = vor.u32 %v1985, %v1981
      %v1987 = vrot.slane %v1986, 4
      %v1989 = vshll.u32 %v332, 16
      %v1991 = vrot.slane %v1989, 5
      %v1992 = vsel %vm1782, %v1987, %v1991
      %v1993 = vshrl.u32 %v332, 16
      %v1995 = vrot.slane %v1993, 4
      %v1996 = vor.u32 %v1995, %v1991
      %v1997 = vrot.slane %v1996, 4
      %v1999 = vshll.u32 %v333, 16
      %v2001 = vrot.slane %v1999, 5
      %v2002 = vsel %vm1782, %v1997, %v2001
      %v2004 = vshrl.u32 %v334, 16
      %v2006 = vrot.slane %v2004, 4
      %v2007 = vshll.u32 %v334, 16
      %v2009 = vrot.slane %v2007, 5
      %v2010 = vor.u32 %v2006, %v2009
      %v2011 = vrot.slane %v2010, 4
      %v2013 = vshll.u32 %v335, 16
      %v2015 = vrot.slane %v2013, 5
      %v2016 = vsel %vm1782, %v2011, %v2015
      %v2017 = vshrl.u32 %v335, 16
      %v2019 = vrot.slane %v2017, 4
      %v2020 = vor.u32 %v2019, %v2015
      %v2021 = vrot.slane %v2020, 4
      %v2023 = vshll.u32 %v336, 16
      %v2025 = vrot.slane %v2023, 5
      %v2026 = vsel %vm1782, %v2021, %v2025
      %v2027 = vshrl.u32 %v336, 16
      %v2029 = vrot.slane %v2027, 4
      %v2030 = vor.u32 %v2029, %v2025
      %v2031 = vrot.slane %v2030, 4
      %v2033 = vshll.u32 %v337, 16
      %v2035 = vrot.slane %v2033, 5
      %v2036 = vsel %vm1782, %v2031, %v2035
      %v2037 = vshrl.u32 %v337, 16
      %v2039 = vrot.slane %v2037, 4
      %v2040 = vor.u32 %v2039, %v2035
      %v2041 = vrot.slane %v2040, 4
      %v2043 = vshll.u32 %v338, 16
      %v2045 = vrot.slane %v2043, 5
      %v2046 = vsel %vm1782, %v2041, %v2045
      %v2048 = vshrl.u32 %v339, 16
      %v2050 = vrot.slane %v2048, 4
      %v2051 = vshll.u32 %v339, 16
      %v2053 = vrot.slane %v2051, 5
      %v2054 = vor.u32 %v2050, %v2053
      %v2055 = vrot.slane %v2054, 4
      %v2057 = vshll.u32 %v340, 16
      %v2059 = vrot.slane %v2057, 5
      %v2060 = vsel %vm1782, %v2055, %v2059
      %v2061 = vshrl.u32 %v340, 16
      %v2063 = vrot.slane %v2061, 4
      %v2064 = vor.u32 %v2063, %v2059
      %v2065 = vrot.slane %v2064, 4
      %v2067 = vshll.u32 %v341, 16
      %v2069 = vrot.slane %v2067, 5
      %v2070 = vsel %vm1782, %v2065, %v2069
      %v2071 = vshrl.u32 %v341, 16
      %v2073 = vrot.slane %v2071, 4
      %v2074 = vor.u32 %v2073, %v2069
      %v2075 = vrot.slane %v2074, 4
      %v2077 = vshll.u32 %v342, 16
      %v2079 = vrot.slane %v2077, 5
      %v2080 = vsel %vm1782, %v2075, %v2079
      %v2081 = vshrl.u32 %v342, 16
      %v2083 = vrot.slane %v2081, 4
      %v2084 = vor.u32 %v2083, %v2079
      %v2085 = vrot.slane %v2084, 4
      %v2087 = vshll.u32 %v343, 16
      %v2089 = vrot.slane %v2087, 5
      %v2090 = vsel %vm1782, %v2085, %v2089
      %v2092 = vshrl.u32 %v344, 16
      %v2094 = vrot.slane %v2092, 4
      %v2095 = vshll.u32 %v344, 16
      %v2097 = vrot.slane %v2095, 5
      %v2098 = vor.u32 %v2094, %v2097
      %v2099 = vrot.slane %v2098, 4
      %v2101 = vshll.u32 %v345, 16
      %v2103 = vrot.slane %v2101, 5
      %v2104 = vsel %vm1782, %v2099, %v2103
      %v2105 = vshrl.u32 %v345, 16
      %v2107 = vrot.slane %v2105, 4
      %v2108 = vor.u32 %v2107, %v2103
      %v2109 = vrot.slane %v2108, 4
      %v2111 = vshll.u32 %v346, 16
      %v2113 = vrot.slane %v2111, 5
      %v2114 = vsel %vm1782, %v2109, %v2113
      %v2115 = vshrl.u32 %v346, 16
      %v2117 = vrot.slane %v2115, 4
      %v2118 = vor.u32 %v2117, %v2113
      %v2119 = vrot.slane %v2118, 4
      %v2121 = vshll.u32 %v347, 16
      %v2123 = vrot.slane %v2121, 5
      %v2124 = vsel %vm1782, %v2119, %v2123
      %v2125 = vshrl.u32 %v347, 16
      %v2127 = vrot.slane %v2125, 4
      %v2128 = vor.u32 %v2127, %v2123
      %v2129 = vrot.slane %v2128, 4
      %v2131 = vshll.u32 %v348, 16
      %v2133 = vrot.slane %v2131, 5
      %v2134 = vsel %vm1782, %v2129, %v2133
      %v2136 = vshrl.u32 %v349, 16
      %v2138 = vrot.slane %v2136, 4
      %v2139 = vshll.u32 %v349, 16
      %v2141 = vrot.slane %v2139, 5
      %v2142 = vor.u32 %v2138, %v2141
      %v2143 = vrot.slane %v2142, 4
      %v2145 = vshll.u32 %v350, 16
      %v2147 = vrot.slane %v2145, 5
      %v2148 = vsel %vm1782, %v2143, %v2147
      %v2149 = vshrl.u32 %v350, 16
      %v2151 = vrot.slane %v2149, 4
      %v2152 = vor.u32 %v2151, %v2147
      %v2153 = vrot.slane %v2152, 4
      %v2155 = vshll.u32 %v351, 16
      %v2157 = vrot.slane %v2155, 5
      %v2158 = vsel %vm1782, %v2153, %v2157
      %v2159 = vshrl.u32 %v351, 16
      %v2161 = vrot.slane %v2159, 4
      %v2162 = vor.u32 %v2161, %v2157
      %v2163 = vrot.slane %v2162, 4
      %v2165 = vshll.u32 %v352, 16
      %v2167 = vrot.slane %v2165, 5
      %v2168 = vsel %vm1782, %v2163, %v2167
      %v2169 = vshrl.u32 %v352, 16
      %v2171 = vrot.slane %v2169, 4
      %v2172 = vor.u32 %v2171, %v2167
      %v2173 = vrot.slane %v2172, 4
      %v2175 = vshll.u32 %v353, 16
      %v2177 = vrot.slane %v2175, 5
      %v2178 = vsel %vm1782, %v2173, %v2177
      %v2180 = vshrl.u32 %v354, 16
      %v2182 = vrot.slane %v2180, 4
      %v2183 = vshll.u32 %v354, 16
      %v2185 = vrot.slane %v2183, 5
      %v2186 = vor.u32 %v2182, %v2185
      %v2187 = vrot.slane %v2186, 4
      %v2189 = vshll.u32 %v355, 16
      %v2191 = vrot.slane %v2189, 5
      %v2192 = vsel %vm1782, %v2187, %v2191
      %v2193 = vshrl.u32 %v355, 16
      %v2195 = vrot.slane %v2193, 4
      %v2196 = vor.u32 %v2195, %v2191
      %v2197 = vrot.slane %v2196, 4
      %v2199 = vshll.u32 %v356, 16
      %v2201 = vrot.slane %v2199, 5
      %v2202 = vsel %vm1782, %v2197, %v2201
      %v2203 = vshrl.u32 %v356, 16
      %v2205 = vrot.slane %v2203, 4
      %v2206 = vor.u32 %v2205, %v2201
      %v2207 = vrot.slane %v2206, 4
      %v2209 = vshll.u32 %v357, 16
      %v2211 = vrot.slane %v2209, 5
      %v2212 = vsel %vm1782, %v2207, %v2211
      %v2213 = vshrl.u32 %v357, 16
      %v2215 = vrot.slane %v2213, 4
      %v2216 = vor.u32 %v2215, %v2211
      %v2217 = vrot.slane %v2216, 4
      %v2219 = vshll.u32 %v358, 16
      %v2221 = vrot.slane %v2219, 5
      %v2222 = vsel %vm1782, %v2217, %v2221
      %v2224 = vshrl.u32 %v359, 16
      %v2226 = vrot.slane %v2224, 4
      %v2227 = vshll.u32 %v359, 16
      %v2229 = vrot.slane %v2227, 5
      %v2230 = vor.u32 %v2226, %v2229
      %v2231 = vrot.slane %v2230, 4
      %v2233 = vshll.u32 %v360, 16
      %v2235 = vrot.slane %v2233, 5
      %v2236 = vsel %vm1782, %v2231, %v2235
      %v2237 = vshrl.u32 %v360, 16
      %v2239 = vrot.slane %v2237, 4
      %v2240 = vor.u32 %v2239, %v2235
      %v2241 = vrot.slane %v2240, 4
      %v2243 = vshll.u32 %v361, 16
      %v2245 = vrot.slane %v2243, 5
      %v2246 = vsel %vm1782, %v2241, %v2245
      %v2247 = vshrl.u32 %v361, 16
      %v2249 = vrot.slane %v2247, 4
      %v2250 = vor.u32 %v2249, %v2245
      %v2251 = vrot.slane %v2250, 4
      %v2253 = vshll.u32 %v362, 16
      %v2255 = vrot.slane %v2253, 5
      %v2256 = vsel %vm1782, %v2251, %v2255
      %v2257 = vshrl.u32 %v362, 16
      %v2259 = vrot.slane %v2257, 4
      %v2260 = vor.u32 %v2259, %v2255
      %v2261 = vrot.slane %v2260, 4
      %v2263 = vshll.u32 %v363, 16
      %v2265 = vrot.slane %v2263, 5
      %v2266 = vsel %vm1782, %v2261, %v2265
      %v2268 = vshrl.u32 %v364, 16
      %v2270 = vrot.slane %v2268, 4
      %v2271 = vshll.u32 %v364, 16
      %v2273 = vrot.slane %v2271, 5
      %v2274 = vor.u32 %v2270, %v2273
      %v2275 = vrot.slane %v2274, 4
      %v2277 = vshll.u32 %v365, 16
      %v2279 = vrot.slane %v2277, 5
      %v2280 = vsel %vm1782, %v2275, %v2279
      %v2281 = vshrl.u32 %v365, 16
      %v2283 = vrot.slane %v2281, 4
      %v2284 = vor.u32 %v2283, %v2279
      %v2285 = vrot.slane %v2284, 4
      %v2287 = vshll.u32 %v366, 16
      %v2289 = vrot.slane %v2287, 5
      %v2290 = vsel %vm1782, %v2285, %v2289
      %v2291 = vshrl.u32 %v366, 16
      %v2293 = vrot.slane %v2291, 4
      %v2294 = vor.u32 %v2293, %v2289
      %v2295 = vrot.slane %v2294, 4
      %v2297 = vshll.u32 %v367, 16
      %v2299 = vrot.slane %v2297, 5
      %v2300 = vsel %vm1782, %v2295, %v2299
      %v2301 = vshrl.u32 %v367, 16
      %v2303 = vrot.slane %v2301, 4
      %v2304 = vor.u32 %v2303, %v2299
      %v2305 = vrot.slane %v2304, 4
      %v2307 = vshll.u32 %v368, 16
      %v2309 = vrot.slane %v2307, 5
      %v2310 = vsel %vm1782, %v2305, %v2309
      %v2312 = vshrl.u32 %v369, 16
      %v2314 = vrot.slane %v2312, 4
      %v2315 = vshll.u32 %v369, 16
      %v2317 = vrot.slane %v2315, 5
      %v2318 = vor.u32 %v2314, %v2317
      %v2319 = vrot.slane %v2318, 4
      %v2321 = vshll.u32 %v370, 16
      %v2323 = vrot.slane %v2321, 5
      %v2324 = vsel %vm1782, %v2319, %v2323
      %v2325 = vshrl.u32 %v370, 16
      %v2327 = vrot.slane %v2325, 4
      %v2328 = vor.u32 %v2327, %v2323
      %v2329 = vrot.slane %v2328, 4
      %v2331 = vshll.u32 %v371, 16
      %v2333 = vrot.slane %v2331, 5
      %v2334 = vsel %vm1782, %v2329, %v2333
      %v2335 = vshrl.u32 %v371, 16
      %v2337 = vrot.slane %v2335, 4
      %v2338 = vor.u32 %v2337, %v2333
      %v2339 = vrot.slane %v2338, 4
      %v2341 = vshll.u32 %v372, 16
      %v2343 = vrot.slane %v2341, 5
      %v2344 = vsel %vm1782, %v2339, %v2343
      %v2345 = vshrl.u32 %v372, 16
      %v2347 = vrot.slane %v2345, 4
      %v2348 = vor.u32 %v2347, %v2343
      %v2349 = vrot.slane %v2348, 4
      %v2351 = vshll.u32 %v373, 16
      %v2353 = vrot.slane %v2351, 5
      %v2354 = vsel %vm1782, %v2349, %v2353
      %v2356 = vshrl.u32 %v374, 16
      %v2358 = vrot.slane %v2356, 4
      %v2359 = vshll.u32 %v374, 16
      %v2361 = vrot.slane %v2359, 5
      %v2362 = vor.u32 %v2358, %v2361
      %v2363 = vrot.slane %v2362, 4
      %v2365 = vshll.u32 %v375, 16
      %v2367 = vrot.slane %v2365, 5
      %v2368 = vsel %vm1782, %v2363, %v2367
      %v2369 = vshrl.u32 %v375, 16
      %v2371 = vrot.slane %v2369, 4
      %v2372 = vor.u32 %v2371, %v2367
      %v2373 = vrot.slane %v2372, 4
      %v2375 = vshll.u32 %v376, 16
      %v2377 = vrot.slane %v2375, 5
      %v2378 = vsel %vm1782, %v2373, %v2377
      %v2379 = vshrl.u32 %v376, 16
      %v2381 = vrot.slane %v2379, 4
      %v2382 = vor.u32 %v2381, %v2377
      %v2383 = vrot.slane %v2382, 4
      %v2385 = vshll.u32 %v377, 16
      %v2387 = vrot.slane %v2385, 5
      %v2388 = vsel %vm1782, %v2383, %v2387
      %v2389 = vshrl.u32 %v377, 16
      %v2391 = vrot.slane %v2389, 4
      %v2392 = vor.u32 %v2391, %v2387
      %v2393 = vrot.slane %v2392, 4
      %v2395 = vshll.u32 %v378, 16
      %v2397 = vrot.slane %v2395, 5
      %v2398 = vsel %vm1782, %v2393, %v2397
      %v2400 = vshrl.u32 %v379, 16
      %v2402 = vrot.slane %v2400, 4
      %v2403 = vshll.u32 %v379, 16
      %v2405 = vrot.slane %v2403, 5
      %v2406 = vor.u32 %v2402, %v2405
      %v2407 = vrot.slane %v2406, 4
      %v2409 = vshll.u32 %v380, 16
      %v2411 = vrot.slane %v2409, 5
      %v2412 = vsel %vm1782, %v2407, %v2411
      %v2413 = vshrl.u32 %v380, 16
      %v2415 = vrot.slane %v2413, 4
      %v2416 = vor.u32 %v2415, %v2411
      %v2417 = vrot.slane %v2416, 4
      %v2419 = vshll.u32 %v381, 16
      %v2421 = vrot.slane %v2419, 5
      %v2422 = vsel %vm1782, %v2417, %v2421
      %v2423 = vshrl.u32 %v381, 16
      %v2425 = vrot.slane %v2423, 4
      %v2426 = vor.u32 %v2425, %v2421
      %v2427 = vrot.slane %v2426, 4
      %v2429 = vshll.u32 %v382, 16
      %v2431 = vrot.slane %v2429, 5
      %v2432 = vsel %vm1782, %v2427, %v2431
      %v2433 = vshrl.u32 %v382, 16
      %v2435 = vrot.slane %v2433, 4
      %v2436 = vor.u32 %v2435, %v2431
      %v2437 = vrot.slane %v2436, 4
      %v2439 = vshll.u32 %v383, 16
      %v2441 = vrot.slane %v2439, 5
      %v2442 = vsel %vm1782, %v2437, %v2441
      %v2444 = vshrl.u32 %v384, 16
      %v2446 = vrot.slane %v2444, 4
      %v2447 = vshll.u32 %v384, 16
      %v2449 = vrot.slane %v2447, 5
      %v2450 = vor.u32 %v2446, %v2449
      %v2451 = vrot.slane %v2450, 4
      %v2453 = vshll.u32 %v385, 16
      %v2455 = vrot.slane %v2453, 5
      %v2456 = vsel %vm1782, %v2451, %v2455
      %v2457 = vshrl.u32 %v385, 16
      %v2459 = vrot.slane %v2457, 4
      %v2460 = vor.u32 %v2459, %v2455
      %v2461 = vrot.slane %v2460, 4
      %v2463 = vshll.u32 %v386, 16
      %v2465 = vrot.slane %v2463, 5
      %v2466 = vsel %vm1782, %v2461, %v2465
      %v2467 = vshrl.u32 %v386, 16
      %v2469 = vrot.slane %v2467, 4
      %v2470 = vor.u32 %v2469, %v2465
      %v2471 = vrot.slane %v2470, 4
      %v2473 = vshll.u32 %v387, 16
      %v2475 = vrot.slane %v2473, 5
      %v2476 = vsel %vm1782, %v2471, %v2475
      %v2477 = vshrl.u32 %v387, 16
      %v2479 = vrot.slane %v2477, 4
      %v2480 = vor.u32 %v2479, %v2475
      %v2481 = vrot.slane %v2480, 4
      %v2483 = vshll.u32 %v388, 16
      %v2485 = vrot.slane %v2483, 5
      %v2486 = vsel %vm1782, %v2481, %v2485
      %v2488 = vshrl.u32 %v389, 16
      %v2490 = vrot.slane %v2488, 4
      %v2491 = vshll.u32 %v389, 16
      %v2493 = vrot.slane %v2491, 5
      %v2494 = vor.u32 %v2490, %v2493
      %v2495 = vrot.slane %v2494, 4
      %v2497 = vshll.u32 %v390, 16
      %v2499 = vrot.slane %v2497, 5
      %v2500 = vsel %vm1782, %v2495, %v2499
      %v2501 = vshrl.u32 %v390, 16
      %v2503 = vrot.slane %v2501, 4
      %v2504 = vor.u32 %v2503, %v2499
      %v2505 = vrot.slane %v2504, 4
      %v2507 = vshll.u32 %v391, 16
      %v2509 = vrot.slane %v2507, 5
      %v2510 = vsel %vm1782, %v2505, %v2509
      %v2511 = vshrl.u32 %v391, 16
      %v2513 = vrot.slane %v2511, 4
      %v2514 = vor.u32 %v2513, %v2509
      %v2515 = vrot.slane %v2514, 4
      %v2517 = vshll.u32 %v392, 16
      %v2519 = vrot.slane %v2517, 5
      %v2520 = vsel %vm1782, %v2515, %v2519
      %v2521 = vshrl.u32 %v392, 16
      %v2523 = vrot.slane %v2521, 4
      %v2524 = vor.u32 %v2523, %v2519
      %v2525 = vrot.slane %v2524, 4
      %v2527 = vshll.u32 %v393, 16
      %v2529 = vrot.slane %v2527, 5
      %v2530 = vsel %vm1782, %v2525, %v2529
      %v2532 = vshrl.u32 %v394, 16
      %v2534 = vrot.slane %v2532, 4
      %v2535 = vshll.u32 %v394, 16
      %v2537 = vrot.slane %v2535, 5
      %v2538 = vor.u32 %v2534, %v2537
      %v2539 = vrot.slane %v2538, 4
      %v2541 = vshll.u32 %v395, 16
      %v2543 = vrot.slane %v2541, 5
      %v2544 = vsel %vm1782, %v2539, %v2543
      %v2545 = vshrl.u32 %v395, 16
      %v2547 = vrot.slane %v2545, 4
      %v2548 = vor.u32 %v2547, %v2543
      %v2549 = vrot.slane %v2548, 4
      %v2551 = vshll.u32 %v396, 16
      %v2553 = vrot.slane %v2551, 5
      %v2554 = vsel %vm1782, %v2549, %v2553
      %v2555 = vshrl.u32 %v396, 16
      %v2557 = vrot.slane %v2555, 4
      %v2558 = vor.u32 %v2557, %v2553
      %v2559 = vrot.slane %v2558, 4
      %v2561 = vshll.u32 %v397, 16
      %v2563 = vrot.slane %v2561, 5
      %v2564 = vsel %vm1782, %v2559, %v2563
      %v2565 = vshrl.u32 %v397, 16
      %v2567 = vrot.slane %v2565, 4
      %v2568 = vor.u32 %v2567, %v2563
      %v2569 = vrot.slane %v2568, 4
      %v2571 = vshll.u32 %v398, 16
      %v2573 = vrot.slane %v2571, 5
      %v2574 = vsel %vm1782, %v2569, %v2573
      %s2575 = scalar_lea.vmem %s1, 2
      %v2576 = vld [vmem:[%s2575] sm:$0x3]
      %v2577 = vunpack.c.l.b16 %v1796
      %v2578 = vunpack.c.l.b16 %v1806
      %v2579 = vunpack.c.l.b16 %v1816
      %v2580 = vunpack.c.l.b16 %v1826
      %v2581 = vunpack.c.l.b16 %v1840
      %v2582 = vunpack.c.l.b16 %v1850
      %v2583 = vunpack.c.l.b16 %v1860
      %v2584 = vunpack.c.l.b16 %v1870
      %v2585 = vunpack.c.l.b16 %v1884
      %v2586 = vunpack.c.l.b16 %v1894
      %v2587 = vunpack.c.l.b16 %v1904
      %v2588 = vunpack.c.l.b16 %v1914
      %v2589 = vunpack.c.l.b16 %v1928
      %v2590 = vunpack.c.l.b16 %v1938
      %v2591 = vunpack.c.l.b16 %v1948
      %v2592 = vunpack.c.l.b16 %v1958
      %v2593 = vunpack.c.l.b16 %v1972
      %v2594 = vunpack.c.l.b16 %v1982
      %v2595 = vunpack.c.l.b16 %v1992
      %v2596 = vunpack.c.l.b16 %v2002
      %v2597 = vunpack.c.l.b16 %v2016
      %v2598 = vunpack.c.l.b16 %v2026
      %v2599 = vunpack.c.l.b16 %v2036
      %v2600 = vunpack.c.l.b16 %v2046
      %v2601 = vunpack.c.l.b16 %v2060
      %v2602 = vunpack.c.l.b16 %v2070
      %v2603 = vunpack.c.l.b16 %v2080
      %v2604 = vunpack.c.l.b16 %v2090
      %v2605 = vunpack.c.l.b16 %v2104
      %v2606 = vunpack.c.l.b16 %v2114
      %v2607 = vunpack.c.l.b16 %v2124
      %v2608 = vunpack.c.l.b16 %v2134
      %v2609 = vunpack.c.l.b16 %v2148
      %v2610 = vunpack.c.l.b16 %v2158
      %v2611 = vunpack.c.l.b16 %v2168
      %v2612 = vunpack.c.l.b16 %v2178
      %v2613 = vunpack.c.l.b16 %v2192
      %v2614 = vunpack.c.l.b16 %v2202
      %v2615 = vunpack.c.l.b16 %v2212
      %v2616 = vunpack.c.l.b16 %v2222
      %v2617 = vunpack.c.l.b16 %v2236
      %v2618 = vunpack.c.l.b16 %v2246
      %v2619 = vunpack.c.l.b16 %v2256
      %v2620 = vunpack.c.l.b16 %v2266
      %v2621 = vunpack.c.l.b16 %v2280
      %v2622 = vunpack.c.l.b16 %v2290
      %v2623 = vunpack.c.l.b16 %v2300
      %v2624 = vunpack.c.l.b16 %v2310
      %v2625 = vunpack.c.l.b16 %v2324
      %v2626 = vunpack.c.l.b16 %v2334
      %v2627 = vunpack.c.l.b16 %v2344
      %v2628 = vunpack.c.l.b16 %v2354
      %v2629 = vunpack.c.l.b16 %v2368
      %v2630 = vunpack.c.l.b16 %v2378
      %v2631 = vunpack.c.l.b16 %v2388
      %v2632 = vunpack.c.l.b16 %v2398
      %v2633 = vunpack.c.l.b16 %v2412
      %v2634 = vunpack.c.l.b16 %v2422
      %v2635 = vunpack.c.l.b16 %v2432
      %v2636 = vunpack.c.l.b16 %v2442
      %v2637 = vunpack.c.l.b16 %v2456
      %v2638 = vunpack.c.l.b16 %v2466
      %v2639 = vunpack.c.l.b16 %v2476
      %v2640 = vunpack.c.l.b16 %v2486
      %v2641 = vunpack.c.l.b16 %v2500
      %v2642 = vunpack.c.l.b16 %v2510
      %v2643 = vunpack.c.l.b16 %v2520
      %v2644 = vunpack.c.l.b16 %v2530
      %v2645 = vunpack.c.l.b16 %v2544
      %v2646 = vunpack.c.l.b16 %v2554
      %v2647 = vunpack.c.l.b16 %v2564
      %v2648 = vunpack.c.l.b16 %v2574
      %v2649 = vpack.c.b16 %v2578, %v2577
      %v2650 = vpack.c.b16 %v2580, %v2579
      %v2651 = vpack.c.b16 %v2582, %v2581
      %v2652 = vpack.c.b16 %v2584, %v2583
      %v2653 = vpack.c.b16 %v2586, %v2585
      %v2654 = vpack.c.b16 %v2588, %v2587
      %v2655 = vpack.c.b16 %v2590, %v2589
      %v2656 = vpack.c.b16 %v2592, %v2591
      %v2657 = vpack.c.b16 %v2594, %v2593
      %v2658 = vpack.c.b16 %v2596, %v2595
      %v2659 = vpack.c.b16 %v2598, %v2597
      %v2660 = vpack.c.b16 %v2600, %v2599
      %v2661 = vpack.c.b16 %v2602, %v2601
      %v2662 = vpack.c.b16 %v2604, %v2603
      %v2663 = vpack.c.b16 %v2606, %v2605
      %v2664 = vpack.c.b16 %v2608, %v2607
      %v2665 = vpack.c.b16 %v2610, %v2609
      %v2666 = vpack.c.b16 %v2612, %v2611
      %v2667 = vpack.c.b16 %v2614, %v2613
      %v2668 = vpack.c.b16 %v2616, %v2615
      %v2669 = vpack.c.b16 %v2618, %v2617
      %v2670 = vpack.c.b16 %v2620, %v2619
      %v2671 = vpack.c.b16 %v2622, %v2621
      %v2672 = vpack.c.b16 %v2624, %v2623
      %v2673 = vpack.c.b16 %v2626, %v2625
      %v2674 = vpack.c.b16 %v2628, %v2627
      %v2675 = vpack.c.b16 %v2630, %v2629
      %v2676 = vpack.c.b16 %v2632, %v2631
      %v2677 = vpack.c.b16 %v2634, %v2633
      %v2678 = vpack.c.b16 %v2636, %v2635
      %v2679 = vpack.c.b16 %v2638, %v2637
      %v2680 = vpack.c.b16 %v2640, %v2639
      %v2681 = vpack.c.b16 %v2642, %v2641
      %v2682 = vpack.c.b16 %v2644, %v2643
      %v2683 = vpack.c.b16 %v2646, %v2645
      %v2684 = vpack.c.b16 %v2648, %v2647
      %v2686 = vsel %vm592, %v2649, 0
      %v2689 = vsel %vm592, %v2650, 0
      %v2692 = vsel %vm592, %v2651, 0
      %v2695 = vsel %vm592, %v2652, 0
      %v2698 = vsel %vm592, %v2653, 0
      %v2701 = vsel %vm592, %v2654, 0
      %v2704 = vsel %vm592, %v2655, 0
      %v2707 = vsel %vm592, %v2656, 0
      %v2710 = vsel %vm592, %v2657, 0
      %v2713 = vsel %vm592, %v2658, 0
      %v2716 = vsel %vm592, %v2659, 0
      %v2719 = vsel %vm592, %v2660, 0
      %v2722 = vsel %vm592, %v2661, 0
      %v2725 = vsel %vm592, %v2662, 0
      %v2728 = vsel %vm592, %v2663, 0
      %v2731 = vsel %vm592, %v2664, 0
      %v2734 = vsel %vm592, %v2665, 0
      %v2737 = vsel %vm592, %v2666, 0
      %v2740 = vsel %vm592, %v2667, 0
      %v2743 = vsel %vm592, %v2668, 0
      %v2746 = vsel %vm592, %v2669, 0
      %v2749 = vsel %vm592, %v2670, 0
      %v2752 = vsel %vm592, %v2671, 0
      %v2755 = vsel %vm592, %v2672, 0
      %v2758 = vsel %vm592, %v2673, 0
      %v2761 = vsel %vm592, %v2674, 0
      %v2764 = vsel %vm592, %v2675, 0
      %v2767 = vsel %vm592, %v2676, 0
      %v2770 = vsel %vm592, %v2677, 0
      %v2773 = vsel %vm592, %v2678, 0
      %v2776 = vsel %vm592, %v2679, 0
      %v2779 = vsel %vm592, %v2680, 0
      %v2782 = vsel %vm592, %v2681, 0
      %v2785 = vsel %vm592, %v2682, 0
      %v2788 = vsel %vm592, %v2683, 0
      %v2791 = vsel %vm592, %v2684, 0
      %v2794 = vsel %vm701, %v2576, 0
      %2796 = vmatprep.subr.bf16.mxu0 0
      %2797 = vmatpush1.bf16.msra.mxu0 %v2794
      %2798 = vmatprep.subr.bf16.mxu0 0
      %2799 = vmatpush1.bf16.msra.mxu0 0
      %2800 = vmatprep.subr.bf16.mxu0 0
      %2801 = vmatpush1.bf16.msra.mxu0 0
      %2802 = vmatprep.subr.bf16.mxu0 0
      %2803 = vmatpush1.bf16.msra.mxu0 0
      %2804 = vmatprep.subr.bf16.mxu0 0
      %2805 = vmatpush1.bf16.msra.mxu0 0
      %2806 = vmatprep.subr.bf16.mxu0 0
      %2807 = vmatpush1.bf16.msra.mxu0 0
      %2808 = vmatprep.subr.bf16.mxu0 0
      %2809 = vmatpush1.bf16.msra.mxu0 0
      %2810 = vmatprep.subr.bf16.mxu0 0
      %2811 = vmatpush1.bf16.msra.mxu0 0
      %2812 = vmatprep.subr.bf16.mxu0 0
      %2813 = vmatpush1.bf16.msra.mxu0 0
      %2814 = vmatprep.subr.bf16.mxu0 0
      %2815 = vmatpush1.bf16.msra.mxu0 0
      %2816 = vmatprep.subr.bf16.mxu0 0
      %2817 = vmatpush1.bf16.msra.mxu0 0
      %2818 = vmatprep.subr.bf16.mxu0 0
      %2819 = vmatpush1.bf16.msra.mxu0 0
      %2820 = vmatprep.subr.bf16.mxu0 0
      %2821 = vmatpush1.bf16.msra.mxu0 0
      %2822 = vmatprep.subr.bf16.mxu0 0
      %2823 = vmatpush1.bf16.msra.mxu0 0
      %2824 = vmatprep.subr.bf16.mxu0 0
      %2825 = vmatpush1.bf16.msra.mxu0 0
      %2826 = vmatprep.subr.bf16.mxu0 0
      %2827 = vmatpush1.bf16.msra.mxu0 0
      %2828 = vmatprep.mubr.bf16.mxu0 0
      %2829 = vmatmul.mubr.bf16.gmra.mrb[0].mxu0 %v2686
      %v2830 = vpop.f32.mrb[0].mxu0
      %v2831 = vadd.f32 0.0, %v2830
      %v2832 = vpop.f32.mrb[0].mxu0
      %v2833 = vpop.f32.mrb[0].mxu0
      %v2834 = vadd.f32 0.0, %v2833
      %v2835 = vpop.f32.mrb[0].mxu0
      %2836 = vmatprep.mubr.bf16.mxu0 0
      %2837 = vmatmul.mubr.bf16.gmra.mrb[0].mxu0 %v2689
      %v2838 = vpop.f32.mrb[0].mxu0
      %v2839 = vadd.f32 0.0, %v2838
      %v2840 = vpop.f32.mrb[0].mxu0
      %v2841 = vpop.f32.mrb[0].mxu0
      %v2842 = vadd.f32 0.0, %v2841
      %v2843 = vpop.f32.mrb[0].mxu0
      %2844 = vmatprep.mubr.bf16.mxu0 0
      %2845 = vmatmul.mubr.bf16.gmra.mrb[0].mxu0 %v2692
      %v2846 = vpop.f32.mrb[0].mxu0
      %v2847 = vadd.f32 0.0, %v2846
      %v2848 = vpop.f32.mrb[0].mxu0
      %v2849 = vpop.f32.mrb[0].mxu0
      %v2850 = vadd.f32 0.0, %v2849
      %v2851 = vpop.f32.mrb[0].mxu0
      %2852 = vmatprep.mubr.bf16.mxu0 0
      %2853 = vmatmul.mubr.bf16.gmra.mrb[0].mxu0 %v2695
      %v2854 = vpop.f32.mrb[0].mxu0
      %v2855 = vadd.f32 0.0, %v2854
      %v2856 = vpop.f32.mrb[0].mxu0
      %v2857 = vpop.f32.mrb[0].mxu0
      %v2858 = vadd.f32 0.0, %v2857
      %v2859 = vpop.f32.mrb[0].mxu0
      %2860 = vmatprep.mubr.bf16.mxu0 0
      %2861 = vmatmul.mubr.bf16.gmra.mrb[0].mxu0 %v2698
      %v2862 = vpop.f32.mrb[0].mxu0
      %v2863 = vadd.f32 0.0, %v2862
      %v2864 = vpop.f32.mrb[0].mxu0
      %v2865 = vpop.f32.mrb[0].mxu0
      %v2866 = vadd.f32 0.0, %v2865
      %v2867 = vpop.f32.mrb[0].mxu0
      %2868 = vmatprep.mubr.bf16.mxu0 0
      %2869 = vmatmul.mubr.bf16.gmra.mrb[0].mxu0 %v2701
      %v2870 = vpop.f32.mrb[0].mxu0
      %v2871 = vadd.f32 0.0, %v2870
      %v2872 = vpop.f32.mrb[0].mxu0
      %v2873 = vpop.f32.mrb[0].mxu0
      %v2874 = vadd.f32 0.0, %v2873
      %v2875 = vpop.f32.mrb[0].mxu0
      %2876 = vmatprep.mubr.bf16.mxu0 0
      %2877 = vmatmul.mubr.bf16.gmra.mrb[0].mxu0 %v2704
      %v2878 = vpop.f32.mrb[0].mxu0
      %v2879 = vadd.f32 0.0, %v2878
      %v2880 = vpop.f32.mrb[0].mxu0
      %v2881 = vpop.f32.mrb[0].mxu0
      %v2882 = vadd.f32 0.0, %v2881
      %v2883 = vpop.f32.mrb[0].mxu0
      %2884 = vmatprep.mubr.bf16.mxu0 0
      %2885 = vmatmul.mubr.bf16.gmra.mrb[0].mxu0 %v2707
      %v2886 = vpop.f32.mrb[0].mxu0
      %v2887 = vadd.f32 0.0, %v2886
      %v2888 = vpop.f32.mrb[0].mxu0
      %v2889 = vpop.f32.mrb[0].mxu0
      %v2890 = vadd.f32 0.0, %v2889
      %v2891 = vpop.f32.mrb[0].mxu0
      %2892 = vmatprep.mubr.bf16.mxu0 0
      %2893 = vmatmul.mubr.bf16.gmra.mrb[0].mxu0 %v2710
      %v2894 = vpop.f32.mrb[0].mxu0
      %v2895 = vadd.f32 0.0, %v2894
      %v2896 = vpop.f32.mrb[0].mxu0
      %v2897 = vpop.f32.mrb[0].mxu0
      %v2898 = vadd.f32 0.0, %v2897
      %v2899 = vpop.f32.mrb[0].mxu0
      %2900 = vmatprep.mubr.bf16.mxu0 0
      %2901 = vmatmul.mubr.bf16.gmra.mrb[0].mxu0 %v2713
      %v2902 = vpop.f32.mrb[0].mxu0
      %v2903 = vadd.f32 0.0, %v2902
      %v2904 = vpop.f32.mrb[0].mxu0
      %v2905 = vpop.f32.mrb[0].mxu0
      %v2906 = vadd.f32 0.0, %v2905
      %v2907 = vpop.f32.mrb[0].mxu0
      %2908 = vmatprep.mubr.bf16.mxu0 0
      %2909 = vmatmul.mubr.bf16.gmra.mrb[0].mxu0 %v2716
      %v2910 = vpop.f32.mrb[0].mxu0
      %v2911 = vadd.f32 0.0, %v2910
      %v2912 = vpop.f32.mrb[0].mxu0
      %v2913 = vpop.f32.mrb[0].mxu0
      %v2914 = vadd.f32 0.0, %v2913
      %v2915 = vpop.f32.mrb[0].mxu0
      %2916 = vmatprep.mubr.bf16.mxu0 0
      %2917 = vmatmul.mubr.bf16.gmra.mrb[0].mxu0 %v2719
      %v2918 = vpop.f32.mrb[0].mxu0
      %v2919 = vadd.f32 0.0, %v2918
      %v2920 = vpop.f32.mrb[0].mxu0
      %v2921 = vpop.f32.mrb[0].mxu0
      %v2922 = vadd.f32 0.0, %v2921
      %v2923 = vpop.f32.mrb[0].mxu0
      %2924 = vmatprep.mubr.bf16.mxu0 0
      %2925 = vmatmul.mubr.bf16.gmra.mrb[0].mxu0 %v2722
      %v2926 = vpop.f32.mrb[0].mxu0
      %v2927 = vadd.f32 0.0, %v2926
      %v2928 = vpop.f32.mrb[0].mxu0
      %v2929 = vpop.f32.mrb[0].mxu0
      %v2930 = vadd.f32 0.0, %v2929
      %v2931 = vpop.f32.mrb[0].mxu0
      %2932 = vmatprep.mubr.bf16.mxu0 0
      %2933 = vmatmul.mubr.bf16.gmra.mrb[0].mxu0 %v2725
      %v2934 = vpop.f32.mrb[0].mxu0
      %v2935 = vadd.f32 0.0, %v2934
      %v2936 = vpop.f32.mrb[0].mxu0
      %v2937 = vpop.f32.mrb[0].mxu0
      %v2938 = vadd.f32 0.0, %v2937
      %v2939 = vpop.f32.mrb[0].mxu0
      %2940 = vmatprep.mubr.bf16.mxu0 0
      %2941 = vmatmul.mubr.bf16.gmra.mrb[0].mxu0 %v2728
      %v2942 = vpop.f32.mrb[0].mxu0
      %v2943 = vadd.f32 0.0, %v2942
      %v2944 = vpop.f32.mrb[0].mxu0
      %v2945 = vpop.f32.mrb[0].mxu0
      %v2946 = vadd.f32 0.0, %v2945
      %v2947 = vpop.f32.mrb[0].mxu0
      %2948 = vmatprep.mubr.bf16.mxu0 0
      %2949 = vmatmul.mubr.bf16.gmra.mrb[0].mxu0 %v2731
      %v2950 = vpop.f32.mrb[0].mxu0
      %v2951 = vadd.f32 0.0, %v2950
      %v2952 = vpop.f32.mrb[0].mxu0
      %v2953 = vpop.f32.mrb[0].mxu0
      %v2954 = vadd.f32 0.0, %v2953
      %v2955 = vpop.f32.mrb[0].mxu0
      %2956 = vmatprep.mubr.bf16.mxu0 0
      %2957 = vmatmul.mubr.bf16.gmra.mrb[0].mxu0 %v2734
      %v2958 = vpop.f32.mrb[0].mxu0
      %v2959 = vadd.f32 0.0, %v2958
      %v2960 = vpop.f32.mrb[0].mxu0
      %v2961 = vpop.f32.mrb[0].mxu0
      %v2962 = vadd.f32 0.0, %v2961
      %v2963 = vpop.f32.mrb[0].mxu0
      %2964 = vmatprep.mubr.bf16.mxu0 0
      %2965 = vmatmul.mubr.bf16.gmra.mrb[0].mxu0 %v2737
      %v2966 = vpop.f32.mrb[0].mxu0
      %v2967 = vadd.f32 0.0, %v2966
      %v2968 = vpop.f32.mrb[0].mxu0
      %v2969 = vpop.f32.mrb[0].mxu0
      %v2970 = vadd.f32 0.0, %v2969
      %v2971 = vpop.f32.mrb[0].mxu0
      %2972 = vmatprep.mubr.bf16.mxu0 0
      %2973 = vmatmul.mubr.bf16.gmra.mrb[0].mxu0 %v2740
      %v2974 = vpop.f32.mrb[0].mxu0
      %v2975 = vadd.f32 0.0, %v2974
      %v2976 = vpop.f32.mrb[0].mxu0
      %v2977 = vpop.f32.mrb[0].mxu0
      %v2978 = vadd.f32 0.0, %v2977
      %v2979 = vpop.f32.mrb[0].mxu0
      %2980 = vmatprep.mubr.bf16.mxu0 0
      %2981 = vmatmul.mubr.bf16.gmra.mrb[0].mxu0 %v2743
      %v2982 = vpop.f32.mrb[0].mxu0
      %v2983 = vadd.f32 0.0, %v2982
      %v2984 = vpop.f32.mrb[0].mxu0
      %v2985 = vpop.f32.mrb[0].mxu0
      %v2986 = vadd.f32 0.0, %v2985
      %v2987 = vpop.f32.mrb[0].mxu0
      %2988 = vmatprep.mubr.bf16.mxu0 0
      %2989 = vmatmul.mubr.bf16.gmra.mrb[0].mxu0 %v2746
      %v2990 = vpop.f32.mrb[0].mxu0
      %v2991 = vadd.f32 0.0, %v2990
      %v2992 = vpop.f32.mrb[0].mxu0
      %v2993 = vpop.f32.mrb[0].mxu0
      %v2994 = vadd.f32 0.0, %v2993
      %v2995 = vpop.f32.mrb[0].mxu0
      %2996 = vmatprep.mubr.bf16.mxu0 0
      %2997 = vmatmul.mubr.bf16.gmra.mrb[0].mxu0 %v2749
      %v2998 = vpop.f32.mrb[0].mxu0
      %v2999 = vadd.f32 0.0, %v2998
      %v3000 = vpop.f32.mrb[0].mxu0
      %v3001 = vpop.f32.mrb[0].mxu0
      %v3002 = vadd.f32 0.0, %v3001
      %v3003 = vpop.f32.mrb[0].mxu0
      %3004 = vmatprep.mubr.bf16.mxu0 0
      %3005 = vmatmul.mubr.bf16.gmra.mrb[0].mxu0 %v2752
      %v3006 = vpop.f32.mrb[0].mxu0
      %v3007 = vadd.f32 0.0, %v3006
      %v3008 = vpop.f32.mrb[0].mxu0
      %v3009 = vpop.f32.mrb[0].mxu0
      %v3010 = vadd.f32 0.0, %v3009
      %v3011 = vpop.f32.mrb[0].mxu0
      %3012 = vmatprep.mubr.bf16.mxu0 0
      %3013 = vmatmul.mubr.bf16.gmra.mrb[0].mxu0 %v2755
      %v3014 = vpop.f32.mrb[0].mxu0
      %v3015 = vadd.f32 0.0, %v3014
      %v3016 = vpop.f32.mrb[0].mxu0
      %v3017 = vpop.f32.mrb[0].mxu0
      %v3018 = vadd.f32 0.0, %v3017
      %v3019 = vpop.f32.mrb[0].mxu0
      %3020 = vmatprep.mubr.bf16.mxu0 0
      %3021 = vmatmul.mubr.bf16.gmra.mrb[0].mxu0 %v2758
      %v3022 = vpop.f32.mrb[0].mxu0
      %v3023 = vadd.f32 0.0, %v3022
      %v3024 = vpop.f32.mrb[0].mxu0
      %v3025 = vpop.f32.mrb[0].mxu0
      %v3026 = vadd.f32 0.0, %v3025
      %v3027 = vpop.f32.mrb[0].mxu0
      %3028 = vmatprep.mubr.bf16.mxu0 0
      %3029 = vmatmul.mubr.bf16.gmra.mrb[0].mxu0 %v2761
      %v3030 = vpop.f32.mrb[0].mxu0
      %v3031 = vadd.f32 0.0, %v3030
      %v3032 = vpop.f32.mrb[0].mxu0
      %v3033 = vpop.f32.mrb[0].mxu0
      %v3034 = vadd.f32 0.0, %v3033
      %v3035 = vpop.f32.mrb[0].mxu0
      %3036 = vmatprep.mubr.bf16.mxu0 0
      %3037 = vmatmul.mubr.bf16.gmra.mrb[0].mxu0 %v2764
      %v3038 = vpop.f32.mrb[0].mxu0
      %v3039 = vadd.f32 0.0, %v3038
      %v3040 = vpop.f32.mrb[0].mxu0
      %v3041 = vpop.f32.mrb[0].mxu0
      %v3042 = vadd.f32 0.0, %v3041
      %v3043 = vpop.f32.mrb[0].mxu0
      %3044 = vmatprep.mubr.bf16.mxu0 0
      %3045 = vmatmul.mubr.bf16.gmra.mrb[0].mxu0 %v2767
      %v3046 = vpop.f32.mrb[0].mxu0
      %v3047 = vadd.f32 0.0, %v3046
      %v3048 = vpop.f32.mrb[0].mxu0
      %v3049 = vpop.f32.mrb[0].mxu0
      %v3050 = vadd.f32 0.0, %v3049
      %v3051 = vpop.f32.mrb[0].mxu0
      %3052 = vmatprep.mubr.bf16.mxu0 0
      %3053 = vmatmul.mubr.bf16.gmra.mrb[0].mxu0 %v2770
      %v3054 = vpop.f32.mrb[0].mxu0
      %v3055 = vadd.f32 0.0, %v3054
      %v3056 = vpop.f32.mrb[0].mxu0
      %v3057 = vpop.f32.mrb[0].mxu0
      %v3058 = vadd.f32 0.0, %v3057
      %v3059 = vpop.f32.mrb[0].mxu0
      %3060 = vmatprep.mubr.bf16.mxu0 0
      %3061 = vmatmul.mubr.bf16.gmra.mrb[0].mxu0 %v2773
      %v3062 = vpop.f32.mrb[0].mxu0
      %v3063 = vadd.f32 0.0, %v3062
      %v3064 = vpop.f32.mrb[0].mxu0
      %v3065 = vpop.f32.mrb[0].mxu0
      %v3066 = vadd.f32 0.0, %v3065
      %v3067 = vpop.f32.mrb[0].mxu0
      %3068 = vmatprep.mubr.bf16.mxu0 0
      %3069 = vmatmul.mubr.bf16.gmra.mrb[0].mxu0 %v2776
      %v3070 = vpop.f32.mrb[0].mxu0
      %v3071 = vadd.f32 0.0, %v3070
      %v3072 = vpop.f32.mrb[0].mxu0
      %v3073 = vpop.f32.mrb[0].mxu0
      %v3074 = vadd.f32 0.0, %v3073
      %v3075 = vpop.f32.mrb[0].mxu0
      %3076 = vmatprep.mubr.bf16.mxu0 0
      %3077 = vmatmul.mubr.bf16.gmra.mrb[0].mxu0 %v2779
      %v3078 = vpop.f32.mrb[0].mxu0
      %v3079 = vadd.f32 0.0, %v3078
      %v3080 = vpop.f32.mrb[0].mxu0
      %v3081 = vpop.f32.mrb[0].mxu0
      %v3082 = vadd.f32 0.0, %v3081
      %v3083 = vpop.f32.mrb[0].mxu0
      %3084 = vmatprep.mubr.bf16.mxu0 0
      %3085 = vmatmul.mubr.bf16.gmra.mrb[0].mxu0 %v2782
      %v3086 = vpop.f32.mrb[0].mxu0
      %v3087 = vadd.f32 0.0, %v3086
      %v3088 = vpop.f32.mrb[0].mxu0
      %v3089 = vpop.f32.mrb[0].mxu0
      %v3090 = vadd.f32 0.0, %v3089
      %v3091 = vpop.f32.mrb[0].mxu0
      %3092 = vmatprep.mubr.bf16.mxu0 0
      %3093 = vmatmul.mubr.bf16.gmra.mrb[0].mxu0 %v2785
      %v3094 = vpop.f32.mrb[0].mxu0
      %v3095 = vadd.f32 0.0, %v3094
      %v3096 = vpop.f32.mrb[0].mxu0
      %v3097 = vpop.f32.mrb[0].mxu0
      %v3098 = vadd.f32 0.0, %v3097
      %v3099 = vpop.f32.mrb[0].mxu0
      %3100 = vmatprep.mubr.bf16.mxu0 0
      %3101 = vmatmul.mubr.bf16.gmra.mrb[0].mxu0 %v2788
      %v3102 = vpop.f32.mrb[0].mxu0
      %v3103 = vadd.f32 0.0, %v3102
      %v3104 = vpop.f32.mrb[0].mxu0
      %v3105 = vpop.f32.mrb[0].mxu0
      %v3106 = vadd.f32 0.0, %v3105
      %v3107 = vpop.f32.mrb[0].mxu0
      %3108 = vmatprep.mubr.bf16.mxu0 0
      %3109 = vmatmul.mubr.bf16.gmra.mrb[0].mxu0 %v2791
      %v3110 = vpop.f32.mrb[0].mxu0
      %v3111 = vadd.f32 0.0, %v3110
      %v3112 = vpop.f32.mrb[0].mxu0
      %v3113 = vpop.f32.mrb[0].mxu0
      %v3114 = vadd.f32 0.0, %v3113
      %v3115 = vpop.f32.mrb[0].mxu0
      %3116 = vdwg.mxu0
      %v3117 = vadd.f32 %v1708, %v2831
      %v3118 = vadd.f32 %v1709, %v2834
      %v3119 = vadd.f32 %v1710, %v2839
      %v3120 = vadd.f32 %v1711, %v2842
      %v3121 = vadd.f32 %v1712, %v2847
      %v3122 = vadd.f32 %v1713, %v2850
      %v3123 = vadd.f32 %v1714, %v2855
      %v3124 = vadd.f32 %v1715, %v2858
      %v3125 = vadd.f32 %v1716, %v2863
      %v3126 = vadd.f32 %v1717, %v2866
      %v3127 = vadd.f32 %v1718, %v2871
      %v3128 = vadd.f32 %v1719, %v2874
      %v3129 = vadd.f32 %v1720, %v2879
      %v3130 = vadd.f32 %v1721, %v2882
      %v3131 = vadd.f32 %v1722, %v2887
      %v3132 = vadd.f32 %v1723, %v2890
      %v3133 = vadd.f32 %v1724, %v2895
      %v3134 = vadd.f32 %v1725, %v2898
      %v3135 = vadd.f32 %v1726, %v2903
      %v3136 = vadd.f32 %v1727, %v2906
      %v3137 = vadd.f32 %v1728, %v2911
      %v3138 = vadd.f32 %v1729, %v2914
      %v3139 = vadd.f32 %v1730, %v2919
      %v3140 = vadd.f32 %v1731, %v2922
      %v3141 = vadd.f32 %v1732, %v2927
      %v3142 = vadd.f32 %v1733, %v2930
      %v3143 = vadd.f32 %v1734, %v2935
      %v3144 = vadd.f32 %v1735, %v2938
      %v3145 = vadd.f32 %v1736, %v2943
      %v3146 = vadd.f32 %v1737, %v2946
      %v3147 = vadd.f32 %v1738, %v2951
      %v3148 = vadd.f32 %v1739, %v2954
      %v3149 = vadd.f32 %v1740, %v2959
      %v3150 = vadd.f32 %v1741, %v2962
      %v3151 = vadd.f32 %v1742, %v2967
      %v3152 = vadd.f32 %v1743, %v2970
      %v3153 = vadd.f32 %v1744, %v2975
      %v3154 = vadd.f32 %v1745, %v2978
      %v3155 = vadd.f32 %v1746, %v2983
      %v3156 = vadd.f32 %v1747, %v2986
      %v3157 = vadd.f32 %v1748, %v2991
      %v3158 = vadd.f32 %v1749, %v2994
      %v3159 = vadd.f32 %v1750, %v2999
      %v3160 = vadd.f32 %v1751, %v3002
      %v3161 = vadd.f32 %v1752, %v3007
      %v3162 = vadd.f32 %v1753, %v3010
      %v3163 = vadd.f32 %v1754, %v3015
      %v3164 = vadd.f32 %v1755, %v3018
      %v3165 = vadd.f32 %v1756, %v3023
      %v3166 = vadd.f32 %v1757, %v3026
      %v3167 = vadd.f32 %v1758, %v3031
      %v3168 = vadd.f32 %v1759, %v3034
      %v3169 = vadd.f32 %v1760, %v3039
      %v3170 = vadd.f32 %v1761, %v3042
      %v3171 = vadd.f32 %v1762, %v3047
      %v3172 = vadd.f32 %v1763, %v3050
      %v3173 = vadd.f32 %v1764, %v3055
      %v3174 = vadd.f32 %v1765, %v3058
      %v3175 = vadd.f32 %v1766, %v3063
      %v3176 = vadd.f32 %v1767, %v3066
      %v3177 = vadd.f32 %v1768, %v3071
      %v3178 = vadd.f32 %v1769, %v3074
      %v3179 = vadd.f32 %v1770, %v3079
      %v3180 = vadd.f32 %v1771, %v3082
      %v3181 = vadd.f32 %v1772, %v3087
      %v3182 = vadd.f32 %v1773, %v3090
      %v3183 = vadd.f32 %v1774, %v3095
      %v3184 = vadd.f32 %v1775, %v3098
      %v3185 = vadd.f32 %v1776, %v3103
      %v3186 = vadd.f32 %v1777, %v3106
      %v3187 = vadd.f32 %v1778, %v3111
      %v3188 = vadd.f32 %v1779, %v3114
      %v3190 = vshrl.u32 %v399, 16
      %v3192 = vrot.slane %v3190, 4
      %v3193 = vshll.u32 %v399, 16
      %v3195 = vrot.slane %v3193, 5
      %v3196 = vor.u32 %v3192, %v3195
      %v3197 = vrot.slane %v3196, 4
      %v3199 = vshll.u32 %v400, 16
      %v3201 = vrot.slane %v3199, 5
      %v3202 = vsel %vm1782, %v3197, %v3201
      %v3203 = vshrl.u32 %v400, 16
      %v3205 = vrot.slane %v3203, 4
      %v3206 = vor.u32 %v3205, %v3201
      %v3207 = vrot.slane %v3206, 4
      %v3209 = vshll.u32 %v401, 16
      %v3211 = vrot.slane %v3209, 5
      %v3212 = vsel %vm1782, %v3207, %v3211
      %v3213 = vshrl.u32 %v401, 16
      %v3215 = vrot.slane %v3213, 4
      %v3216 = vor.u32 %v3215, %v3211
      %v3217 = vrot.slane %v3216, 4
      %v3219 = vshll.u32 %v402, 16
      %v3221 = vrot.slane %v3219, 5
      %v3222 = vsel %vm1782, %v3217, %v3221
      %v3223 = vshrl.u32 %v402, 16
      %v3225 = vrot.slane %v3223, 4
      %v3226 = vor.u32 %v3225, %v3221
      %v3227 = vrot.slane %v3226, 4
      %v3229 = vshll.u32 %v403, 16
      %v3231 = vrot.slane %v3229, 5
      %v3232 = vsel %vm1782, %v3227, %v3231
      %s3233 = scalar_lea.vmem %s1, 8
      %v3234 = vld [vmem:[%s3233] sm:$0x3]
      %v3235 = vunpack.c.l.b16 %v3202
      %v3236 = vunpack.c.l.b16 %v3212
      %v3237 = vunpack.c.l.b16 %v3222
      %v3238 = vunpack.c.l.b16 %v3232
      %v3239 = vpack.c.b16 %v3236, %v3235
      %v3240 = vpack.c.b16 %v3238, %v3237
      %v3242 = vsel %vm592, %v3239, 0
      %v3245 = vsel %vm592, %v3240, 0
      %v3248 = vsel %vm701, %v3234, 0
      %3250 = vmatprep.subr.bf16.mxu0 0
      %3251 = vmatpush1.bf16.msra.mxu0 %v3248
      %3252 = vmatprep.subr.bf16.mxu0 0
      %3253 = vmatpush1.bf16.msra.mxu0 0
      %3254 = vmatprep.subr.bf16.mxu0 0
      %3255 = vmatpush1.bf16.msra.mxu0 0
      %3256 = vmatprep.subr.bf16.mxu0 0
      %3257 = vmatpush1.bf16.msra.mxu0 0
      %3258 = vmatprep.subr.bf16.mxu0 0
      %3259 = vmatpush1.bf16.msra.mxu0 0
      %3260 = vmatprep.subr.bf16.mxu0 0
      %3261 = vmatpush1.bf16.msra.mxu0 0
      %3262 = vmatprep.subr.bf16.mxu0 0
      %3263 = vmatpush1.bf16.msra.mxu0 0
      %3264 = vmatprep.subr.bf16.mxu0 0
      %3265 = vmatpush1.bf16.msra.mxu0 0
      %3266 = vmatprep.subr.bf16.mxu0 0
      %3267 = vmatpush1.bf16.msra.mxu0 0
      %3268 = vmatprep.subr.bf16.mxu0 0
      %3269 = vmatpush1.bf16.msra.mxu0 0
      %3270 = vmatprep.subr.bf16.mxu0 0
      %3271 = vmatpush1.bf16.msra.mxu0 0
      %3272 = vmatprep.subr.bf16.mxu0 0
      %3273 = vmatpush1.bf16.msra.mxu0 0
      %3274 = vmatprep.subr.bf16.mxu0 0
      %3275 = vmatpush1.bf16.msra.mxu0 0
      %3276 = vmatprep.subr.bf16.mxu0 0
      %3277 = vmatpush1.bf16.msra.mxu0 0
      %3278 = vmatprep.subr.bf16.mxu0 0
      %3279 = vmatpush1.bf16.msra.mxu0 0
      %3280 = vmatprep.subr.bf16.mxu0 0
      %3281 = vmatpush1.bf16.msra.mxu0 0
      %3282 = vmatprep.mubr.bf16.mxu0 0
      %3283 = vmatmul.mubr.bf16.gmra.mrb[0].mxu0 %v2692
      %v3284 = vpop.f32.mrb[0].mxu0
      %v3285 = vadd.f32 0.0, %v3284
      %v3286 = vpop.f32.mrb[0].mxu0
      %v3287 = vpop.f32.mrb[0].mxu0
      %v3288 = vadd.f32 0.0, %v3287
      %v3289 = vpop.f32.mrb[0].mxu0
      %3290 = vmatprep.mubr.bf16.mxu0 0
      %3291 = vmatmul.mubr.bf16.gmra.mrb[0].mxu0 %v2695
      %v3292 = vpop.f32.mrb[0].mxu0
      %v3293 = vadd.f32 0.0, %v3292
      %v3294 = vpop.f32.mrb[0].mxu0
      %v3295 = vpop.f32.mrb[0].mxu0
      %v3296 = vadd.f32 0.0, %v3295
      %v3297 = vpop.f32.mrb[0].mxu0
      %3298 = vmatprep.mubr.bf16.mxu0 0
      %3299 = vmatmul.mubr.bf16.gmra.mrb[0].mxu0 %v2698
      %v3300 = vpop.f32.mrb[0].mxu0
      %v3301 = vadd.f32 0.0, %v3300
      %v3302 = vpop.f32.mrb[0].mxu0
      %v3303 = vpop.f32.mrb[0].mxu0
      %v3304 = vadd.f32 0.0, %v3303
      %v3305 = vpop.f32.mrb[0].mxu0
      %3306 = vmatprep.mubr.bf16.mxu0 0
      %3307 = vmatmul.mubr.bf16.gmra.mrb[0].mxu0 %v2701
      %v3308 = vpop.f32.mrb[0].mxu0
      %v3309 = vadd.f32 0.0, %v3308
      %v3310 = vpop.f32.mrb[0].mxu0
      %v3311 = vpop.f32.mrb[0].mxu0
      %v3312 = vadd.f32 0.0, %v3311
      %v3313 = vpop.f32.mrb[0].mxu0
      %3314 = vmatprep.mubr.bf16.mxu0 0
      %3315 = vmatmul.mubr.bf16.gmra.mrb[0].mxu0 %v2704
      %v3316 = vpop.f32.mrb[0].mxu0
      %v3317 = vadd.f32 0.0, %v3316
      %v3318 = vpop.f32.mrb[0].mxu0
      %v3319 = vpop.f32.mrb[0].mxu0
      %v3320 = vadd.f32 0.0, %v3319
      %v3321 = vpop.f32.mrb[0].mxu0
      %3322 = vmatprep.mubr.bf16.mxu0 0
      %3323 = vmatmul.mubr.bf16.gmra.mrb[0].mxu0 %v2707
      %v3324 = vpop.f32.mrb[0].mxu0
      %v3325 = vadd.f32 0.0, %v3324
      %v3326 = vpop.f32.mrb[0].mxu0
      %v3327 = vpop.f32.mrb[0].mxu0
      %v3328 = vadd.f32 0.0, %v3327
      %v3329 = vpop.f32.mrb[0].mxu0
      %3330 = vmatprep.mubr.bf16.mxu0 0
      %3331 = vmatmul.mubr.bf16.gmra.mrb[0].mxu0 %v2710
      %v3332 = vpop.f32.mrb[0].mxu0
      %v3333 = vadd.f32 0.0, %v3332
      %v3334 = vpop.f32.mrb[0].mxu0
      %v3335 = vpop.f32.mrb[0].mxu0
      %v3336 = vadd.f32 0.0, %v3335
      %v3337 = vpop.f32.mrb[0].mxu0
      %3338 = vmatprep.mubr.bf16.mxu0 0
      %3339 = vmatmul.mubr.bf16.gmra.mrb[0].mxu0 %v2713
      %v3340 = vpop.f32.mrb[0].mxu0
      %v3341 = vadd.f32 0.0, %v3340
      %v3342 = vpop.f32.mrb[0].mxu0
      %v3343 = vpop.f32.mrb[0].mxu0
      %v3344 = vadd.f32 0.0, %v3343
      %v3345 = vpop.f32.mrb[0].mxu0
      %3346 = vmatprep.mubr.bf16.mxu0 0
      %3347 = vmatmul.mubr.bf16.gmra.mrb[0].mxu0 %v2716
      %v3348 = vpop.f32.mrb[0].mxu0
      %v3349 = vadd.f32 0.0, %v3348
      %v3350 = vpop.f32.mrb[0].mxu0
      %v3351 = vpop.f32.mrb[0].mxu0
      %v3352 = vadd.f32 0.0, %v3351
      %v3353 = vpop.f32.mrb[0].mxu0
      %3354 = vmatprep.mubr.bf16.mxu0 0
      %3355 = vmatmul.mubr.bf16.gmra.mrb[0].mxu0 %v2719
      %v3356 = vpop.f32.mrb[0].mxu0
      %v3357 = vadd.f32 0.0, %v3356
      %v3358 = vpop.f32.mrb[0].mxu0
      %v3359 = vpop.f32.mrb[0].mxu0
      %v3360 = vadd.f32 0.0, %v3359
      %v3361 = vpop.f32.mrb[0].mxu0
      %3362 = vmatprep.mubr.bf16.mxu0 0
      %3363 = vmatmul.mubr.bf16.gmra.mrb[0].mxu0 %v2722
      %v3364 = vpop.f32.mrb[0].mxu0
      %v3365 = vadd.f32 0.0, %v3364
      %v3366 = vpop.f32.mrb[0].mxu0
      %v3367 = vpop.f32.mrb[0].mxu0
      %v3368 = vadd.f32 0.0, %v3367
      %v3369 = vpop.f32.mrb[0].mxu0
      %3370 = vmatprep.mubr.bf16.mxu0 0
      %3371 = vmatmul.mubr.bf16.gmra.mrb[0].mxu0 %v2725
      %v3372 = vpop.f32.mrb[0].mxu0
      %v3373 = vadd.f32 0.0, %v3372
      %v3374 = vpop.f32.mrb[0].mxu0
      %v3375 = vpop.f32.mrb[0].mxu0
      %v3376 = vadd.f32 0.0, %v3375
      %v3377 = vpop.f32.mrb[0].mxu0
      %3378 = vmatprep.mubr.bf16.mxu0 0
      %3379 = vmatmul.mubr.bf16.gmra.mrb[0].mxu0 %v2728
      %v3380 = vpop.f32.mrb[0].mxu0
      %v3381 = vadd.f32 0.0, %v3380
      %v3382 = vpop.f32.mrb[0].mxu0
      %v3383 = vpop.f32.mrb[0].mxu0
      %v3384 = vadd.f32 0.0, %v3383
      %v3385 = vpop.f32.mrb[0].mxu0
      %3386 = vmatprep.mubr.bf16.mxu0 0
      %3387 = vmatmul.mubr.bf16.gmra.mrb[0].mxu0 %v2731
      %v3388 = vpop.f32.mrb[0].mxu0
      %v3389 = vadd.f32 0.0, %v3388
      %v3390 = vpop.f32.mrb[0].mxu0
      %v3391 = vpop.f32.mrb[0].mxu0
      %v3392 = vadd.f32 0.0, %v3391
      %v3393 = vpop.f32.mrb[0].mxu0
      %3394 = vmatprep.mubr.bf16.mxu0 0
      %3395 = vmatmul.mubr.bf16.gmra.mrb[0].mxu0 %v2734
      %v3396 = vpop.f32.mrb[0].mxu0
      %v3397 = vadd.f32 0.0, %v3396
      %v3398 = vpop.f32.mrb[0].mxu0
      %v3399 = vpop.f32.mrb[0].mxu0
      %v3400 = vadd.f32 0.0, %v3399
      %v3401 = vpop.f32.mrb[0].mxu0
      %3402 = vmatprep.mubr.bf16.mxu0 0
      %3403 = vmatmul.mubr.bf16.gmra.mrb[0].mxu0 %v2737
      %v3404 = vpop.f32.mrb[0].mxu0
      %v3405 = vadd.f32 0.0, %v3404
      %v3406 = vpop.f32.mrb[0].mxu0
      %v3407 = vpop.f32.mrb[0].mxu0
      %v3408 = vadd.f32 0.0, %v3407
      %v3409 = vpop.f32.mrb[0].mxu0
      %3410 = vmatprep.mubr.bf16.mxu0 0
      %3411 = vmatmul.mubr.bf16.gmra.mrb[0].mxu0 %v2740
      %v3412 = vpop.f32.mrb[0].mxu0
      %v3413 = vadd.f32 0.0, %v3412
      %v3414 = vpop.f32.mrb[0].mxu0
      %v3415 = vpop.f32.mrb[0].mxu0
      %v3416 = vadd.f32 0.0, %v3415
      %v3417 = vpop.f32.mrb[0].mxu0
      %3418 = vmatprep.mubr.bf16.mxu0 0
      %3419 = vmatmul.mubr.bf16.gmra.mrb[0].mxu0 %v2743
      %v3420 = vpop.f32.mrb[0].mxu0
      %v3421 = vadd.f32 0.0, %v3420
      %v3422 = vpop.f32.mrb[0].mxu0
      %v3423 = vpop.f32.mrb[0].mxu0
      %v3424 = vadd.f32 0.0, %v3423
      %v3425 = vpop.f32.mrb[0].mxu0
      %3426 = vmatprep.mubr.bf16.mxu0 0
      %3427 = vmatmul.mubr.bf16.gmra.mrb[0].mxu0 %v2746
      %v3428 = vpop.f32.mrb[0].mxu0
      %v3429 = vadd.f32 0.0, %v3428
      %v3430 = vpop.f32.mrb[0].mxu0
      %v3431 = vpop.f32.mrb[0].mxu0
      %v3432 = vadd.f32 0.0, %v3431
      %v3433 = vpop.f32.mrb[0].mxu0
      %3434 = vmatprep.mubr.bf16.mxu0 0
      %3435 = vmatmul.mubr.bf16.gmra.mrb[0].mxu0 %v2749
      %v3436 = vpop.f32.mrb[0].mxu0
      %v3437 = vadd.f32 0.0, %v3436
      %v3438 = vpop.f32.mrb[0].mxu0
      %v3439 = vpop.f32.mrb[0].mxu0
      %v3440 = vadd.f32 0.0, %v3439
      %v3441 = vpop.f32.mrb[0].mxu0
      %3442 = vmatprep.mubr.bf16.mxu0 0
      %3443 = vmatmul.mubr.bf16.gmra.mrb[0].mxu0 %v2752
      %v3444 = vpop.f32.mrb[0].mxu0
      %v3445 = vadd.f32 0.0, %v3444
      %v3446 = vpop.f32.mrb[0].mxu0
      %v3447 = vpop.f32.mrb[0].mxu0
      %v3448 = vadd.f32 0.0, %v3447
      %v3449 = vpop.f32.mrb[0].mxu0
      %3450 = vmatprep.mubr.bf16.mxu0 0
      %3451 = vmatmul.mubr.bf16.gmra.mrb[0].mxu0 %v2755
      %v3452 = vpop.f32.mrb[0].mxu0
      %v3453 = vadd.f32 0.0, %v3452
      %v3454 = vpop.f32.mrb[0].mxu0
      %v3455 = vpop.f32.mrb[0].mxu0
      %v3456 = vadd.f32 0.0, %v3455
      %v3457 = vpop.f32.mrb[0].mxu0
      %3458 = vmatprep.mubr.bf16.mxu0 0
      %3459 = vmatmul.mubr.bf16.gmra.mrb[0].mxu0 %v2758
      %v3460 = vpop.f32.mrb[0].mxu0
      %v3461 = vadd.f32 0.0, %v3460
      %v3462 = vpop.f32.mrb[0].mxu0
      %v3463 = vpop.f32.mrb[0].mxu0
      %v3464 = vadd.f32 0.0, %v3463
      %v3465 = vpop.f32.mrb[0].mxu0
      %3466 = vmatprep.mubr.bf16.mxu0 0
      %3467 = vmatmul.mubr.bf16.gmra.mrb[0].mxu0 %v2761
      %v3468 = vpop.f32.mrb[0].mxu0
      %v3469 = vadd.f32 0.0, %v3468
      %v3470 = vpop.f32.mrb[0].mxu0
      %v3471 = vpop.f32.mrb[0].mxu0
      %v3472 = vadd.f32 0.0, %v3471
      %v3473 = vpop.f32.mrb[0].mxu0
      %3474 = vmatprep.mubr.bf16.mxu0 0
      %3475 = vmatmul.mubr.bf16.gmra.mrb[0].mxu0 %v2764
      %v3476 = vpop.f32.mrb[0].mxu0
      %v3477 = vadd.f32 0.0, %v3476
      %v3478 = vpop.f32.mrb[0].mxu0
      %v3479 = vpop.f32.mrb[0].mxu0
      %v3480 = vadd.f32 0.0, %v3479
      %v3481 = vpop.f32.mrb[0].mxu0
      %3482 = vmatprep.mubr.bf16.mxu0 0
      %3483 = vmatmul.mubr.bf16.gmra.mrb[0].mxu0 %v2767
      %v3484 = vpop.f32.mrb[0].mxu0
      %v3485 = vadd.f32 0.0, %v3484
      %v3486 = vpop.f32.mrb[0].mxu0
      %v3487 = vpop.f32.mrb[0].mxu0
      %v3488 = vadd.f32 0.0, %v3487
      %v3489 = vpop.f32.mrb[0].mxu0
      %3490 = vmatprep.mubr.bf16.mxu0 0
      %3491 = vmatmul.mubr.bf16.gmra.mrb[0].mxu0 %v2770
      %v3492 = vpop.f32.mrb[0].mxu0
      %v3493 = vadd.f32 0.0, %v3492
      %v3494 = vpop.f32.mrb[0].mxu0
      %v3495 = vpop.f32.mrb[0].mxu0
      %v3496 = vadd.f32 0.0, %v3495
      %v3497 = vpop.f32.mrb[0].mxu0
      %3498 = vmatprep.mubr.bf16.mxu0 0
      %3499 = vmatmul.mubr.bf16.gmra.mrb[0].mxu0 %v2773
      %v3500 = vpop.f32.mrb[0].mxu0
      %v3501 = vadd.f32 0.0, %v3500
      %v3502 = vpop.f32.mrb[0].mxu0
      %v3503 = vpop.f32.mrb[0].mxu0
      %v3504 = vadd.f32 0.0, %v3503
      %v3505 = vpop.f32.mrb[0].mxu0
      %3506 = vmatprep.mubr.bf16.mxu0 0
      %3507 = vmatmul.mubr.bf16.gmra.mrb[0].mxu0 %v2776
      %v3508 = vpop.f32.mrb[0].mxu0
      %v3509 = vadd.f32 0.0, %v3508
      %v3510 = vpop.f32.mrb[0].mxu0
      %v3511 = vpop.f32.mrb[0].mxu0
      %v3512 = vadd.f32 0.0, %v3511
      %v3513 = vpop.f32.mrb[0].mxu0
      %3514 = vmatprep.mubr.bf16.mxu0 0
      %3515 = vmatmul.mubr.bf16.gmra.mrb[0].mxu0 %v2779
      %v3516 = vpop.f32.mrb[0].mxu0
      %v3517 = vadd.f32 0.0, %v3516
      %v3518 = vpop.f32.mrb[0].mxu0
      %v3519 = vpop.f32.mrb[0].mxu0
      %v3520 = vadd.f32 0.0, %v3519
      %v3521 = vpop.f32.mrb[0].mxu0
      %3522 = vmatprep.mubr.bf16.mxu0 0
      %3523 = vmatmul.mubr.bf16.gmra.mrb[0].mxu0 %v2782
      %v3524 = vpop.f32.mrb[0].mxu0
      %v3525 = vadd.f32 0.0, %v3524
      %v3526 = vpop.f32.mrb[0].mxu0
      %v3527 = vpop.f32.mrb[0].mxu0
      %v3528 = vadd.f32 0.0, %v3527
      %v3529 = vpop.f32.mrb[0].mxu0
      %3530 = vmatprep.mubr.bf16.mxu0 0
      %3531 = vmatmul.mubr.bf16.gmra.mrb[0].mxu0 %v2785
      %v3532 = vpop.f32.mrb[0].mxu0
      %v3533 = vadd.f32 0.0, %v3532
      %v3534 = vpop.f32.mrb[0].mxu0
      %v3535 = vpop.f32.mrb[0].mxu0
      %v3536 = vadd.f32 0.0, %v3535
      %v3537 = vpop.f32.mrb[0].mxu0
      %3538 = vmatprep.mubr.bf16.mxu0 0
      %3539 = vmatmul.mubr.bf16.gmra.mrb[0].mxu0 %v2788
      %v3540 = vpop.f32.mrb[0].mxu0
      %v3541 = vadd.f32 0.0, %v3540
      %v3542 = vpop.f32.mrb[0].mxu0
      %v3543 = vpop.f32.mrb[0].mxu0
      %v3544 = vadd.f32 0.0, %v3543
      %v3545 = vpop.f32.mrb[0].mxu0
      %3546 = vmatprep.mubr.bf16.mxu0 0
      %3547 = vmatmul.mubr.bf16.gmra.mrb[0].mxu0 %v2791
      %v3548 = vpop.f32.mrb[0].mxu0
      %v3549 = vadd.f32 0.0, %v3548
      %v3550 = vpop.f32.mrb[0].mxu0
      %v3551 = vpop.f32.mrb[0].mxu0
      %v3552 = vadd.f32 0.0, %v3551
      %v3553 = vpop.f32.mrb[0].mxu0
      %3554 = vmatprep.mubr.bf16.mxu0 0
      %3555 = vmatmul.mubr.bf16.gmra.mrb[0].mxu0 %v3242
      %v3556 = vpop.f32.mrb[0].mxu0
      %v3557 = vadd.f32 0.0, %v3556
      %v3558 = vpop.f32.mrb[0].mxu0
      %v3559 = vpop.f32.mrb[0].mxu0
      %v3560 = vadd.f32 0.0, %v3559
      %v3561 = vpop.f32.mrb[0].mxu0
      %3562 = vmatprep.mubr.bf16.mxu0 0
      %3563 = vmatmul.mubr.bf16.gmra.mrb[0].mxu0 %v3245
      %v3564 = vpop.f32.mrb[0].mxu0
      %v3565 = vadd.f32 0.0, %v3564
      %v3566 = vpop.f32.mrb[0].mxu0
      %v3567 = vpop.f32.mrb[0].mxu0
      %v3568 = vadd.f32 0.0, %v3567
      %v3569 = vpop.f32.mrb[0].mxu0
      %3570 = vdwg.mxu0
      %v3571 = vadd.f32 %v3117, %v3285
      %v3572 = vadd.f32 %v3118, %v3288
      %v3573 = vadd.f32 %v3119, %v3293
      %v3574 = vadd.f32 %v3120, %v3296
      %v3575 = vadd.f32 %v3121, %v3301
      %v3576 = vadd.f32 %v3122, %v3304
      %v3577 = vadd.f32 %v3123, %v3309
      %v3578 = vadd.f32 %v3124, %v3312
      %v3579 = vadd.f32 %v3125, %v3317
      %v3580 = vadd.f32 %v3126, %v3320
      %v3581 = vadd.f32 %v3127, %v3325
      %v3582 = vadd.f32 %v3128, %v3328
      %v3583 = vadd.f32 %v3129, %v3333
      %v3584 = vadd.f32 %v3130, %v3336
      %v3585 = vadd.f32 %v3131, %v3341
      %v3586 = vadd.f32 %v3132, %v3344
      %v3587 = vadd.f32 %v3133, %v3349
      %v3588 = vadd.f32 %v3134, %v3352
      %v3589 = vadd.f32 %v3135, %v3357
      %v3590 = vadd.f32 %v3136, %v3360
      %v3591 = vadd.f32 %v3137, %v3365
      %v3592 = vadd.f32 %v3138, %v3368
      %v3593 = vadd.f32 %v3139, %v3373
      %v3594 = vadd.f32 %v3140, %v3376
      %v3595 = vadd.f32 %v3141, %v3381
      %v3596 = vadd.f32 %v3142, %v3384
      %v3597 = vadd.f32 %v3143, %v3389
      %v3598 = vadd.f32 %v3144, %v3392
      %v3599 = vadd.f32 %v3145, %v3397
      %v3600 = vadd.f32 %v3146, %v3400
      %v3601 = vadd.f32 %v3147, %v3405
      %v3602 = vadd.f32 %v3148, %v3408
      %v3603 = vadd.f32 %v3149, %v3413
      %v3604 = vadd.f32 %v3150, %v3416
      %v3605 = vadd.f32 %v3151, %v3421
      %v3606 = vadd.f32 %v3152, %v3424
      %v3607 = vadd.f32 %v3153, %v3429
      %v3608 = vadd.f32 %v3154, %v3432
      %v3609 = vadd.f32 %v3155, %v3437
      %v3610 = vadd.f32 %v3156, %v3440
      %v3611 = vadd.f32 %v3157, %v3445
      %v3612 = vadd.f32 %v3158, %v3448
      %v3613 = vadd.f32 %v3159, %v3453
      %v3614 = vadd.f32 %v3160, %v3456
      %v3615 = vadd.f32 %v3161, %v3461
      %v3616 = vadd.f32 %v3162, %v3464
      %v3617 = vadd.f32 %v3163, %v3469
      %v3618 = vadd.f32 %v3164, %v3472
      %v3619 = vadd.f32 %v3165, %v3477
      %v3620 = vadd.f32 %v3166, %v3480
      %v3621 = vadd.f32 %v3167, %v3485
      %v3622 = vadd.f32 %v3168, %v3488
      %v3623 = vadd.f32 %v3169, %v3493
      %v3624 = vadd.f32 %v3170, %v3496
      %v3625 = vadd.f32 %v3171, %v3501
      %v3626 = vadd.f32 %v3172, %v3504
      %v3627 = vadd.f32 %v3173, %v3509
      %v3628 = vadd.f32 %v3174, %v3512
      %v3629 = vadd.f32 %v3175, %v3517
      %v3630 = vadd.f32 %v3176, %v3520
      %v3631 = vadd.f32 %v3177, %v3525
      %v3632 = vadd.f32 %v3178, %v3528
      %v3633 = vadd.f32 %v3179, %v3533
      %v3634 = vadd.f32 %v3180, %v3536
      %v3635 = vadd.f32 %v3181, %v3541
      %v3636 = vadd.f32 %v3182, %v3544
      %v3637 = vadd.f32 %v3183, %v3549
      %v3638 = vadd.f32 %v3184, %v3552
      %v3639 = vadd.f32 %v3185, %v3557
      %v3640 = vadd.f32 %v3186, %v3560
      %v3641 = vadd.f32 %v3187, %v3565
      %v3642 = vadd.f32 %v3188, %v3568
      %v3644 = vshrl.u32 %v404, 16
      %v3646 = vrot.slane %v3644, 4
      %v3647 = vshll.u32 %v404, 16
      %v3649 = vrot.slane %v3647, 5
      %v3650 = vor.u32 %v3646, %v3649
      %v3651 = vrot.slane %v3650, 4
      %v3653 = vshll.u32 %v405, 16
      %v3655 = vrot.slane %v3653, 5
      %v3656 = vsel %vm1782, %v3651, %v3655
      %v3657 = vshrl.u32 %v405, 16
      %v3659 = vrot.slane %v3657, 4
      %v3660 = vor.u32 %v3659, %v3655
      %v3661 = vrot.slane %v3660, 4
      %v3663 = vshll.u32 %v406, 16
      %v3665 = vrot.slane %v3663, 5
      %v3666 = vsel %vm1782, %v3661, %v3665
      %v3667 = vshrl.u32 %v406, 16
      %v3669 = vrot.slane %v3667, 4
      %v3670 = vor.u32 %v3669, %v3665
      %v3671 = vrot.slane %v3670, 4
      %v3673 = vshll.u32 %v407, 16
      %v3675 = vrot.slane %v3673, 5
      %v3676 = vsel %vm1782, %v3671, %v3675
      %v3677 = vshrl.u32 %v407, 16
      %v3679 = vrot.slane %v3677, 4
      %v3680 = vor.u32 %v3679, %v3675
      %v3681 = vrot.slane %v3680, 4
      %v3683 = vshll.u32 %v408, 16
      %v3685 = vrot.slane %v3683, 5
      %v3686 = vsel %vm1782, %v3681, %v3685
      %s3687 = scalar_lea.vmem %s1, 14
      %v3688 = vld [vmem:[%s3687] sm:$0x3]
      %v3689 = vunpack.c.l.b16 %v3656
      %v3690 = vunpack.c.l.b16 %v3666
      %v3691 = vunpack.c.l.b16 %v3676
      %v3692 = vunpack.c.l.b16 %v3686
      %v3693 = vpack.c.b16 %v3690, %v3689
      %v3694 = vpack.c.b16 %v3692, %v3691
      %v3696 = vsel %vm592, %v3693, 0
      %v3699 = vsel %vm592, %v3694, 0
      %v3702 = vsel %vm701, %v3688, 0
      %3704 = vmatprep.subr.bf16.mxu0 0
      %3705 = vmatpush1.bf16.msra.mxu0 %v3702
      %3706 = vmatprep.subr.bf16.mxu0 0
      %3707 = vmatpush1.bf16.msra.mxu0 0
      %3708 = vmatprep.subr.bf16.mxu0 0
      %3709 = vmatpush1.bf16.msra.mxu0 0
      %3710 = vmatprep.subr.bf16.mxu0 0
      %3711 = vmatpush1.bf16.msra.mxu0 0
      %3712 = vmatprep.subr.bf16.mxu0 0
      %3713 = vmatpush1.bf16.msra.mxu0 0
      %3714 = vmatprep.subr.bf16.mxu0 0
      %3715 = vmatpush1.bf16.msra.mxu0 0
      %3716 = vmatprep.subr.bf16.mxu0 0
      %3717 = vmatpush1.bf16.msra.mxu0 0
      %3718 = vmatprep.subr.bf16.mxu0 0
      %3719 = vmatpush1.bf16.msra.mxu0 0
      %3720 = vmatprep.subr.bf16.mxu0 0
      %3721 = vmatpush1.bf16.msra.mxu0 0
      %3722 = vmatprep.subr.bf16.mxu0 0
      %3723 = vmatpush1.bf16.msra.mxu0 0
      %3724 = vmatprep.subr.bf16.mxu0 0
      %3725 = vmatpush1.bf16.msra.mxu0 0
      %3726 = vmatprep.subr.bf16.mxu0 0
      %3727 = vmatpush1.bf16.msra.mxu0 0
      %3728 = vmatprep.subr.bf16.mxu0 0
      %3729 = vmatpush1.bf16.msra.mxu0 0
      %3730 = vmatprep.subr.bf16.mxu0 0
      %3731 = vmatpush1.bf16.msra.mxu0 0
      %3732 = vmatprep.subr.bf16.mxu0 0
      %3733 = vmatpush1.bf16.msra.mxu0 0
      %3734 = vmatprep.subr.bf16.mxu0 0
      %3735 = vmatpush1.bf16.msra.mxu0 0
      %3736 = vmatprep.mubr.bf16.mxu0 0
      %3737 = vmatmul.mubr.bf16.gmra.mrb[0].mxu0 %v2698
      %v3738 = vpop.f32.mrb[0].mxu0
      %v3739 = vadd.f32 0.0, %v3738
      %v3740 = vpop.f32.mrb[0].mxu0
      %v3741 = vpop.f32.mrb[0].mxu0
      %v3742 = vadd.f32 0.0, %v3741
      %v3743 = vpop.f32.mrb[0].mxu0
      %3744 = vmatprep.mubr.bf16.mxu0 0
      %3745 = vmatmul.mubr.bf16.gmra.mrb[0].mxu0 %v2701
      %v3746 = vpop.f32.mrb[0].mxu0
      %v3747 = vadd.f32 0.0, %v3746
      %v3748 = vpop.f32.mrb[0].mxu0
      %v3749 = vpop.f32.mrb[0].mxu0
      %v3750 = vadd.f32 0.0, %v3749
      %v3751 = vpop.f32.mrb[0].mxu0
      %3752 = vmatprep.mubr.bf16.mxu0 0
      %3753 = vmatmul.mubr.bf16.gmra.mrb[0].mxu0 %v2704
      %v3754 = vpop.f32.mrb[0].mxu0
      %v3755 = vadd.f32 0.0, %v3754
      %v3756 = vpop.f32.mrb[0].mxu0
      %v3757 = vpop.f32.mrb[0].mxu0
      %v3758 = vadd.f32 0.0, %v3757
      %v3759 = vpop.f32.mrb[0].mxu0
      %3760 = vmatprep.mubr.bf16.mxu0 0
      %3761 = vmatmul.mubr.bf16.gmra.mrb[0].mxu0 %v2707
      %v3762 = vpop.f32.mrb[0].mxu0
      %v3763 = vadd.f32 0.0, %v3762
      %v3764 = vpop.f32.mrb[0].mxu0
      %v3765 = vpop.f32.mrb[0].mxu0
      %v3766 = vadd.f32 0.0, %v3765
      %v3767 = vpop.f32.mrb[0].mxu0
      %3768 = vmatprep.mubr.bf16.mxu0 0
      %3769 = vmatmul.mubr.bf16.gmra.mrb[0].mxu0 %v2710
      %v3770 = vpop.f32.mrb[0].mxu0
      %v3771 = vadd.f32 0.0, %v3770
      %v3772 = vpop.f32.mrb[0].mxu0
      %v3773 = vpop.f32.mrb[0].mxu0
      %v3774 = vadd.f32 0.0, %v3773
      %v3775 = vpop.f32.mrb[0].mxu0
      %3776 = vmatprep.mubr.bf16.mxu0 0
      %3777 = vmatmul.mubr.bf16.gmra.mrb[0].mxu0 %v2713
      %v3778 = vpop.f32.mrb[0].mxu0
      %v3779 = vadd.f32 0.0, %v3778
      %v3780 = vpop.f32.mrb[0].mxu0
      %v3781 = vpop.f32.mrb[0].mxu0
      %v3782 = vadd.f32 0.0, %v3781
      %v3783 = vpop.f32.mrb[0].mxu0
      %3784 = vmatprep.mubr.bf16.mxu0 0
      %3785 = vmatmul.mubr.bf16.gmra.mrb[0].mxu0 %v2716
      %v3786 = vpop.f32.mrb[0].mxu0
      %v3787 = vadd.f32 0.0, %v3786
      %v3788 = vpop.f32.mrb[0].mxu0
      %v3789 = vpop.f32.mrb[0].mxu0
      %v3790 = vadd.f32 0.0, %v3789
      %v3791 = vpop.f32.mrb[0].mxu0
      %3792 = vmatprep.mubr.bf16.mxu0 0
      %3793 = vmatmul.mubr.bf16.gmra.mrb[0].mxu0 %v2719
      %v3794 = vpop.f32.mrb[0].mxu0
      %v3795 = vadd.f32 0.0, %v3794
      %v3796 = vpop.f32.mrb[0].mxu0
      %v3797 = vpop.f32.mrb[0].mxu0
      %v3798 = vadd.f32 0.0, %v3797
      %v3799 = vpop.f32.mrb[0].mxu0
      %3800 = vmatprep.mubr.bf16.mxu0 0
      %3801 = vmatmul.mubr.bf16.gmra.mrb[0].mxu0 %v2722
      %v3802 = vpop.f32.mrb[0].mxu0
      %v3803 = vadd.f32 0.0, %v3802
      %v3804 = vpop.f32.mrb[0].mxu0
      %v3805 = vpop.f32.mrb[0].mxu0
      %v3806 = vadd.f32 0.0, %v3805
      %v3807 = vpop.f32.mrb[0].mxu0
      %3808 = vmatprep.mubr.bf16.mxu0 0
      %3809 = vmatmul.mubr.bf16.gmra.mrb[0].mxu0 %v2725
      %v3810 = vpop.f32.mrb[0].mxu0
      %v3811 = vadd.f32 0.0, %v3810
      %v3812 = vpop.f32.mrb[0].mxu0
      %v3813 = vpop.f32.mrb[0].mxu0
      %v3814 = vadd.f32 0.0, %v3813
      %v3815 = vpop.f32.mrb[0].mxu0
      %3816 = vmatprep.mubr.bf16.mxu0 0
      %3817 = vmatmul.mubr.bf16.gmra.mrb[0].mxu0 %v2728
      %v3818 = vpop.f32.mrb[0].mxu0
      %v3819 = vadd.f32 0.0, %v3818
      %v3820 = vpop.f32.mrb[0].mxu0
      %v3821 = vpop.f32.mrb[0].mxu0
      %v3822 = vadd.f32 0.0, %v3821
      %v3823 = vpop.f32.mrb[0].mxu0
      %3824 = vmatprep.mubr.bf16.mxu0 0
      %3825 = vmatmul.mubr.bf16.gmra.mrb[0].mxu0 %v2731
      %v3826 = vpop.f32.mrb[0].mxu0
      %v3827 = vadd.f32 0.0, %v3826
      %v3828 = vpop.f32.mrb[0].mxu0
      %v3829 = vpop.f32.mrb[0].mxu0
      %v3830 = vadd.f32 0.0, %v3829
      %v3831 = vpop.f32.mrb[0].mxu0
      %3832 = vmatprep.mubr.bf16.mxu0 0
      %3833 = vmatmul.mubr.bf16.gmra.mrb[0].mxu0 %v2734
      %v3834 = vpop.f32.mrb[0].mxu0
      %v3835 = vadd.f32 0.0, %v3834
      %v3836 = vpop.f32.mrb[0].mxu0
      %v3837 = vpop.f32.mrb[0].mxu0
      %v3838 = vadd.f32 0.0, %v3837
      %v3839 = vpop.f32.mrb[0].mxu0
      %3840 = vmatprep.mubr.bf16.mxu0 0
      %3841 = vmatmul.mubr.bf16.gmra.mrb[0].mxu0 %v2737
      %v3842 = vpop.f32.mrb[0].mxu0
      %v3843 = vadd.f32 0.0, %v3842
      %v3844 = vpop.f32.mrb[0].mxu0
      %v3845 = vpop.f32.mrb[0].mxu0
      %v3846 = vadd.f32 0.0, %v3845
      %v3847 = vpop.f32.mrb[0].mxu0
      %3848 = vmatprep.mubr.bf16.mxu0 0
      %3849 = vmatmul.mubr.bf16.gmra.mrb[0].mxu0 %v2740
      %v3850 = vpop.f32.mrb[0].mxu0
      %v3851 = vadd.f32 0.0, %v3850
      %v3852 = vpop.f32.mrb[0].mxu0
      %v3853 = vpop.f32.mrb[0].mxu0
      %v3854 = vadd.f32 0.0, %v3853
      %v3855 = vpop.f32.mrb[0].mxu0
      %3856 = vmatprep.mubr.bf16.mxu0 0
      %3857 = vmatmul.mubr.bf16.gmra.mrb[0].mxu0 %v2743
      %v3858 = vpop.f32.mrb[0].mxu0
      %v3859 = vadd.f32 0.0, %v3858
      %v3860 = vpop.f32.mrb[0].mxu0
      %v3861 = vpop.f32.mrb[0].mxu0
      %v3862 = vadd.f32 0.0, %v3861
      %v3863 = vpop.f32.mrb[0].mxu0
      %3864 = vmatprep.mubr.bf16.mxu0 0
      %3865 = vmatmul.mubr.bf16.gmra.mrb[0].mxu0 %v2746
      %v3866 = vpop.f32.mrb[0].mxu0
      %v3867 = vadd.f32 0.0, %v3866
      %v3868 = vpop.f32.mrb[0].mxu0
      %v3869 = vpop.f32.mrb[0].mxu0
      %v3870 = vadd.f32 0.0, %v3869
      %v3871 = vpop.f32.mrb[0].mxu0
      %3872 = vmatprep.mubr.bf16.mxu0 0
      %3873 = vmatmul.mubr.bf16.gmra.mrb[0].mxu0 %v2749
      %v3874 = vpop.f32.mrb[0].mxu0
      %v3875 = vadd.f32 0.0, %v3874
      %v3876 = vpop.f32.mrb[0].mxu0
      %v3877 = vpop.f32.mrb[0].mxu0
      %v3878 = vadd.f32 0.0, %v3877
      %v3879 = vpop.f32.mrb[0].mxu0
      %3880 = vmatprep.mubr.bf16.mxu0 0
      %3881 = vmatmul.mubr.bf16.gmra.mrb[0].mxu0 %v2752
      %v3882 = vpop.f32.mrb[0].mxu0
      %v3883 = vadd.f32 0.0, %v3882
      %v3884 = vpop.f32.mrb[0].mxu0
      %v3885 = vpop.f32.mrb[0].mxu0
      %v3886 = vadd.f32 0.0, %v3885
      %v3887 = vpop.f32.mrb[0].mxu0
      %3888 = vmatprep.mubr.bf16.mxu0 0
      %3889 = vmatmul.mubr.bf16.gmra.mrb[0].mxu0 %v2755
      %v3890 = vpop.f32.mrb[0].mxu0
      %v3891 = vadd.f32 0.0, %v3890
      %v3892 = vpop.f32.mrb[0].mxu0
      %v3893 = vpop.f32.mrb[0].mxu0
      %v3894 = vadd.f32 0.0, %v3893
      %v3895 = vpop.f32.mrb[0].mxu0
      %3896 = vmatprep.mubr.bf16.mxu0 0
      %3897 = vmatmul.mubr.bf16.gmra.mrb[0].mxu0 %v2758
      %v3898 = vpop.f32.mrb[0].mxu0
      %v3899 = vadd.f32 0.0, %v3898
      %v3900 = vpop.f32.mrb[0].mxu0
      %v3901 = vpop.f32.mrb[0].mxu0
      %v3902 = vadd.f32 0.0, %v3901
      %v3903 = vpop.f32.mrb[0].mxu0
      %3904 = vmatprep.mubr.bf16.mxu0 0
      %3905 = vmatmul.mubr.bf16.gmra.mrb[0].mxu0 %v2761
      %v3906 = vpop.f32.mrb[0].mxu0
      %v3907 = vadd.f32 0.0, %v3906
      %v3908 = vpop.f32.mrb[0].mxu0
      %v3909 = vpop.f32.mrb[0].mxu0
      %v3910 = vadd.f32 0.0, %v3909
      %v3911 = vpop.f32.mrb[0].mxu0
      %3912 = vmatprep.mubr.bf16.mxu0 0
      %3913 = vmatmul.mubr.bf16.gmra.mrb[0].mxu0 %v2764
      %v3914 = vpop.f32.mrb[0].mxu0
      %v3915 = vadd.f32 0.0, %v3914
      %v3916 = vpop.f32.mrb[0].mxu0
      %v3917 = vpop.f32.mrb[0].mxu0
      %v3918 = vadd.f32 0.0, %v3917
      %v3919 = vpop.f32.mrb[0].mxu0
      %3920 = vmatprep.mubr.bf16.mxu0 0
      %3921 = vmatmul.mubr.bf16.gmra.mrb[0].mxu0 %v2767
      %v3922 = vpop.f32.mrb[0].mxu0
      %v3923 = vadd.f32 0.0, %v3922
      %v3924 = vpop.f32.mrb[0].mxu0
      %v3925 = vpop.f32.mrb[0].mxu0
      %v3926 = vadd.f32 0.0, %v3925
      %v3927 = vpop.f32.mrb[0].mxu0
      %3928 = vmatprep.mubr.bf16.mxu0 0
      %3929 = vmatmul.mubr.bf16.gmra.mrb[0].mxu0 %v2770
      %v3930 = vpop.f32.mrb[0].mxu0
      %v3931 = vadd.f32 0.0, %v3930
      %v3932 = vpop.f32.mrb[0].mxu0
      %v3933 = vpop.f32.mrb[0].mxu0
      %v3934 = vadd.f32 0.0, %v3933
      %v3935 = vpop.f32.mrb[0].mxu0
      %3936 = vmatprep.mubr.bf16.mxu0 0
      %3937 = vmatmul.mubr.bf16.gmra.mrb[0].mxu0 %v2773
      %v3938 = vpop.f32.mrb[0].mxu0
      %v3939 = vadd.f32 0.0, %v3938
      %v3940 = vpop.f32.mrb[0].mxu0
      %v3941 = vpop.f32.mrb[0].mxu0
      %v3942 = vadd.f32 0.0, %v3941
      %v3943 = vpop.f32.mrb[0].mxu0
      %3944 = vmatprep.mubr.bf16.mxu0 0
      %3945 = vmatmul.mubr.bf16.gmra.mrb[0].mxu0 %v2776
      %v3946 = vpop.f32.mrb[0].mxu0
      %v3947 = vadd.f32 0.0, %v3946
      %v3948 = vpop.f32.mrb[0].mxu0
      %v3949 = vpop.f32.mrb[0].mxu0
      %v3950 = vadd.f32 0.0, %v3949
      %v3951 = vpop.f32.mrb[0].mxu0
      %3952 = vmatprep.mubr.bf16.mxu0 0
      %3953 = vmatmul.mubr.bf16.gmra.mrb[0].mxu0 %v2779
      %v3954 = vpop.f32.mrb[0].mxu0
      %v3955 = vadd.f32 0.0, %v3954
      %v3956 = vpop.f32.mrb[0].mxu0
      %v3957 = vpop.f32.mrb[0].mxu0
      %v3958 = vadd.f32 0.0, %v3957
      %v3959 = vpop.f32.mrb[0].mxu0
      %3960 = vmatprep.mubr.bf16.mxu0 0
      %3961 = vmatmul.mubr.bf16.gmra.mrb[0].mxu0 %v2782
      %v3962 = vpop.f32.mrb[0].mxu0
      %v3963 = vadd.f32 0.0, %v3962
      %v3964 = vpop.f32.mrb[0].mxu0
      %v3965 = vpop.f32.mrb[0].mxu0
      %v3966 = vadd.f32 0.0, %v3965
      %v3967 = vpop.f32.mrb[0].mxu0
      %3968 = vmatprep.mubr.bf16.mxu0 0
      %3969 = vmatmul.mubr.bf16.gmra.mrb[0].mxu0 %v2785
      %v3970 = vpop.f32.mrb[0].mxu0
      %v3971 = vadd.f32 0.0, %v3970
      %v3972 = vpop.f32.mrb[0].mxu0
      %v3973 = vpop.f32.mrb[0].mxu0
      %v3974 = vadd.f32 0.0, %v3973
      %v3975 = vpop.f32.mrb[0].mxu0
      %3976 = vmatprep.mubr.bf16.mxu0 0
      %3977 = vmatmul.mubr.bf16.gmra.mrb[0].mxu0 %v2788
      %v3978 = vpop.f32.mrb[0].mxu0
      %v3979 = vadd.f32 0.0, %v3978
      %v3980 = vpop.f32.mrb[0].mxu0
      %v3981 = vpop.f32.mrb[0].mxu0
      %v3982 = vadd.f32 0.0, %v3981
      %v3983 = vpop.f32.mrb[0].mxu0
      %3984 = vmatprep.mubr.bf16.mxu0 0
      %3985 = vmatmul.mubr.bf16.gmra.mrb[0].mxu0 %v2791
      %v3986 = vpop.f32.mrb[0].mxu0
      %v3987 = vadd.f32 0.0, %v3986
      %v3988 = vpop.f32.mrb[0].mxu0
      %v3989 = vpop.f32.mrb[0].mxu0
      %v3990 = vadd.f32 0.0, %v3989
      %v3991 = vpop.f32.mrb[0].mxu0
      %3992 = vmatprep.mubr.bf16.mxu0 0
      %3993 = vmatmul.mubr.bf16.gmra.mrb[0].mxu0 %v3242
      %v3994 = vpop.f32.mrb[0].mxu0
      %v3995 = vadd.f32 0.0, %v3994
      %v3996 = vpop.f32.mrb[0].mxu0
      %v3997 = vpop.f32.mrb[0].mxu0
      %v3998 = vadd.f32 0.0, %v3997
      %v3999 = vpop.f32.mrb[0].mxu0
      %4000 = vmatprep.mubr.bf16.mxu0 0
      %4001 = vmatmul.mubr.bf16.gmra.mrb[0].mxu0 %v3245
      %v4002 = vpop.f32.mrb[0].mxu0
      %v4003 = vadd.f32 0.0, %v4002
      %v4004 = vpop.f32.mrb[0].mxu0
      %v4005 = vpop.f32.mrb[0].mxu0
      %v4006 = vadd.f32 0.0, %v4005
      %v4007 = vpop.f32.mrb[0].mxu0
      %4008 = vmatprep.mubr.bf16.mxu0 0
      %4009 = vmatmul.mubr.bf16.gmra.mrb[0].mxu0 %v3696
      %v4010 = vpop.f32.mrb[0].mxu0
      %v4011 = vadd.f32 0.0, %v4010
      %v4012 = vpop.f32.mrb[0].mxu0
      %v4013 = vpop.f32.mrb[0].mxu0
      %v4014 = vadd.f32 0.0, %v4013
      %v4015 = vpop.f32.mrb[0].mxu0
      %4016 = vmatprep.mubr.bf16.mxu0 0
      %4017 = vmatmul.mubr.bf16.gmra.mrb[0].mxu0 %v3699
      %v4018 = vpop.f32.mrb[0].mxu0
      %v4019 = vadd.f32 0.0, %v4018
      %v4020 = vpop.f32.mrb[0].mxu0
      %v4021 = vpop.f32.mrb[0].mxu0
      %v4022 = vadd.f32 0.0, %v4021
      %v4023 = vpop.f32.mrb[0].mxu0
      %4024 = vdwg.mxu0
      %v4025 = vadd.f32 %v3571, %v3739
      %v4026 = vadd.f32 %v3572, %v3742
      %v4027 = vadd.f32 %v3573, %v3747
      %v4028 = vadd.f32 %v3574, %v3750
      %v4029 = vadd.f32 %v3575, %v3755
      %v4030 = vadd.f32 %v3576, %v3758
      %v4031 = vadd.f32 %v3577, %v3763
      %v4032 = vadd.f32 %v3578, %v3766
      %v4033 = vadd.f32 %v3579, %v3771
      %v4034 = vadd.f32 %v3580, %v3774
      %v4035 = vadd.f32 %v3581, %v3779
      %v4036 = vadd.f32 %v3582, %v3782
      %v4037 = vadd.f32 %v3583, %v3787
      %v4038 = vadd.f32 %v3584, %v3790
      %v4039 = vadd.f32 %v3585, %v3795
      %v4040 = vadd.f32 %v3586, %v3798
      %v4041 = vadd.f32 %v3587, %v3803
      %v4042 = vadd.f32 %v3588, %v3806
      %v4043 = vadd.f32 %v3589, %v3811
      %v4044 = vadd.f32 %v3590, %v3814
      %v4045 = vadd.f32 %v3591, %v3819
      %v4046 = vadd.f32 %v3592, %v3822
      %v4047 = vadd.f32 %v3593, %v3827
      %v4048 = vadd.f32 %v3594, %v3830
      %v4049 = vadd.f32 %v3595, %v3835
      %v4050 = vadd.f32 %v3596, %v3838
      %v4051 = vadd.f32 %v3597, %v3843
      %v4052 = vadd.f32 %v3598, %v3846
      %v4053 = vadd.f32 %v3599, %v3851
      %v4054 = vadd.f32 %v3600, %v3854
      %v4055 = vadd.f32 %v3601, %v3859
      %v4056 = vadd.f32 %v3602, %v3862
      %v4057 = vadd.f32 %v3603, %v3867
      %v4058 = vadd.f32 %v3604, %v3870
      %v4059 = vadd.f32 %v3605, %v3875
      %v4060 = vadd.f32 %v3606, %v3878
      %v4061 = vadd.f32 %v3607, %v3883
      %v4062 = vadd.f32 %v3608, %v3886
      %v4063 = vadd.f32 %v3609, %v3891
      %v4064 = vadd.f32 %v3610, %v3894
      %v4065 = vadd.f32 %v3611, %v3899
      %v4066 = vadd.f32 %v3612, %v3902
      %v4067 = vadd.f32 %v3613, %v3907
      %v4068 = vadd.f32 %v3614, %v3910
      %v4069 = vadd.f32 %v3615, %v3915
      %v4070 = vadd.f32 %v3616, %v3918
      %v4071 = vadd.f32 %v3617, %v3923
      %v4072 = vadd.f32 %v3618, %v3926
      %v4073 = vadd.f32 %v3619, %v3931
      %v4074 = vadd.f32 %v3620, %v3934
      %v4075 = vadd.f32 %v3621, %v3939
      %v4076 = vadd.f32 %v3622, %v3942
      %v4077 = vadd.f32 %v3623, %v3947
      %v4078 = vadd.f32 %v3624, %v3950
      %v4079 = vadd.f32 %v3625, %v3955
      %v4080 = vadd.f32 %v3626, %v3958
      %v4081 = vadd.f32 %v3627, %v3963
      %v4082 = vadd.f32 %v3628, %v3966
      %v4083 = vadd.f32 %v3629, %v3971
      %v4084 = vadd.f32 %v3630, %v3974
      %v4085 = vadd.f32 %v3631, %v3979
      %v4086 = vadd.f32 %v3632, %v3982
      %v4087 = vadd.f32 %v3633, %v3987
      %v4088 = vadd.f32 %v3634, %v3990
      %v4089 = vadd.f32 %v3635, %v3995
      %v4090 = vadd.f32 %v3636, %v3998
      %v4091 = vadd.f32 %v3637, %v4003
      %v4092 = vadd.f32 %v3638, %v4006
      %v4093 = vadd.f32 %v3639, %v4011
      %v4094 = vadd.f32 %v3640, %v4014
      %v4095 = vadd.f32 %v3641, %v4019
      %v4096 = vadd.f32 %v3642, %v4022
      %vm4115 = vcmask 1042432
      %vm4116 = vcmask 1046532
      %vm4117 = vmor %vm4115, %vm4116
      %v4118 = vrot.slane %v309, 5
      %v4119 = vrot.slane %v4118, 4
      %v4120 = vrot.slane %v310, 5
      %v4121 = vsel %vm4117, %v4119, %v4120
      %v4122 = vrot.slane %v4120, 4
      %v4123 = vrot.slane %v311, 5
      %v4124 = vsel %vm4117, %v4122, %v4123
      %v4125 = vrot.slane %v4123, 4
      %v4126 = vrot.slane %v312, 5
      %v4127 = vsel %vm4117, %v4125, %v4126
      %v4128 = vrot.slane %v4126, 4
      %v4129 = vrot.slane %v313, 5
      %v4130 = vsel %vm4117, %v4128, %v4129
      %v4131 = vrot.slane %v314, 5
      %v4132 = vrot.slane %v4131, 4
      %v4133 = vrot.slane %v315, 5
      %v4134 = vsel %vm4117, %v4132, %v4133
      %v4135 = vrot.slane %v4133, 4
      %v4136 = vrot.slane %v316, 5
      %v4137 = vsel %vm4117, %v4135, %v4136
      %v4138 = vrot.slane %v4136, 4
      %v4139 = vrot.slane %v317, 5
      %v4140 = vsel %vm4117, %v4138, %v4139
      %v4141 = vrot.slane %v4139, 4
      %v4142 = vrot.slane %v318, 5
      %v4143 = vsel %vm4117, %v4141, %v4142
      %v4144 = vrot.slane %v319, 5
      %v4145 = vrot.slane %v4144, 4
      %v4146 = vrot.slane %v320, 5
      %v4147 = vsel %vm4117, %v4145, %v4146
      %v4148 = vrot.slane %v4146, 4
      %v4149 = vrot.slane %v321, 5
      %v4150 = vsel %vm4117, %v4148, %v4149
      %v4151 = vrot.slane %v4149, 4
      %v4152 = vrot.slane %v322, 5
      %v4153 = vsel %vm4117, %v4151, %v4152
      %v4154 = vrot.slane %v4152, 4
      %v4155 = vrot.slane %v323, 5
      %v4156 = vsel %vm4117, %v4154, %v4155
      %v4157 = vrot.slane %v324, 5
      %v4158 = vrot.slane %v4157, 4
      %v4159 = vrot.slane %v325, 5
      %v4160 = vsel %vm4117, %v4158, %v4159
      %v4161 = vrot.slane %v4159, 4
      %v4162 = vrot.slane %v326, 5
      %v4163 = vsel %vm4117, %v4161, %v4162
      %v4164 = vrot.slane %v4162, 4
      %v4165 = vrot.slane %v327, 5
      %v4166 = vsel %vm4117, %v4164, %v4165
      %v4167 = vrot.slane %v4165, 4
      %v4168 = vrot.slane %v328, 5
      %v4169 = vsel %vm4117, %v4167, %v4168
      %v4170 = vrot.slane %v329, 5
      %v4171 = vrot.slane %v4170, 4
      %v4172 = vrot.slane %v330, 5
      %v4173 = vsel %vm4117, %v4171, %v4172
      %v4174 = vrot.slane %v4172, 4
      %v4175 = vrot.slane %v331, 5
      %v4176 = vsel %vm4117, %v4174, %v4175
      %v4177 = vrot.slane %v4175, 4
      %v4178 = vrot.slane %v332, 5
      %v4179 = vsel %vm4117, %v4177, %v4178
      %v4180 = vrot.slane %v4178, 4
      %v4181 = vrot.slane %v333, 5
      %v4182 = vsel %vm4117, %v4180, %v4181
      %v4183 = vrot.slane %v334, 5
      %v4184 = vrot.slane %v4183, 4
      %v4185 = vrot.slane %v335, 5
      %v4186 = vsel %vm4117, %v4184, %v4185
      %v4187 = vrot.slane %v4185, 4
      %v4188 = vrot.slane %v336, 5
      %v4189 = vsel %vm4117, %v4187, %v4188
      %v4190 = vrot.slane %v4188, 4
      %v4191 = vrot.slane %v337, 5
      %v4192 = vsel %vm4117, %v4190, %v4191
      %v4193 = vrot.slane %v4191, 4
      %v4194 = vrot.slane %v338, 5
      %v4195 = vsel %vm4117, %v4193, %v4194
      %v4196 = vrot.slane %v339, 5
      %v4197 = vrot.slane %v4196, 4
      %v4198 = vrot.slane %v340, 5
      %v4199 = vsel %vm4117, %v4197, %v4198
      %v4200 = vrot.slane %v4198, 4
      %v4201 = vrot.slane %v341, 5
      %v4202 = vsel %vm4117, %v4200, %v4201
      %v4203 = vrot.slane %v4201, 4
      %v4204 = vrot.slane %v342, 5
      %v4205 = vsel %vm4117, %v4203, %v4204
      %v4206 = vrot.slane %v4204, 4
      %v4207 = vrot.slane %v343, 5
      %v4208 = vsel %vm4117, %v4206, %v4207
      %v4209 = vrot.slane %v344, 5
      %v4210 = vrot.slane %v4209, 4
      %v4211 = vrot.slane %v345, 5
      %v4212 = vsel %vm4117, %v4210, %v4211
      %v4213 = vrot.slane %v4211, 4
      %v4214 = vrot.slane %v346, 5
      %v4215 = vsel %vm4117, %v4213, %v4214
      %v4216 = vrot.slane %v4214, 4
      %v4217 = vrot.slane %v347, 5
      %v4218 = vsel %vm4117, %v4216, %v4217
      %v4219 = vrot.slane %v4217, 4
      %v4220 = vrot.slane %v348, 5
      %v4221 = vsel %vm4117, %v4219, %v4220
      %v4222 = vrot.slane %v349, 5
      %v4223 = vrot.slane %v4222, 4
      %v4224 = vrot.slane %v350, 5
      %v4225 = vsel %vm4117, %v4223, %v4224
      %v4226 = vrot.slane %v4224, 4
      %v4227 = vrot.slane %v351, 5
      %v4228 = vsel %vm4117, %v4226, %v4227
      %v4229 = vrot.slane %v4227, 4
      %v4230 = vrot.slane %v352, 5
      %v4231 = vsel %vm4117, %v4229, %v4230
      %v4232 = vrot.slane %v4230, 4
      %v4233 = vrot.slane %v353, 5
      %v4234 = vsel %vm4117, %v4232, %v4233
      %v4235 = vrot.slane %v354, 5
      %v4236 = vrot.slane %v4235, 4
      %v4237 = vrot.slane %v355, 5
      %v4238 = vsel %vm4117, %v4236, %v4237
      %v4239 = vrot.slane %v4237, 4
      %v4240 = vrot.slane %v356, 5
      %v4241 = vsel %vm4117, %v4239, %v4240
      %v4242 = vrot.slane %v4240, 4
      %v4243 = vrot.slane %v357, 5
      %v4244 = vsel %vm4117, %v4242, %v4243
      %v4245 = vrot.slane %v4243, 4
      %v4246 = vrot.slane %v358, 5
      %v4247 = vsel %vm4117, %v4245, %v4246
      %v4248 = vrot.slane %v359, 5
      %v4249 = vrot.slane %v4248, 4
      %v4250 = vrot.slane %v360, 5
      %v4251 = vsel %vm4117, %v4249, %v4250
      %v4252 = vrot.slane %v4250, 4
      %v4253 = vrot.slane %v361, 5
      %v4254 = vsel %vm4117, %v4252, %v4253
      %v4255 = vrot.slane %v4253, 4
      %v4256 = vrot.slane %v362, 5
      %v4257 = vsel %vm4117, %v4255, %v4256
      %v4258 = vrot.slane %v4256, 4
      %v4259 = vrot.slane %v363, 5
      %v4260 = vsel %vm4117, %v4258, %v4259
      %v4261 = vrot.slane %v364, 5
      %v4262 = vrot.slane %v4261, 4
      %v4263 = vrot.slane %v365, 5
      %v4264 = vsel %vm4117, %v4262, %v4263
      %v4265 = vrot.slane %v4263, 4
      %v4266 = vrot.slane %v366, 5
      %v4267 = vsel %vm4117, %v4265, %v4266
      %v4268 = vrot.slane %v4266, 4
      %v4269 = vrot.slane %v367, 5
      %v4270 = vsel %vm4117, %v4268, %v4269
      %v4271 = vrot.slane %v4269, 4
      %v4272 = vrot.slane %v368, 5
      %v4273 = vsel %vm4117, %v4271, %v4272
      %v4274 = vrot.slane %v369, 5
      %v4275 = vrot.slane %v4274, 4
      %v4276 = vrot.slane %v370, 5
      %v4277 = vsel %vm4117, %v4275, %v4276
      %v4278 = vrot.slane %v4276, 4
      %v4279 = vrot.slane %v371, 5
      %v4280 = vsel %vm4117, %v4278, %v4279
      %v4281 = vrot.slane %v4279, 4
      %v4282 = vrot.slane %v372, 5
      %v4283 = vsel %vm4117, %v4281, %v4282
      %v4284 = vrot.slane %v4282, 4
      %v4285 = vrot.slane %v373, 5
      %v4286 = vsel %vm4117, %v4284, %v4285
      %v4287 = vrot.slane %v374, 5
      %v4288 = vrot.slane %v4287, 4
      %v4289 = vrot.slane %v375, 5
      %v4290 = vsel %vm4117, %v4288, %v4289
      %v4291 = vrot.slane %v4289, 4
      %v4292 = vrot.slane %v376, 5
      %v4293 = vsel %vm4117, %v4291, %v4292
      %v4294 = vrot.slane %v4292, 4
      %v4295 = vrot.slane %v377, 5
      %v4296 = vsel %vm4117, %v4294, %v4295
      %v4297 = vrot.slane %v4295, 4
      %v4298 = vrot.slane %v378, 5
      %v4299 = vsel %vm4117, %v4297, %v4298
      %v4300 = vrot.slane %v379, 5
      %v4301 = vrot.slane %v4300, 4
      %v4302 = vrot.slane %v380, 5
      %v4303 = vsel %vm4117, %v4301, %v4302
      %v4304 = vrot.slane %v4302, 4
      %v4305 = vrot.slane %v381, 5
      %v4306 = vsel %vm4117, %v4304, %v4305
      %v4307 = vrot.slane %v4305, 4
      %v4308 = vrot.slane %v382, 5
      %v4309 = vsel %vm4117, %v4307, %v4308
      %v4310 = vrot.slane %v4308, 4
      %v4311 = vrot.slane %v383, 5
      %v4312 = vsel %vm4117, %v4310, %v4311
      %v4313 = vrot.slane %v384, 5
      %v4314 = vrot.slane %v4313, 4
      %v4315 = vrot.slane %v385, 5
      %v4316 = vsel %vm4117, %v4314, %v4315
      %v4317 = vrot.slane %v4315, 4
      %v4318 = vrot.slane %v386, 5
      %v4319 = vsel %vm4117, %v4317, %v4318
      %v4320 = vrot.slane %v4318, 4
      %v4321 = vrot.slane %v387, 5
      %v4322 = vsel %vm4117, %v4320, %v4321
      %v4323 = vrot.slane %v4321, 4
      %v4324 = vrot.slane %v388, 5
      %v4325 = vsel %vm4117, %v4323, %v4324
      %v4326 = vrot.slane %v389, 5
      %v4327 = vrot.slane %v4326, 4
      %v4328 = vrot.slane %v390, 5
      %v4329 = vsel %vm4117, %v4327, %v4328
      %v4330 = vrot.slane %v4328, 4
      %v4331 = vrot.slane %v391, 5
      %v4332 = vsel %vm4117, %v4330, %v4331
      %v4333 = vrot.slane %v4331, 4
      %v4334 = vrot.slane %v392, 5
      %v4335 = vsel %vm4117, %v4333, %v4334
      %v4336 = vrot.slane %v4334, 4
      %v4337 = vrot.slane %v393, 5
      %v4338 = vsel %vm4117, %v4336, %v4337
      %v4339 = vrot.slane %v394, 5
      %v4340 = vrot.slane %v4339, 4
      %v4341 = vrot.slane %v395, 5
      %v4342 = vsel %vm4117, %v4340, %v4341
      %v4343 = vrot.slane %v4341, 4
      %v4344 = vrot.slane %v396, 5
      %v4345 = vsel %vm4117, %v4343, %v4344
      %v4346 = vrot.slane %v4344, 4
      %v4347 = vrot.slane %v397, 5
      %v4348 = vsel %vm4117, %v4346, %v4347
      %v4349 = vrot.slane %v4347, 4
      %v4350 = vrot.slane %v398, 5
      %v4351 = vsel %vm4117, %v4349, %v4350
      %s4352 = scalar_lea.vmem %s1, 4
      %v4353 = vld [vmem:[%s4352] sm:$0x3]
      %v4354 = vunpack.c.l.b16 %v4121
      %v4355 = vunpack.c.l.b16 %v4124
      %v4356 = vunpack.c.l.b16 %v4127
      %v4357 = vunpack.c.l.b16 %v4130
      %v4358 = vunpack.c.l.b16 %v4134
      %v4359 = vunpack.c.l.b16 %v4137
      %v4360 = vunpack.c.l.b16 %v4140
      %v4361 = vunpack.c.l.b16 %v4143
      %v4362 = vunpack.c.l.b16 %v4147
      %v4363 = vunpack.c.l.b16 %v4150
      %v4364 = vunpack.c.l.b16 %v4153
      %v4365 = vunpack.c.l.b16 %v4156
      %v4366 = vunpack.c.l.b16 %v4160
      %v4367 = vunpack.c.l.b16 %v4163
      %v4368 = vunpack.c.l.b16 %v4166
      %v4369 = vunpack.c.l.b16 %v4169
      %v4370 = vunpack.c.l.b16 %v4173
      %v4371 = vunpack.c.l.b16 %v4176
      %v4372 = vunpack.c.l.b16 %v4179
      %v4373 = vunpack.c.l.b16 %v4182
      %v4374 = vunpack.c.l.b16 %v4186
      %v4375 = vunpack.c.l.b16 %v4189
      %v4376 = vunpack.c.l.b16 %v4192
      %v4377 = vunpack.c.l.b16 %v4195
      %v4378 = vunpack.c.l.b16 %v4199
      %v4379 = vunpack.c.l.b16 %v4202
      %v4380 = vunpack.c.l.b16 %v4205
      %v4381 = vunpack.c.l.b16 %v4208
      %v4382 = vunpack.c.l.b16 %v4212
      %v4383 = vunpack.c.l.b16 %v4215
      %v4384 = vunpack.c.l.b16 %v4218
      %v4385 = vunpack.c.l.b16 %v4221
      %v4386 = vunpack.c.l.b16 %v4225
      %v4387 = vunpack.c.l.b16 %v4228
      %v4388 = vunpack.c.l.b16 %v4231
      %v4389 = vunpack.c.l.b16 %v4234
      %v4390 = vunpack.c.l.b16 %v4238
      %v4391 = vunpack.c.l.b16 %v4241
      %v4392 = vunpack.c.l.b16 %v4244
      %v4393 = vunpack.c.l.b16 %v4247
      %v4394 = vunpack.c.l.b16 %v4251
      %v4395 = vunpack.c.l.b16 %v4254
      %v4396 = vunpack.c.l.b16 %v4257
      %v4397 = vunpack.c.l.b16 %v4260
      %v4398 = vunpack.c.l.b16 %v4264
      %v4399 = vunpack.c.l.b16 %v4267
      %v4400 = vunpack.c.l.b16 %v4270
      %v4401 = vunpack.c.l.b16 %v4273
      %v4402 = vunpack.c.l.b16 %v4277
      %v4403 = vunpack.c.l.b16 %v4280
      %v4404 = vunpack.c.l.b16 %v4283
      %v4405 = vunpack.c.l.b16 %v4286
      %v4406 = vunpack.c.l.b16 %v4290
      %v4407 = vunpack.c.l.b16 %v4293
      %v4408 = vunpack.c.l.b16 %v4296
      %v4409 = vunpack.c.l.b16 %v4299
      %v4410 = vunpack.c.l.b16 %v4303
      %v4411 = vunpack.c.l.b16 %v4306
      %v4412 = vunpack.c.l.b16 %v4309
      %v4413 = vunpack.c.l.b16 %v4312
      %v4414 = vunpack.c.l.b16 %v4316
      %v4415 = vunpack.c.l.b16 %v4319
      %v4416 = vunpack.c.l.b16 %v4322
      %v4417 = vunpack.c.l.b16 %v4325
      %v4418 = vunpack.c.l.b16 %v4329
      %v4419 = vunpack.c.l.b16 %v4332
      %v4420 = vunpack.c.l.b16 %v4335
      %v4421 = vunpack.c.l.b16 %v4338
      %v4422 = vunpack.c.l.b16 %v4342
      %v4423 = vunpack.c.l.b16 %v4345
      %v4424 = vunpack.c.l.b16 %v4348
      %v4425 = vunpack.c.l.b16 %v4351
      %v4426 = vpack.c.b16 %v4355, %v4354
      %v4427 = vpack.c.b16 %v4357, %v4356
      %v4428 = vpack.c.b16 %v4359, %v4358
      %v4429 = vpack.c.b16 %v4361, %v4360
      %v4430 = vpack.c.b16 %v4363, %v4362
      %v4431 = vpack.c.b16 %v4365, %v4364
      %v4432 = vpack.c.b16 %v4367, %v4366
      %v4433 = vpack.c.b16 %v4369, %v4368
      %v4434 = vpack.c.b16 %v4371, %v4370
      %v4435 = vpack.c.b16 %v4373, %v4372
      %v4436 = vpack.c.b16 %v4375, %v4374
      %v4437 = vpack.c.b16 %v4377, %v4376
      %v4438 = vpack.c.b16 %v4379, %v4378
      %v4439 = vpack.c.b16 %v4381, %v4380
      %v4440 = vpack.c.b16 %v4383, %v4382
      %v4441 = vpack.c.b16 %v4385, %v4384
      %v4442 = vpack.c.b16 %v4387, %v4386
      %v4443 = vpack.c.b16 %v4389, %v4388
      %v4444 = vpack.c.b16 %v4391, %v4390
      %v4445 = vpack.c.b16 %v4393, %v4392
      %v4446 = vpack.c.b16 %v4395, %v4394
      %v4447 = vpack.c.b16 %v4397, %v4396
      %v4448 = vpack.c.b16 %v4399, %v4398
      %v4449 = vpack.c.b16 %v4401, %v4400
      %v4450 = vpack.c.b16 %v4403, %v4402
      %v4451 = vpack.c.b16 %v4405, %v4404
      %v4452 = vpack.c.b16 %v4407, %v4406
      %v4453 = vpack.c.b16 %v4409, %v4408
      %v4454 = vpack.c.b16 %v4411, %v4410
      %v4455 = vpack.c.b16 %v4413, %v4412
      %v4456 = vpack.c.b16 %v4415, %v4414
      %v4457 = vpack.c.b16 %v4417, %v4416
      %v4458 = vpack.c.b16 %v4419, %v4418
      %v4459 = vpack.c.b16 %v4421, %v4420
      %v4460 = vpack.c.b16 %v4423, %v4422
      %v4461 = vpack.c.b16 %v4425, %v4424
      %v4463 = vsel %vm592, %v4426, 0
      %v4466 = vsel %vm592, %v4427, 0
      %v4469 = vsel %vm592, %v4428, 0
      %v4472 = vsel %vm592, %v4429, 0
      %v4475 = vsel %vm592, %v4430, 0
      %v4478 = vsel %vm592, %v4431, 0
      %v4481 = vsel %vm592, %v4432, 0
      %v4484 = vsel %vm592, %v4433, 0
      %v4487 = vsel %vm592, %v4434, 0
      %v4490 = vsel %vm592, %v4435, 0
      %v4493 = vsel %vm592, %v4436, 0
      %v4496 = vsel %vm592, %v4437, 0
      %v4499 = vsel %vm592, %v4438, 0
      %v4502 = vsel %vm592, %v4439, 0
      %v4505 = vsel %vm592, %v4440, 0
      %v4508 = vsel %vm592, %v4441, 0
      %v4511 = vsel %vm592, %v4442, 0
      %v4514 = vsel %vm592, %v4443, 0
      %v4517 = vsel %vm592, %v4444, 0
      %v4520 = vsel %vm592, %v4445, 0
      %v4523 = vsel %vm592, %v4446, 0
      %v4526 = vsel %vm592, %v4447, 0
      %v4529 = vsel %vm592, %v4448, 0
      %v4532 = vsel %vm592, %v4449, 0
      %v4535 = vsel %vm592, %v4450, 0
      %v4538 = vsel %vm592, %v4451, 0
      %v4541 = vsel %vm592, %v4452, 0
      %v4544 = vsel %vm592, %v4453, 0
      %v4547 = vsel %vm592, %v4454, 0
      %v4550 = vsel %vm592, %v4455, 0
      %v4553 = vsel %vm592, %v4456, 0
      %v4556 = vsel %vm592, %v4457, 0
      %v4559 = vsel %vm592, %v4458, 0
      %v4562 = vsel %vm592, %v4459, 0
      %v4565 = vsel %vm592, %v4460, 0
      %v4568 = vsel %vm592, %v4461, 0
      %v4571 = vsel %vm701, %v4353, 0
      %4573 = vmatprep.subr.bf16.mxu0 0
      %4574 = vmatpush1.bf16.msra.mxu0 %v4571
      %4575 = vmatprep.subr.bf16.mxu0 0
      %4576 = vmatpush1.bf16.msra.mxu0 0
      %4577 = vmatprep.subr.bf16.mxu0 0
      %4578 = vmatpush1.bf16.msra.mxu0 0
      %4579 = vmatprep.subr.bf16.mxu0 0
      %4580 = vmatpush1.bf16.msra.mxu0 0
      %4581 = vmatprep.subr.bf16.mxu0 0
      %4582 = vmatpush1.bf16.msra.mxu0 0
      %4583 = vmatprep.subr.bf16.mxu0 0
      %4584 = vmatpush1.bf16.msra.mxu0 0
      %4585 = vmatprep.subr.bf16.mxu0 0
      %4586 = vmatpush1.bf16.msra.mxu0 0
      %4587 = vmatprep.subr.bf16.mxu0 0
      %4588 = vmatpush1.bf16.msra.mxu0 0
      %4589 = vmatprep.subr.bf16.mxu0 0
      %4590 = vmatpush1.bf16.msra.mxu0 0
      %4591 = vmatprep.subr.bf16.mxu0 0
      %4592 = vmatpush1.bf16.msra.mxu0 0
      %4593 = vmatprep.subr.bf16.mxu0 0
      %4594 = vmatpush1.bf16.msra.mxu0 0
      %4595 = vmatprep.subr.bf16.mxu0 0
      %4596 = vmatpush1.bf16.msra.mxu0 0
      %4597 = vmatprep.subr.bf16.mxu0 0
      %4598 = vmatpush1.bf16.msra.mxu0 0
      %4599 = vmatprep.subr.bf16.mxu0 0
      %4600 = vmatpush1.bf16.msra.mxu0 0
      %4601 = vmatprep.subr.bf16.mxu0 0
      %4602 = vmatpush1.bf16.msra.mxu0 0
      %4603 = vmatprep.subr.bf16.mxu0 0
      %4604 = vmatpush1.bf16.msra.mxu0 0
      %4605 = vmatprep.mubr.bf16.mxu0 0
      %4606 = vmatmul.mubr.bf16.gmra.mrb[0].mxu0 %v4463
      %v4607 = vpop.f32.mrb[0].mxu0
      %v4608 = vadd.f32 0.0, %v4607
      %v4609 = vpop.f32.mrb[0].mxu0
      %v4610 = vpop.f32.mrb[0].mxu0
      %v4611 = vadd.f32 0.0, %v4610
      %v4612 = vpop.f32.mrb[0].mxu0
      %4613 = vmatprep.mubr.bf16.mxu0 0
      %4614 = vmatmul.mubr.bf16.gmra.mrb[0].mxu0 %v4466
      %v4615 = vpop.f32.mrb[0].mxu0
      %v4616 = vadd.f32 0.0, %v4615
      %v4617 = vpop.f32.mrb[0].mxu0
      %v4618 = vpop.f32.mrb[0].mxu0
      %v4619 = vadd.f32 0.0, %v4618
      %v4620 = vpop.f32.mrb[0].mxu0
      %4621 = vmatprep.mubr.bf16.mxu0 0
      %4622 = vmatmul.mubr.bf16.gmra.mrb[0].mxu0 %v4469
      %v4623 = vpop.f32.mrb[0].mxu0
      %v4624 = vadd.f32 0.0, %v4623
      %v4625 = vpop.f32.mrb[0].mxu0
      %v4626 = vpop.f32.mrb[0].mxu0
      %v4627 = vadd.f32 0.0, %v4626
      %v4628 = vpop.f32.mrb[0].mxu0
      %4629 = vmatprep.mubr.bf16.mxu0 0
      %4630 = vmatmul.mubr.bf16.gmra.mrb[0].mxu0 %v4472
      %v4631 = vpop.f32.mrb[0].mxu0
      %v4632 = vadd.f32 0.0, %v4631
      %v4633 = vpop.f32.mrb[0].mxu0
      %v4634 = vpop.f32.mrb[0].mxu0
      %v4635 = vadd.f32 0.0, %v4634
      %v4636 = vpop.f32.mrb[0].mxu0
      %4637 = vmatprep.mubr.bf16.mxu0 0
      %4638 = vmatmul.mubr.bf16.gmra.mrb[0].mxu0 %v4475
      %v4639 = vpop.f32.mrb[0].mxu0
      %v4640 = vadd.f32 0.0, %v4639
      %v4641 = vpop.f32.mrb[0].mxu0
      %v4642 = vpop.f32.mrb[0].mxu0
      %v4643 = vadd.f32 0.0, %v4642
      %v4644 = vpop.f32.mrb[0].mxu0
      %4645 = vmatprep.mubr.bf16.mxu0 0
      %4646 = vmatmul.mubr.bf16.gmra.mrb[0].mxu0 %v4478
      %v4647 = vpop.f32.mrb[0].mxu0
      %v4648 = vadd.f32 0.0, %v4647
      %v4649 = vpop.f32.mrb[0].mxu0
      %v4650 = vpop.f32.mrb[0].mxu0
      %v4651 = vadd.f32 0.0, %v4650
      %v4652 = vpop.f32.mrb[0].mxu0
      %4653 = vmatprep.mubr.bf16.mxu0 0
      %4654 = vmatmul.mubr.bf16.gmra.mrb[0].mxu0 %v4481
      %v4655 = vpop.f32.mrb[0].mxu0
      %v4656 = vadd.f32 0.0, %v4655
      %v4657 = vpop.f32.mrb[0].mxu0
      %v4658 = vpop.f32.mrb[0].mxu0
      %v4659 = vadd.f32 0.0, %v4658
      %v4660 = vpop.f32.mrb[0].mxu0
      %4661 = vmatprep.mubr.bf16.mxu0 0
      %4662 = vmatmul.mubr.bf16.gmra.mrb[0].mxu0 %v4484
      %v4663 = vpop.f32.mrb[0].mxu0
      %v4664 = vadd.f32 0.0, %v4663
      %v4665 = vpop.f32.mrb[0].mxu0
      %v4666 = vpop.f32.mrb[0].mxu0
      %v4667 = vadd.f32 0.0, %v4666
      %v4668 = vpop.f32.mrb[0].mxu0
      %4669 = vmatprep.mubr.bf16.mxu0 0
      %4670 = vmatmul.mubr.bf16.gmra.mrb[0].mxu0 %v4487
      %v4671 = vpop.f32.mrb[0].mxu0
      %v4672 = vadd.f32 0.0, %v4671
      %v4673 = vpop.f32.mrb[0].mxu0
      %v4674 = vpop.f32.mrb[0].mxu0
      %v4675 = vadd.f32 0.0, %v4674
      %v4676 = vpop.f32.mrb[0].mxu0
      %4677 = vmatprep.mubr.bf16.mxu0 0
      %4678 = vmatmul.mubr.bf16.gmra.mrb[0].mxu0 %v4490
      %v4679 = vpop.f32.mrb[0].mxu0
      %v4680 = vadd.f32 0.0, %v4679
      %v4681 = vpop.f32.mrb[0].mxu0
      %v4682 = vpop.f32.mrb[0].mxu0
      %v4683 = vadd.f32 0.0, %v4682
      %v4684 = vpop.f32.mrb[0].mxu0
      %4685 = vmatprep.mubr.bf16.mxu0 0
      %4686 = vmatmul.mubr.bf16.gmra.mrb[0].mxu0 %v4493
      %v4687 = vpop.f32.mrb[0].mxu0
      %v4688 = vadd.f32 0.0, %v4687
      %v4689 = vpop.f32.mrb[0].mxu0
      %v4690 = vpop.f32.mrb[0].mxu0
      %v4691 = vadd.f32 0.0, %v4690
      %v4692 = vpop.f32.mrb[0].mxu0
      %4693 = vmatprep.mubr.bf16.mxu0 0
      %4694 = vmatmul.mubr.bf16.gmra.mrb[0].mxu0 %v4496
      %v4695 = vpop.f32.mrb[0].mxu0
      %v4696 = vadd.f32 0.0, %v4695
      %v4697 = vpop.f32.mrb[0].mxu0
      %v4698 = vpop.f32.mrb[0].mxu0
      %v4699 = vadd.f32 0.0, %v4698
      %v4700 = vpop.f32.mrb[0].mxu0
      %4701 = vmatprep.mubr.bf16.mxu0 0
      %4702 = vmatmul.mubr.bf16.gmra.mrb[0].mxu0 %v4499
      %v4703 = vpop.f32.mrb[0].mxu0
      %v4704 = vadd.f32 0.0, %v4703
      %v4705 = vpop.f32.mrb[0].mxu0
      %v4706 = vpop.f32.mrb[0].mxu0
      %v4707 = vadd.f32 0.0, %v4706
      %v4708 = vpop.f32.mrb[0].mxu0
      %4709 = vmatprep.mubr.bf16.mxu0 0
      %4710 = vmatmul.mubr.bf16.gmra.mrb[0].mxu0 %v4502
      %v4711 = vpop.f32.mrb[0].mxu0
      %v4712 = vadd.f32 0.0, %v4711
      %v4713 = vpop.f32.mrb[0].mxu0
      %v4714 = vpop.f32.mrb[0].mxu0
      %v4715 = vadd.f32 0.0, %v4714
      %v4716 = vpop.f32.mrb[0].mxu0
      %4717 = vmatprep.mubr.bf16.mxu0 0
      %4718 = vmatmul.mubr.bf16.gmra.mrb[0].mxu0 %v4505
      %v4719 = vpop.f32.mrb[0].mxu0
      %v4720 = vadd.f32 0.0, %v4719
      %v4721 = vpop.f32.mrb[0].mxu0
      %v4722 = vpop.f32.mrb[0].mxu0
      %v4723 = vadd.f32 0.0, %v4722
      %v4724 = vpop.f32.mrb[0].mxu0
      %4725 = vmatprep.mubr.bf16.mxu0 0
      %4726 = vmatmul.mubr.bf16.gmra.mrb[0].mxu0 %v4508
      %v4727 = vpop.f32.mrb[0].mxu0
      %v4728 = vadd.f32 0.0, %v4727
      %v4729 = vpop.f32.mrb[0].mxu0
      %v4730 = vpop.f32.mrb[0].mxu0
      %v4731 = vadd.f32 0.0, %v4730
      %v4732 = vpop.f32.mrb[0].mxu0
      %4733 = vmatprep.mubr.bf16.mxu0 0
      %4734 = vmatmul.mubr.bf16.gmra.mrb[0].mxu0 %v4511
      %v4735 = vpop.f32.mrb[0].mxu0
      %v4736 = vadd.f32 0.0, %v4735
      %v4737 = vpop.f32.mrb[0].mxu0
      %v4738 = vpop.f32.mrb[0].mxu0
      %v4739 = vadd.f32 0.0, %v4738
      %v4740 = vpop.f32.mrb[0].mxu0
      %4741 = vmatprep.mubr.bf16.mxu0 0
      %4742 = vmatmul.mubr.bf16.gmra.mrb[0].mxu0 %v4514
      %v4743 = vpop.f32.mrb[0].mxu0
      %v4744 = vadd.f32 0.0, %v4743
      %v4745 = vpop.f32.mrb[0].mxu0
      %v4746 = vpop.f32.mrb[0].mxu0
      %v4747 = vadd.f32 0.0, %v4746
      %v4748 = vpop.f32.mrb[0].mxu0
      %4749 = vmatprep.mubr.bf16.mxu0 0
      %4750 = vmatmul.mubr.bf16.gmra.mrb[0].mxu0 %v4517
      %v4751 = vpop.f32.mrb[0].mxu0
      %v4752 = vadd.f32 0.0, %v4751
      %v4753 = vpop.f32.mrb[0].mxu0
      %v4754 = vpop.f32.mrb[0].mxu0
      %v4755 = vadd.f32 0.0, %v4754
      %v4756 = vpop.f32.mrb[0].mxu0
      %4757 = vmatprep.mubr.bf16.mxu0 0
      %4758 = vmatmul.mubr.bf16.gmra.mrb[0].mxu0 %v4520
      %v4759 = vpop.f32.mrb[0].mxu0
      %v4760 = vadd.f32 0.0, %v4759
      %v4761 = vpop.f32.mrb[0].mxu0
      %v4762 = vpop.f32.mrb[0].mxu0
      %v4763 = vadd.f32 0.0, %v4762
      %v4764 = vpop.f32.mrb[0].mxu0
      %4765 = vmatprep.mubr.bf16.mxu0 0
      %4766 = vmatmul.mubr.bf16.gmra.mrb[0].mxu0 %v4523
      %v4767 = vpop.f32.mrb[0].mxu0
      %v4768 = vadd.f32 0.0, %v4767
      %v4769 = vpop.f32.mrb[0].mxu0
      %v4770 = vpop.f32.mrb[0].mxu0
      %v4771 = vadd.f32 0.0, %v4770
      %v4772 = vpop.f32.mrb[0].mxu0
      %4773 = vmatprep.mubr.bf16.mxu0 0
      %4774 = vmatmul.mubr.bf16.gmra.mrb[0].mxu0 %v4526
      %v4775 = vpop.f32.mrb[0].mxu0
      %v4776 = vadd.f32 0.0, %v4775
      %v4777 = vpop.f32.mrb[0].mxu0
      %v4778 = vpop.f32.mrb[0].mxu0
      %v4779 = vadd.f32 0.0, %v4778
      %v4780 = vpop.f32.mrb[0].mxu0
      %4781 = vmatprep.mubr.bf16.mxu0 0
      %4782 = vmatmul.mubr.bf16.gmra.mrb[0].mxu0 %v4529
      %v4783 = vpop.f32.mrb[0].mxu0
      %v4784 = vadd.f32 0.0, %v4783
      %v4785 = vpop.f32.mrb[0].mxu0
      %v4786 = vpop.f32.mrb[0].mxu0
      %v4787 = vadd.f32 0.0, %v4786
      %v4788 = vpop.f32.mrb[0].mxu0
      %4789 = vmatprep.mubr.bf16.mxu0 0
      %4790 = vmatmul.mubr.bf16.gmra.mrb[0].mxu0 %v4532
      %v4791 = vpop.f32.mrb[0].mxu0
      %v4792 = vadd.f32 0.0, %v4791
      %v4793 = vpop.f32.mrb[0].mxu0
      %v4794 = vpop.f32.mrb[0].mxu0
      %v4795 = vadd.f32 0.0, %v4794
      %v4796 = vpop.f32.mrb[0].mxu0
      %4797 = vmatprep.mubr.bf16.mxu0 0
      %4798 = vmatmul.mubr.bf16.gmra.mrb[0].mxu0 %v4535
      %v4799 = vpop.f32.mrb[0].mxu0
      %v4800 = vadd.f32 0.0, %v4799
      %v4801 = vpop.f32.mrb[0].mxu0
      %v4802 = vpop.f32.mrb[0].mxu0
      %v4803 = vadd.f32 0.0, %v4802
      %v4804 = vpop.f32.mrb[0].mxu0
      %4805 = vmatprep.mubr.bf16.mxu0 0
      %4806 = vmatmul.mubr.bf16.gmra.mrb[0].mxu0 %v4538
      %v4807 = vpop.f32.mrb[0].mxu0
      %v4808 = vadd.f32 0.0, %v4807
      %v4809 = vpop.f32.mrb[0].mxu0
      %v4810 = vpop.f32.mrb[0].mxu0
      %v4811 = vadd.f32 0.0, %v4810
      %v4812 = vpop.f32.mrb[0].mxu0
      %4813 = vmatprep.mubr.bf16.mxu0 0
      %4814 = vmatmul.mubr.bf16.gmra.mrb[0].mxu0 %v4541
      %v4815 = vpop.f32.mrb[0].mxu0
      %v4816 = vadd.f32 0.0, %v4815
      %v4817 = vpop.f32.mrb[0].mxu0
      %v4818 = vpop.f32.mrb[0].mxu0
      %v4819 = vadd.f32 0.0, %v4818
      %v4820 = vpop.f32.mrb[0].mxu0
      %4821 = vmatprep.mubr.bf16.mxu0 0
      %4822 = vmatmul.mubr.bf16.gmra.mrb[0].mxu0 %v4544
      %v4823 = vpop.f32.mrb[0].mxu0
      %v4824 = vadd.f32 0.0, %v4823
      %v4825 = vpop.f32.mrb[0].mxu0
      %v4826 = vpop.f32.mrb[0].mxu0
      %v4827 = vadd.f32 0.0, %v4826
      %v4828 = vpop.f32.mrb[0].mxu0
      %4829 = vmatprep.mubr.bf16.mxu0 0
      %4830 = vmatmul.mubr.bf16.gmra.mrb[0].mxu0 %v4547
      %v4831 = vpop.f32.mrb[0].mxu0
      %v4832 = vadd.f32 0.0, %v4831
      %v4833 = vpop.f32.mrb[0].mxu0
      %v4834 = vpop.f32.mrb[0].mxu0
      %v4835 = vadd.f32 0.0, %v4834
      %v4836 = vpop.f32.mrb[0].mxu0
      %4837 = vmatprep.mubr.bf16.mxu0 0
      %4838 = vmatmul.mubr.bf16.gmra.mrb[0].mxu0 %v4550
      %v4839 = vpop.f32.mrb[0].mxu0
      %v4840 = vadd.f32 0.0, %v4839
      %v4841 = vpop.f32.mrb[0].mxu0
      %v4842 = vpop.f32.mrb[0].mxu0
      %v4843 = vadd.f32 0.0, %v4842
      %v4844 = vpop.f32.mrb[0].mxu0
      %4845 = vmatprep.mubr.bf16.mxu0 0
      %4846 = vmatmul.mubr.bf16.gmra.mrb[0].mxu0 %v4553
      %v4847 = vpop.f32.mrb[0].mxu0
      %v4848 = vadd.f32 0.0, %v4847
      %v4849 = vpop.f32.mrb[0].mxu0
      %v4850 = vpop.f32.mrb[0].mxu0
      %v4851 = vadd.f32 0.0, %v4850
      %v4852 = vpop.f32.mrb[0].mxu0
      %4853 = vmatprep.mubr.bf16.mxu0 0
      %4854 = vmatmul.mubr.bf16.gmra.mrb[0].mxu0 %v4556
      %v4855 = vpop.f32.mrb[0].mxu0
      %v4856 = vadd.f32 0.0, %v4855
      %v4857 = vpop.f32.mrb[0].mxu0
      %v4858 = vpop.f32.mrb[0].mxu0
      %v4859 = vadd.f32 0.0, %v4858
      %v4860 = vpop.f32.mrb[0].mxu0
      %4861 = vmatprep.mubr.bf16.mxu0 0
      %4862 = vmatmul.mubr.bf16.gmra.mrb[0].mxu0 %v4559
      %v4863 = vpop.f32.mrb[0].mxu0
      %v4864 = vadd.f32 0.0, %v4863
      %v4865 = vpop.f32.mrb[0].mxu0
      %v4866 = vpop.f32.mrb[0].mxu0
      %v4867 = vadd.f32 0.0, %v4866
      %v4868 = vpop.f32.mrb[0].mxu0
      %4869 = vmatprep.mubr.bf16.mxu0 0
      %4870 = vmatmul.mubr.bf16.gmra.mrb[0].mxu0 %v4562
      %v4871 = vpop.f32.mrb[0].mxu0
      %v4872 = vadd.f32 0.0, %v4871
      %v4873 = vpop.f32.mrb[0].mxu0
      %v4874 = vpop.f32.mrb[0].mxu0
      %v4875 = vadd.f32 0.0, %v4874
      %v4876 = vpop.f32.mrb[0].mxu0
      %4877 = vmatprep.mubr.bf16.mxu0 0
      %4878 = vmatmul.mubr.bf16.gmra.mrb[0].mxu0 %v4565
      %v4879 = vpop.f32.mrb[0].mxu0
      %v4880 = vadd.f32 0.0, %v4879
      %v4881 = vpop.f32.mrb[0].mxu0
      %v4882 = vpop.f32.mrb[0].mxu0
      %v4883 = vadd.f32 0.0, %v4882
      %v4884 = vpop.f32.mrb[0].mxu0
      %4885 = vmatprep.mubr.bf16.mxu0 0
      %4886 = vmatmul.mubr.bf16.gmra.mrb[0].mxu0 %v4568
      %v4887 = vpop.f32.mrb[0].mxu0
      %v4888 = vadd.f32 0.0, %v4887
      %v4889 = vpop.f32.mrb[0].mxu0
      %v4890 = vpop.f32.mrb[0].mxu0
      %v4891 = vadd.f32 0.0, %v4890
      %v4892 = vpop.f32.mrb[0].mxu0
      %4893 = vdwg.mxu0
      %v4894 = vadd.f32 %v4025, %v4608
      %v4895 = vadd.f32 %v4026, %v4611
      %v4896 = vadd.f32 %v4027, %v4616
      %v4897 = vadd.f32 %v4028, %v4619
      %v4898 = vadd.f32 %v4029, %v4624
      %v4899 = vadd.f32 %v4030, %v4627
      %v4900 = vadd.f32 %v4031, %v4632
      %v4901 = vadd.f32 %v4032, %v4635
      %v4902 = vadd.f32 %v4033, %v4640
      %v4903 = vadd.f32 %v4034, %v4643
      %v4904 = vadd.f32 %v4035, %v4648
      %v4905 = vadd.f32 %v4036, %v4651
      %v4906 = vadd.f32 %v4037, %v4656
      %v4907 = vadd.f32 %v4038, %v4659
      %v4908 = vadd.f32 %v4039, %v4664
      %v4909 = vadd.f32 %v4040, %v4667
      %v4910 = vadd.f32 %v4041, %v4672
      %v4911 = vadd.f32 %v4042, %v4675
      %v4912 = vadd.f32 %v4043, %v4680
      %v4913 = vadd.f32 %v4044, %v4683
      %v4914 = vadd.f32 %v4045, %v4688
      %v4915 = vadd.f32 %v4046, %v4691
      %v4916 = vadd.f32 %v4047, %v4696
      %v4917 = vadd.f32 %v4048, %v4699
      %v4918 = vadd.f32 %v4049, %v4704
      %v4919 = vadd.f32 %v4050, %v4707
      %v4920 = vadd.f32 %v4051, %v4712
      %v4921 = vadd.f32 %v4052, %v4715
      %v4922 = vadd.f32 %v4053, %v4720
      %v4923 = vadd.f32 %v4054, %v4723
      %v4924 = vadd.f32 %v4055, %v4728
      %v4925 = vadd.f32 %v4056, %v4731
      %v4926 = vadd.f32 %v4057, %v4736
      %v4927 = vadd.f32 %v4058, %v4739
      %v4928 = vadd.f32 %v4059, %v4744
      %v4929 = vadd.f32 %v4060, %v4747
      %v4930 = vadd.f32 %v4061, %v4752
      %v4931 = vadd.f32 %v4062, %v4755
      %v4932 = vadd.f32 %v4063, %v4760
      %v4933 = vadd.f32 %v4064, %v4763
      %v4934 = vadd.f32 %v4065, %v4768
      %v4935 = vadd.f32 %v4066, %v4771
      %v4936 = vadd.f32 %v4067, %v4776
      %v4937 = vadd.f32 %v4068, %v4779
      %v4938 = vadd.f32 %v4069, %v4784
      %v4939 = vadd.f32 %v4070, %v4787
      %v4940 = vadd.f32 %v4071, %v4792
      %v4941 = vadd.f32 %v4072, %v4795
      %v4942 = vadd.f32 %v4073, %v4800
      %v4943 = vadd.f32 %v4074, %v4803
      %v4944 = vadd.f32 %v4075, %v4808
      %v4945 = vadd.f32 %v4076, %v4811
      %v4946 = vadd.f32 %v4077, %v4816
      %v4947 = vadd.f32 %v4078, %v4819
      %v4948 = vadd.f32 %v4079, %v4824
      %v4949 = vadd.f32 %v4080, %v4827
      %v4950 = vadd.f32 %v4081, %v4832
      %v4951 = vadd.f32 %v4082, %v4835
      %v4952 = vadd.f32 %v4083, %v4840
      %v4953 = vadd.f32 %v4084, %v4843
      %v4954 = vadd.f32 %v4085, %v4848
      %v4955 = vadd.f32 %v4086, %v4851
      %v4956 = vadd.f32 %v4087, %v4856
      %v4957 = vadd.f32 %v4088, %v4859
      %v4958 = vadd.f32 %v4089, %v4864
      %v4959 = vadd.f32 %v4090, %v4867
      %v4960 = vadd.f32 %v4091, %v4872
      %v4961 = vadd.f32 %v4092, %v4875
      %v4962 = vadd.f32 %v4093, %v4880
      %v4963 = vadd.f32 %v4094, %v4883
      %v4964 = vadd.f32 %v4095, %v4888
      %v4965 = vadd.f32 %v4096, %v4891
      %v4967 = vrot.slane %v399, 5
      %v4968 = vrot.slane %v4967, 4
      %v4969 = vrot.slane %v400, 5
      %v4970 = vsel %vm4117, %v4968, %v4969
      %v4971 = vrot.slane %v4969, 4
      %v4972 = vrot.slane %v401, 5
      %v4973 = vsel %vm4117, %v4971, %v4972
      %v4974 = vrot.slane %v4972, 4
      %v4975 = vrot.slane %v402, 5
      %v4976 = vsel %vm4117, %v4974, %v4975
      %v4977 = vrot.slane %v4975, 4
      %v4978 = vrot.slane %v403, 5
      %v4979 = vsel %vm4117, %v4977, %v4978
      %s4980 = scalar_lea.vmem %s1, 10
      %v4981 = vld [vmem:[%s4980] sm:$0x3]
      %v4982 = vunpack.c.l.b16 %v4970
      %v4983 = vunpack.c.l.b16 %v4973
      %v4984 = vunpack.c.l.b16 %v4976
      %v4985 = vunpack.c.l.b16 %v4979
      %v4986 = vpack.c.b16 %v4983, %v4982
      %v4987 = vpack.c.b16 %v4985, %v4984
      %v4989 = vsel %vm592, %v4986, 0
      %v4992 = vsel %vm592, %v4987, 0
      %v4995 = vsel %vm701, %v4981, 0
      %4997 = vmatprep.subr.bf16.mxu0 0
      %4998 = vmatpush1.bf16.msra.mxu0 %v4995
      %4999 = vmatprep.subr.bf16.mxu0 0
      %5000 = vmatpush1.bf16.msra.mxu0 0
      %5001 = vmatprep.subr.bf16.mxu0 0
      %5002 = vmatpush1.bf16.msra.mxu0 0
      %5003 = vmatprep.subr.bf16.mxu0 0
      %5004 = vmatpush1.bf16.msra.mxu0 0
      %5005 = vmatprep.subr.bf16.mxu0 0
      %5006 = vmatpush1.bf16.msra.mxu0 0
      %5007 = vmatprep.subr.bf16.mxu0 0
      %5008 = vmatpush1.bf16.msra.mxu0 0
      %5009 = vmatprep.subr.bf16.mxu0 0
      %5010 = vmatpush1.bf16.msra.mxu0 0
      %5011 = vmatprep.subr.bf16.mxu0 0
      %5012 = vmatpush1.bf16.msra.mxu0 0
      %5013 = vmatprep.subr.bf16.mxu0 0
      %5014 = vmatpush1.bf16.msra.mxu0 0
      %5015 = vmatprep.subr.bf16.mxu0 0
      %5016 = vmatpush1.bf16.msra.mxu0 0
      %5017 = vmatprep.subr.bf16.mxu0 0
      %5018 = vmatpush1.bf16.msra.mxu0 0
      %5019 = vmatprep.subr.bf16.mxu0 0
      %5020 = vmatpush1.bf16.msra.mxu0 0
      %5021 = vmatprep.subr.bf16.mxu0 0
      %5022 = vmatpush1.bf16.msra.mxu0 0
      %5023 = vmatprep.subr.bf16.mxu0 0
      %5024 = vmatpush1.bf16.msra.mxu0 0
      %5025 = vmatprep.subr.bf16.mxu0 0
      %5026 = vmatpush1.bf16.msra.mxu0 0
      %5027 = vmatprep.subr.bf16.mxu0 0
      %5028 = vmatpush1.bf16.msra.mxu0 0
      %5029 = vmatprep.mubr.bf16.mxu0 0
      %5030 = vmatmul.mubr.bf16.gmra.mrb[0].mxu0 %v4469
      %v5031 = vpop.f32.mrb[0].mxu0
      %v5032 = vadd.f32 0.0, %v5031
      %v5033 = vpop.f32.mrb[0].mxu0
      %v5034 = vpop.f32.mrb[0].mxu0
      %v5035 = vadd.f32 0.0, %v5034
      %v5036 = vpop.f32.mrb[0].mxu0
      %5037 = vmatprep.mubr.bf16.mxu0 0
      %5038 = vmatmul.mubr.bf16.gmra.mrb[0].mxu0 %v4472
      %v5039 = vpop.f32.mrb[0].mxu0
      %v5040 = vadd.f32 0.0, %v5039
      %v5041 = vpop.f32.mrb[0].mxu0
      %v5042 = vpop.f32.mrb[0].mxu0
      %v5043 = vadd.f32 0.0, %v5042
      %v5044 = vpop.f32.mrb[0].mxu0
      %5045 = vmatprep.mubr.bf16.mxu0 0
      %5046 = vmatmul.mubr.bf16.gmra.mrb[0].mxu0 %v4475
      %v5047 = vpop.f32.mrb[0].mxu0
      %v5048 = vadd.f32 0.0, %v5047
      %v5049 = vpop.f32.mrb[0].mxu0
      %v5050 = vpop.f32.mrb[0].mxu0
      %v5051 = vadd.f32 0.0, %v5050
      %v5052 = vpop.f32.mrb[0].mxu0
      %5053 = vmatprep.mubr.bf16.mxu0 0
      %5054 = vmatmul.mubr.bf16.gmra.mrb[0].mxu0 %v4478
      %v5055 = vpop.f32.mrb[0].mxu0
      %v5056 = vadd.f32 0.0, %v5055
      %v5057 = vpop.f32.mrb[0].mxu0
      %v5058 = vpop.f32.mrb[0].mxu0
      %v5059 = vadd.f32 0.0, %v5058
      %v5060 = vpop.f32.mrb[0].mxu0
      %5061 = vmatprep.mubr.bf16.mxu0 0
      %5062 = vmatmul.mubr.bf16.gmra.mrb[0].mxu0 %v4481
      %v5063 = vpop.f32.mrb[0].mxu0
      %v5064 = vadd.f32 0.0, %v5063
      %v5065 = vpop.f32.mrb[0].mxu0
      %v5066 = vpop.f32.mrb[0].mxu0
      %v5067 = vadd.f32 0.0, %v5066
      %v5068 = vpop.f32.mrb[0].mxu0
      %5069 = vmatprep.mubr.bf16.mxu0 0
      %5070 = vmatmul.mubr.bf16.gmra.mrb[0].mxu0 %v4484
      %v5071 = vpop.f32.mrb[0].mxu0
      %v5072 = vadd.f32 0.0, %v5071
      %v5073 = vpop.f32.mrb[0].mxu0
      %v5074 = vpop.f32.mrb[0].mxu0
      %v5075 = vadd.f32 0.0, %v5074
      %v5076 = vpop.f32.mrb[0].mxu0
      %5077 = vmatprep.mubr.bf16.mxu0 0
      %5078 = vmatmul.mubr.bf16.gmra.mrb[0].mxu0 %v4487
      %v5079 = vpop.f32.mrb[0].mxu0
      %v5080 = vadd.f32 0.0, %v5079
      %v5081 = vpop.f32.mrb[0].mxu0
      %v5082 = vpop.f32.mrb[0].mxu0
      %v5083 = vadd.f32 0.0, %v5082
      %v5084 = vpop.f32.mrb[0].mxu0
      %5085 = vmatprep.mubr.bf16.mxu0 0
      %5086 = vmatmul.mubr.bf16.gmra.mrb[0].mxu0 %v4490
      %v5087 = vpop.f32.mrb[0].mxu0
      %v5088 = vadd.f32 0.0, %v5087
      %v5089 = vpop.f32.mrb[0].mxu0
      %v5090 = vpop.f32.mrb[0].mxu0
      %v5091 = vadd.f32 0.0, %v5090
      %v5092 = vpop.f32.mrb[0].mxu0
      %5093 = vmatprep.mubr.bf16.mxu0 0
      %5094 = vmatmul.mubr.bf16.gmra.mrb[0].mxu0 %v4493
      %v5095 = vpop.f32.mrb[0].mxu0
      %v5096 = vadd.f32 0.0, %v5095
      %v5097 = vpop.f32.mrb[0].mxu0
      %v5098 = vpop.f32.mrb[0].mxu0
      %v5099 = vadd.f32 0.0, %v5098
      %v5100 = vpop.f32.mrb[0].mxu0
      %5101 = vmatprep.mubr.bf16.mxu0 0
      %5102 = vmatmul.mubr.bf16.gmra.mrb[0].mxu0 %v4496
      %v5103 = vpop.f32.mrb[0].mxu0
      %v5104 = vadd.f32 0.0, %v5103
      %v5105 = vpop.f32.mrb[0].mxu0
      %v5106 = vpop.f32.mrb[0].mxu0
      %v5107 = vadd.f32 0.0, %v5106
      %v5108 = vpop.f32.mrb[0].mxu0
      %5109 = vmatprep.mubr.bf16.mxu0 0
      %5110 = vmatmul.mubr.bf16.gmra.mrb[0].mxu0 %v4499
      %v5111 = vpop.f32.mrb[0].mxu0
      %v5112 = vadd.f32 0.0, %v5111
      %v5113 = vpop.f32.mrb[0].mxu0
      %v5114 = vpop.f32.mrb[0].mxu0
      %v5115 = vadd.f32 0.0, %v5114
      %v5116 = vpop.f32.mrb[0].mxu0
      %5117 = vmatprep.mubr.bf16.mxu0 0
      %5118 = vmatmul.mubr.bf16.gmra.mrb[0].mxu0 %v4502
      %v5119 = vpop.f32.mrb[0].mxu0
      %v5120 = vadd.f32 0.0, %v5119
      %v5121 = vpop.f32.mrb[0].mxu0
      %v5122 = vpop.f32.mrb[0].mxu0
      %v5123 = vadd.f32 0.0, %v5122
      %v5124 = vpop.f32.mrb[0].mxu0
      %5125 = vmatprep.mubr.bf16.mxu0 0
      %5126 = vmatmul.mubr.bf16.gmra.mrb[0].mxu0 %v4505
      %v5127 = vpop.f32.mrb[0].mxu0
      %v5128 = vadd.f32 0.0, %v5127
      %v5129 = vpop.f32.mrb[0].mxu0
      %v5130 = vpop.f32.mrb[0].mxu0
      %v5131 = vadd.f32 0.0, %v5130
      %v5132 = vpop.f32.mrb[0].mxu0
      %5133 = vmatprep.mubr.bf16.mxu0 0
      %5134 = vmatmul.mubr.bf16.gmra.mrb[0].mxu0 %v4508
      %v5135 = vpop.f32.mrb[0].mxu0
      %v5136 = vadd.f32 0.0, %v5135
      %v5137 = vpop.f32.mrb[0].mxu0
      %v5138 = vpop.f32.mrb[0].mxu0
      %v5139 = vadd.f32 0.0, %v5138
      %v5140 = vpop.f32.mrb[0].mxu0
      %5141 = vmatprep.mubr.bf16.mxu0 0
      %5142 = vmatmul.mubr.bf16.gmra.mrb[0].mxu0 %v4511
      %v5143 = vpop.f32.mrb[0].mxu0
      %v5144 = vadd.f32 0.0, %v5143
      %v5145 = vpop.f32.mrb[0].mxu0
      %v5146 = vpop.f32.mrb[0].mxu0
      %v5147 = vadd.f32 0.0, %v5146
      %v5148 = vpop.f32.mrb[0].mxu0
      %5149 = vmatprep.mubr.bf16.mxu0 0
      %5150 = vmatmul.mubr.bf16.gmra.mrb[0].mxu0 %v4514
      %v5151 = vpop.f32.mrb[0].mxu0
      %v5152 = vadd.f32 0.0, %v5151
      %v5153 = vpop.f32.mrb[0].mxu0
      %v5154 = vpop.f32.mrb[0].mxu0
      %v5155 = vadd.f32 0.0, %v5154
      %v5156 = vpop.f32.mrb[0].mxu0
      %5157 = vmatprep.mubr.bf16.mxu0 0
      %5158 = vmatmul.mubr.bf16.gmra.mrb[0].mxu0 %v4517
      %v5159 = vpop.f32.mrb[0].mxu0
      %v5160 = vadd.f32 0.0, %v5159
      %v5161 = vpop.f32.mrb[0].mxu0
      %v5162 = vpop.f32.mrb[0].mxu0
      %v5163 = vadd.f32 0.0, %v5162
      %v5164 = vpop.f32.mrb[0].mxu0
      %5165 = vmatprep.mubr.bf16.mxu0 0
      %5166 = vmatmul.mubr.bf16.gmra.mrb[0].mxu0 %v4520
      %v5167 = vpop.f32.mrb[0].mxu0
      %v5168 = vadd.f32 0.0, %v5167
      %v5169 = vpop.f32.mrb[0].mxu0
      %v5170 = vpop.f32.mrb[0].mxu0
      %v5171 = vadd.f32 0.0, %v5170
      %v5172 = vpop.f32.mrb[0].mxu0
      %5173 = vmatprep.mubr.bf16.mxu0 0
      %5174 = vmatmul.mubr.bf16.gmra.mrb[0].mxu0 %v4523
      %v5175 = vpop.f32.mrb[0].mxu0
      %v5176 = vadd.f32 0.0, %v5175
      %v5177 = vpop.f32.mrb[0].mxu0
      %v5178 = vpop.f32.mrb[0].mxu0
      %v5179 = vadd.f32 0.0, %v5178
      %v5180 = vpop.f32.mrb[0].mxu0
      %5181 = vmatprep.mubr.bf16.mxu0 0
      %5182 = vmatmul.mubr.bf16.gmra.mrb[0].mxu0 %v4526
      %v5183 = vpop.f32.mrb[0].mxu0
      %v5184 = vadd.f32 0.0, %v5183
      %v5185 = vpop.f32.mrb[0].mxu0
      %v5186 = vpop.f32.mrb[0].mxu0
      %v5187 = vadd.f32 0.0, %v5186
      %v5188 = vpop.f32.mrb[0].mxu0
      %5189 = vmatprep.mubr.bf16.mxu0 0
      %5190 = vmatmul.mubr.bf16.gmra.mrb[0].mxu0 %v4529
      %v5191 = vpop.f32.mrb[0].mxu0
      %v5192 = vadd.f32 0.0, %v5191
      %v5193 = vpop.f32.mrb[0].mxu0
      %v5194 = vpop.f32.mrb[0].mxu0
      %v5195 = vadd.f32 0.0, %v5194
      %v5196 = vpop.f32.mrb[0].mxu0
      %5197 = vmatprep.mubr.bf16.mxu0 0
      %5198 = vmatmul.mubr.bf16.gmra.mrb[0].mxu0 %v4532
      %v5199 = vpop.f32.mrb[0].mxu0
      %v5200 = vadd.f32 0.0, %v5199
      %v5201 = vpop.f32.mrb[0].mxu0
      %v5202 = vpop.f32.mrb[0].mxu0
      %v5203 = vadd.f32 0.0, %v5202
      %v5204 = vpop.f32.mrb[0].mxu0
      %5205 = vmatprep.mubr.bf16.mxu0 0
      %5206 = vmatmul.mubr.bf16.gmra.mrb[0].mxu0 %v4535
      %v5207 = vpop.f32.mrb[0].mxu0
      %v5208 = vadd.f32 0.0, %v5207
      %v5209 = vpop.f32.mrb[0].mxu0
      %v5210 = vpop.f32.mrb[0].mxu0
      %v5211 = vadd.f32 0.0, %v5210
      %v5212 = vpop.f32.mrb[0].mxu0
      %5213 = vmatprep.mubr.bf16.mxu0 0
      %5214 = vmatmul.mubr.bf16.gmra.mrb[0].mxu0 %v4538
      %v5215 = vpop.f32.mrb[0].mxu0
      %v5216 = vadd.f32 0.0, %v5215
      %v5217 = vpop.f32.mrb[0].mxu0
      %v5218 = vpop.f32.mrb[0].mxu0
      %v5219 = vadd.f32 0.0, %v5218
      %v5220 = vpop.f32.mrb[0].mxu0
      %5221 = vmatprep.mubr.bf16.mxu0 0
      %5222 = vmatmul.mubr.bf16.gmra.mrb[0].mxu0 %v4541
      %v5223 = vpop.f32.mrb[0].mxu0
      %v5224 = vadd.f32 0.0, %v5223
      %v5225 = vpop.f32.mrb[0].mxu0
      %v5226 = vpop.f32.mrb[0].mxu0
      %v5227 = vadd.f32 0.0, %v5226
      %v5228 = vpop.f32.mrb[0].mxu0
      %5229 = vmatprep.mubr.bf16.mxu0 0
      %5230 = vmatmul.mubr.bf16.gmra.mrb[0].mxu0 %v4544
      %v5231 = vpop.f32.mrb[0].mxu0
      %v5232 = vadd.f32 0.0, %v5231
      %v5233 = vpop.f32.mrb[0].mxu0
      %v5234 = vpop.f32.mrb[0].mxu0
      %v5235 = vadd.f32 0.0, %v5234
      %v5236 = vpop.f32.mrb[0].mxu0
      %5237 = vmatprep.mubr.bf16.mxu0 0
      %5238 = vmatmul.mubr.bf16.gmra.mrb[0].mxu0 %v4547
      %v5239 = vpop.f32.mrb[0].mxu0
      %v5240 = vadd.f32 0.0, %v5239
      %v5241 = vpop.f32.mrb[0].mxu0
      %v5242 = vpop.f32.mrb[0].mxu0
      %v5243 = vadd.f32 0.0, %v5242
      %v5244 = vpop.f32.mrb[0].mxu0
      %5245 = vmatprep.mubr.bf16.mxu0 0
      %5246 = vmatmul.mubr.bf16.gmra.mrb[0].mxu0 %v4550
      %v5247 = vpop.f32.mrb[0].mxu0
      %v5248 = vadd.f32 0.0, %v5247
      %v5249 = vpop.f32.mrb[0].mxu0
      %v5250 = vpop.f32.mrb[0].mxu0
      %v5251 = vadd.f32 0.0, %v5250
      %v5252 = vpop.f32.mrb[0].mxu0
      %5253 = vmatprep.mubr.bf16.mxu0 0
      %5254 = vmatmul.mubr.bf16.gmra.mrb[0].mxu0 %v4553
      %v5255 = vpop.f32.mrb[0].mxu0
      %v5256 = vadd.f32 0.0, %v5255
      %v5257 = vpop.f32.mrb[0].mxu0
      %v5258 = vpop.f32.mrb[0].mxu0
      %v5259 = vadd.f32 0.0, %v5258
      %v5260 = vpop.f32.mrb[0].mxu0
      %5261 = vmatprep.mubr.bf16.mxu0 0
      %5262 = vmatmul.mubr.bf16.gmra.mrb[0].mxu0 %v4556
      %v5263 = vpop.f32.mrb[0].mxu0
      %v5264 = vadd.f32 0.0, %v5263
      %v5265 = vpop.f32.mrb[0].mxu0
      %v5266 = vpop.f32.mrb[0].mxu0
      %v5267 = vadd.f32 0.0, %v5266
      %v5268 = vpop.f32.mrb[0].mxu0
      %5269 = vmatprep.mubr.bf16.mxu0 0
      %5270 = vmatmul.mubr.bf16.gmra.mrb[0].mxu0 %v4559
      %v5271 = vpop.f32.mrb[0].mxu0
      %v5272 = vadd.f32 0.0, %v5271
      %v5273 = vpop.f32.mrb[0].mxu0
      %v5274 = vpop.f32.mrb[0].mxu0
      %v5275 = vadd.f32 0.0, %v5274
      %v5276 = vpop.f32.mrb[0].mxu0
      %5277 = vmatprep.mubr.bf16.mxu0 0
      %5278 = vmatmul.mubr.bf16.gmra.mrb[0].mxu0 %v4562
      %v5279 = vpop.f32.mrb[0].mxu0
      %v5280 = vadd.f32 0.0, %v5279
      %v5281 = vpop.f32.mrb[0].mxu0
      %v5282 = vpop.f32.mrb[0].mxu0
      %v5283 = vadd.f32 0.0, %v5282
      %v5284 = vpop.f32.mrb[0].mxu0
      %5285 = vmatprep.mubr.bf16.mxu0 0
      %5286 = vmatmul.mubr.bf16.gmra.mrb[0].mxu0 %v4565
      %v5287 = vpop.f32.mrb[0].mxu0
      %v5288 = vadd.f32 0.0, %v5287
      %v5289 = vpop.f32.mrb[0].mxu0
      %v5290 = vpop.f32.mrb[0].mxu0
      %v5291 = vadd.f32 0.0, %v5290
      %v5292 = vpop.f32.mrb[0].mxu0
      %5293 = vmatprep.mubr.bf16.mxu0 0
      %5294 = vmatmul.mubr.bf16.gmra.mrb[0].mxu0 %v4568
      %v5295 = vpop.f32.mrb[0].mxu0
      %v5296 = vadd.f32 0.0, %v5295
      %v5297 = vpop.f32.mrb[0].mxu0
      %v5298 = vpop.f32.mrb[0].mxu0
      %v5299 = vadd.f32 0.0, %v5298
      %v5300 = vpop.f32.mrb[0].mxu0
      %5301 = vmatprep.mubr.bf16.mxu0 0
      %5302 = vmatmul.mubr.bf16.gmra.mrb[0].mxu0 %v4989
      %v5303 = vpop.f32.mrb[0].mxu0
      %v5304 = vadd.f32 0.0, %v5303
      %v5305 = vpop.f32.mrb[0].mxu0
      %v5306 = vpop.f32.mrb[0].mxu0
      %v5307 = vadd.f32 0.0, %v5306
      %v5308 = vpop.f32.mrb[0].mxu0
      %5309 = vmatprep.mubr.bf16.mxu0 0
      %5310 = vmatmul.mubr.bf16.gmra.mrb[0].mxu0 %v4992
      %v5311 = vpop.f32.mrb[0].mxu0
      %v5312 = vadd.f32 0.0, %v5311
      %v5313 = vpop.f32.mrb[0].mxu0
      %v5314 = vpop.f32.mrb[0].mxu0
      %v5315 = vadd.f32 0.0, %v5314
      %v5316 = vpop.f32.mrb[0].mxu0
      %5317 = vdwg.mxu0
      %v5318 = vadd.f32 %v4894, %v5032
      %v5319 = vadd.f32 %v4895, %v5035
      %v5320 = vadd.f32 %v4896, %v5040
      %v5321 = vadd.f32 %v4897, %v5043
      %v5322 = vadd.f32 %v4898, %v5048
      %v5323 = vadd.f32 %v4899, %v5051
      %v5324 = vadd.f32 %v4900, %v5056
      %v5325 = vadd.f32 %v4901, %v5059
      %v5326 = vadd.f32 %v4902, %v5064
      %v5327 = vadd.f32 %v4903, %v5067
      %v5328 = vadd.f32 %v4904, %v5072
      %v5329 = vadd.f32 %v4905, %v5075
      %v5330 = vadd.f32 %v4906, %v5080
      %v5331 = vadd.f32 %v4907, %v5083
      %v5332 = vadd.f32 %v4908, %v5088
      %v5333 = vadd.f32 %v4909, %v5091
      %v5334 = vadd.f32 %v4910, %v5096
      %v5335 = vadd.f32 %v4911, %v5099
      %v5336 = vadd.f32 %v4912, %v5104
      %v5337 = vadd.f32 %v4913, %v5107
      %v5338 = vadd.f32 %v4914, %v5112
      %v5339 = vadd.f32 %v4915, %v5115
      %v5340 = vadd.f32 %v4916, %v5120
      %v5341 = vadd.f32 %v4917, %v5123
      %v5342 = vadd.f32 %v4918, %v5128
      %v5343 = vadd.f32 %v4919, %v5131
      %v5344 = vadd.f32 %v4920, %v5136
      %v5345 = vadd.f32 %v4921, %v5139
      %v5346 = vadd.f32 %v4922, %v5144
      %v5347 = vadd.f32 %v4923, %v5147
      %v5348 = vadd.f32 %v4924, %v5152
      %v5349 = vadd.f32 %v4925, %v5155
      %v5350 = vadd.f32 %v4926, %v5160
      %v5351 = vadd.f32 %v4927, %v5163
      %v5352 = vadd.f32 %v4928, %v5168
      %v5353 = vadd.f32 %v4929, %v5171
      %v5354 = vadd.f32 %v4930, %v5176
      %v5355 = vadd.f32 %v4931, %v5179
      %v5356 = vadd.f32 %v4932, %v5184
      %v5357 = vadd.f32 %v4933, %v5187
      %v5358 = vadd.f32 %v4934, %v5192
      %v5359 = vadd.f32 %v4935, %v5195
      %v5360 = vadd.f32 %v4936, %v5200
      %v5361 = vadd.f32 %v4937, %v5203
      %v5362 = vadd.f32 %v4938, %v5208
      %v5363 = vadd.f32 %v4939, %v5211
      %v5364 = vadd.f32 %v4940, %v5216
      %v5365 = vadd.f32 %v4941, %v5219
      %v5366 = vadd.f32 %v4942, %v5224
      %v5367 = vadd.f32 %v4943, %v5227
      %v5368 = vadd.f32 %v4944, %v5232
      %v5369 = vadd.f32 %v4945, %v5235
      %v5370 = vadd.f32 %v4946, %v5240
      %v5371 = vadd.f32 %v4947, %v5243
      %v5372 = vadd.f32 %v4948, %v5248
      %v5373 = vadd.f32 %v4949, %v5251
      %v5374 = vadd.f32 %v4950, %v5256
      %v5375 = vadd.f32 %v4951, %v5259
      %v5376 = vadd.f32 %v4952, %v5264
      %v5377 = vadd.f32 %v4953, %v5267
      %v5378 = vadd.f32 %v4954, %v5272
      %v5379 = vadd.f32 %v4955, %v5275
      %v5380 = vadd.f32 %v4956, %v5280
      %v5381 = vadd.f32 %v4957, %v5283
      %v5382 = vadd.f32 %v4958, %v5288
      %v5383 = vadd.f32 %v4959, %v5291
      %v5384 = vadd.f32 %v4960, %v5296
      %v5385 = vadd.f32 %v4961, %v5299
      %v5386 = vadd.f32 %v4962, %v5304
      %v5387 = vadd.f32 %v4963, %v5307
      %v5388 = vadd.f32 %v4964, %v5312
      %v5389 = vadd.f32 %v4965, %v5315
      %v5391 = vrot.slane %v404, 5
      %v5392 = vrot.slane %v5391, 4
      %v5393 = vrot.slane %v405, 5
      %v5394 = vsel %vm4117, %v5392, %v5393
      %v5395 = vrot.slane %v5393, 4
      %v5396 = vrot.slane %v406, 5
      %v5397 = vsel %vm4117, %v5395, %v5396
      %v5398 = vrot.slane %v5396, 4
      %v5399 = vrot.slane %v407, 5
      %v5400 = vsel %vm4117, %v5398, %v5399
      %v5401 = vrot.slane %v5399, 4
      %v5402 = vrot.slane %v408, 5
      %v5403 = vsel %vm4117, %v5401, %v5402
      %s5404 = scalar_lea.vmem %s1, 16
      %v5405 = vld [vmem:[%s5404] sm:$0x3]
      %v5406 = vunpack.c.l.b16 %v5394
      %v5407 = vunpack.c.l.b16 %v5397
      %v5408 = vunpack.c.l.b16 %v5400
      %v5409 = vunpack.c.l.b16 %v5403
      %v5410 = vpack.c.b16 %v5407, %v5406
      %v5411 = vpack.c.b16 %v5409, %v5408
      %v5413 = vsel %vm592, %v5410, 0
      %v5416 = vsel %vm592, %v5411, 0
      %v5419 = vsel %vm701, %v5405, 0
      %5421 = vmatprep.subr.bf16.mxu0 0
      %5422 = vmatpush1.bf16.msra.mxu0 %v5419
      %5423 = vmatprep.subr.bf16.mxu0 0
      %5424 = vmatpush1.bf16.msra.mxu0 0
      %5425 = vmatprep.subr.bf16.mxu0 0
      %5426 = vmatpush1.bf16.msra.mxu0 0
      %5427 = vmatprep.subr.bf16.mxu0 0
      %5428 = vmatpush1.bf16.msra.mxu0 0
      %5429 = vmatprep.subr.bf16.mxu0 0
      %5430 = vmatpush1.bf16.msra.mxu0 0
      %5431 = vmatprep.subr.bf16.mxu0 0
      %5432 = vmatpush1.bf16.msra.mxu0 0
      %5433 = vmatprep.subr.bf16.mxu0 0
      %5434 = vmatpush1.bf16.msra.mxu0 0
      %5435 = vmatprep.subr.bf16.mxu0 0
      %5436 = vmatpush1.bf16.msra.mxu0 0
      %5437 = vmatprep.subr.bf16.mxu0 0
      %5438 = vmatpush1.bf16.msra.mxu0 0
      %5439 = vmatprep.subr.bf16.mxu0 0
      %5440 = vmatpush1.bf16.msra.mxu0 0
      %5441 = vmatprep.subr.bf16.mxu0 0
      %5442 = vmatpush1.bf16.msra.mxu0 0
      %5443 = vmatprep.subr.bf16.mxu0 0
      %5444 = vmatpush1.bf16.msra.mxu0 0
      %5445 = vmatprep.subr.bf16.mxu0 0
      %5446 = vmatpush1.bf16.msra.mxu0 0
      %5447 = vmatprep.subr.bf16.mxu0 0
      %5448 = vmatpush1.bf16.msra.mxu0 0
      %5449 = vmatprep.subr.bf16.mxu0 0
      %5450 = vmatpush1.bf16.msra.mxu0 0
      %5451 = vmatprep.subr.bf16.mxu0 0
      %5452 = vmatpush1.bf16.msra.mxu0 0
      %5453 = vmatprep.mubr.bf16.mxu0 0
      %5454 = vmatmul.mubr.bf16.gmra.mrb[0].mxu0 %v4475
      %v5455 = vpop.f32.mrb[0].mxu0
      %v5456 = vadd.f32 0.0, %v5455
      %v5457 = vpop.f32.mrb[0].mxu0
      %v5458 = vpop.f32.mrb[0].mxu0
      %v5459 = vadd.f32 0.0, %v5458
      %v5460 = vpop.f32.mrb[0].mxu0
      %5461 = vmatprep.mubr.bf16.mxu0 0
      %5462 = vmatmul.mubr.bf16.gmra.mrb[0].mxu0 %v4478
      %v5463 = vpop.f32.mrb[0].mxu0
      %v5464 = vadd.f32 0.0, %v5463
      %v5465 = vpop.f32.mrb[0].mxu0
      %v5466 = vpop.f32.mrb[0].mxu0
      %v5467 = vadd.f32 0.0, %v5466
      %v5468 = vpop.f32.mrb[0].mxu0
      %5469 = vmatprep.mubr.bf16.mxu0 0
      %5470 = vmatmul.mubr.bf16.gmra.mrb[0].mxu0 %v4481
      %v5471 = vpop.f32.mrb[0].mxu0
      %v5472 = vadd.f32 0.0, %v5471
      %v5473 = vpop.f32.mrb[0].mxu0
      %v5474 = vpop.f32.mrb[0].mxu0
      %v5475 = vadd.f32 0.0, %v5474
      %v5476 = vpop.f32.mrb[0].mxu0
      %5477 = vmatprep.mubr.bf16.mxu0 0
      %5478 = vmatmul.mubr.bf16.gmra.mrb[0].mxu0 %v4484
      %v5479 = vpop.f32.mrb[0].mxu0
      %v5480 = vadd.f32 0.0, %v5479
      %v5481 = vpop.f32.mrb[0].mxu0
      %v5482 = vpop.f32.mrb[0].mxu0
      %v5483 = vadd.f32 0.0, %v5482
      %v5484 = vpop.f32.mrb[0].mxu0
      %5485 = vmatprep.mubr.bf16.mxu0 0
      %5486 = vmatmul.mubr.bf16.gmra.mrb[0].mxu0 %v4487
      %v5487 = vpop.f32.mrb[0].mxu0
      %v5488 = vadd.f32 0.0, %v5487
      %v5489 = vpop.f32.mrb[0].mxu0
      %v5490 = vpop.f32.mrb[0].mxu0
      %v5491 = vadd.f32 0.0, %v5490
      %v5492 = vpop.f32.mrb[0].mxu0
      %5493 = vmatprep.mubr.bf16.mxu0 0
      %5494 = vmatmul.mubr.bf16.gmra.mrb[0].mxu0 %v4490
      %v5495 = vpop.f32.mrb[0].mxu0
      %v5496 = vadd.f32 0.0, %v5495
      %v5497 = vpop.f32.mrb[0].mxu0
      %v5498 = vpop.f32.mrb[0].mxu0
      %v5499 = vadd.f32 0.0, %v5498
      %v5500 = vpop.f32.mrb[0].mxu0
      %5501 = vmatprep.mubr.bf16.mxu0 0
      %5502 = vmatmul.mubr.bf16.gmra.mrb[0].mxu0 %v4493
      %v5503 = vpop.f32.mrb[0].mxu0
      %v5504 = vadd.f32 0.0, %v5503
      %v5505 = vpop.f32.mrb[0].mxu0
      %v5506 = vpop.f32.mrb[0].mxu0
      %v5507 = vadd.f32 0.0, %v5506
      %v5508 = vpop.f32.mrb[0].mxu0
      %5509 = vmatprep.mubr.bf16.mxu0 0
      %5510 = vmatmul.mubr.bf16.gmra.mrb[0].mxu0 %v4496
      %v5511 = vpop.f32.mrb[0].mxu0
      %v5512 = vadd.f32 0.0, %v5511
      %v5513 = vpop.f32.mrb[0].mxu0
      %v5514 = vpop.f32.mrb[0].mxu0
      %v5515 = vadd.f32 0.0, %v5514
      %v5516 = vpop.f32.mrb[0].mxu0
      %5517 = vmatprep.mubr.bf16.mxu0 0
      %5518 = vmatmul.mubr.bf16.gmra.mrb[0].mxu0 %v4499
      %v5519 = vpop.f32.mrb[0].mxu0
      %v5520 = vadd.f32 0.0, %v5519
      %v5521 = vpop.f32.mrb[0].mxu0
      %v5522 = vpop.f32.mrb[0].mxu0
      %v5523 = vadd.f32 0.0, %v5522
      %v5524 = vpop.f32.mrb[0].mxu0
      %5525 = vmatprep.mubr.bf16.mxu0 0
      %5526 = vmatmul.mubr.bf16.gmra.mrb[0].mxu0 %v4502
      %v5527 = vpop.f32.mrb[0].mxu0
      %v5528 = vadd.f32 0.0, %v5527
      %v5529 = vpop.f32.mrb[0].mxu0
      %v5530 = vpop.f32.mrb[0].mxu0
      %v5531 = vadd.f32 0.0, %v5530
      %v5532 = vpop.f32.mrb[0].mxu0
      %5533 = vmatprep.mubr.bf16.mxu0 0
      %5534 = vmatmul.mubr.bf16.gmra.mrb[0].mxu0 %v4505
      %v5535 = vpop.f32.mrb[0].mxu0
      %v5536 = vadd.f32 0.0, %v5535
      %v5537 = vpop.f32.mrb[0].mxu0
      %v5538 = vpop.f32.mrb[0].mxu0
      %v5539 = vadd.f32 0.0, %v5538
      %v5540 = vpop.f32.mrb[0].mxu0
      %5541 = vmatprep.mubr.bf16.mxu0 0
      %5542 = vmatmul.mubr.bf16.gmra.mrb[0].mxu0 %v4508
      %v5543 = vpop.f32.mrb[0].mxu0
      %v5544 = vadd.f32 0.0, %v5543
      %v5545 = vpop.f32.mrb[0].mxu0
      %v5546 = vpop.f32.mrb[0].mxu0
      %v5547 = vadd.f32 0.0, %v5546
      %v5548 = vpop.f32.mrb[0].mxu0
      %5549 = vmatprep.mubr.bf16.mxu0 0
      %5550 = vmatmul.mubr.bf16.gmra.mrb[0].mxu0 %v4511
      %v5551 = vpop.f32.mrb[0].mxu0
      %v5552 = vadd.f32 0.0, %v5551
      %v5553 = vpop.f32.mrb[0].mxu0
      %v5554 = vpop.f32.mrb[0].mxu0
      %v5555 = vadd.f32 0.0, %v5554
      %v5556 = vpop.f32.mrb[0].mxu0
      %5557 = vmatprep.mubr.bf16.mxu0 0
      %5558 = vmatmul.mubr.bf16.gmra.mrb[0].mxu0 %v4514
      %v5559 = vpop.f32.mrb[0].mxu0
      %v5560 = vadd.f32 0.0, %v5559
      %v5561 = vpop.f32.mrb[0].mxu0
      %v5562 = vpop.f32.mrb[0].mxu0
      %v5563 = vadd.f32 0.0, %v5562
      %v5564 = vpop.f32.mrb[0].mxu0
      %5565 = vmatprep.mubr.bf16.mxu0 0
      %5566 = vmatmul.mubr.bf16.gmra.mrb[0].mxu0 %v4517
      %v5567 = vpop.f32.mrb[0].mxu0
      %v5568 = vadd.f32 0.0, %v5567
      %v5569 = vpop.f32.mrb[0].mxu0
      %v5570 = vpop.f32.mrb[0].mxu0
      %v5571 = vadd.f32 0.0, %v5570
      %v5572 = vpop.f32.mrb[0].mxu0
      %5573 = vmatprep.mubr.bf16.mxu0 0
      %5574 = vmatmul.mubr.bf16.gmra.mrb[0].mxu0 %v4520
      %v5575 = vpop.f32.mrb[0].mxu0
      %v5576 = vadd.f32 0.0, %v5575
      %v5577 = vpop.f32.mrb[0].mxu0
      %v5578 = vpop.f32.mrb[0].mxu0
      %v5579 = vadd.f32 0.0, %v5578
      %v5580 = vpop.f32.mrb[0].mxu0
      %5581 = vmatprep.mubr.bf16.mxu0 0
      %5582 = vmatmul.mubr.bf16.gmra.mrb[0].mxu0 %v4523
      %v5583 = vpop.f32.mrb[0].mxu0
      %v5584 = vadd.f32 0.0, %v5583
      %v5585 = vpop.f32.mrb[0].mxu0
      %v5586 = vpop.f32.mrb[0].mxu0
      %v5587 = vadd.f32 0.0, %v5586
      %v5588 = vpop.f32.mrb[0].mxu0
      %5589 = vmatprep.mubr.bf16.mxu0 0
      %5590 = vmatmul.mubr.bf16.gmra.mrb[0].mxu0 %v4526
      %v5591 = vpop.f32.mrb[0].mxu0
      %v5592 = vadd.f32 0.0, %v5591
      %v5593 = vpop.f32.mrb[0].mxu0
      %v5594 = vpop.f32.mrb[0].mxu0
      %v5595 = vadd.f32 0.0, %v5594
      %v5596 = vpop.f32.mrb[0].mxu0
      %5597 = vmatprep.mubr.bf16.mxu0 0
      %5598 = vmatmul.mubr.bf16.gmra.mrb[0].mxu0 %v4529
      %v5599 = vpop.f32.mrb[0].mxu0
      %v5600 = vadd.f32 0.0, %v5599
      %v5601 = vpop.f32.mrb[0].mxu0
      %v5602 = vpop.f32.mrb[0].mxu0
      %v5603 = vadd.f32 0.0, %v5602
      %v5604 = vpop.f32.mrb[0].mxu0
      %5605 = vmatprep.mubr.bf16.mxu0 0
      %5606 = vmatmul.mubr.bf16.gmra.mrb[0].mxu0 %v4532
      %v5607 = vpop.f32.mrb[0].mxu0
      %v5608 = vadd.f32 0.0, %v5607
      %v5609 = vpop.f32.mrb[0].mxu0
      %v5610 = vpop.f32.mrb[0].mxu0
      %v5611 = vadd.f32 0.0, %v5610
      %v5612 = vpop.f32.mrb[0].mxu0
      %5613 = vmatprep.mubr.bf16.mxu0 0
      %5614 = vmatmul.mubr.bf16.gmra.mrb[0].mxu0 %v4535
      %v5615 = vpop.f32.mrb[0].mxu0
      %v5616 = vadd.f32 0.0, %v5615
      %v5617 = vpop.f32.mrb[0].mxu0
      %v5618 = vpop.f32.mrb[0].mxu0
      %v5619 = vadd.f32 0.0, %v5618
      %v5620 = vpop.f32.mrb[0].mxu0
      %5621 = vmatprep.mubr.bf16.mxu0 0
      %5622 = vmatmul.mubr.bf16.gmra.mrb[0].mxu0 %v4538
      %v5623 = vpop.f32.mrb[0].mxu0
      %v5624 = vadd.f32 0.0, %v5623
      %v5625 = vpop.f32.mrb[0].mxu0
      %v5626 = vpop.f32.mrb[0].mxu0
      %v5627 = vadd.f32 0.0, %v5626
      %v5628 = vpop.f32.mrb[0].mxu0
      %5629 = vmatprep.mubr.bf16.mxu0 0
      %5630 = vmatmul.mubr.bf16.gmra.mrb[0].mxu0 %v4541
      %v5631 = vpop.f32.mrb[0].mxu0
      %v5632 = vadd.f32 0.0, %v5631
      %v5633 = vpop.f32.mrb[0].mxu0
      %v5634 = vpop.f32.mrb[0].mxu0
      %v5635 = vadd.f32 0.0, %v5634
      %v5636 = vpop.f32.mrb[0].mxu0
      %5637 = vmatprep.mubr.bf16.mxu0 0
      %5638 = vmatmul.mubr.bf16.gmra.mrb[0].mxu0 %v4544
      %v5639 = vpop.f32.mrb[0].mxu0
      %v5640 = vadd.f32 0.0, %v5639
      %v5641 = vpop.f32.mrb[0].mxu0
      %v5642 = vpop.f32.mrb[0].mxu0
      %v5643 = vadd.f32 0.0, %v5642
      %v5644 = vpop.f32.mrb[0].mxu0
      %5645 = vmatprep.mubr.bf16.mxu0 0
      %5646 = vmatmul.mubr.bf16.gmra.mrb[0].mxu0 %v4547
      %v5647 = vpop.f32.mrb[0].mxu0
      %v5648 = vadd.f32 0.0, %v5647
      %v5649 = vpop.f32.mrb[0].mxu0
      %v5650 = vpop.f32.mrb[0].mxu0
      %v5651 = vadd.f32 0.0, %v5650
      %v5652 = vpop.f32.mrb[0].mxu0
      %5653 = vmatprep.mubr.bf16.mxu0 0
      %5654 = vmatmul.mubr.bf16.gmra.mrb[0].mxu0 %v4550
      %v5655 = vpop.f32.mrb[0].mxu0
      %v5656 = vadd.f32 0.0, %v5655
      %v5657 = vpop.f32.mrb[0].mxu0
      %v5658 = vpop.f32.mrb[0].mxu0
      %v5659 = vadd.f32 0.0, %v5658
      %v5660 = vpop.f32.mrb[0].mxu0
      %5661 = vmatprep.mubr.bf16.mxu0 0
      %5662 = vmatmul.mubr.bf16.gmra.mrb[0].mxu0 %v4553
      %v5663 = vpop.f32.mrb[0].mxu0
      %v5664 = vadd.f32 0.0, %v5663
      %v5665 = vpop.f32.mrb[0].mxu0
      %v5666 = vpop.f32.mrb[0].mxu0
      %v5667 = vadd.f32 0.0, %v5666
      %v5668 = vpop.f32.mrb[0].mxu0
      %5669 = vmatprep.mubr.bf16.mxu0 0
      %5670 = vmatmul.mubr.bf16.gmra.mrb[0].mxu0 %v4556
      %v5671 = vpop.f32.mrb[0].mxu0
      %v5672 = vadd.f32 0.0, %v5671
      %v5673 = vpop.f32.mrb[0].mxu0
      %v5674 = vpop.f32.mrb[0].mxu0
      %v5675 = vadd.f32 0.0, %v5674
      %v5676 = vpop.f32.mrb[0].mxu0
      %5677 = vmatprep.mubr.bf16.mxu0 0
      %5678 = vmatmul.mubr.bf16.gmra.mrb[0].mxu0 %v4559
      %v5679 = vpop.f32.mrb[0].mxu0
      %v5680 = vadd.f32 0.0, %v5679
      %v5681 = vpop.f32.mrb[0].mxu0
      %v5682 = vpop.f32.mrb[0].mxu0
      %v5683 = vadd.f32 0.0, %v5682
      %v5684 = vpop.f32.mrb[0].mxu0
      %5685 = vmatprep.mubr.bf16.mxu0 0
      %5686 = vmatmul.mubr.bf16.gmra.mrb[0].mxu0 %v4562
      %v5687 = vpop.f32.mrb[0].mxu0
      %v5688 = vadd.f32 0.0, %v5687
      %v5689 = vpop.f32.mrb[0].mxu0
      %v5690 = vpop.f32.mrb[0].mxu0
      %v5691 = vadd.f32 0.0, %v5690
      %v5692 = vpop.f32.mrb[0].mxu0
      %5693 = vmatprep.mubr.bf16.mxu0 0
      %5694 = vmatmul.mubr.bf16.gmra.mrb[0].mxu0 %v4565
      %v5695 = vpop.f32.mrb[0].mxu0
      %v5696 = vadd.f32 0.0, %v5695
      %v5697 = vpop.f32.mrb[0].mxu0
      %v5698 = vpop.f32.mrb[0].mxu0
      %v5699 = vadd.f32 0.0, %v5698
      %v5700 = vpop.f32.mrb[0].mxu0
      %5701 = vmatprep.mubr.bf16.mxu0 0
      %5702 = vmatmul.mubr.bf16.gmra.mrb[0].mxu0 %v4568
      %v5703 = vpop.f32.mrb[0].mxu0
      %v5704 = vadd.f32 0.0, %v5703
      %v5705 = vpop.f32.mrb[0].mxu0
      %v5706 = vpop.f32.mrb[0].mxu0
      %v5707 = vadd.f32 0.0, %v5706
      %v5708 = vpop.f32.mrb[0].mxu0
      %5709 = vmatprep.mubr.bf16.mxu0 0
      %5710 = vmatmul.mubr.bf16.gmra.mrb[0].mxu0 %v4989
      %v5711 = vpop.f32.mrb[0].mxu0
      %v5712 = vadd.f32 0.0, %v5711
      %v5713 = vpop.f32.mrb[0].mxu0
      %v5714 = vpop.f32.mrb[0].mxu0
      %v5715 = vadd.f32 0.0, %v5714
      %v5716 = vpop.f32.mrb[0].mxu0
      %5717 = vmatprep.mubr.bf16.mxu0 0
      %5718 = vmatmul.mubr.bf16.gmra.mrb[0].mxu0 %v4992
      %v5719 = vpop.f32.mrb[0].mxu0
      %v5720 = vadd.f32 0.0, %v5719
      %v5721 = vpop.f32.mrb[0].mxu0
      %v5722 = vpop.f32.mrb[0].mxu0
      %v5723 = vadd.f32 0.0, %v5722
      %v5724 = vpop.f32.mrb[0].mxu0
      %5725 = vmatprep.mubr.bf16.mxu0 0
      %5726 = vmatmul.mubr.bf16.gmra.mrb[0].mxu0 %v5413
      %v5727 = vpop.f32.mrb[0].mxu0
      %v5728 = vadd.f32 0.0, %v5727
      %v5729 = vpop.f32.mrb[0].mxu0
      %v5730 = vpop.f32.mrb[0].mxu0
      %v5731 = vadd.f32 0.0, %v5730
      %v5732 = vpop.f32.mrb[0].mxu0
      %5733 = vmatprep.mubr.bf16.mxu0 0
      %5734 = vmatmul.mubr.bf16.gmra.mrb[0].mxu0 %v5416
      %v5735 = vpop.f32.mrb[0].mxu0
      %v5736 = vadd.f32 0.0, %v5735
      %v5737 = vpop.f32.mrb[0].mxu0
      %v5738 = vpop.f32.mrb[0].mxu0
      %v5739 = vadd.f32 0.0, %v5738
      %v5740 = vpop.f32.mrb[0].mxu0
      %5741 = vdwg.mxu0
      %v5742 = vadd.f32 %v5318, %v5456
      %v5743 = vadd.f32 %v5319, %v5459
      %v5744 = vadd.f32 %v5320, %v5464
      %v5745 = vadd.f32 %v5321, %v5467
      %v5746 = vadd.f32 %v5322, %v5472
      %v5747 = vadd.f32 %v5323, %v5475
      %v5748 = vadd.f32 %v5324, %v5480
      %v5749 = vadd.f32 %v5325, %v5483
      %v5750 = vadd.f32 %v5326, %v5488
      %v5751 = vadd.f32 %v5327, %v5491
      %v5752 = vadd.f32 %v5328, %v5496
      %v5753 = vadd.f32 %v5329, %v5499
      %v5754 = vadd.f32 %v5330, %v5504
      %v5755 = vadd.f32 %v5331, %v5507
      %v5756 = vadd.f32 %v5332, %v5512
      %v5757 = vadd.f32 %v5333, %v5515
      %v5758 = vadd.f32 %v5334, %v5520
      %v5759 = vadd.f32 %v5335, %v5523
      %v5760 = vadd.f32 %v5336, %v5528
      %v5761 = vadd.f32 %v5337, %v5531
      %v5762 = vadd.f32 %v5338, %v5536
      %v5763 = vadd.f32 %v5339, %v5539
      %v5764 = vadd.f32 %v5340, %v5544
      %v5765 = vadd.f32 %v5341, %v5547
      %v5766 = vadd.f32 %v5342, %v5552
      %v5767 = vadd.f32 %v5343, %v5555
      %v5768 = vadd.f32 %v5344, %v5560
      %v5769 = vadd.f32 %v5345, %v5563
      %v5770 = vadd.f32 %v5346, %v5568
      %v5771 = vadd.f32 %v5347, %v5571
      %v5772 = vadd.f32 %v5348, %v5576
      %v5773 = vadd.f32 %v5349, %v5579
      %v5774 = vadd.f32 %v5350, %v5584
      %v5775 = vadd.f32 %v5351, %v5587
      %v5776 = vadd.f32 %v5352, %v5592
      %v5777 = vadd.f32 %v5353, %v5595
      %v5778 = vadd.f32 %v5354, %v5600
      %v5779 = vadd.f32 %v5355, %v5603
      %v5780 = vadd.f32 %v5356, %v5608
      %v5781 = vadd.f32 %v5357, %v5611
      %v5782 = vadd.f32 %v5358, %v5616
      %v5783 = vadd.f32 %v5359, %v5619
      %v5784 = vadd.f32 %v5360, %v5624
      %v5785 = vadd.f32 %v5361, %v5627
      %v5786 = vadd.f32 %v5362, %v5632
      %v5787 = vadd.f32 %v5363, %v5635
      %v5788 = vadd.f32 %v5364, %v5640
      %v5789 = vadd.f32 %v5365, %v5643
      %v5790 = vadd.f32 %v5366, %v5648
      %v5791 = vadd.f32 %v5367, %v5651
      %v5792 = vadd.f32 %v5368, %v5656
      %v5793 = vadd.f32 %v5369, %v5659
      %v5794 = vadd.f32 %v5370, %v5664
      %v5795 = vadd.f32 %v5371, %v5667
      %v5796 = vadd.f32 %v5372, %v5672
      %v5797 = vadd.f32 %v5373, %v5675
      %v5798 = vadd.f32 %v5374, %v5680
      %v5799 = vadd.f32 %v5375, %v5683
      %v5800 = vadd.f32 %v5376, %v5688
      %v5801 = vadd.f32 %v5377, %v5691
      %v5802 = vadd.f32 %v5378, %v5696
      %v5803 = vadd.f32 %v5379, %v5699
      %v5804 = vadd.f32 %v5380, %v5704
      %v5805 = vadd.f32 %v5381, %v5707
      %v5806 = vadd.f32 %v5382, %v5712
      %v5807 = vadd.f32 %v5383, %v5715
      %v5808 = vadd.f32 %v5384, %v5720
      %v5809 = vadd.f32 %v5385, %v5723
      %v5810 = vadd.f32 %v5386, %v5728
      %v5811 = vadd.f32 %v5387, %v5731
      %v5812 = vadd.f32 %v5388, %v5736
      %v5813 = vadd.f32 %v5389, %v5739
      %v5814 = vld [vmem:[%s2] sm:$0x1]
      %v5816 = vlaneseq
      %v5817 = vshrl.u32 %v5816, 7
      %v5818 = vsub.s32 0, %v5817
      %v5819 = vrot.slane %v5814, %v5818
      %v5821 = vmul.f32 %v5742, %v5819
      %v5822 = vmul.f32 %v5743, %v5819
      %v5823 = vmul.f32 %v5744, %v5819
      %v5824 = vmul.f32 %v5745, %v5819
      %v5825 = vmul.f32 %v5746, %v5819
      %v5826 = vmul.f32 %v5747, %v5819
      %v5827 = vmul.f32 %v5748, %v5819
      %v5828 = vmul.f32 %v5749, %v5819
      %v5829 = vmul.f32 %v5750, %v5819
      %v5830 = vmul.f32 %v5751, %v5819
      %v5831 = vmul.f32 %v5752, %v5819
      %v5832 = vmul.f32 %v5753, %v5819
      %v5833 = vmul.f32 %v5754, %v5819
      %v5834 = vmul.f32 %v5755, %v5819
      %v5835 = vmul.f32 %v5756, %v5819
      %v5836 = vmul.f32 %v5757, %v5819
      %v5837 = vmul.f32 %v5758, %v5819
      %v5838 = vmul.f32 %v5759, %v5819
      %v5839 = vmul.f32 %v5760, %v5819
      %v5840 = vmul.f32 %v5761, %v5819
      %v5841 = vmul.f32 %v5762, %v5819
      %v5842 = vmul.f32 %v5763, %v5819
      %v5843 = vmul.f32 %v5764, %v5819
      %v5844 = vmul.f32 %v5765, %v5819
      %v5845 = vmul.f32 %v5766, %v5819
      %v5846 = vmul.f32 %v5767, %v5819
      %v5847 = vmul.f32 %v5768, %v5819
      %v5848 = vmul.f32 %v5769, %v5819
      %v5849 = vmul.f32 %v5770, %v5819
      %v5850 = vmul.f32 %v5771, %v5819
      %v5851 = vmul.f32 %v5772, %v5819
      %v5852 = vmul.f32 %v5773, %v5819
      %v5853 = vmul.f32 %v5774, %v5819
      %v5854 = vmul.f32 %v5775, %v5819
      %v5855 = vmul.f32 %v5776, %v5819
      %v5856 = vmul.f32 %v5777, %v5819
      %v5857 = vmul.f32 %v5778, %v5819
      %v5858 = vmul.f32 %v5779, %v5819
      %v5859 = vmul.f32 %v5780, %v5819
      %v5860 = vmul.f32 %v5781, %v5819
      %v5861 = vmul.f32 %v5782, %v5819
      %v5862 = vmul.f32 %v5783, %v5819
      %v5863 = vmul.f32 %v5784, %v5819
      %v5864 = vmul.f32 %v5785, %v5819
      %v5865 = vmul.f32 %v5786, %v5819
      %v5866 = vmul.f32 %v5787, %v5819
      %v5867 = vmul.f32 %v5788, %v5819
      %v5868 = vmul.f32 %v5789, %v5819
      %v5869 = vmul.f32 %v5790, %v5819
      %v5870 = vmul.f32 %v5791, %v5819
      %v5871 = vmul.f32 %v5792, %v5819
      %v5872 = vmul.f32 %v5793, %v5819
      %v5873 = vmul.f32 %v5794, %v5819
      %v5874 = vmul.f32 %v5795, %v5819
      %v5875 = vmul.f32 %v5796, %v5819
      %v5876 = vmul.f32 %v5797, %v5819
      %v5877 = vmul.f32 %v5798, %v5819
      %v5878 = vmul.f32 %v5799, %v5819
      %v5879 = vmul.f32 %v5800, %v5819
      %v5880 = vmul.f32 %v5801, %v5819
      %v5881 = vmul.f32 %v5802, %v5819
      %v5882 = vmul.f32 %v5803, %v5819
      %v5883 = vmul.f32 %v5804, %v5819
      %v5884 = vmul.f32 %v5805, %v5819
      %v5885 = vmul.f32 %v5806, %v5819
      %v5886 = vmul.f32 %v5807, %v5819
      %v5887 = vmul.f32 %v5808, %v5819
      %v5888 = vmul.f32 %v5809, %v5819
      %v5889 = vmul.f32 %v5810, %v5819
      %v5890 = vmul.f32 %v5811, %v5819
      %v5891 = vmul.f32 %v5812, %v5819
      %v5892 = vmul.f32 %v5813, %v5819
      %v5893 = vld [vmem:[%s3] sm:$0x1]
      %v5895 = vlaneseq
      %v5896 = vshrl.u32 %v5895, 7
      %v5897 = vsub.s32 0, %v5896
      %v5898 = vrot.slane %v5893, %v5897
      %v5900 = vadd.f32 %v5821, %v5898
      %v5901 = vadd.f32 %v5822, %v5898
      %v5902 = vadd.f32 %v5823, %v5898
      %v5903 = vadd.f32 %v5824, %v5898
      %v5904 = vadd.f32 %v5825, %v5898
      %v5905 = vadd.f32 %v5826, %v5898
      %v5906 = vadd.f32 %v5827, %v5898
      %v5907 = vadd.f32 %v5828, %v5898
      %v5908 = vadd.f32 %v5829, %v5898
      %v5909 = vadd.f32 %v5830, %v5898
      %v5910 = vadd.f32 %v5831, %v5898
      %v5911 = vadd.f32 %v5832, %v5898
      %v5912 = vadd.f32 %v5833, %v5898
      %v5913 = vadd.f32 %v5834, %v5898
      %v5914 = vadd.f32 %v5835, %v5898
      %v5915 = vadd.f32 %v5836, %v5898
      %v5916 = vadd.f32 %v5837, %v5898
      %v5917 = vadd.f32 %v5838, %v5898
      %v5918 = vadd.f32 %v5839, %v5898
      %v5919 = vadd.f32 %v5840, %v5898
      %v5920 = vadd.f32 %v5841, %v5898
      %v5921 = vadd.f32 %v5842, %v5898
      %v5922 = vadd.f32 %v5843, %v5898
      %v5923 = vadd.f32 %v5844, %v5898
      %v5924 = vadd.f32 %v5845, %v5898
      %v5925 = vadd.f32 %v5846, %v5898
      %v5926 = vadd.f32 %v5847, %v5898
      %v5927 = vadd.f32 %v5848, %v5898
      %v5928 = vadd.f32 %v5849, %v5898
      %v5929 = vadd.f32 %v5850, %v5898
      %v5930 = vadd.f32 %v5851, %v5898
      %v5931 = vadd.f32 %v5852, %v5898
      %v5932 = vadd.f32 %v5853, %v5898
      %v5933 = vadd.f32 %v5854, %v5898
      %v5934 = vadd.f32 %v5855, %v5898
      %v5935 = vadd.f32 %v5856, %v5898
      %v5936 = vadd.f32 %v5857, %v5898
      %v5937 = vadd.f32 %v5858, %v5898
      %v5938 = vadd.f32 %v5859, %v5898
      %v5939 = vadd.f32 %v5860, %v5898
      %v5940 = vadd.f32 %v5861, %v5898
      %v5941 = vadd.f32 %v5862, %v5898
      %v5942 = vadd.f32 %v5863, %v5898
      %v5943 = vadd.f32 %v5864, %v5898
      %v5944 = vadd.f32 %v5865, %v5898
      %v5945 = vadd.f32 %v5866, %v5898
      %v5946 = vadd.f32 %v5867, %v5898
      %v5947 = vadd.f32 %v5868, %v5898
      %v5948 = vadd.f32 %v5869, %v5898
      %v5949 = vadd.f32 %v5870, %v5898
      %v5950 = vadd.f32 %v5871, %v5898
      %v5951 = vadd.f32 %v5872, %v5898
      %v5952 = vadd.f32 %v5873, %v5898
      %v5953 = vadd.f32 %v5874, %v5898
      %v5954 = vadd.f32 %v5875, %v5898
      %v5955 = vadd.f32 %v5876, %v5898
      %v5956 = vadd.f32 %v5877, %v5898
      %v5957 = vadd.f32 %v5878, %v5898
      %v5958 = vadd.f32 %v5879, %v5898
      %v5959 = vadd.f32 %v5880, %v5898
      %v5960 = vadd.f32 %v5881, %v5898
      %v5961 = vadd.f32 %v5882, %v5898
      %v5962 = vadd.f32 %v5883, %v5898
      %v5963 = vadd.f32 %v5884, %v5898
      %v5964 = vadd.f32 %v5885, %v5898
      %v5965 = vadd.f32 %v5886, %v5898
      %v5966 = vadd.f32 %v5887, %v5898
      %v5967 = vadd.f32 %v5888, %v5898
      %v5968 = vadd.f32 %v5889, %v5898
      %v5969 = vadd.f32 %v5890, %v5898
      %v5970 = vadd.f32 %v5891, %v5898
      %v5971 = vadd.f32 %v5892, %v5898
      %v5972 = vmax.f32 %v5900, 0.0
      %v5973 = vmax.f32 %v5901, 0.0
      %v5974 = vmax.f32 %v5902, 0.0
      %v5975 = vmax.f32 %v5903, 0.0
      %v5976 = vmax.f32 %v5904, 0.0
      %v5977 = vmax.f32 %v5905, 0.0
      %v5978 = vmax.f32 %v5906, 0.0
      %v5979 = vmax.f32 %v5907, 0.0
      %v5980 = vmax.f32 %v5908, 0.0
      %v5981 = vmax.f32 %v5909, 0.0
      %v5982 = vmax.f32 %v5910, 0.0
      %v5983 = vmax.f32 %v5911, 0.0
      %v5984 = vmax.f32 %v5912, 0.0
      %v5985 = vmax.f32 %v5913, 0.0
      %v5986 = vmax.f32 %v5914, 0.0
      %v5987 = vmax.f32 %v5915, 0.0
      %v5988 = vmax.f32 %v5916, 0.0
      %v5989 = vmax.f32 %v5917, 0.0
      %v5990 = vmax.f32 %v5918, 0.0
      %v5991 = vmax.f32 %v5919, 0.0
      %v5992 = vmax.f32 %v5920, 0.0
      %v5993 = vmax.f32 %v5921, 0.0
      %v5994 = vmax.f32 %v5922, 0.0
      %v5995 = vmax.f32 %v5923, 0.0
      %v5996 = vmax.f32 %v5924, 0.0
      %v5997 = vmax.f32 %v5925, 0.0
      %v5998 = vmax.f32 %v5926, 0.0
      %v5999 = vmax.f32 %v5927, 0.0
      %v6000 = vmax.f32 %v5928, 0.0
      %v6001 = vmax.f32 %v5929, 0.0
      %v6002 = vmax.f32 %v5930, 0.0
      %v6003 = vmax.f32 %v5931, 0.0
      %v6004 = vmax.f32 %v5932, 0.0
      %v6005 = vmax.f32 %v5933, 0.0
      %v6006 = vmax.f32 %v5934, 0.0
      %v6007 = vmax.f32 %v5935, 0.0
      %v6008 = vmax.f32 %v5936, 0.0
      %v6009 = vmax.f32 %v5937, 0.0
      %v6010 = vmax.f32 %v5938, 0.0
      %v6011 = vmax.f32 %v5939, 0.0
      %v6012 = vmax.f32 %v5940, 0.0
      %v6013 = vmax.f32 %v5941, 0.0
      %v6014 = vmax.f32 %v5942, 0.0
      %v6015 = vmax.f32 %v5943, 0.0
      %v6016 = vmax.f32 %v5944, 0.0
      %v6017 = vmax.f32 %v5945, 0.0
      %v6018 = vmax.f32 %v5946, 0.0
      %v6019 = vmax.f32 %v5947, 0.0
      %v6020 = vmax.f32 %v5948, 0.0
      %v6021 = vmax.f32 %v5949, 0.0
      %v6022 = vmax.f32 %v5950, 0.0
      %v6023 = vmax.f32 %v5951, 0.0
      %v6024 = vmax.f32 %v5952, 0.0
      %v6025 = vmax.f32 %v5953, 0.0
      %v6026 = vmax.f32 %v5954, 0.0
      %v6027 = vmax.f32 %v5955, 0.0
      %v6028 = vmax.f32 %v5956, 0.0
      %v6029 = vmax.f32 %v5957, 0.0
      %v6030 = vmax.f32 %v5958, 0.0
      %v6031 = vmax.f32 %v5959, 0.0
      %v6032 = vmax.f32 %v5960, 0.0
      %v6033 = vmax.f32 %v5961, 0.0
      %v6034 = vmax.f32 %v5962, 0.0
      %v6035 = vmax.f32 %v5963, 0.0
      %v6036 = vmax.f32 %v5964, 0.0
      %v6037 = vmax.f32 %v5965, 0.0
      %v6038 = vmax.f32 %v5966, 0.0
      %v6039 = vmax.f32 %v5967, 0.0
      %v6040 = vmax.f32 %v5968, 0.0
      %v6041 = vmax.f32 %v5969, 0.0
      %v6042 = vmax.f32 %v5970, 0.0
      %v6043 = vmax.f32 %v5971, 0.0
      %6044 = vst [vmem:[#allocation2] sm:$0xf] 0
      %6045 = vst [vmem:[#allocation2 + $0x4] sm:$0xf] 0
      %6046 = vst [vmem:[#allocation2 + $0x8] sm:$0xf] 0
      %6047 = vst [vmem:[#allocation2 + $0xc] sm:$0xf] 0
      %6048 = vst [vmem:[#allocation2 + $0x10] sm:$0x1] 0
      %6049 = vst [vmem:[#allocation2 + $0x14] sm:$0xf] 0
      %6050 = vst [vmem:[#allocation2 + $0x18] sm:$0xf] 0
      %6051 = vst [vmem:[#allocation2 + $0x1c] sm:$0xf] 0
      %6052 = vst [vmem:[#allocation2 + $0x20] sm:$0xf] 0
      %6053 = vst [vmem:[#allocation2 + $0x24] sm:$0x1] 0
      %6054 = vst [vmem:[#allocation2 + $0x28] sm:$0xf] 0
      %6055 = vst [vmem:[#allocation2 + $0x2c] sm:$0xf] 0
      %6056 = vst [vmem:[#allocation2 + $0x30] sm:$0xf] 0
      %6057 = vst [vmem:[#allocation2 + $0x34] sm:$0xf] 0
      %6058 = vst [vmem:[#allocation2 + $0x38] sm:$0x1] 0
      %6059 = vst [vmem:[#allocation2 + $0x3c] sm:$0xf] 0
      %6060 = vst [vmem:[#allocation2 + $0x40] sm:$0xf] 0
      %6061 = vst [vmem:[#allocation2 + $0x44] sm:$0xf] 0
      %6062 = vst [vmem:[#allocation2 + $0x48] sm:$0xf] 0
      %6063 = vst [vmem:[#allocation2 + $0x4c] sm:$0x1] 0
      %6064 = vst [vmem:[#allocation2 + $0x50] sm:$0xf] 0
      %6065 = vst [vmem:[#allocation2 + $0x54] sm:$0xf] 0
      %6066 = vst [vmem:[#allocation2 + $0x58] sm:$0xf] 0
      %6067 = vst [vmem:[#allocation2 + $0x5c] sm:$0xf] 0
      %6068 = vst [vmem:[#allocation2 + $0x60] sm:$0x1] 0
      %6069 = vst [vmem:[#allocation2 + $0x64] sm:$0xf] 0
      %6070 = vst [vmem:[#allocation2 + $0x68] sm:$0xf] 0
      %6071 = vst [vmem:[#allocation2 + $0x6c] sm:$0xf] 0
      %6072 = vst [vmem:[#allocation2 + $0x70] sm:$0xf] 0
      %6073 = vst [vmem:[#allocation2 + $0x74] sm:$0x1] 0
      %6074 = vst [vmem:[#allocation2 + $0x78] sm:$0xf] 0
      %6075 = vst [vmem:[#allocation2 + $0x7c] sm:$0xf] 0
      %6076 = vst [vmem:[#allocation2 + $0x80] sm:$0xf] 0
      %6077 = vst [vmem:[#allocation2 + $0x84] sm:$0xf] 0
      %6078 = vst [vmem:[#allocation2 + $0x88] sm:$0x1] 0
      %6079 = vst [vmem:[#allocation2 + $0x8c] sm:$0xf] 0
      %6080 = vst [vmem:[#allocation2 + $0x90] sm:$0xf] 0
      %6081 = vst [vmem:[#allocation2 + $0x94] sm:$0xf] 0
      %6082 = vst [vmem:[#allocation2 + $0x98] sm:$0xf] 0
      %6083 = vst [vmem:[#allocation2 + $0x9c] sm:$0x1] 0
      %6084 = vst [vmem:[#allocation2 + $0xa0] sm:$0xf] 0
      %6085 = vst [vmem:[#allocation2 + $0xa4] sm:$0xf] 0
      %6086 = vst [vmem:[#allocation2 + $0xa8] sm:$0xf] 0
      %6087 = vst [vmem:[#allocation2 + $0xac] sm:$0xf] 0
      %6088 = vst [vmem:[#allocation2 + $0xb0] sm:$0x1] 0
      %6089 = vst [vmem:[#allocation2 + $0xb4] sm:$0xf] 0
      %6090 = vst [vmem:[#allocation2 + $0xb8] sm:$0xf] 0
      %6091 = vst [vmem:[#allocation2 + $0xbc] sm:$0xf] 0
      %6092 = vst [vmem:[#allocation2 + $0xc0] sm:$0xf] 0
      %6093 = vst [vmem:[#allocation2 + $0xc4] sm:$0x1] 0
      %6094 = vst [vmem:[#allocation2 + $0xc8] sm:$0xf] 0
      %6095 = vst [vmem:[#allocation2 + $0xcc] sm:$0xf] 0
      %6096 = vst [vmem:[#allocation2 + $0xd0] sm:$0xf] 0
      %6097 = vst [vmem:[#allocation2 + $0xd4] sm:$0xf] 0
      %6098 = vst [vmem:[#allocation2 + $0xd8] sm:$0x1] 0
      %6099 = vst [vmem:[#allocation2 + $0xdc] sm:$0xf] 0
      %6100 = vst [vmem:[#allocation2 + $0xe0] sm:$0xf] 0
      %6101 = vst [vmem:[#allocation2 + $0xe4] sm:$0xf] 0
      %6102 = vst [vmem:[#allocation2 + $0xe8] sm:$0xf] 0
      %6103 = vst [vmem:[#allocation2 + $0xec] sm:$0x1] 0
      %6104 = vst [vmem:[#allocation2 + $0xf0] sm:$0xf] 0
      %6105 = vst [vmem:[#allocation2 + $0xf4] sm:$0xf] 0
      %6106 = vst [vmem:[#allocation2 + $0xf8] sm:$0xf] 0
      %6107 = vst [vmem:[#allocation2 + $0xfc] sm:$0xf] 0
      %6108 = vst [vmem:[#allocation2 + $0x100] sm:$0x1] 0
      %6109 = vst [vmem:[#allocation2 + $0x104] sm:$0xf] 0
      %6110 = vst [vmem:[#allocation2 + $0x108] sm:$0xf] 0
      %6111 = vst [vmem:[#allocation2 + $0x10c] sm:$0xf] 0
      %6112 = vst [vmem:[#allocation2 + $0x110] sm:$0xf] 0
      %6113 = vst [vmem:[#allocation2 + $0x114] sm:$0x1] 0
      %6114 = vst [vmem:[#allocation2 + $0x118] sm:$0xf] 0
      %6115 = vst [vmem:[#allocation2 + $0x11c] sm:$0xf] 0
      %6116 = vst [vmem:[#allocation2 + $0x120] sm:$0xf] 0
      %6117 = vst [vmem:[#allocation2 + $0x124] sm:$0xf] 0
      %6118 = vst [vmem:[#allocation2 + $0x128] sm:$0x1] 0
      %6119 = vst [vmem:[#allocation2 + $0x12c] sm:$0xf] 0
      %6120 = vst [vmem:[#allocation2 + $0x130] sm:$0xf] 0
      %6121 = vst [vmem:[#allocation2 + $0x134] sm:$0xf] 0
      %6122 = vst [vmem:[#allocation2 + $0x138] sm:$0xf] 0
      %6123 = vst [vmem:[#allocation2 + $0x13c] sm:$0x1] 0
      %6124 = vst [vmem:[#allocation2 + $0x140] sm:$0xf] 0
      %6125 = vst [vmem:[#allocation2 + $0x144] sm:$0xf] 0
      %6126 = vst [vmem:[#allocation2 + $0x148] sm:$0xf] 0
      %6127 = vst [vmem:[#allocation2 + $0x14c] sm:$0xf] 0
      %6128 = vst [vmem:[#allocation2 + $0x150] sm:$0x1] 0
      %6129 = vst [vmem:[#allocation2 + $0x154] sm:$0xf] 0
      %6130 = vst [vmem:[#allocation2 + $0x158] sm:$0xf] 0
      %6131 = vst [vmem:[#allocation2 + $0x15c] sm:$0xf] 0
      %6132 = vst [vmem:[#allocation2 + $0x160] sm:$0xf] 0
      %6133 = vst [vmem:[#allocation2 + $0x164] sm:$0x1] 0
      %v6134 = vpack.c.bf16 %v5973, %v5972
      %v6135 = vpack.c.bf16 %v5975, %v5974
      %v6136 = vpack.c.bf16 %v5977, %v5976
      %v6137 = vpack.c.bf16 %v5979, %v5978
      %v6138 = vpack.c.bf16 %v5981, %v5980
      %v6139 = vpack.c.bf16 %v5983, %v5982
      %v6140 = vpack.c.bf16 %v5985, %v5984
      %v6141 = vpack.c.bf16 %v5987, %v5986
      %v6142 = vpack.c.bf16 %v5989, %v5988
      %v6143 = vpack.c.bf16 %v5991, %v5990
      %v6144 = vpack.c.bf16 %v5993, %v5992
      %v6145 = vpack.c.bf16 %v5995, %v5994
      %v6146 = vpack.c.bf16 %v5997, %v5996
      %v6147 = vpack.c.bf16 %v5999, %v5998
      %v6148 = vpack.c.bf16 %v6001, %v6000
      %v6149 = vpack.c.bf16 %v6003, %v6002
      %v6150 = vpack.c.bf16 %v6005, %v6004
      %v6151 = vpack.c.bf16 %v6007, %v6006
      %v6152 = vpack.c.bf16 %v6009, %v6008
      %v6153 = vpack.c.bf16 %v6011, %v6010
      %v6154 = vpack.c.bf16 %v6013, %v6012
      %v6155 = vpack.c.bf16 %v6015, %v6014
      %v6156 = vpack.c.bf16 %v6017, %v6016
      %v6157 = vpack.c.bf16 %v6019, %v6018
      %v6158 = vpack.c.bf16 %v6021, %v6020
      %v6159 = vpack.c.bf16 %v6023, %v6022
      %v6160 = vpack.c.bf16 %v6025, %v6024
      %v6161 = vpack.c.bf16 %v6027, %v6026
      %v6162 = vpack.c.bf16 %v6029, %v6028
      %v6163 = vpack.c.bf16 %v6031, %v6030
      %v6164 = vpack.c.bf16 %v6033, %v6032
      %v6165 = vpack.c.bf16 %v6035, %v6034
      %v6166 = vpack.c.bf16 %v6037, %v6036
      %v6167 = vpack.c.bf16 %v6039, %v6038
      %v6168 = vpack.c.bf16 %v6041, %v6040
      %v6169 = vpack.c.bf16 %v6043, %v6042
      %v6206 = vunpack.c.l.b16 %v6134
      %v6207 = vunpack.c.h.b16 %v6134
      %v6208 = vunpack.c.l.b16 %v6135
      %v6209 = vunpack.c.h.b16 %v6135
      %v6210 = vunpack.c.l.b16 %v6136
      %v6211 = vunpack.c.h.b16 %v6136
      %v6212 = vunpack.c.l.b16 %v6137
      %v6213 = vunpack.c.h.b16 %v6137
      %v6214 = vunpack.c.l.b16 %v6138
      %v6215 = vunpack.c.h.b16 %v6138
      %v6216 = vunpack.c.l.b16 %v6139
      %v6217 = vunpack.c.h.b16 %v6139
      %v6218 = vunpack.c.l.b16 %v6140
      %v6219 = vunpack.c.h.b16 %v6140
      %v6220 = vunpack.c.l.b16 %v6141
      %v6221 = vunpack.c.h.b16 %v6141
      %v6222 = vunpack.c.l.b16 %v6142
      %v6223 = vunpack.c.h.b16 %v6142
      %v6224 = vunpack.c.l.b16 %v6143
      %v6225 = vunpack.c.h.b16 %v6143
      %v6226 = vunpack.c.l.b16 %v6144
      %v6227 = vunpack.c.h.b16 %v6144
      %v6228 = vunpack.c.l.b16 %v6145
      %v6229 = vunpack.c.h.b16 %v6145
      %v6230 = vunpack.c.l.b16 %v6146
      %v6231 = vunpack.c.h.b16 %v6146
      %v6232 = vunpack.c.l.b16 %v6147
      %v6233 = vunpack.c.h.b16 %v6147
      %v6234 = vunpack.c.l.b16 %v6148
      %v6235 = vunpack.c.h.b16 %v6148
      %v6236 = vunpack.c.l.b16 %v6149
      %v6237 = vunpack.c.h.b16 %v6149
      %v6238 = vunpack.c.l.b16 %v6150
      %v6239 = vunpack.c.h.b16 %v6150
      %v6240 = vunpack.c.l.b16 %v6151
      %v6241 = vunpack.c.h.b16 %v6151
      %v6242 = vunpack.c.l.b16 %v6152
      %v6243 = vunpack.c.h.b16 %v6152
      %v6244 = vunpack.c.l.b16 %v6153
      %v6245 = vunpack.c.h.b16 %v6153
      %v6246 = vunpack.c.l.b16 %v6154
      %v6247 = vunpack.c.h.b16 %v6154
      %v6248 = vunpack.c.l.b16 %v6155
      %v6249 = vunpack.c.h.b16 %v6155
      %v6250 = vunpack.c.l.b16 %v6156
      %v6251 = vunpack.c.h.b16 %v6156
      %v6252 = vunpack.c.l.b16 %v6157
      %v6253 = vunpack.c.h.b16 %v6157
      %v6254 = vunpack.c.l.b16 %v6158
      %v6255 = vunpack.c.h.b16 %v6158
      %v6256 = vunpack.c.l.b16 %v6159
      %v6257 = vunpack.c.h.b16 %v6159
      %v6258 = vunpack.c.l.b16 %v6160
      %v6259 = vunpack.c.h.b16 %v6160
      %v6260 = vunpack.c.l.b16 %v6161
      %v6261 = vunpack.c.h.b16 %v6161
      %v6262 = vunpack.c.l.b16 %v6162
      %v6263 = vunpack.c.h.b16 %v6162
      %v6264 = vunpack.c.l.b16 %v6163
      %v6265 = vunpack.c.h.b16 %v6163
      %v6266 = vunpack.c.l.b16 %v6164
      %v6267 = vunpack.c.h.b16 %v6164
      %v6268 = vunpack.c.l.b16 %v6165
      %v6269 = vunpack.c.h.b16 %v6165
      %v6270 = vunpack.c.l.b16 %v6166
      %v6271 = vunpack.c.h.b16 %v6166
      %v6272 = vunpack.c.l.b16 %v6167
      %v6273 = vunpack.c.h.b16 %v6167
      %v6274 = vunpack.c.l.b16 %v6168
      %v6275 = vunpack.c.h.b16 %v6168
      %v6276 = vunpack.c.l.b16 %v6169
      %v6277 = vunpack.c.h.b16 %v6169
      %v6278 = vpack.c.b16 %v6206, %v6206
      %v6279 = vpack.c.b16 %v6207, %v6207
      %v6280 = vpack.c.b16 %v6208, %v6208
      %v6281 = vpack.c.b16 %v6209, %v6209
      %v6282 = vpack.c.b16 %v6210, %v6210
      %v6283 = vpack.c.b16 %v6211, %v6211
      %v6284 = vpack.c.b16 %v6212, %v6212
      %v6285 = vpack.c.b16 %v6213, %v6213
      %v6286 = vpack.c.b16 %v6214, %v6214
      %v6287 = vpack.c.b16 %v6215, %v6215
      %v6288 = vpack.c.b16 %v6216, %v6216
      %v6289 = vpack.c.b16 %v6217, %v6217
      %v6290 = vpack.c.b16 %v6218, %v6218
      %v6291 = vpack.c.b16 %v6219, %v6219
      %v6292 = vpack.c.b16 %v6220, %v6220
      %v6293 = vpack.c.b16 %v6221, %v6221
      %v6294 = vpack.c.b16 %v6222, %v6222
      %v6295 = vpack.c.b16 %v6223, %v6223
      %v6296 = vpack.c.b16 %v6224, %v6224
      %v6297 = vpack.c.b16 %v6225, %v6225
      %v6298 = vpack.c.b16 %v6226, %v6226
      %v6299 = vpack.c.b16 %v6227, %v6227
      %v6300 = vpack.c.b16 %v6228, %v6228
      %v6301 = vpack.c.b16 %v6229, %v6229
      %v6302 = vpack.c.b16 %v6230, %v6230
      %v6303 = vpack.c.b16 %v6231, %v6231
      %v6304 = vpack.c.b16 %v6232, %v6232
      %v6305 = vpack.c.b16 %v6233, %v6233
      %v6306 = vpack.c.b16 %v6234, %v6234
      %v6307 = vpack.c.b16 %v6235, %v6235
      %v6308 = vpack.c.b16 %v6236, %v6236
      %v6309 = vpack.c.b16 %v6237, %v6237
      %v6310 = vpack.c.b16 %v6238, %v6238
      %v6311 = vpack.c.b16 %v6239, %v6239
      %v6312 = vpack.c.b16 %v6240, %v6240
      %v6313 = vpack.c.b16 %v6241, %v6241
      %v6314 = vpack.c.b16 %v6242, %v6242
      %v6315 = vpack.c.b16 %v6243, %v6243
      %v6316 = vpack.c.b16 %v6244, %v6244
      %v6317 = vpack.c.b16 %v6245, %v6245
      %v6318 = vpack.c.b16 %v6246, %v6246
      %v6319 = vpack.c.b16 %v6247, %v6247
      %v6320 = vpack.c.b16 %v6248, %v6248
      %v6321 = vpack.c.b16 %v6249, %v6249
      %v6322 = vpack.c.b16 %v6250, %v6250
      %v6323 = vpack.c.b16 %v6251, %v6251
      %v6324 = vpack.c.b16 %v6252, %v6252
      %v6325 = vpack.c.b16 %v6253, %v6253
      %v6326 = vpack.c.b16 %v6254, %v6254
      %v6327 = vpack.c.b16 %v6255, %v6255
      %v6328 = vpack.c.b16 %v6256, %v6256
      %v6329 = vpack.c.b16 %v6257, %v6257
      %v6330 = vpack.c.b16 %v6258, %v6258
      %v6331 = vpack.c.b16 %v6259, %v6259
      %v6332 = vpack.c.b16 %v6260, %v6260
      %v6333 = vpack.c.b16 %v6261, %v6261
      %v6334 = vpack.c.b16 %v6262, %v6262
      %v6335 = vpack.c.b16 %v6263, %v6263
      %v6336 = vpack.c.b16 %v6264, %v6264
      %v6337 = vpack.c.b16 %v6265, %v6265
      %v6338 = vpack.c.b16 %v6266, %v6266
      %v6339 = vpack.c.b16 %v6267, %v6267
      %v6340 = vpack.c.b16 %v6268, %v6268
      %v6341 = vpack.c.b16 %v6269, %v6269
      %v6342 = vpack.c.b16 %v6270, %v6270
      %v6343 = vpack.c.b16 %v6271, %v6271
      %v6344 = vpack.c.b16 %v6272, %v6272
      %v6345 = vpack.c.b16 %v6273, %v6273
      %v6346 = vpack.c.b16 %v6274, %v6274
      %v6347 = vpack.c.b16 %v6275, %v6275
      %v6348 = vpack.c.b16 %v6276, %v6276
      %v6349 = vpack.c.b16 %v6277, %v6277
      %vm6350 = vsmask.f32 256
      %vm6351 = vsmask.f32 4368
      %vm6352 = vmor %vm6350, %vm6351
      %v6354 = vshrl.u32 %v6278, 16
      %v6356 = vrot.slane %v6354, 7
      %v6357 = vshll.u32 %v6278, 16
      %v6359 = vor.u32 %v6356, %v6357
      %v6360 = vrot.slane %v6356, 4
      %v6362 = vshrl.u32 %v6279, 16
      %v6364 = vrot.slane %v6362, 7
      %v6365 = vshll.u32 %v6279, 16
      %v6367 = vor.u32 %v6364, %v6365
      %v6368 = vsel %vm6352, %v6360, %v6367
      %v6369 = vrot.slane %v6364, 4
      %v6371 = vshrl.u32 %v6280, 16
      %v6373 = vrot.slane %v6371, 7
      %v6374 = vshll.u32 %v6280, 16
      %v6376 = vor.u32 %v6373, %v6374
      %v6377 = vsel %vm6352, %v6369, %v6376
      %v6378 = vrot.slane %v6373, 4
      %v6380 = vshrl.u32 %v6281, 16
      %v6382 = vrot.slane %v6380, 7
      %v6383 = vshll.u32 %v6281, 16
      %v6385 = vor.u32 %v6382, %v6383
      %v6386 = vsel %vm6352, %v6378, %v6385
      %v6387 = vrot.slane %v6382, 4
      %v6389 = vshrl.u32 %v6282, 16
      %v6391 = vrot.slane %v6389, 7
      %v6392 = vshll.u32 %v6282, 16
      %v6394 = vor.u32 %v6391, %v6392
      %v6395 = vrot.slane %v6391, 4
      %v6397 = vshrl.u32 %v6283, 16
      %v6399 = vrot.slane %v6397, 7
      %v6400 = vshll.u32 %v6283, 16
      %v6402 = vor.u32 %v6399, %v6400
      %v6403 = vsel %vm6352, %v6395, %v6402
      %v6404 = vrot.slane %v6399, 4
      %v6406 = vshrl.u32 %v6284, 16
      %v6408 = vrot.slane %v6406, 7
      %v6409 = vshll.u32 %v6284, 16
      %v6411 = vor.u32 %v6408, %v6409
      %v6412 = vsel %vm6352, %v6404, %v6411
      %v6413 = vrot.slane %v6408, 4
      %v6415 = vshrl.u32 %v6285, 16
      %v6417 = vrot.slane %v6415, 7
      %v6418 = vshll.u32 %v6285, 16
      %v6420 = vor.u32 %v6417, %v6418
      %v6421 = vsel %vm6352, %v6413, %v6420
      %v6422 = vrot.slane %v6417, 4
      %v6424 = vshrl.u32 %v6286, 16
      %v6426 = vrot.slane %v6424, 7
      %v6427 = vshll.u32 %v6286, 16
      %v6429 = vor.u32 %v6426, %v6427
      %v6430 = vrot.slane %v6426, 4
      %v6432 = vshrl.u32 %v6287, 16
      %v6434 = vrot.slane %v6432, 7
      %v6435 = vshll.u32 %v6287, 16
      %v6437 = vor.u32 %v6434, %v6435
      %v6438 = vsel %vm6352, %v6430, %v6437
      %v6439 = vrot.slane %v6434, 4
      %v6441 = vshrl.u32 %v6288, 16
      %v6443 = vrot.slane %v6441, 7
      %v6444 = vshll.u32 %v6288, 16
      %v6446 = vor.u32 %v6443, %v6444
      %v6447 = vsel %vm6352, %v6439, %v6446
      %v6448 = vrot.slane %v6443, 4
      %v6450 = vshrl.u32 %v6289, 16
      %v6452 = vrot.slane %v6450, 7
      %v6453 = vshll.u32 %v6289, 16
      %v6455 = vor.u32 %v6452, %v6453
      %v6456 = vsel %vm6352, %v6448, %v6455
      %v6457 = vrot.slane %v6452, 4
      %v6459 = vshrl.u32 %v6290, 16
      %v6461 = vrot.slane %v6459, 7
      %v6462 = vshll.u32 %v6290, 16
      %v6464 = vor.u32 %v6461, %v6462
      %v6465 = vrot.slane %v6461, 4
      %v6467 = vshrl.u32 %v6291, 16
      %v6469 = vrot.slane %v6467, 7
      %v6470 = vshll.u32 %v6291, 16
      %v6472 = vor.u32 %v6469, %v6470
      %v6473 = vsel %vm6352, %v6465, %v6472
      %v6474 = vrot.slane %v6469, 4
      %v6476 = vshrl.u32 %v6292, 16
      %v6478 = vrot.slane %v6476, 7
      %v6479 = vshll.u32 %v6292, 16
      %v6481 = vor.u32 %v6478, %v6479
      %v6482 = vsel %vm6352, %v6474, %v6481
      %v6483 = vrot.slane %v6478, 4
      %v6485 = vshrl.u32 %v6293, 16
      %v6487 = vrot.slane %v6485, 7
      %v6488 = vshll.u32 %v6293, 16
      %v6490 = vor.u32 %v6487, %v6488
      %v6491 = vsel %vm6352, %v6483, %v6490
      %v6492 = vrot.slane %v6487, 4
      %v6494 = vshrl.u32 %v6294, 16
      %v6496 = vrot.slane %v6494, 7
      %v6497 = vshll.u32 %v6294, 16
      %v6499 = vor.u32 %v6496, %v6497
      %v6500 = vrot.slane %v6496, 4
      %v6502 = vshrl.u32 %v6295, 16
      %v6504 = vrot.slane %v6502, 7
      %v6505 = vshll.u32 %v6295, 16
      %v6507 = vor.u32 %v6504, %v6505
      %v6508 = vsel %vm6352, %v6500, %v6507
      %v6509 = vrot.slane %v6504, 4
      %v6511 = vshrl.u32 %v6296, 16
      %v6513 = vrot.slane %v6511, 7
      %v6514 = vshll.u32 %v6296, 16
      %v6516 = vor.u32 %v6513, %v6514
      %v6517 = vsel %vm6352, %v6509, %v6516
      %v6518 = vrot.slane %v6513, 4
      %v6520 = vshrl.u32 %v6297, 16
      %v6522 = vrot.slane %v6520, 7
      %v6523 = vshll.u32 %v6297, 16
      %v6525 = vor.u32 %v6522, %v6523
      %v6526 = vsel %vm6352, %v6518, %v6525
      %v6527 = vrot.slane %v6522, 4
      %v6529 = vshrl.u32 %v6298, 16
      %v6531 = vrot.slane %v6529, 7
      %v6532 = vshll.u32 %v6298, 16
      %v6534 = vor.u32 %v6531, %v6532
      %v6535 = vrot.slane %v6531, 4
      %v6537 = vshrl.u32 %v6299, 16
      %v6539 = vrot.slane %v6537, 7
      %v6540 = vshll.u32 %v6299, 16
      %v6542 = vor.u32 %v6539, %v6540
      %v6543 = vsel %vm6352, %v6535, %v6542
      %v6544 = vrot.slane %v6539, 4
      %v6546 = vshrl.u32 %v6300, 16
      %v6548 = vrot.slane %v6546, 7
      %v6549 = vshll.u32 %v6300, 16
      %v6551 = vor.u32 %v6548, %v6549
      %v6552 = vsel %vm6352, %v6544, %v6551
      %v6553 = vrot.slane %v6548, 4
      %v6555 = vshrl.u32 %v6301, 16
      %v6557 = vrot.slane %v6555, 7
      %v6558 = vshll.u32 %v6301, 16
      %v6560 = vor.u32 %v6557, %v6558
      %v6561 = vsel %vm6352, %v6553, %v6560
      %v6562 = vrot.slane %v6557, 4
      %v6564 = vshrl.u32 %v6302, 16
      %v6566 = vrot.slane %v6564, 7
      %v6567 = vshll.u32 %v6302, 16
      %v6569 = vor.u32 %v6566, %v6567
      %v6570 = vrot.slane %v6566, 4
      %v6572 = vshrl.u32 %v6303, 16
      %v6574 = vrot.slane %v6572, 7
      %v6575 = vshll.u32 %v6303, 16
      %v6577 = vor.u32 %v6574, %v6575
      %v6578 = vsel %vm6352, %v6570, %v6577
      %v6579 = vrot.slane %v6574, 4
      %v6581 = vshrl.u32 %v6304, 16
      %v6583 = vrot.slane %v6581, 7
      %v6584 = vshll.u32 %v6304, 16
      %v6586 = vor.u32 %v6583, %v6584
      %v6587 = vsel %vm6352, %v6579, %v6586
      %v6588 = vrot.slane %v6583, 4
      %v6590 = vshrl.u32 %v6305, 16
      %v6592 = vrot.slane %v6590, 7
      %v6593 = vshll.u32 %v6305, 16
      %v6595 = vor.u32 %v6592, %v6593
      %v6596 = vsel %vm6352, %v6588, %v6595
      %v6597 = vrot.slane %v6592, 4
      %v6599 = vshrl.u32 %v6306, 16
      %v6601 = vrot.slane %v6599, 7
      %v6602 = vshll.u32 %v6306, 16
      %v6604 = vor.u32 %v6601, %v6602
      %v6605 = vrot.slane %v6601, 4
      %v6607 = vshrl.u32 %v6307, 16
      %v6609 = vrot.slane %v6607, 7
      %v6610 = vshll.u32 %v6307, 16
      %v6612 = vor.u32 %v6609, %v6610
      %v6613 = vsel %vm6352, %v6605, %v6612
      %v6614 = vrot.slane %v6609, 4
      %v6616 = vshrl.u32 %v6308, 16
      %v6618 = vrot.slane %v6616, 7
      %v6619 = vshll.u32 %v6308, 16
      %v6621 = vor.u32 %v6618, %v6619
      %v6622 = vsel %vm6352, %v6614, %v6621
      %v6623 = vrot.slane %v6618, 4
      %v6625 = vshrl.u32 %v6309, 16
      %v6627 = vrot.slane %v6625, 7
      %v6628 = vshll.u32 %v6309, 16
      %v6630 = vor.u32 %v6627, %v6628
      %v6631 = vsel %vm6352, %v6623, %v6630
      %v6632 = vrot.slane %v6627, 4
      %v6634 = vshrl.u32 %v6310, 16
      %v6636 = vrot.slane %v6634, 7
      %v6637 = vshll.u32 %v6310, 16
      %v6639 = vor.u32 %v6636, %v6637
      %v6640 = vrot.slane %v6636, 4
      %v6642 = vshrl.u32 %v6311, 16
      %v6644 = vrot.slane %v6642, 7
      %v6645 = vshll.u32 %v6311, 16
      %v6647 = vor.u32 %v6644, %v6645
      %v6648 = vsel %vm6352, %v6640, %v6647
      %v6649 = vrot.slane %v6644, 4
      %v6651 = vshrl.u32 %v6312, 16
      %v6653 = vrot.slane %v6651, 7
      %v6654 = vshll.u32 %v6312, 16
      %v6656 = vor.u32 %v6653, %v6654
      %v6657 = vsel %vm6352, %v6649, %v6656
      %v6658 = vrot.slane %v6653, 4
      %v6660 = vshrl.u32 %v6313, 16
      %v6662 = vrot.slane %v6660, 7
      %v6663 = vshll.u32 %v6313, 16
      %v6665 = vor.u32 %v6662, %v6663
      %v6666 = vsel %vm6352, %v6658, %v6665
      %v6667 = vrot.slane %v6662, 4
      %v6669 = vshrl.u32 %v6314, 16
      %v6671 = vrot.slane %v6669, 7
      %v6672 = vshll.u32 %v6314, 16
      %v6674 = vor.u32 %v6671, %v6672
      %v6675 = vrot.slane %v6671, 4
      %v6677 = vshrl.u32 %v6315, 16
      %v6679 = vrot.slane %v6677, 7
      %v6680 = vshll.u32 %v6315, 16
      %v6682 = vor.u32 %v6679, %v6680
      %v6683 = vsel %vm6352, %v6675, %v6682
      %v6684 = vrot.slane %v6679, 4
      %v6686 = vshrl.u32 %v6316, 16
      %v6688 = vrot.slane %v6686, 7
      %v6689 = vshll.u32 %v6316, 16
      %v6691 = vor.u32 %v6688, %v6689
      %v6692 = vsel %vm6352, %v6684, %v6691
      %v6693 = vrot.slane %v6688, 4
      %v6695 = vshrl.u32 %v6317, 16
      %v6697 = vrot.slane %v6695, 7
      %v6698 = vshll.u32 %v6317, 16
      %v6700 = vor.u32 %v6697, %v6698
      %v6701 = vsel %vm6352, %v6693, %v6700
      %v6702 = vrot.slane %v6697, 4
      %v6704 = vshrl.u32 %v6318, 16
      %v6706 = vrot.slane %v6704, 7
      %v6707 = vshll.u32 %v6318, 16
      %v6709 = vor.u32 %v6706, %v6707
      %v6710 = vrot.slane %v6706, 4
      %v6712 = vshrl.u32 %v6319, 16
      %v6714 = vrot.slane %v6712, 7
      %v6715 = vshll.u32 %v6319, 16
      %v6717 = vor.u32 %v6714, %v6715
      %v6718 = vsel %vm6352, %v6710, %v6717
      %v6719 = vrot.slane %v6714, 4
      %v6721 = vshrl.u32 %v6320, 16
      %v6723 = vrot.slane %v6721, 7
      %v6724 = vshll.u32 %v6320, 16
      %v6726 = vor.u32 %v6723, %v6724
      %v6727 = vsel %vm6352, %v6719, %v6726
      %v6728 = vrot.slane %v6723, 4
      %v6730 = vshrl.u32 %v6321, 16
      %v6732 = vrot.slane %v6730, 7
      %v6733 = vshll.u32 %v6321, 16
      %v6735 = vor.u32 %v6732, %v6733
      %v6736 = vsel %vm6352, %v6728, %v6735
      %v6737 = vrot.slane %v6732, 4
      %v6739 = vshrl.u32 %v6322, 16
      %v6741 = vrot.slane %v6739, 7
      %v6742 = vshll.u32 %v6322, 16
      %v6744 = vor.u32 %v6741, %v6742
      %v6745 = vrot.slane %v6741, 4
      %v6747 = vshrl.u32 %v6323, 16
      %v6749 = vrot.slane %v6747, 7
      %v6750 = vshll.u32 %v6323, 16
      %v6752 = vor.u32 %v6749, %v6750
      %v6753 = vsel %vm6352, %v6745, %v6752
      %v6754 = vrot.slane %v6749, 4
      %v6756 = vshrl.u32 %v6324, 16
      %v6758 = vrot.slane %v6756, 7
      %v6759 = vshll.u32 %v6324, 16
      %v6761 = vor.u32 %v6758, %v6759
      %v6762 = vsel %vm6352, %v6754, %v6761
      %v6763 = vrot.slane %v6758, 4
      %v6765 = vshrl.u32 %v6325, 16
      %v6767 = vrot.slane %v6765, 7
      %v6768 = vshll.u32 %v6325, 16
      %v6770 = vor.u32 %v6767, %v6768
      %v6771 = vsel %vm6352, %v6763, %v6770
      %v6772 = vrot.slane %v6767, 4
      %v6774 = vshrl.u32 %v6326, 16
      %v6776 = vrot.slane %v6774, 7
      %v6777 = vshll.u32 %v6326, 16
      %v6779 = vor.u32 %v6776, %v6777
      %v6780 = vrot.slane %v6776, 4
      %v6782 = vshrl.u32 %v6327, 16
      %v6784 = vrot.slane %v6782, 7
      %v6785 = vshll.u32 %v6327, 16
      %v6787 = vor.u32 %v6784, %v6785
      %v6788 = vsel %vm6352, %v6780, %v6787
      %v6789 = vrot.slane %v6784, 4
      %v6791 = vshrl.u32 %v6328, 16
      %v6793 = vrot.slane %v6791, 7
      %v6794 = vshll.u32 %v6328, 16
      %v6796 = vor.u32 %v6793, %v6794
      %v6797 = vsel %vm6352, %v6789, %v6796
      %v6798 = vrot.slane %v6793, 4
      %v6800 = vshrl.u32 %v6329, 16
      %v6802 = vrot.slane %v6800, 7
      %v6803 = vshll.u32 %v6329, 16
      %v6805 = vor.u32 %v6802, %v6803
      %v6806 = vsel %vm6352, %v6798, %v6805
      %v6807 = vrot.slane %v6802, 4
      %v6809 = vshrl.u32 %v6330, 16
      %v6811 = vrot.slane %v6809, 7
      %v6812 = vshll.u32 %v6330, 16
      %v6814 = vor.u32 %v6811, %v6812
      %v6815 = vrot.slane %v6811, 4
      %v6817 = vshrl.u32 %v6331, 16
      %v6819 = vrot.slane %v6817, 7
      %v6820 = vshll.u32 %v6331, 16
      %v6822 = vor.u32 %v6819, %v6820
      %v6823 = vsel %vm6352, %v6815, %v6822
      %v6824 = vrot.slane %v6819, 4
      %v6826 = vshrl.u32 %v6332, 16
      %v6828 = vrot.slane %v6826, 7
      %v6829 = vshll.u32 %v6332, 16
      %v6831 = vor.u32 %v6828, %v6829
      %v6832 = vsel %vm6352, %v6824, %v6831
      %v6833 = vrot.slane %v6828, 4
      %v6835 = vshrl.u32 %v6333, 16
      %v6837 = vrot.slane %v6835, 7
      %v6838 = vshll.u32 %v6333, 16
      %v6840 = vor.u32 %v6837, %v6838
      %v6841 = vsel %vm6352, %v6833, %v6840
      %v6842 = vrot.slane %v6837, 4
      %v6844 = vshrl.u32 %v6334, 16
      %v6846 = vrot.slane %v6844, 7
      %v6847 = vshll.u32 %v6334, 16
      %v6849 = vor.u32 %v6846, %v6847
      %v6850 = vrot.slane %v6846, 4
      %v6852 = vshrl.u32 %v6335, 16
      %v6854 = vrot.slane %v6852, 7
      %v6855 = vshll.u32 %v6335, 16
      %v6857 = vor.u32 %v6854, %v6855
      %v6858 = vsel %vm6352, %v6850, %v6857
      %v6859 = vrot.slane %v6854, 4
      %v6861 = vshrl.u32 %v6336, 16
      %v6863 = vrot.slane %v6861, 7
      %v6864 = vshll.u32 %v6336, 16
      %v6866 = vor.u32 %v6863, %v6864
      %v6867 = vsel %vm6352, %v6859, %v6866
      %v6868 = vrot.slane %v6863, 4
      %v6870 = vshrl.u32 %v6337, 16
      %v6872 = vrot.slane %v6870, 7
      %v6873 = vshll.u32 %v6337, 16
      %v6875 = vor.u32 %v6872, %v6873
      %v6876 = vsel %vm6352, %v6868, %v6875
      %v6877 = vrot.slane %v6872, 4
      %v6879 = vshrl.u32 %v6338, 16
      %v6881 = vrot.slane %v6879, 7
      %v6882 = vshll.u32 %v6338, 16
      %v6884 = vor.u32 %v6881, %v6882
      %v6885 = vrot.slane %v6881, 4
      %v6887 = vshrl.u32 %v6339, 16
      %v6889 = vrot.slane %v6887, 7
      %v6890 = vshll.u32 %v6339, 16
      %v6892 = vor.u32 %v6889, %v6890
      %v6893 = vsel %vm6352, %v6885, %v6892
      %v6894 = vrot.slane %v6889, 4
      %v6896 = vshrl.u32 %v6340, 16
      %v6898 = vrot.slane %v6896, 7
      %v6899 = vshll.u32 %v6340, 16
      %v6901 = vor.u32 %v6898, %v6899
      %v6902 = vsel %vm6352, %v6894, %v6901
      %v6903 = vrot.slane %v6898, 4
      %v6905 = vshrl.u32 %v6341, 16
      %v6907 = vrot.slane %v6905, 7
      %v6908 = vshll.u32 %v6341, 16
      %v6910 = vor.u32 %v6907, %v6908
      %v6911 = vsel %vm6352, %v6903, %v6910
      %v6912 = vrot.slane %v6907, 4
      %v6914 = vshrl.u32 %v6342, 16
      %v6916 = vrot.slane %v6914, 7
      %v6917 = vshll.u32 %v6342, 16
      %v6919 = vor.u32 %v6916, %v6917
      %v6920 = vrot.slane %v6916, 4
      %v6922 = vshrl.u32 %v6343, 16
      %v6924 = vrot.slane %v6922, 7
      %v6925 = vshll.u32 %v6343, 16
      %v6927 = vor.u32 %v6924, %v6925
      %v6928 = vsel %vm6352, %v6920, %v6927
      %v6929 = vrot.slane %v6924, 4
      %v6931 = vshrl.u32 %v6344, 16
      %v6933 = vrot.slane %v6931, 7
      %v6934 = vshll.u32 %v6344, 16
      %v6936 = vor.u32 %v6933, %v6934
      %v6937 = vsel %vm6352, %v6929, %v6936
      %v6938 = vrot.slane %v6933, 4
      %v6940 = vshrl.u32 %v6345, 16
      %v6942 = vrot.slane %v6940, 7
      %v6943 = vshll.u32 %v6345, 16
      %v6945 = vor.u32 %v6942, %v6943
      %v6946 = vsel %vm6352, %v6938, %v6945
      %v6947 = vrot.slane %v6942, 4
      %v6949 = vshrl.u32 %v6346, 16
      %v6951 = vrot.slane %v6949, 7
      %v6952 = vshll.u32 %v6346, 16
      %v6954 = vor.u32 %v6951, %v6952
      %v6955 = vrot.slane %v6951, 4
      %v6957 = vshrl.u32 %v6347, 16
      %v6959 = vrot.slane %v6957, 7
      %v6960 = vshll.u32 %v6347, 16
      %v6962 = vor.u32 %v6959, %v6960
      %v6963 = vsel %vm6352, %v6955, %v6962
      %v6964 = vrot.slane %v6959, 4
      %v6966 = vshrl.u32 %v6348, 16
      %v6968 = vrot.slane %v6966, 7
      %v6969 = vshll.u32 %v6348, 16
      %v6971 = vor.u32 %v6968, %v6969
      %v6972 = vsel %vm6352, %v6964, %v6971
      %v6973 = vrot.slane %v6968, 4
      %v6975 = vshrl.u32 %v6349, 16
      %v6977 = vrot.slane %v6975, 7
      %v6978 = vshll.u32 %v6349, 16
      %v6980 = vor.u32 %v6977, %v6978
      %v6981 = vsel %vm6352, %v6973, %v6980
      %v6982 = vrot.slane %v6977, 4
      %vm7073 = vcmask 1043456
      %vm7074 = vsmask.f32 7938
      %vm7075 = vmand %vm7073, %vm7074
      %v7076 = vld [vmem:[#allocation2] sm:$0xf]
      %v7077 = vsel %vm7075, %v6359, %v7076
      %7078 = vst [vmem:[#allocation2] sm:$0xf] %v7077
      %7079 = vst [vmem:[#allocation2 + $0x4] sm:$0xf] %v6368
      %7080 = vst [vmem:[#allocation2 + $0x8] sm:$0xf] %v6377
      %7081 = vst [vmem:[#allocation2 + $0xc] sm:$0xf] %v6386
      %vm7082 = vcmask 1040384
      %vm7083 = vmand %vm7082, %vm6350
      %v7084 = vld [vmem:[#allocation2 + $0x10] sm:$0x1]
      %v7085 = vsel %vm7083, %v6387, %v7084
      %7086 = vst [vmem:[#allocation2 + $0x10] sm:$0x1] %v7085
      %v7087 = vld [vmem:[#allocation2 + $0x14] sm:$0xf]
      %v7088 = vsel %vm7075, %v6394, %v7087
      %7089 = vst [vmem:[#allocation2 + $0x14] sm:$0xf] %v7088
      %7090 = vst [vmem:[#allocation2 + $0x18] sm:$0xf] %v6403
      %7091 = vst [vmem:[#allocation2 + $0x1c] sm:$0xf] %v6412
      %7092 = vst [vmem:[#allocation2 + $0x20] sm:$0xf] %v6421
      %v7093 = vld [vmem:[#allocation2 + $0x24] sm:$0x1]
      %v7094 = vsel %vm7083, %v6422, %v7093
      %7095 = vst [vmem:[#allocation2 + $0x24] sm:$0x1] %v7094
      %v7096 = vld [vmem:[#allocation2 + $0x28] sm:$0xf]
      %v7097 = vsel %vm7075, %v6429, %v7096
      %7098 = vst [vmem:[#allocation2 + $0x28] sm:$0xf] %v7097
      %7099 = vst [vmem:[#allocation2 + $0x2c] sm:$0xf] %v6438
      %7100 = vst [vmem:[#allocation2 + $0x30] sm:$0xf] %v6447
      %7101 = vst [vmem:[#allocation2 + $0x34] sm:$0xf] %v6456
      %v7102 = vld [vmem:[#allocation2 + $0x38] sm:$0x1]
      %v7103 = vsel %vm7083, %v6457, %v7102
      %7104 = vst [vmem:[#allocation2 + $0x38] sm:$0x1] %v7103
      %v7105 = vld [vmem:[#allocation2 + $0x3c] sm:$0xf]
      %v7106 = vsel %vm7075, %v6464, %v7105
      %7107 = vst [vmem:[#allocation2 + $0x3c] sm:$0xf] %v7106
      %7108 = vst [vmem:[#allocation2 + $0x40] sm:$0xf] %v6473
      %7109 = vst [vmem:[#allocation2 + $0x44] sm:$0xf] %v6482
      %7110 = vst [vmem:[#allocation2 + $0x48] sm:$0xf] %v6491
      %v7111 = vld [vmem:[#allocation2 + $0x4c] sm:$0x1]
      %v7112 = vsel %vm7083, %v6492, %v7111
      %7113 = vst [vmem:[#allocation2 + $0x4c] sm:$0x1] %v7112
      %v7114 = vld [vmem:[#allocation2 + $0x50] sm:$0xf]
      %v7115 = vsel %vm7075, %v6499, %v7114
      %7116 = vst [vmem:[#allocation2 + $0x50] sm:$0xf] %v7115
      %7117 = vst [vmem:[#allocation2 + $0x54] sm:$0xf] %v6508
      %7118 = vst [vmem:[#allocation2 + $0x58] sm:$0xf] %v6517
      %7119 = vst [vmem:[#allocation2 + $0x5c] sm:$0xf] %v6526
      %v7120 = vld [vmem:[#allocation2 + $0x60] sm:$0x1]
      %v7121 = vsel %vm7083, %v6527, %v7120
      %7122 = vst [vmem:[#allocation2 + $0x60] sm:$0x1] %v7121
      %v7123 = vld [vmem:[#allocation2 + $0x64] sm:$0xf]
      %v7124 = vsel %vm7075, %v6534, %v7123
      %7125 = vst [vmem:[#allocation2 + $0x64] sm:$0xf] %v7124
      %7126 = vst [vmem:[#allocation2 + $0x68] sm:$0xf] %v6543
      %7127 = vst [vmem:[#allocation2 + $0x6c] sm:$0xf] %v6552
      %7128 = vst [vmem:[#allocation2 + $0x70] sm:$0xf] %v6561
      %v7129 = vld [vmem:[#allocation2 + $0x74] sm:$0x1]
      %v7130 = vsel %vm7083, %v6562, %v7129
      %7131 = vst [vmem:[#allocation2 + $0x74] sm:$0x1] %v7130
      %v7132 = vld [vmem:[#allocation2 + $0x78] sm:$0xf]
      %v7133 = vsel %vm7075, %v6569, %v7132
      %7134 = vst [vmem:[#allocation2 + $0x78] sm:$0xf] %v7133
      %7135 = vst [vmem:[#allocation2 + $0x7c] sm:$0xf] %v6578
      %7136 = vst [vmem:[#allocation2 + $0x80] sm:$0xf] %v6587
      %7137 = vst [vmem:[#allocation2 + $0x84] sm:$0xf] %v6596
      %v7138 = vld [vmem:[#allocation2 + $0x88] sm:$0x1]
      %v7139 = vsel %vm7083, %v6597, %v7138
      %7140 = vst [vmem:[#allocation2 + $0x88] sm:$0x1] %v7139
      %v7141 = vld [vmem:[#allocation2 + $0x8c] sm:$0xf]
      %v7142 = vsel %vm7075, %v6604, %v7141
      %7143 = vst [vmem:[#allocation2 + $0x8c] sm:$0xf] %v7142
      %7144 = vst [vmem:[#allocation2 + $0x90] sm:$0xf] %v6613
      %7145 = vst [vmem:[#allocation2 + $0x94] sm:$0xf] %v6622
      %7146 = vst [vmem:[#allocation2 + $0x98] sm:$0xf] %v6631
      %v7147 = vld [vmem:[#allocation2 + $0x9c] sm:$0x1]
      %v7148 = vsel %vm7083, %v6632, %v7147
      %7149 = vst [vmem:[#allocation2 + $0x9c] sm:$0x1] %v7148
      %v7150 = vld [vmem:[#allocation2 + $0xa0] sm:$0xf]
      %v7151 = vsel %vm7075, %v6639, %v7150
      %7152 = vst [vmem:[#allocation2 + $0xa0] sm:$0xf] %v7151
      %7153 = vst [vmem:[#allocation2 + $0xa4] sm:$0xf] %v6648
      %7154 = vst [vmem:[#allocation2 + $0xa8] sm:$0xf] %v6657
      %7155 = vst [vmem:[#allocation2 + $0xac] sm:$0xf] %v6666
      %v7156 = vld [vmem:[#allocation2 + $0xb0] sm:$0x1]
      %v7157 = vsel %vm7083, %v6667, %v7156
      %7158 = vst [vmem:[#allocation2 + $0xb0] sm:$0x1] %v7157
      %v7159 = vld [vmem:[#allocation2 + $0xb4] sm:$0xf]
      %v7160 = vsel %vm7075, %v6674, %v7159
      %7161 = vst [vmem:[#allocation2 + $0xb4] sm:$0xf] %v7160
      %7162 = vst [vmem:[#allocation2 + $0xb8] sm:$0xf] %v6683
      %7163 = vst [vmem:[#allocation2 + $0xbc] sm:$0xf] %v6692
      %7164 = vst [vmem:[#allocation2 + $0xc0] sm:$0xf] %v6701
      %v7165 = vld [vmem:[#allocation2 + $0xc4] sm:$0x1]
      %v7166 = vsel %vm7083, %v6702, %v7165
      %7167 = vst [vmem:[#allocation2 + $0xc4] sm:$0x1] %v7166
      %v7168 = vld [vmem:[#allocation2 + $0xc8] sm:$0xf]
      %v7169 = vsel %vm7075, %v6709, %v7168
      %7170 = vst [vmem:[#allocation2 + $0xc8] sm:$0xf] %v7169
      %7171 = vst [vmem:[#allocation2 + $0xcc] sm:$0xf] %v6718
      %7172 = vst [vmem:[#allocation2 + $0xd0] sm:$0xf] %v6727
      %7173 = vst [vmem:[#allocation2 + $0xd4] sm:$0xf] %v6736
      %v7174 = vld [vmem:[#allocation2 + $0xd8] sm:$0x1]
      %v7175 = vsel %vm7083, %v6737, %v7174
      %7176 = vst [vmem:[#allocation2 + $0xd8] sm:$0x1] %v7175
      %v7177 = vld [vmem:[#allocation2 + $0xdc] sm:$0xf]
      %v7178 = vsel %vm7075, %v6744, %v7177
      %7179 = vst [vmem:[#allocation2 + $0xdc] sm:$0xf] %v7178
      %7180 = vst [vmem:[#allocation2 + $0xe0] sm:$0xf] %v6753
      %7181 = vst [vmem:[#allocation2 + $0xe4] sm:$0xf] %v6762
      %7182 = vst [vmem:[#allocation2 + $0xe8] sm:$0xf] %v6771
      %v7183 = vld [vmem:[#allocation2 + $0xec] sm:$0x1]
      %v7184 = vsel %vm7083, %v6772, %v7183
      %7185 = vst [vmem:[#allocation2 + $0xec] sm:$0x1] %v7184
      %v7186 = vld [vmem:[#allocation2 + $0xf0] sm:$0xf]
      %v7187 = vsel %vm7075, %v6779, %v7186
      %7188 = vst [vmem:[#allocation2 + $0xf0] sm:$0xf] %v7187
      %7189 = vst [vmem:[#allocation2 + $0xf4] sm:$0xf] %v6788
      %7190 = vst [vmem:[#allocation2 + $0xf8] sm:$0xf] %v6797
      %7191 = vst [vmem:[#allocation2 + $0xfc] sm:$0xf] %v6806
      %v7192 = vld [vmem:[#allocation2 + $0x100] sm:$0x1]
      %v7193 = vsel %vm7083, %v6807, %v7192
      %7194 = vst [vmem:[#allocation2 + $0x100] sm:$0x1] %v7193
      %v7195 = vld [vmem:[#allocation2 + $0x104] sm:$0xf]
      %v7196 = vsel %vm7075, %v6814, %v7195
      %7197 = vst [vmem:[#allocation2 + $0x104] sm:$0xf] %v7196
      %7198 = vst [vmem:[#allocation2 + $0x108] sm:$0xf] %v6823
      %7199 = vst [vmem:[#allocation2 + $0x10c] sm:$0xf] %v6832
      %7200 = vst [vmem:[#allocation2 + $0x110] sm:$0xf] %v6841
      %v7201 = vld [vmem:[#allocation2 + $0x114] sm:$0x1]
      %v7202 = vsel %vm7083, %v6842, %v7201
      %7203 = vst [vmem:[#allocation2 + $0x114] sm:$0x1] %v7202
      %v7204 = vld [vmem:[#allocation2 + $0x118] sm:$0xf]
      %v7205 = vsel %vm7075, %v6849, %v7204
      %7206 = vst [vmem:[#allocation2 + $0x118] sm:$0xf] %v7205
      %7207 = vst [vmem:[#allocation2 + $0x11c] sm:$0xf] %v6858
      %7208 = vst [vmem:[#allocation2 + $0x120] sm:$0xf] %v6867
      %7209 = vst [vmem:[#allocation2 + $0x124] sm:$0xf] %v6876
      %v7210 = vld [vmem:[#allocation2 + $0x128] sm:$0x1]
      %v7211 = vsel %vm7083, %v6877, %v7210
      %7212 = vst [vmem:[#allocation2 + $0x128] sm:$0x1] %v7211
      %v7213 = vld [vmem:[#allocation2 + $0x12c] sm:$0xf]
      %v7214 = vsel %vm7075, %v6884, %v7213
      %7215 = vst [vmem:[#allocation2 + $0x12c] sm:$0xf] %v7214
      %7216 = vst [vmem:[#allocation2 + $0x130] sm:$0xf] %v6893
      %7217 = vst [vmem:[#allocation2 + $0x134] sm:$0xf] %v6902
      %7218 = vst [vmem:[#allocation2 + $0x138] sm:$0xf] %v6911
      %v7219 = vld [vmem:[#allocation2 + $0x13c] sm:$0x1]
      %v7220 = vsel %vm7083, %v6912, %v7219
      %7221 = vst [vmem:[#allocation2 + $0x13c] sm:$0x1] %v7220
      %v7222 = vld [vmem:[#allocation2 + $0x140] sm:$0xf]
      %v7223 = vsel %vm7075, %v6919, %v7222
      %7224 = vst [vmem:[#allocation2 + $0x140] sm:$0xf] %v7223
      %7225 = vst [vmem:[#allocation2 + $0x144] sm:$0xf] %v6928
      %7226 = vst [vmem:[#allocation2 + $0x148] sm:$0xf] %v6937
      %7227 = vst [vmem:[#allocation2 + $0x14c] sm:$0xf] %v6946
      %v7228 = vld [vmem:[#allocation2 + $0x150] sm:$0x1]
      %v7229 = vsel %vm7083, %v6947, %v7228
      %7230 = vst [vmem:[#allocation2 + $0x150] sm:$0x1] %v7229
      %v7231 = vld [vmem:[#allocation2 + $0x154] sm:$0xf]
      %v7232 = vsel %vm7075, %v6954, %v7231
      %7233 = vst [vmem:[#allocation2 + $0x154] sm:$0xf] %v7232
      %7234 = vst [vmem:[#allocation2 + $0x158] sm:$0xf] %v6963
      %7235 = vst [vmem:[#allocation2 + $0x15c] sm:$0xf] %v6972
      %7236 = vst [vmem:[#allocation2 + $0x160] sm:$0xf] %v6981
      %v7237 = vld [vmem:[#allocation2 + $0x164] sm:$0x1]
      %v7238 = vsel %vm7083, %v6982, %v7237
      %7239 = vst [vmem:[#allocation2 + $0x164] sm:$0x1] %v7238
      %p7240 = scmp.eq.s32.totalorder %s23, 0
      // Predicated region
      $region49: #{up_forward.1} parent=47 // pred_check
        %p7241 = pneg %p7240
      $region50: #{up_forward.1} parent=47 // pred_check_branch
        %7243 = sbr.rel (%p7241) target = $region52
      $region51: #{up_forward.1} parent=47 // pred_region
        %7244 = vst [vmem:[#allocation2] sm:$0xf] 0
        %7245 = vst [vmem:[#allocation2 + $0x4] sm:$0xf] 0
        %7246 = vst [vmem:[#allocation2 + $0x8] sm:$0xf] 0
        %7247 = vst [vmem:[#allocation2 + $0xc] sm:$0xf] 0
        %7248 = vst [vmem:[#allocation2 + $0x10] sm:$0x1] 0
      $region52: #{up_forward.1} parent=47 // pred_fallthru
        _
      %p7249 = scmp.eq.s32.totalorder %s23, 1
      // Predicated region
      $region53: #{up_forward.1} parent=47 // pred_check
        %p7250 = pneg %p7249
      $region54: #{up_forward.1} parent=47 // pred_check_branch
        %7252 = sbr.rel (%p7250) target = $region56
      $region55: #{up_forward.1} parent=47 // pred_region
        %s7253 = scalar_lea.vmem [#allocation2], 340
        %7254 = vst [vmem:[%s7253] sm:$0xf] 0
        %7255 = vst [vmem:[%s7253 + $0x4] sm:$0xf] 0
        %7256 = vst [vmem:[%s7253 + $0x8] sm:$0xf] 0
        %7257 = vst [vmem:[%s7253 + $0xc] sm:$0xf] 0
        %7258 = vst [vmem:[%s7253 + $0x10] sm:$0x1] 0
      $region56: #{up_forward.1} parent=47 // pred_fallthru
        _
      %v7259 = vld [vmem:[#allocation2] sm:$0xf]
      %v7260 = vld [vmem:[#allocation2 + $0x4] sm:$0xf]
      %v7261 = vld [vmem:[#allocation2 + $0x8] sm:$0xf]
      %v7262 = vld [vmem:[#allocation2 + $0xc] sm:$0xf]
      %v7263 = vld [vmem:[#allocation2 + $0x10] sm:$0x1]
      %v7264 = vld [vmem:[#allocation2 + $0x14] sm:$0xf]
      %v7265 = vld [vmem:[#allocation2 + $0x18] sm:$0xf]
      %v7266 = vld [vmem:[#allocation2 + $0x1c] sm:$0xf]
      %v7267 = vld [vmem:[#allocation2 + $0x20] sm:$0xf]
      %v7268 = vld [vmem:[#allocation2 + $0x24] sm:$0x1]
      %v7269 = vld [vmem:[#allocation2 + $0x28] sm:$0xf]
      %v7270 = vld [vmem:[#allocation2 + $0x2c] sm:$0xf]
      %v7271 = vld [vmem:[#allocation2 + $0x30] sm:$0xf]
      %v7272 = vld [vmem:[#allocation2 + $0x34] sm:$0xf]
      %v7273 = vld [vmem:[#allocation2 + $0x38] sm:$0x1]
      %v7274 = vld [vmem:[#allocation2 + $0x3c] sm:$0xf]
      %v7275 = vld [vmem:[#allocation2 + $0x40] sm:$0xf]
      %v7276 = vld [vmem:[#allocation2 + $0x44] sm:$0xf]
      %v7277 = vld [vmem:[#allocation2 + $0x48] sm:$0xf]
      %v7278 = vld [vmem:[#allocation2 + $0x4c] sm:$0x1]
      %v7279 = vld [vmem:[#allocation2 + $0x50] sm:$0xf]
      %v7280 = vld [vmem:[#allocation2 + $0x54] sm:$0xf]
      %v7281 = vld [vmem:[#allocation2 + $0x58] sm:$0xf]
      %v7282 = vld [vmem:[#allocation2 + $0x5c] sm:$0xf]
      %v7283 = vld [vmem:[#allocation2 + $0x60] sm:$0x1]
      %v7284 = vld [vmem:[#allocation2 + $0x64] sm:$0xf]
      %v7285 = vld [vmem:[#allocation2 + $0x68] sm:$0xf]
      %v7286 = vld [vmem:[#allocation2 + $0x6c] sm:$0xf]
      %v7287 = vld [vmem:[#allocation2 + $0x70] sm:$0xf]
      %v7288 = vld [vmem:[#allocation2 + $0x74] sm:$0x1]
      %v7289 = vld [vmem:[#allocation2 + $0x78] sm:$0xf]
      %v7290 = vld [vmem:[#allocation2 + $0x7c] sm:$0xf]
      %v7291 = vld [vmem:[#allocation2 + $0x80] sm:$0xf]
      %v7292 = vld [vmem:[#allocation2 + $0x84] sm:$0xf]
      %v7293 = vld [vmem:[#allocation2 + $0x88] sm:$0x1]
      %v7294 = vld [vmem:[#allocation2 + $0x8c] sm:$0xf]
      %v7295 = vld [vmem:[#allocation2 + $0x90] sm:$0xf]
      %v7296 = vld [vmem:[#allocation2 + $0x94] sm:$0xf]
      %v7297 = vld [vmem:[#allocation2 + $0x98] sm:$0xf]
      %v7298 = vld [vmem:[#allocation2 + $0x9c] sm:$0x1]
      %v7299 = vld [vmem:[#allocation2 + $0xa0] sm:$0xf]
      %v7300 = vld [vmem:[#allocation2 + $0xa4] sm:$0xf]
      %v7301 = vld [vmem:[#allocation2 + $0xa8] sm:$0xf]
      %v7302 = vld [vmem:[#allocation2 + $0xac] sm:$0xf]
      %v7303 = vld [vmem:[#allocation2 + $0xb0] sm:$0x1]
      %v7304 = vld [vmem:[#allocation2 + $0xb4] sm:$0xf]
      %v7305 = vld [vmem:[#allocation2 + $0xb8] sm:$0xf]
      %v7306 = vld [vmem:[#allocation2 + $0xbc] sm:$0xf]
      %v7307 = vld [vmem:[#allocation2 + $0xc0] sm:$0xf]
      %v7308 = vld [vmem:[#allocation2 + $0xc4] sm:$0x1]
      %v7309 = vld [vmem:[#allocation2 + $0xc8] sm:$0xf]
      %v7310 = vld [vmem:[#allocation2 + $0xcc] sm:$0xf]
      %v7311 = vld [vmem:[#allocation2 + $0xd0] sm:$0xf]
      %v7312 = vld [vmem:[#allocation2 + $0xd4] sm:$0xf]
      %v7313 = vld [vmem:[#allocation2 + $0xd8] sm:$0x1]
      %v7314 = vld [vmem:[#allocation2 + $0xdc] sm:$0xf]
      %v7315 = vld [vmem:[#allocation2 + $0xe0] sm:$0xf]
      %v7316 = vld [vmem:[#allocation2 + $0xe4] sm:$0xf]
      %v7317 = vld [vmem:[#allocation2 + $0xe8] sm:$0xf]
      %v7318 = vld [vmem:[#allocation2 + $0xec] sm:$0x1]
      %v7319 = vld [vmem:[#allocation2 + $0xf0] sm:$0xf]
      %v7320 = vld [vmem:[#allocation2 + $0xf4] sm:$0xf]
      %v7321 = vld [vmem:[#allocation2 + $0xf8] sm:$0xf]
      %v7322 = vld [vmem:[#allocation2 + $0xfc] sm:$0xf]
      %v7323 = vld [vmem:[#allocation2 + $0x100] sm:$0x1]
      %v7324 = vld [vmem:[#allocation2 + $0x104] sm:$0xf]
      %v7325 = vld [vmem:[#allocation2 + $0x108] sm:$0xf]
      %v7326 = vld [vmem:[#allocation2 + $0x10c] sm:$0xf]
      %v7327 = vld [vmem:[#allocation2 + $0x110] sm:$0xf]
      %v7328 = vld [vmem:[#allocation2 + $0x114] sm:$0x1]
      %v7329 = vld [vmem:[#allocation2 + $0x118] sm:$0xf]
      %v7330 = vld [vmem:[#allocation2 + $0x11c] sm:$0xf]
      %v7331 = vld [vmem:[#allocation2 + $0x120] sm:$0xf]
      %v7332 = vld [vmem:[#allocation2 + $0x124] sm:$0xf]
      %v7333 = vld [vmem:[#allocation2 + $0x128] sm:$0x1]
      %v7334 = vld [vmem:[#allocation2 + $0x12c] sm:$0xf]
      %v7335 = vld [vmem:[#allocation2 + $0x130] sm:$0xf]
      %v7336 = vld [vmem:[#allocation2 + $0x134] sm:$0xf]
      %v7337 = vld [vmem:[#allocation2 + $0x138] sm:$0xf]
      %v7338 = vld [vmem:[#allocation2 + $0x13c] sm:$0x1]
      %v7339 = vld [vmem:[#allocation2 + $0x140] sm:$0xf]
      %v7340 = vld [vmem:[#allocation2 + $0x144] sm:$0xf]
      %v7341 = vld [vmem:[#allocation2 + $0x148] sm:$0xf]
      %v7342 = vld [vmem:[#allocation2 + $0x14c] sm:$0xf]
      %v7343 = vld [vmem:[#allocation2 + $0x150] sm:$0x1]
      %v7344 = vld [vmem:[#allocation2 + $0x154] sm:$0xf]
      %v7345 = vld [vmem:[#allocation2 + $0x158] sm:$0xf]
      %v7346 = vld [vmem:[#allocation2 + $0x15c] sm:$0xf]
      %v7347 = vld [vmem:[#allocation2 + $0x160] sm:$0xf]
      %v7348 = vld [vmem:[#allocation2 + $0x164] sm:$0x1]
      %v7349 = vld [vmem:[%s4] sm:$0xf]
      %v7350 = vld [vmem:[%s4 + $0x4] sm:$0xf]
      %v7351 = vld [vmem:[%s4 + $0x8] sm:$0xf]
      %v7352 = vld [vmem:[%s4 + $0xc] sm:$0xf]
      %v7353 = vld [vmem:[%s4 + $0x10] sm:$0xf]
      %v7354 = vld [vmem:[%s4 + $0x14] sm:$0xf]
      %v7355 = vld [vmem:[%s4 + $0x18] sm:$0xf]
      %v7356 = vld [vmem:[%s4 + $0x1c] sm:$0xf]
      %v7357 = vld [vmem:[%s4 + $0x20] sm:$0xf]
      %v7358 = vld [vmem:[%s4 + $0x24] sm:$0xf]
      %v7359 = vld [vmem:[%s4 + $0x28] sm:$0xf]
      %v7360 = vld [vmem:[%s4 + $0x2c] sm:$0xf]
      %v7361 = vld [vmem:[%s4 + $0x30] sm:$0xf]
      %v7362 = vld [vmem:[%s4 + $0x34] sm:$0xf]
      %v7363 = vld [vmem:[%s4 + $0x38] sm:$0xf]
      %v7364 = vld [vmem:[%s4 + $0x3c] sm:$0xf]
      %s7365 = scalar_lea.vmem %s4, 192
      %v7366 = vld [vmem:[%s7365] sm:$0xf]
      %v7367 = vld [vmem:[%s7365 + $0x4] sm:$0xf]
      %v7368 = vld [vmem:[%s7365 + $0x8] sm:$0xf]
      %v7369 = vld [vmem:[%s7365 + $0xc] sm:$0xf]
      %v7370 = vld [vmem:[%s7365 + $0x10] sm:$0xf]
      %v7371 = vld [vmem:[%s7365 + $0x14] sm:$0xf]
      %v7372 = vld [vmem:[%s7365 + $0x18] sm:$0xf]
      %v7373 = vld [vmem:[%s7365 + $0x1c] sm:$0xf]
      %v7374 = vld [vmem:[%s7365 + $0x20] sm:$0xf]
      %v7375 = vld [vmem:[%s7365 + $0x24] sm:$0xf]
      %v7376 = vld [vmem:[%s7365 + $0x28] sm:$0xf]
      %v7377 = vld [vmem:[%s7365 + $0x2c] sm:$0xf]
      %v7378 = vld [vmem:[%s7365 + $0x30] sm:$0xf]
      %v7379 = vld [vmem:[%s7365 + $0x34] sm:$0xf]
      %v7380 = vld [vmem:[%s7365 + $0x38] sm:$0xf]
      %v7381 = vld [vmem:[%s7365 + $0x3c] sm:$0xf]
      %v7446 = vunpack.c.l.b16 %v7264
      %v7447 = vunpack.c.l.b16 %v7265
      %v7448 = vunpack.c.l.b16 %v7266
      %v7449 = vunpack.c.l.b16 %v7267
      %v7450 = vunpack.c.l.b16 %v7269
      %v7451 = vunpack.c.l.b16 %v7270
      %v7452 = vunpack.c.l.b16 %v7271
      %v7453 = vunpack.c.l.b16 %v7272
      %v7454 = vunpack.c.l.b16 %v7274
      %v7455 = vunpack.c.l.b16 %v7275
      %v7456 = vunpack.c.l.b16 %v7276
      %v7457 = vunpack.c.l.b16 %v7277
      %v7458 = vunpack.c.l.b16 %v7279
      %v7459 = vunpack.c.l.b16 %v7280
      %v7460 = vunpack.c.l.b16 %v7281
      %v7461 = vunpack.c.l.b16 %v7282
      %v7462 = vunpack.c.l.b16 %v7284
      %v7463 = vunpack.c.l.b16 %v7285
      %v7464 = vunpack.c.l.b16 %v7286
      %v7465 = vunpack.c.l.b16 %v7287
      %v7466 = vunpack.c.l.b16 %v7289
      %v7467 = vunpack.c.l.b16 %v7290
      %v7468 = vunpack.c.l.b16 %v7291
      %v7469 = vunpack.c.l.b16 %v7292
      %v7470 = vunpack.c.l.b16 %v7294
      %v7471 = vunpack.c.l.b16 %v7295
      %v7472 = vunpack.c.l.b16 %v7296
      %v7473 = vunpack.c.l.b16 %v7297
      %v7474 = vunpack.c.l.b16 %v7299
      %v7475 = vunpack.c.l.b16 %v7300
      %v7476 = vunpack.c.l.b16 %v7301
      %v7477 = vunpack.c.l.b16 %v7302
      %v7478 = vunpack.c.l.b16 %v7304
      %v7479 = vunpack.c.l.b16 %v7305
      %v7480 = vunpack.c.l.b16 %v7306
      %v7481 = vunpack.c.l.b16 %v7307
      %v7482 = vunpack.c.l.b16 %v7309
      %v7483 = vunpack.c.l.b16 %v7310
      %v7484 = vunpack.c.l.b16 %v7311
      %v7485 = vunpack.c.l.b16 %v7312
      %v7486 = vunpack.c.l.b16 %v7314
      %v7487 = vunpack.c.l.b16 %v7315
      %v7488 = vunpack.c.l.b16 %v7316
      %v7489 = vunpack.c.l.b16 %v7317
      %v7490 = vunpack.c.l.b16 %v7319
      %v7491 = vunpack.c.l.b16 %v7320
      %v7492 = vunpack.c.l.b16 %v7321
      %v7493 = vunpack.c.l.b16 %v7322
      %v7494 = vunpack.c.l.b16 %v7324
      %v7495 = vunpack.c.l.b16 %v7325
      %v7496 = vunpack.c.l.b16 %v7326
      %v7497 = vunpack.c.l.b16 %v7327
      %v7498 = vunpack.c.l.b16 %v7329
      %v7499 = vunpack.c.l.b16 %v7330
      %v7500 = vunpack.c.l.b16 %v7331
      %v7501 = vunpack.c.l.b16 %v7332
      %v7502 = vunpack.c.l.b16 %v7334
      %v7503 = vunpack.c.l.b16 %v7335
      %v7504 = vunpack.c.l.b16 %v7336
      %v7505 = vunpack.c.l.b16 %v7337
      %v7506 = vunpack.c.l.b16 %v7339
      %v7507 = vunpack.c.l.b16 %v7340
      %v7508 = vunpack.c.l.b16 %v7341
      %v7509 = vunpack.c.l.b16 %v7342
      %v7510 = vpack.c.b16 %v7447, %v7446
      %v7511 = vpack.c.b16 %v7449, %v7448
      %v7512 = vpack.c.b16 %v7451, %v7450
      %v7513 = vpack.c.b16 %v7453, %v7452
      %v7514 = vpack.c.b16 %v7455, %v7454
      %v7515 = vpack.c.b16 %v7457, %v7456
      %v7516 = vpack.c.b16 %v7459, %v7458
      %v7517 = vpack.c.b16 %v7461, %v7460
      %v7518 = vpack.c.b16 %v7463, %v7462
      %v7519 = vpack.c.b16 %v7465, %v7464
      %v7520 = vpack.c.b16 %v7467, %v7466
      %v7521 = vpack.c.b16 %v7469, %v7468
      %v7522 = vpack.c.b16 %v7471, %v7470
      %v7523 = vpack.c.b16 %v7473, %v7472
      %v7524 = vpack.c.b16 %v7475, %v7474
      %v7525 = vpack.c.b16 %v7477, %v7476
      %v7526 = vpack.c.b16 %v7479, %v7478
      %v7527 = vpack.c.b16 %v7481, %v7480
      %v7528 = vpack.c.b16 %v7483, %v7482
      %v7529 = vpack.c.b16 %v7485, %v7484
      %v7530 = vpack.c.b16 %v7487, %v7486
      %v7531 = vpack.c.b16 %v7489, %v7488
      %v7532 = vpack.c.b16 %v7491, %v7490
      %v7533 = vpack.c.b16 %v7493, %v7492
      %v7534 = vpack.c.b16 %v7495, %v7494
      %v7535 = vpack.c.b16 %v7497, %v7496
      %v7536 = vpack.c.b16 %v7499, %v7498
      %v7537 = vpack.c.b16 %v7501, %v7500
      %v7538 = vpack.c.b16 %v7503, %v7502
      %v7539 = vpack.c.b16 %v7505, %v7504
      %v7540 = vpack.c.b16 %v7507, %v7506
      %v7541 = vpack.c.b16 %v7509, %v7508
      %v7590 = vunpack.c.l.b16 %v7366
      %v7591 = vunpack.c.l.b16 %v7367
      %v7592 = vunpack.c.l.b16 %v7368
      %v7593 = vunpack.c.l.b16 %v7369
      %v7594 = vunpack.c.l.b16 %v7370
      %v7595 = vunpack.c.l.b16 %v7371
      %v7596 = vunpack.c.l.b16 %v7372
      %v7597 = vunpack.c.l.b16 %v7373
      %v7598 = vunpack.c.l.b16 %v7374
      %v7599 = vunpack.c.l.b16 %v7375
      %v7600 = vunpack.c.l.b16 %v7376
      %v7601 = vunpack.c.l.b16 %v7377
      %v7602 = vunpack.c.l.b16 %v7378
      %v7603 = vunpack.c.l.b16 %v7379
      %v7604 = vunpack.c.l.b16 %v7380
      %v7605 = vunpack.c.l.b16 %v7381
      %v7606 = vpack.c.b16 %v7591, %v7590
      %v7607 = vpack.c.b16 %v7593, %v7592
      %v7608 = vpack.c.b16 %v7595, %v7594
      %v7609 = vpack.c.b16 %v7597, %v7596
      %v7610 = vpack.c.b16 %v7599, %v7598
      %v7611 = vpack.c.b16 %v7601, %v7600
      %v7612 = vpack.c.b16 %v7603, %v7602
      %v7613 = vpack.c.b16 %v7605, %v7604
      %7622 = vmatprep.subr.bf16.mxu0 0
      %7623 = vmatpush1.bf16.msra.mxu0 %v7606
      %7624 = vmatprep.subr.bf16.mxu0 0
      %7625 = vmatpush1.bf16.msra.mxu0 %v7607
      %7626 = vmatprep.subr.bf16.mxu0 0
      %7627 = vmatpush1.bf16.msra.mxu0 %v7608
      %7628 = vmatprep.subr.bf16.mxu0 0
      %7629 = vmatpush1.bf16.msra.mxu0 %v7609
      %7630 = vmatprep.subr.bf16.mxu0 0
      %7631 = vmatpush1.bf16.msra.mxu0 %v7610
      %7632 = vmatprep.subr.bf16.mxu0 0
      %7633 = vmatpush1.bf16.msra.mxu0 %v7611
      %7634 = vmatprep.subr.bf16.mxu0 0
      %7635 = vmatpush1.bf16.msra.mxu0 %v7612
      %7636 = vmatprep.subr.bf16.mxu0 0
      %7637 = vmatpush1.bf16.msra.mxu0 %v7613
      %7638 = vmatprep.subr.bf16.mxu0 0
      %7639 = vmatpush1.bf16.msra.mxu0 0
      %7640 = vmatprep.subr.bf16.mxu0 0
      %7641 = vmatpush1.bf16.msra.mxu0 0
      %7642 = vmatprep.subr.bf16.mxu0 0
      %7643 = vmatpush1.bf16.msra.mxu0 0
      %7644 = vmatprep.subr.bf16.mxu0 0
      %7645 = vmatpush1.bf16.msra.mxu0 0
      %7646 = vmatprep.subr.bf16.mxu0 0
      %7647 = vmatpush1.bf16.msra.mxu0 0
      %7648 = vmatprep.subr.bf16.mxu0 0
      %7649 = vmatpush1.bf16.msra.mxu0 0
      %7650 = vmatprep.subr.bf16.mxu0 0
      %7651 = vmatpush1.bf16.msra.mxu0 0
      %7652 = vmatprep.subr.bf16.mxu0 0
      %7653 = vmatpush1.bf16.msra.mxu0 0
      %7654 = vmatprep.mubr.bf16.mxu0 0
      %7655 = vmatmul.mubr.bf16.gmra.mrb[0].mxu0 %v7510
      %v7656 = vpop.f32.mrb[0].mxu0
      %v7657 = vadd.f32 0.0, %v7656
      %v7658 = vpop.f32.mrb[0].mxu0
      %v7659 = vpop.f32.mrb[0].mxu0
      %v7660 = vadd.f32 0.0, %v7659
      %v7661 = vpop.f32.mrb[0].mxu0
      %7662 = vmatprep.mubr.bf16.mxu0 0
      %7663 = vmatmul.mubr.bf16.gmra.mrb[0].mxu0 %v7511
      %v7664 = vpop.f32.mrb[0].mxu0
      %v7665 = vadd.f32 0.0, %v7664
      %v7666 = vpop.f32.mrb[0].mxu0
      %v7667 = vpop.f32.mrb[0].mxu0
      %v7668 = vadd.f32 0.0, %v7667
      %v7669 = vpop.f32.mrb[0].mxu0
      %7670 = vmatprep.mubr.bf16.mxu0 0
      %7671 = vmatmul.mubr.bf16.gmra.mrb[0].mxu0 %v7512
      %v7672 = vpop.f32.mrb[0].mxu0
      %v7673 = vadd.f32 0.0, %v7672
      %v7674 = vpop.f32.mrb[0].mxu0
      %v7675 = vpop.f32.mrb[0].mxu0
      %v7676 = vadd.f32 0.0, %v7675
      %v7677 = vpop.f32.mrb[0].mxu0
      %7678 = vmatprep.mubr.bf16.mxu0 0
      %7679 = vmatmul.mubr.bf16.gmra.mrb[0].mxu0 %v7513
      %v7680 = vpop.f32.mrb[0].mxu0
      %v7681 = vadd.f32 0.0, %v7680
      %v7682 = vpop.f32.mrb[0].mxu0
      %v7683 = vpop.f32.mrb[0].mxu0
      %v7684 = vadd.f32 0.0, %v7683
      %v7685 = vpop.f32.mrb[0].mxu0
      %7686 = vmatprep.mubr.bf16.mxu0 0
      %7687 = vmatmul.mubr.bf16.gmra.mrb[0].mxu0 %v7514
      %v7688 = vpop.f32.mrb[0].mxu0
      %v7689 = vadd.f32 0.0, %v7688
      %v7690 = vpop.f32.mrb[0].mxu0
      %v7691 = vpop.f32.mrb[0].mxu0
      %v7692 = vadd.f32 0.0, %v7691
      %v7693 = vpop.f32.mrb[0].mxu0
      %7694 = vmatprep.mubr.bf16.mxu0 0
      %7695 = vmatmul.mubr.bf16.gmra.mrb[0].mxu0 %v7515
      %v7696 = vpop.f32.mrb[0].mxu0
      %v7697 = vadd.f32 0.0, %v7696
      %v7698 = vpop.f32.mrb[0].mxu0
      %v7699 = vpop.f32.mrb[0].mxu0
      %v7700 = vadd.f32 0.0, %v7699
      %v7701 = vpop.f32.mrb[0].mxu0
      %7702 = vmatprep.mubr.bf16.mxu0 0
      %7703 = vmatmul.mubr.bf16.gmra.mrb[0].mxu0 %v7516
      %v7704 = vpop.f32.mrb[0].mxu0
      %v7705 = vadd.f32 0.0, %v7704
      %v7706 = vpop.f32.mrb[0].mxu0
      %v7707 = vpop.f32.mrb[0].mxu0
      %v7708 = vadd.f32 0.0, %v7707
      %v7709 = vpop.f32.mrb[0].mxu0
      %7710 = vmatprep.mubr.bf16.mxu0 0
      %7711 = vmatmul.mubr.bf16.gmra.mrb[0].mxu0 %v7517
      %v7712 = vpop.f32.mrb[0].mxu0
      %v7713 = vadd.f32 0.0, %v7712
      %v7714 = vpop.f32.mrb[0].mxu0
      %v7715 = vpop.f32.mrb[0].mxu0
      %v7716 = vadd.f32 0.0, %v7715
      %v7717 = vpop.f32.mrb[0].mxu0
      %7718 = vmatprep.mubr.bf16.mxu0 0
      %7719 = vmatmul.mubr.bf16.gmra.mrb[0].mxu0 %v7518
      %v7720 = vpop.f32.mrb[0].mxu0
      %v7721 = vadd.f32 0.0, %v7720
      %v7722 = vpop.f32.mrb[0].mxu0
      %v7723 = vpop.f32.mrb[0].mxu0
      %v7724 = vadd.f32 0.0, %v7723
      %v7725 = vpop.f32.mrb[0].mxu0
      %7726 = vmatprep.mubr.bf16.mxu0 0
      %7727 = vmatmul.mubr.bf16.gmra.mrb[0].mxu0 %v7519
      %v7728 = vpop.f32.mrb[0].mxu0
      %v7729 = vadd.f32 0.0, %v7728
      %v7730 = vpop.f32.mrb[0].mxu0
      %v7731 = vpop.f32.mrb[0].mxu0
      %v7732 = vadd.f32 0.0, %v7731
      %v7733 = vpop.f32.mrb[0].mxu0
      %7734 = vmatprep.mubr.bf16.mxu0 0
      %7735 = vmatmul.mubr.bf16.gmra.mrb[0].mxu0 %v7520
      %v7736 = vpop.f32.mrb[0].mxu0
      %v7737 = vadd.f32 0.0, %v7736
      %v7738 = vpop.f32.mrb[0].mxu0
      %v7739 = vpop.f32.mrb[0].mxu0
      %v7740 = vadd.f32 0.0, %v7739
      %v7741 = vpop.f32.mrb[0].mxu0
      %7742 = vmatprep.mubr.bf16.mxu0 0
      %7743 = vmatmul.mubr.bf16.gmra.mrb[0].mxu0 %v7521
      %v7744 = vpop.f32.mrb[0].mxu0
      %v7745 = vadd.f32 0.0, %v7744
      %v7746 = vpop.f32.mrb[0].mxu0
      %v7747 = vpop.f32.mrb[0].mxu0
      %v7748 = vadd.f32 0.0, %v7747
      %v7749 = vpop.f32.mrb[0].mxu0
      %7750 = vmatprep.mubr.bf16.mxu0 0
      %7751 = vmatmul.mubr.bf16.gmra.mrb[0].mxu0 %v7522
      %v7752 = vpop.f32.mrb[0].mxu0
      %v7753 = vadd.f32 0.0, %v7752
      %v7754 = vpop.f32.mrb[0].mxu0
      %v7755 = vpop.f32.mrb[0].mxu0
      %v7756 = vadd.f32 0.0, %v7755
      %v7757 = vpop.f32.mrb[0].mxu0
      %7758 = vmatprep.mubr.bf16.mxu0 0
      %7759 = vmatmul.mubr.bf16.gmra.mrb[0].mxu0 %v7523
      %v7760 = vpop.f32.mrb[0].mxu0
      %v7761 = vadd.f32 0.0, %v7760
      %v7762 = vpop.f32.mrb[0].mxu0
      %v7763 = vpop.f32.mrb[0].mxu0
      %v7764 = vadd.f32 0.0, %v7763
      %v7765 = vpop.f32.mrb[0].mxu0
      %7766 = vmatprep.mubr.bf16.mxu0 0
      %7767 = vmatmul.mubr.bf16.gmra.mrb[0].mxu0 %v7524
      %v7768 = vpop.f32.mrb[0].mxu0
      %v7769 = vadd.f32 0.0, %v7768
      %v7770 = vpop.f32.mrb[0].mxu0
      %v7771 = vpop.f32.mrb[0].mxu0
      %v7772 = vadd.f32 0.0, %v7771
      %v7773 = vpop.f32.mrb[0].mxu0
      %7774 = vmatprep.mubr.bf16.mxu0 0
      %7775 = vmatmul.mubr.bf16.gmra.mrb[0].mxu0 %v7525
      %v7776 = vpop.f32.mrb[0].mxu0
      %v7777 = vadd.f32 0.0, %v7776
      %v7778 = vpop.f32.mrb[0].mxu0
      %v7779 = vpop.f32.mrb[0].mxu0
      %v7780 = vadd.f32 0.0, %v7779
      %v7781 = vpop.f32.mrb[0].mxu0
      %7782 = vmatprep.mubr.bf16.mxu0 0
      %7783 = vmatmul.mubr.bf16.gmra.mrb[0].mxu0 %v7526
      %v7784 = vpop.f32.mrb[0].mxu0
      %v7785 = vadd.f32 0.0, %v7784
      %v7786 = vpop.f32.mrb[0].mxu0
      %v7787 = vpop.f32.mrb[0].mxu0
      %v7788 = vadd.f32 0.0, %v7787
      %v7789 = vpop.f32.mrb[0].mxu0
      %7790 = vmatprep.mubr.bf16.mxu0 0
      %7791 = vmatmul.mubr.bf16.gmra.mrb[0].mxu0 %v7527
      %v7792 = vpop.f32.mrb[0].mxu0
      %v7793 = vadd.f32 0.0, %v7792
      %v7794 = vpop.f32.mrb[0].mxu0
      %v7795 = vpop.f32.mrb[0].mxu0
      %v7796 = vadd.f32 0.0, %v7795
      %v7797 = vpop.f32.mrb[0].mxu0
      %7798 = vmatprep.mubr.bf16.mxu0 0
      %7799 = vmatmul.mubr.bf16.gmra.mrb[0].mxu0 %v7528
      %v7800 = vpop.f32.mrb[0].mxu0
      %v7801 = vadd.f32 0.0, %v7800
      %v7802 = vpop.f32.mrb[0].mxu0
      %v7803 = vpop.f32.mrb[0].mxu0
      %v7804 = vadd.f32 0.0, %v7803
      %v7805 = vpop.f32.mrb[0].mxu0
      %7806 = vmatprep.mubr.bf16.mxu0 0
      %7807 = vmatmul.mubr.bf16.gmra.mrb[0].mxu0 %v7529
      %v7808 = vpop.f32.mrb[0].mxu0
      %v7809 = vadd.f32 0.0, %v7808
      %v7810 = vpop.f32.mrb[0].mxu0
      %v7811 = vpop.f32.mrb[0].mxu0
      %v7812 = vadd.f32 0.0, %v7811
      %v7813 = vpop.f32.mrb[0].mxu0
      %7814 = vmatprep.mubr.bf16.mxu0 0
      %7815 = vmatmul.mubr.bf16.gmra.mrb[0].mxu0 %v7530
      %v7816 = vpop.f32.mrb[0].mxu0
      %v7817 = vadd.f32 0.0, %v7816
      %v7818 = vpop.f32.mrb[0].mxu0
      %v7819 = vpop.f32.mrb[0].mxu0
      %v7820 = vadd.f32 0.0, %v7819
      %v7821 = vpop.f32.mrb[0].mxu0
      %7822 = vmatprep.mubr.bf16.mxu0 0
      %7823 = vmatmul.mubr.bf16.gmra.mrb[0].mxu0 %v7531
      %v7824 = vpop.f32.mrb[0].mxu0
      %v7825 = vadd.f32 0.0, %v7824
      %v7826 = vpop.f32.mrb[0].mxu0
      %v7827 = vpop.f32.mrb[0].mxu0
      %v7828 = vadd.f32 0.0, %v7827
      %v7829 = vpop.f32.mrb[0].mxu0
      %7830 = vmatprep.mubr.bf16.mxu0 0
      %7831 = vmatmul.mubr.bf16.gmra.mrb[0].mxu0 %v7532
      %v7832 = vpop.f32.mrb[0].mxu0
      %v7833 = vadd.f32 0.0, %v7832
      %v7834 = vpop.f32.mrb[0].mxu0
      %v7835 = vpop.f32.mrb[0].mxu0
      %v7836 = vadd.f32 0.0, %v7835
      %v7837 = vpop.f32.mrb[0].mxu0
      %7838 = vmatprep.mubr.bf16.mxu0 0
      %7839 = vmatmul.mubr.bf16.gmra.mrb[0].mxu0 %v7533
      %v7840 = vpop.f32.mrb[0].mxu0
      %v7841 = vadd.f32 0.0, %v7840
      %v7842 = vpop.f32.mrb[0].mxu0
      %v7843 = vpop.f32.mrb[0].mxu0
      %v7844 = vadd.f32 0.0, %v7843
      %v7845 = vpop.f32.mrb[0].mxu0
      %7846 = vmatprep.mubr.bf16.mxu0 0
      %7847 = vmatmul.mubr.bf16.gmra.mrb[0].mxu0 %v7534
      %v7848 = vpop.f32.mrb[0].mxu0
      %v7849 = vadd.f32 0.0, %v7848
      %v7850 = vpop.f32.mrb[0].mxu0
      %v7851 = vpop.f32.mrb[0].mxu0
      %v7852 = vadd.f32 0.0, %v7851
      %v7853 = vpop.f32.mrb[0].mxu0
      %7854 = vmatprep.mubr.bf16.mxu0 0
      %7855 = vmatmul.mubr.bf16.gmra.mrb[0].mxu0 %v7535
      %v7856 = vpop.f32.mrb[0].mxu0
      %v7857 = vadd.f32 0.0, %v7856
      %v7858 = vpop.f32.mrb[0].mxu0
      %v7859 = vpop.f32.mrb[0].mxu0
      %v7860 = vadd.f32 0.0, %v7859
      %v7861 = vpop.f32.mrb[0].mxu0
      %7862 = vmatprep.mubr.bf16.mxu0 0
      %7863 = vmatmul.mubr.bf16.gmra.mrb[0].mxu0 %v7536
      %v7864 = vpop.f32.mrb[0].mxu0
      %v7865 = vadd.f32 0.0, %v7864
      %v7866 = vpop.f32.mrb[0].mxu0
      %v7867 = vpop.f32.mrb[0].mxu0
      %v7868 = vadd.f32 0.0, %v7867
      %v7869 = vpop.f32.mrb[0].mxu0
      %7870 = vmatprep.mubr.bf16.mxu0 0
      %7871 = vmatmul.mubr.bf16.gmra.mrb[0].mxu0 %v7537
      %v7872 = vpop.f32.mrb[0].mxu0
      %v7873 = vadd.f32 0.0, %v7872
      %v7874 = vpop.f32.mrb[0].mxu0
      %v7875 = vpop.f32.mrb[0].mxu0
      %v7876 = vadd.f32 0.0, %v7875
      %v7877 = vpop.f32.mrb[0].mxu0
      %7878 = vmatprep.mubr.bf16.mxu0 0
      %7879 = vmatmul.mubr.bf16.gmra.mrb[0].mxu0 %v7538
      %v7880 = vpop.f32.mrb[0].mxu0
      %v7881 = vadd.f32 0.0, %v7880
      %v7882 = vpop.f32.mrb[0].mxu0
      %v7883 = vpop.f32.mrb[0].mxu0
      %v7884 = vadd.f32 0.0, %v7883
      %v7885 = vpop.f32.mrb[0].mxu0
      %7886 = vmatprep.mubr.bf16.mxu0 0
      %7887 = vmatmul.mubr.bf16.gmra.mrb[0].mxu0 %v7539
      %v7888 = vpop.f32.mrb[0].mxu0
      %v7889 = vadd.f32 0.0, %v7888
      %v7890 = vpop.f32.mrb[0].mxu0
      %v7891 = vpop.f32.mrb[0].mxu0
      %v7892 = vadd.f32 0.0, %v7891
      %v7893 = vpop.f32.mrb[0].mxu0
      %7894 = vmatprep.mubr.bf16.mxu0 0
      %7895 = vmatmul.mubr.bf16.gmra.mrb[0].mxu0 %v7540
      %v7896 = vpop.f32.mrb[0].mxu0
      %v7897 = vadd.f32 0.0, %v7896
      %v7898 = vpop.f32.mrb[0].mxu0
      %v7899 = vpop.f32.mrb[0].mxu0
      %v7900 = vadd.f32 0.0, %v7899
      %v7901 = vpop.f32.mrb[0].mxu0
      %7902 = vmatprep.mubr.bf16.mxu0 0
      %7903 = vmatmul.mubr.bf16.gmra.mrb[0].mxu0 %v7541
      %v7904 = vpop.f32.mrb[0].mxu0
      %v7905 = vadd.f32 0.0, %v7904
      %v7906 = vpop.f32.mrb[0].mxu0
      %v7907 = vpop.f32.mrb[0].mxu0
      %v7908 = vadd.f32 0.0, %v7907
      %v7909 = vpop.f32.mrb[0].mxu0
      %7910 = vdwg.mxu0
      %v7915 = vunpack.c.l.b16 %v7259
      %v7916 = vunpack.c.l.b16 %v7260
      %v7917 = vunpack.c.l.b16 %v7261
      %v7918 = vunpack.c.l.b16 %v7262
      %v7919 = vpack.c.b16 %v7916, %v7915
      %v7920 = vpack.c.b16 %v7918, %v7917
      %v7939 = vunpack.c.l.b16 %v7349
      %v7940 = vunpack.c.l.b16 %v7350
      %v7941 = vunpack.c.l.b16 %v7351
      %v7942 = vunpack.c.l.b16 %v7352
      %v7943 = vunpack.c.l.b16 %v7353
      %v7944 = vunpack.c.l.b16 %v7354
      %v7945 = vunpack.c.l.b16 %v7355
      %v7946 = vunpack.c.l.b16 %v7356
      %v7947 = vunpack.c.l.b16 %v7357
      %v7948 = vunpack.c.l.b16 %v7358
      %v7949 = vunpack.c.l.b16 %v7359
      %v7950 = vunpack.c.l.b16 %v7360
      %v7951 = vunpack.c.l.b16 %v7361
      %v7952 = vunpack.c.l.b16 %v7362
      %v7953 = vunpack.c.l.b16 %v7363
      %v7954 = vunpack.c.l.b16 %v7364
      %v7955 = vpack.c.b16 %v7940, %v7939
      %v7956 = vpack.c.b16 %v7942, %v7941
      %v7957 = vpack.c.b16 %v7944, %v7943
      %v7958 = vpack.c.b16 %v7946, %v7945
      %v7959 = vpack.c.b16 %v7948, %v7947
      %v7960 = vpack.c.b16 %v7950, %v7949
      %v7961 = vpack.c.b16 %v7952, %v7951
      %v7962 = vpack.c.b16 %v7954, %v7953
      %7971 = vmatprep.subr.bf16.mxu0 0
      %7972 = vmatpush1.bf16.msra.mxu0 %v7955
      %7973 = vmatprep.subr.bf16.mxu0 0
      %7974 = vmatpush1.bf16.msra.mxu0 %v7956
      %7975 = vmatprep.subr.bf16.mxu0 0
      %7976 = vmatpush1.bf16.msra.mxu0 %v7957
      %7977 = vmatprep.subr.bf16.mxu0 0
      %7978 = vmatpush1.bf16.msra.mxu0 %v7958
      %7979 = vmatprep.subr.bf16.mxu0 0
      %7980 = vmatpush1.bf16.msra.mxu0 %v7959
      %7981 = vmatprep.subr.bf16.mxu0 0
      %7982 = vmatpush1.bf16.msra.mxu0 %v7960
      %7983 = vmatprep.subr.bf16.mxu0 0
      %7984 = vmatpush1.bf16.msra.mxu0 %v7961
      %7985 = vmatprep.subr.bf16.mxu0 0
      %7986 = vmatpush1.bf16.msra.mxu0 %v7962
      %7987 = vmatprep.subr.bf16.mxu0 0
      %7988 = vmatpush1.bf16.msra.mxu0 0
      %7989 = vmatprep.subr.bf16.mxu0 0
      %7990 = vmatpush1.bf16.msra.mxu0 0
      %7991 = vmatprep.subr.bf16.mxu0 0
      %7992 = vmatpush1.bf16.msra.mxu0 0
      %7993 = vmatprep.subr.bf16.mxu0 0
      %7994 = vmatpush1.bf16.msra.mxu0 0
      %7995 = vmatprep.subr.bf16.mxu0 0
      %7996 = vmatpush1.bf16.msra.mxu0 0
      %7997 = vmatprep.subr.bf16.mxu0 0
      %7998 = vmatpush1.bf16.msra.mxu0 0
      %7999 = vmatprep.subr.bf16.mxu0 0
      %8000 = vmatpush1.bf16.msra.mxu0 0
      %8001 = vmatprep.subr.bf16.mxu0 0
      %8002 = vmatpush1.bf16.msra.mxu0 0
      %8003 = vmatprep.mubr.bf16.mxu0 0
      %8004 = vmatmul.mubr.bf16.gmra.mrb[0].mxu0 %v7919
      %v8005 = vpop.f32.mrb[0].mxu0
      %v8006 = vadd.f32 %v7657, %v8005
      %v8007 = vpop.f32.mrb[0].mxu0
      %v8008 = vpop.f32.mrb[0].mxu0
      %v8009 = vadd.f32 %v7660, %v8008
      %v8010 = vpop.f32.mrb[0].mxu0
      %8011 = vmatprep.mubr.bf16.mxu0 0
      %8012 = vmatmul.mubr.bf16.gmra.mrb[0].mxu0 %v7920
      %v8013 = vpop.f32.mrb[0].mxu0
      %v8014 = vadd.f32 %v7665, %v8013
      %v8015 = vpop.f32.mrb[0].mxu0
      %v8016 = vpop.f32.mrb[0].mxu0
      %v8017 = vadd.f32 %v7668, %v8016
      %v8018 = vpop.f32.mrb[0].mxu0
      %8019 = vmatprep.mubr.bf16.mxu0 0
      %8020 = vmatmul.mubr.bf16.gmra.mrb[0].mxu0 %v7510
      %v8021 = vpop.f32.mrb[0].mxu0
      %v8022 = vadd.f32 %v7673, %v8021
      %v8023 = vpop.f32.mrb[0].mxu0
      %v8024 = vpop.f32.mrb[0].mxu0
      %v8025 = vadd.f32 %v7676, %v8024
      %v8026 = vpop.f32.mrb[0].mxu0
      %8027 = vmatprep.mubr.bf16.mxu0 0
      %8028 = vmatmul.mubr.bf16.gmra.mrb[0].mxu0 %v7511
      %v8029 = vpop.f32.mrb[0].mxu0
      %v8030 = vadd.f32 %v7681, %v8029
      %v8031 = vpop.f32.mrb[0].mxu0
      %v8032 = vpop.f32.mrb[0].mxu0
      %v8033 = vadd.f32 %v7684, %v8032
      %v8034 = vpop.f32.mrb[0].mxu0
      %8035 = vmatprep.mubr.bf16.mxu0 0
      %8036 = vmatmul.mubr.bf16.gmra.mrb[0].mxu0 %v7512
      %v8037 = vpop.f32.mrb[0].mxu0
      %v8038 = vadd.f32 %v7689, %v8037
      %v8039 = vpop.f32.mrb[0].mxu0
      %v8040 = vpop.f32.mrb[0].mxu0
      %v8041 = vadd.f32 %v7692, %v8040
      %v8042 = vpop.f32.mrb[0].mxu0
      %8043 = vmatprep.mubr.bf16.mxu0 0
      %8044 = vmatmul.mubr.bf16.gmra.mrb[0].mxu0 %v7513
      %v8045 = vpop.f32.mrb[0].mxu0
      %v8046 = vadd.f32 %v7697, %v8045
      %v8047 = vpop.f32.mrb[0].mxu0
      %v8048 = vpop.f32.mrb[0].mxu0
      %v8049 = vadd.f32 %v7700, %v8048
      %v8050 = vpop.f32.mrb[0].mxu0
      %8051 = vmatprep.mubr.bf16.mxu0 0
      %8052 = vmatmul.mubr.bf16.gmra.mrb[0].mxu0 %v7514
      %v8053 = vpop.f32.mrb[0].mxu0
      %v8054 = vadd.f32 %v7705, %v8053
      %v8055 = vpop.f32.mrb[0].mxu0
      %v8056 = vpop.f32.mrb[0].mxu0
      %v8057 = vadd.f32 %v7708, %v8056
      %v8058 = vpop.f32.mrb[0].mxu0
      %8059 = vmatprep.mubr.bf16.mxu0 0
      %8060 = vmatmul.mubr.bf16.gmra.mrb[0].mxu0 %v7515
      %v8061 = vpop.f32.mrb[0].mxu0
      %v8062 = vadd.f32 %v7713, %v8061
      %v8063 = vpop.f32.mrb[0].mxu0
      %v8064 = vpop.f32.mrb[0].mxu0
      %v8065 = vadd.f32 %v7716, %v8064
      %v8066 = vpop.f32.mrb[0].mxu0
      %8067 = vmatprep.mubr.bf16.mxu0 0
      %8068 = vmatmul.mubr.bf16.gmra.mrb[0].mxu0 %v7516
      %v8069 = vpop.f32.mrb[0].mxu0
      %v8070 = vadd.f32 %v7721, %v8069
      %v8071 = vpop.f32.mrb[0].mxu0
      %v8072 = vpop.f32.mrb[0].mxu0
      %v8073 = vadd.f32 %v7724, %v8072
      %v8074 = vpop.f32.mrb[0].mxu0
      %8075 = vmatprep.mubr.bf16.mxu0 0
      %8076 = vmatmul.mubr.bf16.gmra.mrb[0].mxu0 %v7517
      %v8077 = vpop.f32.mrb[0].mxu0
      %v8078 = vadd.f32 %v7729, %v8077
      %v8079 = vpop.f32.mrb[0].mxu0
      %v8080 = vpop.f32.mrb[0].mxu0
      %v8081 = vadd.f32 %v7732, %v8080
      %v8082 = vpop.f32.mrb[0].mxu0
      %8083 = vmatprep.mubr.bf16.mxu0 0
      %8084 = vmatmul.mubr.bf16.gmra.mrb[0].mxu0 %v7518
      %v8085 = vpop.f32.mrb[0].mxu0
      %v8086 = vadd.f32 %v7737, %v8085
      %v8087 = vpop.f32.mrb[0].mxu0
      %v8088 = vpop.f32.mrb[0].mxu0
      %v8089 = vadd.f32 %v7740, %v8088
      %v8090 = vpop.f32.mrb[0].mxu0
      %8091 = vmatprep.mubr.bf16.mxu0 0
      %8092 = vmatmul.mubr.bf16.gmra.mrb[0].mxu0 %v7519
      %v8093 = vpop.f32.mrb[0].mxu0
      %v8094 = vadd.f32 %v7745, %v8093
      %v8095 = vpop.f32.mrb[0].mxu0
      %v8096 = vpop.f32.mrb[0].mxu0
      %v8097 = vadd.f32 %v7748, %v8096
      %v8098 = vpop.f32.mrb[0].mxu0
      %8099 = vmatprep.mubr.bf16.mxu0 0
      %8100 = vmatmul.mubr.bf16.gmra.mrb[0].mxu0 %v7520
      %v8101 = vpop.f32.mrb[0].mxu0
      %v8102 = vadd.f32 %v7753, %v8101
      %v8103 = vpop.f32.mrb[0].mxu0
      %v8104 = vpop.f32.mrb[0].mxu0
      %v8105 = vadd.f32 %v7756, %v8104
      %v8106 = vpop.f32.mrb[0].mxu0
      %8107 = vmatprep.mubr.bf16.mxu0 0
      %8108 = vmatmul.mubr.bf16.gmra.mrb[0].mxu0 %v7521
      %v8109 = vpop.f32.mrb[0].mxu0
      %v8110 = vadd.f32 %v7761, %v8109
      %v8111 = vpop.f32.mrb[0].mxu0
      %v8112 = vpop.f32.mrb[0].mxu0
      %v8113 = vadd.f32 %v7764, %v8112
      %v8114 = vpop.f32.mrb[0].mxu0
      %8115 = vmatprep.mubr.bf16.mxu0 0
      %8116 = vmatmul.mubr.bf16.gmra.mrb[0].mxu0 %v7522
      %v8117 = vpop.f32.mrb[0].mxu0
      %v8118 = vadd.f32 %v7769, %v8117
      %v8119 = vpop.f32.mrb[0].mxu0
      %v8120 = vpop.f32.mrb[0].mxu0
      %v8121 = vadd.f32 %v7772, %v8120
      %v8122 = vpop.f32.mrb[0].mxu0
      %8123 = vmatprep.mubr.bf16.mxu0 0
      %8124 = vmatmul.mubr.bf16.gmra.mrb[0].mxu0 %v7523
      %v8125 = vpop.f32.mrb[0].mxu0
      %v8126 = vadd.f32 %v7777, %v8125
      %v8127 = vpop.f32.mrb[0].mxu0
      %v8128 = vpop.f32.mrb[0].mxu0
      %v8129 = vadd.f32 %v7780, %v8128
      %v8130 = vpop.f32.mrb[0].mxu0
      %8131 = vmatprep.mubr.bf16.mxu0 0
      %8132 = vmatmul.mubr.bf16.gmra.mrb[0].mxu0 %v7524
      %v8133 = vpop.f32.mrb[0].mxu0
      %v8134 = vadd.f32 %v7785, %v8133
      %v8135 = vpop.f32.mrb[0].mxu0
      %v8136 = vpop.f32.mrb[0].mxu0
      %v8137 = vadd.f32 %v7788, %v8136
      %v8138 = vpop.f32.mrb[0].mxu0
      %8139 = vmatprep.mubr.bf16.mxu0 0
      %8140 = vmatmul.mubr.bf16.gmra.mrb[0].mxu0 %v7525
      %v8141 = vpop.f32.mrb[0].mxu0
      %v8142 = vadd.f32 %v7793, %v8141
      %v8143 = vpop.f32.mrb[0].mxu0
      %v8144 = vpop.f32.mrb[0].mxu0
      %v8145 = vadd.f32 %v7796, %v8144
      %v8146 = vpop.f32.mrb[0].mxu0
      %8147 = vmatprep.mubr.bf16.mxu0 0
      %8148 = vmatmul.mubr.bf16.gmra.mrb[0].mxu0 %v7526
      %v8149 = vpop.f32.mrb[0].mxu0
      %v8150 = vadd.f32 %v7801, %v8149
      %v8151 = vpop.f32.mrb[0].mxu0
      %v8152 = vpop.f32.mrb[0].mxu0
      %v8153 = vadd.f32 %v7804, %v8152
      %v8154 = vpop.f32.mrb[0].mxu0
      %8155 = vmatprep.mubr.bf16.mxu0 0
      %8156 = vmatmul.mubr.bf16.gmra.mrb[0].mxu0 %v7527
      %v8157 = vpop.f32.mrb[0].mxu0
      %v8158 = vadd.f32 %v7809, %v8157
      %v8159 = vpop.f32.mrb[0].mxu0
      %v8160 = vpop.f32.mrb[0].mxu0
      %v8161 = vadd.f32 %v7812, %v8160
      %v8162 = vpop.f32.mrb[0].mxu0
      %8163 = vmatprep.mubr.bf16.mxu0 0
      %8164 = vmatmul.mubr.bf16.gmra.mrb[0].mxu0 %v7528
      %v8165 = vpop.f32.mrb[0].mxu0
      %v8166 = vadd.f32 %v7817, %v8165
      %v8167 = vpop.f32.mrb[0].mxu0
      %v8168 = vpop.f32.mrb[0].mxu0
      %v8169 = vadd.f32 %v7820, %v8168
      %v8170 = vpop.f32.mrb[0].mxu0
      %8171 = vmatprep.mubr.bf16.mxu0 0
      %8172 = vmatmul.mubr.bf16.gmra.mrb[0].mxu0 %v7529
      %v8173 = vpop.f32.mrb[0].mxu0
      %v8174 = vadd.f32 %v7825, %v8173
      %v8175 = vpop.f32.mrb[0].mxu0
      %v8176 = vpop.f32.mrb[0].mxu0
      %v8177 = vadd.f32 %v7828, %v8176
      %v8178 = vpop.f32.mrb[0].mxu0
      %8179 = vmatprep.mubr.bf16.mxu0 0
      %8180 = vmatmul.mubr.bf16.gmra.mrb[0].mxu0 %v7530
      %v8181 = vpop.f32.mrb[0].mxu0
      %v8182 = vadd.f32 %v7833, %v8181
      %v8183 = vpop.f32.mrb[0].mxu0
      %v8184 = vpop.f32.mrb[0].mxu0
      %v8185 = vadd.f32 %v7836, %v8184
      %v8186 = vpop.f32.mrb[0].mxu0
      %8187 = vmatprep.mubr.bf16.mxu0 0
      %8188 = vmatmul.mubr.bf16.gmra.mrb[0].mxu0 %v7531
      %v8189 = vpop.f32.mrb[0].mxu0
      %v8190 = vadd.f32 %v7841, %v8189
      %v8191 = vpop.f32.mrb[0].mxu0
      %v8192 = vpop.f32.mrb[0].mxu0
      %v8193 = vadd.f32 %v7844, %v8192
      %v8194 = vpop.f32.mrb[0].mxu0
      %8195 = vmatprep.mubr.bf16.mxu0 0
      %8196 = vmatmul.mubr.bf16.gmra.mrb[0].mxu0 %v7532
      %v8197 = vpop.f32.mrb[0].mxu0
      %v8198 = vadd.f32 %v7849, %v8197
      %v8199 = vpop.f32.mrb[0].mxu0
      %v8200 = vpop.f32.mrb[0].mxu0
      %v8201 = vadd.f32 %v7852, %v8200
      %v8202 = vpop.f32.mrb[0].mxu0
      %8203 = vmatprep.mubr.bf16.mxu0 0
      %8204 = vmatmul.mubr.bf16.gmra.mrb[0].mxu0 %v7533
      %v8205 = vpop.f32.mrb[0].mxu0
      %v8206 = vadd.f32 %v7857, %v8205
      %v8207 = vpop.f32.mrb[0].mxu0
      %v8208 = vpop.f32.mrb[0].mxu0
      %v8209 = vadd.f32 %v7860, %v8208
      %v8210 = vpop.f32.mrb[0].mxu0
      %8211 = vmatprep.mubr.bf16.mxu0 0
      %8212 = vmatmul.mubr.bf16.gmra.mrb[0].mxu0 %v7534
      %v8213 = vpop.f32.mrb[0].mxu0
      %v8214 = vadd.f32 %v7865, %v8213
      %v8215 = vpop.f32.mrb[0].mxu0
      %v8216 = vpop.f32.mrb[0].mxu0
      %v8217 = vadd.f32 %v7868, %v8216
      %v8218 = vpop.f32.mrb[0].mxu0
      %8219 = vmatprep.mubr.bf16.mxu0 0
      %8220 = vmatmul.mubr.bf16.gmra.mrb[0].mxu0 %v7535
      %v8221 = vpop.f32.mrb[0].mxu0
      %v8222 = vadd.f32 %v7873, %v8221
      %v8223 = vpop.f32.mrb[0].mxu0
      %v8224 = vpop.f32.mrb[0].mxu0
      %v8225 = vadd.f32 %v7876, %v8224
      %v8226 = vpop.f32.mrb[0].mxu0
      %8227 = vmatprep.mubr.bf16.mxu0 0
      %8228 = vmatmul.mubr.bf16.gmra.mrb[0].mxu0 %v7536
      %v8229 = vpop.f32.mrb[0].mxu0
      %v8230 = vadd.f32 %v7881, %v8229
      %v8231 = vpop.f32.mrb[0].mxu0
      %v8232 = vpop.f32.mrb[0].mxu0
      %v8233 = vadd.f32 %v7884, %v8232
      %v8234 = vpop.f32.mrb[0].mxu0
      %8235 = vmatprep.mubr.bf16.mxu0 0
      %8236 = vmatmul.mubr.bf16.gmra.mrb[0].mxu0 %v7537
      %v8237 = vpop.f32.mrb[0].mxu0
      %v8238 = vadd.f32 %v7889, %v8237
      %v8239 = vpop.f32.mrb[0].mxu0
      %v8240 = vpop.f32.mrb[0].mxu0
      %v8241 = vadd.f32 %v7892, %v8240
      %v8242 = vpop.f32.mrb[0].mxu0
      %8243 = vmatprep.mubr.bf16.mxu0 0
      %8244 = vmatmul.mubr.bf16.gmra.mrb[0].mxu0 %v7538
      %v8245 = vpop.f32.mrb[0].mxu0
      %v8246 = vadd.f32 %v7897, %v8245
      %v8247 = vpop.f32.mrb[0].mxu0
      %v8248 = vpop.f32.mrb[0].mxu0
      %v8249 = vadd.f32 %v7900, %v8248
      %v8250 = vpop.f32.mrb[0].mxu0
      %8251 = vmatprep.mubr.bf16.mxu0 0
      %8252 = vmatmul.mubr.bf16.gmra.mrb[0].mxu0 %v7539
      %v8253 = vpop.f32.mrb[0].mxu0
      %v8254 = vadd.f32 %v7905, %v8253
      %v8255 = vpop.f32.mrb[0].mxu0
      %v8256 = vpop.f32.mrb[0].mxu0
      %v8257 = vadd.f32 %v7908, %v8256
      %v8258 = vpop.f32.mrb[0].mxu0
      %8259 = vdwg.mxu0
      %s8260 = scalar_lea.vmem %s4, 384
      %v8261 = vld [vmem:[%s8260] sm:$0xf]
      %v8262 = vld [vmem:[%s8260 + $0x4] sm:$0xf]
      %v8263 = vld [vmem:[%s8260 + $0x8] sm:$0xf]
      %v8264 = vld [vmem:[%s8260 + $0xc] sm:$0xf]
      %v8265 = vld [vmem:[%s8260 + $0x10] sm:$0xf]
      %v8266 = vld [vmem:[%s8260 + $0x14] sm:$0xf]
      %v8267 = vld [vmem:[%s8260 + $0x18] sm:$0xf]
      %v8268 = vld [vmem:[%s8260 + $0x1c] sm:$0xf]
      %v8269 = vld [vmem:[%s8260 + $0x20] sm:$0xf]
      %v8270 = vld [vmem:[%s8260 + $0x24] sm:$0xf]
      %v8271 = vld [vmem:[%s8260 + $0x28] sm:$0xf]
      %v8272 = vld [vmem:[%s8260 + $0x2c] sm:$0xf]
      %v8273 = vld [vmem:[%s8260 + $0x30] sm:$0xf]
      %v8274 = vld [vmem:[%s8260 + $0x34] sm:$0xf]
      %v8275 = vld [vmem:[%s8260 + $0x38] sm:$0xf]
      %v8276 = vld [vmem:[%s8260 + $0x3c] sm:$0xf]
      %v8281 = vunpack.c.l.b16 %v7344
      %v8282 = vunpack.c.l.b16 %v7345
      %v8283 = vunpack.c.l.b16 %v7346
      %v8284 = vunpack.c.l.b16 %v7347
      %v8285 = vpack.c.b16 %v8282, %v8281
      %v8286 = vpack.c.b16 %v8284, %v8283
      %v8305 = vunpack.c.l.b16 %v8261
      %v8306 = vunpack.c.l.b16 %v8262
      %v8307 = vunpack.c.l.b16 %v8263
      %v8308 = vunpack.c.l.b16 %v8264
      %v8309 = vunpack.c.l.b16 %v8265
      %v8310 = vunpack.c.l.b16 %v8266
      %v8311 = vunpack.c.l.b16 %v8267
      %v8312 = vunpack.c.l.b16 %v8268
      %v8313 = vunpack.c.l.b16 %v8269
      %v8314 = vunpack.c.l.b16 %v8270
      %v8315 = vunpack.c.l.b16 %v8271
      %v8316 = vunpack.c.l.b16 %v8272
      %v8317 = vunpack.c.l.b16 %v8273
      %v8318 = vunpack.c.l.b16 %v8274
      %v8319 = vunpack.c.l.b16 %v8275
      %v8320 = vunpack.c.l.b16 %v8276
      %v8321 = vpack.c.b16 %v8306, %v8305
      %v8322 = vpack.c.b16 %v8308, %v8307
      %v8323 = vpack.c.b16 %v8310, %v8309
      %v8324 = vpack.c.b16 %v8312, %v8311
      %v8325 = vpack.c.b16 %v8314, %v8313
      %v8326 = vpack.c.b16 %v8316, %v8315
      %v8327 = vpack.c.b16 %v8318, %v8317
      %v8328 = vpack.c.b16 %v8320, %v8319
      %8337 = vmatprep.subr.bf16.mxu0 0
      %8338 = vmatpush1.bf16.msra.mxu0 %v8321
      %8339 = vmatprep.subr.bf16.mxu0 0
      %8340 = vmatpush1.bf16.msra.mxu0 %v8322
      %8341 = vmatprep.subr.bf16.mxu0 0
      %8342 = vmatpush1.bf16.msra.mxu0 %v8323
      %8343 = vmatprep.subr.bf16.mxu0 0
      %8344 = vmatpush1.bf16.msra.mxu0 %v8324
      %8345 = vmatprep.subr.bf16.mxu0 0
      %8346 = vmatpush1.bf16.msra.mxu0 %v8325
      %8347 = vmatprep.subr.bf16.mxu0 0
      %8348 = vmatpush1.bf16.msra.mxu0 %v8326
      %8349 = vmatprep.subr.bf16.mxu0 0
      %8350 = vmatpush1.bf16.msra.mxu0 %v8327
      %8351 = vmatprep.subr.bf16.mxu0 0
      %8352 = vmatpush1.bf16.msra.mxu0 %v8328
      %8353 = vmatprep.subr.bf16.mxu0 0
      %8354 = vmatpush1.bf16.msra.mxu0 0
      %8355 = vmatprep.subr.bf16.mxu0 0
      %8356 = vmatpush1.bf16.msra.mxu0 0
      %8357 = vmatprep.subr.bf16.mxu0 0
      %8358 = vmatpush1.bf16.msra.mxu0 0
      %8359 = vmatprep.subr.bf16.mxu0 0
      %8360 = vmatpush1.bf16.msra.mxu0 0
      %8361 = vmatprep.subr.bf16.mxu0 0
      %8362 = vmatpush1.bf16.msra.mxu0 0
      %8363 = vmatprep.subr.bf16.mxu0 0
      %8364 = vmatpush1.bf16.msra.mxu0 0
      %8365 = vmatprep.subr.bf16.mxu0 0
      %8366 = vmatpush1.bf16.msra.mxu0 0
      %8367 = vmatprep.subr.bf16.mxu0 0
      %8368 = vmatpush1.bf16.msra.mxu0 0
      %8369 = vmatprep.mubr.bf16.mxu0 0
      %8370 = vmatmul.mubr.bf16.gmra.mrb[0].mxu0 %v7512
      %v8371 = vpop.f32.mrb[0].mxu0
      %v8372 = vadd.f32 0.0, %v8371
      %v8373 = vpop.f32.mrb[0].mxu0
      %v8374 = vpop.f32.mrb[0].mxu0
      %v8375 = vadd.f32 0.0, %v8374
      %v8376 = vpop.f32.mrb[0].mxu0
      %8377 = vmatprep.mubr.bf16.mxu0 0
      %8378 = vmatmul.mubr.bf16.gmra.mrb[0].mxu0 %v7513
      %v8379 = vpop.f32.mrb[0].mxu0
      %v8380 = vadd.f32 0.0, %v8379
      %v8381 = vpop.f32.mrb[0].mxu0
      %v8382 = vpop.f32.mrb[0].mxu0
      %v8383 = vadd.f32 0.0, %v8382
      %v8384 = vpop.f32.mrb[0].mxu0
      %8385 = vmatprep.mubr.bf16.mxu0 0
      %8386 = vmatmul.mubr.bf16.gmra.mrb[0].mxu0 %v7514
      %v8387 = vpop.f32.mrb[0].mxu0
      %v8388 = vadd.f32 0.0, %v8387
      %v8389 = vpop.f32.mrb[0].mxu0
      %v8390 = vpop.f32.mrb[0].mxu0
      %v8391 = vadd.f32 0.0, %v8390
      %v8392 = vpop.f32.mrb[0].mxu0
      %8393 = vmatprep.mubr.bf16.mxu0 0
      %8394 = vmatmul.mubr.bf16.gmra.mrb[0].mxu0 %v7515
      %v8395 = vpop.f32.mrb[0].mxu0
      %v8396 = vadd.f32 0.0, %v8395
      %v8397 = vpop.f32.mrb[0].mxu0
      %v8398 = vpop.f32.mrb[0].mxu0
      %v8399 = vadd.f32 0.0, %v8398
      %v8400 = vpop.f32.mrb[0].mxu0
      %8401 = vmatprep.mubr.bf16.mxu0 0
      %8402 = vmatmul.mubr.bf16.gmra.mrb[0].mxu0 %v7516
      %v8403 = vpop.f32.mrb[0].mxu0
      %v8404 = vadd.f32 0.0, %v8403
      %v8405 = vpop.f32.mrb[0].mxu0
      %v8406 = vpop.f32.mrb[0].mxu0
      %v8407 = vadd.f32 0.0, %v8406
      %v8408 = vpop.f32.mrb[0].mxu0
      %8409 = vmatprep.mubr.bf16.mxu0 0
      %8410 = vmatmul.mubr.bf16.gmra.mrb[0].mxu0 %v7517
      %v8411 = vpop.f32.mrb[0].mxu0
      %v8412 = vadd.f32 0.0, %v8411
      %v8413 = vpop.f32.mrb[0].mxu0
      %v8414 = vpop.f32.mrb[0].mxu0
      %v8415 = vadd.f32 0.0, %v8414
      %v8416 = vpop.f32.mrb[0].mxu0
      %8417 = vmatprep.mubr.bf16.mxu0 0
      %8418 = vmatmul.mubr.bf16.gmra.mrb[0].mxu0 %v7518
      %v8419 = vpop.f32.mrb[0].mxu0
      %v8420 = vadd.f32 0.0, %v8419
      %v8421 = vpop.f32.mrb[0].mxu0
      %v8422 = vpop.f32.mrb[0].mxu0
      %v8423 = vadd.f32 0.0, %v8422
      %v8424 = vpop.f32.mrb[0].mxu0
      %8425 = vmatprep.mubr.bf16.mxu0 0
      %8426 = vmatmul.mubr.bf16.gmra.mrb[0].mxu0 %v7519
      %v8427 = vpop.f32.mrb[0].mxu0
      %v8428 = vadd.f32 0.0, %v8427
      %v8429 = vpop.f32.mrb[0].mxu0
      %v8430 = vpop.f32.mrb[0].mxu0
      %v8431 = vadd.f32 0.0, %v8430
      %v8432 = vpop.f32.mrb[0].mxu0
      %8433 = vmatprep.mubr.bf16.mxu0 0
      %8434 = vmatmul.mubr.bf16.gmra.mrb[0].mxu0 %v7520
      %v8435 = vpop.f32.mrb[0].mxu0
      %v8436 = vadd.f32 0.0, %v8435
      %v8437 = vpop.f32.mrb[0].mxu0
      %v8438 = vpop.f32.mrb[0].mxu0
      %v8439 = vadd.f32 0.0, %v8438
      %v8440 = vpop.f32.mrb[0].mxu0
      %8441 = vmatprep.mubr.bf16.mxu0 0
      %8442 = vmatmul.mubr.bf16.gmra.mrb[0].mxu0 %v7521
      %v8443 = vpop.f32.mrb[0].mxu0
      %v8444 = vadd.f32 0.0, %v8443
      %v8445 = vpop.f32.mrb[0].mxu0
      %v8446 = vpop.f32.mrb[0].mxu0
      %v8447 = vadd.f32 0.0, %v8446
      %v8448 = vpop.f32.mrb[0].mxu0
      %8449 = vmatprep.mubr.bf16.mxu0 0
      %8450 = vmatmul.mubr.bf16.gmra.mrb[0].mxu0 %v7522
      %v8451 = vpop.f32.mrb[0].mxu0
      %v8452 = vadd.f32 0.0, %v8451
      %v8453 = vpop.f32.mrb[0].mxu0
      %v8454 = vpop.f32.mrb[0].mxu0
      %v8455 = vadd.f32 0.0, %v8454
      %v8456 = vpop.f32.mrb[0].mxu0
      %8457 = vmatprep.mubr.bf16.mxu0 0
      %8458 = vmatmul.mubr.bf16.gmra.mrb[0].mxu0 %v7523
      %v8459 = vpop.f32.mrb[0].mxu0
      %v8460 = vadd.f32 0.0, %v8459
      %v8461 = vpop.f32.mrb[0].mxu0
      %v8462 = vpop.f32.mrb[0].mxu0
      %v8463 = vadd.f32 0.0, %v8462
      %v8464 = vpop.f32.mrb[0].mxu0
      %8465 = vmatprep.mubr.bf16.mxu0 0
      %8466 = vmatmul.mubr.bf16.gmra.mrb[0].mxu0 %v7524
      %v8467 = vpop.f32.mrb[0].mxu0
      %v8468 = vadd.f32 0.0, %v8467
      %v8469 = vpop.f32.mrb[0].mxu0
      %v8470 = vpop.f32.mrb[0].mxu0
      %v8471 = vadd.f32 0.0, %v8470
      %v8472 = vpop.f32.mrb[0].mxu0
      %8473 = vmatprep.mubr.bf16.mxu0 0
      %8474 = vmatmul.mubr.bf16.gmra.mrb[0].mxu0 %v7525
      %v8475 = vpop.f32.mrb[0].mxu0
      %v8476 = vadd.f32 0.0, %v8475
      %v8477 = vpop.f32.mrb[0].mxu0
      %v8478 = vpop.f32.mrb[0].mxu0
      %v8479 = vadd.f32 0.0, %v8478
      %v8480 = vpop.f32.mrb[0].mxu0
      %8481 = vmatprep.mubr.bf16.mxu0 0
      %8482 = vmatmul.mubr.bf16.gmra.mrb[0].mxu0 %v7526
      %v8483 = vpop.f32.mrb[0].mxu0
      %v8484 = vadd.f32 0.0, %v8483
      %v8485 = vpop.f32.mrb[0].mxu0
      %v8486 = vpop.f32.mrb[0].mxu0
      %v8487 = vadd.f32 0.0, %v8486
      %v8488 = vpop.f32.mrb[0].mxu0
      %8489 = vmatprep.mubr.bf16.mxu0 0
      %8490 = vmatmul.mubr.bf16.gmra.mrb[0].mxu0 %v7527
      %v8491 = vpop.f32.mrb[0].mxu0
      %v8492 = vadd.f32 0.0, %v8491
      %v8493 = vpop.f32.mrb[0].mxu0
      %v8494 = vpop.f32.mrb[0].mxu0
      %v8495 = vadd.f32 0.0, %v8494
      %v8496 = vpop.f32.mrb[0].mxu0
      %8497 = vmatprep.mubr.bf16.mxu0 0
      %8498 = vmatmul.mubr.bf16.gmra.mrb[0].mxu0 %v7528
      %v8499 = vpop.f32.mrb[0].mxu0
      %v8500 = vadd.f32 0.0, %v8499
      %v8501 = vpop.f32.mrb[0].mxu0
      %v8502 = vpop.f32.mrb[0].mxu0
      %v8503 = vadd.f32 0.0, %v8502
      %v8504 = vpop.f32.mrb[0].mxu0
      %8505 = vmatprep.mubr.bf16.mxu0 0
      %8506 = vmatmul.mubr.bf16.gmra.mrb[0].mxu0 %v7529
      %v8507 = vpop.f32.mrb[0].mxu0
      %v8508 = vadd.f32 0.0, %v8507
      %v8509 = vpop.f32.mrb[0].mxu0
      %v8510 = vpop.f32.mrb[0].mxu0
      %v8511 = vadd.f32 0.0, %v8510
      %v8512 = vpop.f32.mrb[0].mxu0
      %8513 = vmatprep.mubr.bf16.mxu0 0
      %8514 = vmatmul.mubr.bf16.gmra.mrb[0].mxu0 %v7530
      %v8515 = vpop.f32.mrb[0].mxu0
      %v8516 = vadd.f32 0.0, %v8515
      %v8517 = vpop.f32.mrb[0].mxu0
      %v8518 = vpop.f32.mrb[0].mxu0
      %v8519 = vadd.f32 0.0, %v8518
      %v8520 = vpop.f32.mrb[0].mxu0
      %8521 = vmatprep.mubr.bf16.mxu0 0
      %8522 = vmatmul.mubr.bf16.gmra.mrb[0].mxu0 %v7531
      %v8523 = vpop.f32.mrb[0].mxu0
      %v8524 = vadd.f32 0.0, %v8523
      %v8525 = vpop.f32.mrb[0].mxu0
      %v8526 = vpop.f32.mrb[0].mxu0
      %v8527 = vadd.f32 0.0, %v8526
      %v8528 = vpop.f32.mrb[0].mxu0
      %8529 = vmatprep.mubr.bf16.mxu0 0
      %8530 = vmatmul.mubr.bf16.gmra.mrb[0].mxu0 %v7532
      %v8531 = vpop.f32.mrb[0].mxu0
      %v8532 = vadd.f32 0.0, %v8531
      %v8533 = vpop.f32.mrb[0].mxu0
      %v8534 = vpop.f32.mrb[0].mxu0
      %v8535 = vadd.f32 0.0, %v8534
      %v8536 = vpop.f32.mrb[0].mxu0
      %8537 = vmatprep.mubr.bf16.mxu0 0
      %8538 = vmatmul.mubr.bf16.gmra.mrb[0].mxu0 %v7533
      %v8539 = vpop.f32.mrb[0].mxu0
      %v8540 = vadd.f32 0.0, %v8539
      %v8541 = vpop.f32.mrb[0].mxu0
      %v8542 = vpop.f32.mrb[0].mxu0
      %v8543 = vadd.f32 0.0, %v8542
      %v8544 = vpop.f32.mrb[0].mxu0
      %8545 = vmatprep.mubr.bf16.mxu0 0
      %8546 = vmatmul.mubr.bf16.gmra.mrb[0].mxu0 %v7534
      %v8547 = vpop.f32.mrb[0].mxu0
      %v8548 = vadd.f32 0.0, %v8547
      %v8549 = vpop.f32.mrb[0].mxu0
      %v8550 = vpop.f32.mrb[0].mxu0
      %v8551 = vadd.f32 0.0, %v8550
      %v8552 = vpop.f32.mrb[0].mxu0
      %8553 = vmatprep.mubr.bf16.mxu0 0
      %8554 = vmatmul.mubr.bf16.gmra.mrb[0].mxu0 %v7535
      %v8555 = vpop.f32.mrb[0].mxu0
      %v8556 = vadd.f32 0.0, %v8555
      %v8557 = vpop.f32.mrb[0].mxu0
      %v8558 = vpop.f32.mrb[0].mxu0
      %v8559 = vadd.f32 0.0, %v8558
      %v8560 = vpop.f32.mrb[0].mxu0
      %8561 = vmatprep.mubr.bf16.mxu0 0
      %8562 = vmatmul.mubr.bf16.gmra.mrb[0].mxu0 %v7536
      %v8563 = vpop.f32.mrb[0].mxu0
      %v8564 = vadd.f32 0.0, %v8563
      %v8565 = vpop.f32.mrb[0].mxu0
      %v8566 = vpop.f32.mrb[0].mxu0
      %v8567 = vadd.f32 0.0, %v8566
      %v8568 = vpop.f32.mrb[0].mxu0
      %8569 = vmatprep.mubr.bf16.mxu0 0
      %8570 = vmatmul.mubr.bf16.gmra.mrb[0].mxu0 %v7537
      %v8571 = vpop.f32.mrb[0].mxu0
      %v8572 = vadd.f32 0.0, %v8571
      %v8573 = vpop.f32.mrb[0].mxu0
      %v8574 = vpop.f32.mrb[0].mxu0
      %v8575 = vadd.f32 0.0, %v8574
      %v8576 = vpop.f32.mrb[0].mxu0
      %8577 = vmatprep.mubr.bf16.mxu0 0
      %8578 = vmatmul.mubr.bf16.gmra.mrb[0].mxu0 %v7538
      %v8579 = vpop.f32.mrb[0].mxu0
      %v8580 = vadd.f32 0.0, %v8579
      %v8581 = vpop.f32.mrb[0].mxu0
      %v8582 = vpop.f32.mrb[0].mxu0
      %v8583 = vadd.f32 0.0, %v8582
      %v8584 = vpop.f32.mrb[0].mxu0
      %8585 = vmatprep.mubr.bf16.mxu0 0
      %8586 = vmatmul.mubr.bf16.gmra.mrb[0].mxu0 %v7539
      %v8587 = vpop.f32.mrb[0].mxu0
      %v8588 = vadd.f32 0.0, %v8587
      %v8589 = vpop.f32.mrb[0].mxu0
      %v8590 = vpop.f32.mrb[0].mxu0
      %v8591 = vadd.f32 0.0, %v8590
      %v8592 = vpop.f32.mrb[0].mxu0
      %8593 = vmatprep.mubr.bf16.mxu0 0
      %8594 = vmatmul.mubr.bf16.gmra.mrb[0].mxu0 %v7540
      %v8595 = vpop.f32.mrb[0].mxu0
      %v8596 = vadd.f32 0.0, %v8595
      %v8597 = vpop.f32.mrb[0].mxu0
      %v8598 = vpop.f32.mrb[0].mxu0
      %v8599 = vadd.f32 0.0, %v8598
      %v8600 = vpop.f32.mrb[0].mxu0
      %8601 = vmatprep.mubr.bf16.mxu0 0
      %8602 = vmatmul.mubr.bf16.gmra.mrb[0].mxu0 %v7541
      %v8603 = vpop.f32.mrb[0].mxu0
      %v8604 = vadd.f32 0.0, %v8603
      %v8605 = vpop.f32.mrb[0].mxu0
      %v8606 = vpop.f32.mrb[0].mxu0
      %v8607 = vadd.f32 0.0, %v8606
      %v8608 = vpop.f32.mrb[0].mxu0
      %8609 = vmatprep.mubr.bf16.mxu0 0
      %8610 = vmatmul.mubr.bf16.gmra.mrb[0].mxu0 %v8285
      %v8611 = vpop.f32.mrb[0].mxu0
      %v8612 = vadd.f32 0.0, %v8611
      %v8613 = vpop.f32.mrb[0].mxu0
      %v8614 = vpop.f32.mrb[0].mxu0
      %v8615 = vadd.f32 0.0, %v8614
      %v8616 = vpop.f32.mrb[0].mxu0
      %8617 = vmatprep.mubr.bf16.mxu0 0
      %8618 = vmatmul.mubr.bf16.gmra.mrb[0].mxu0 %v8286
      %v8619 = vpop.f32.mrb[0].mxu0
      %v8620 = vadd.f32 0.0, %v8619
      %v8621 = vpop.f32.mrb[0].mxu0
      %v8622 = vpop.f32.mrb[0].mxu0
      %v8623 = vadd.f32 0.0, %v8622
      %v8624 = vpop.f32.mrb[0].mxu0
      %8625 = vdwg.mxu0
      %v8626 = vadd.f32 %v8006, %v8372
      %v8627 = vadd.f32 %v8009, %v8375
      %v8628 = vadd.f32 %v8014, %v8380
      %v8629 = vadd.f32 %v8017, %v8383
      %v8630 = vadd.f32 %v8022, %v8388
      %v8631 = vadd.f32 %v8025, %v8391
      %v8632 = vadd.f32 %v8030, %v8396
      %v8633 = vadd.f32 %v8033, %v8399
      %v8634 = vadd.f32 %v8038, %v8404
      %v8635 = vadd.f32 %v8041, %v8407
      %v8636 = vadd.f32 %v8046, %v8412
      %v8637 = vadd.f32 %v8049, %v8415
      %v8638 = vadd.f32 %v8054, %v8420
      %v8639 = vadd.f32 %v8057, %v8423
      %v8640 = vadd.f32 %v8062, %v8428
      %v8641 = vadd.f32 %v8065, %v8431
      %v8642 = vadd.f32 %v8070, %v8436
      %v8643 = vadd.f32 %v8073, %v8439
      %v8644 = vadd.f32 %v8078, %v8444
      %v8645 = vadd.f32 %v8081, %v8447
      %v8646 = vadd.f32 %v8086, %v8452
      %v8647 = vadd.f32 %v8089, %v8455
      %v8648 = vadd.f32 %v8094, %v8460
      %v8649 = vadd.f32 %v8097, %v8463
      %v8650 = vadd.f32 %v8102, %v8468
      %v8651 = vadd.f32 %v8105, %v8471
      %v8652 = vadd.f32 %v8110, %v8476
      %v8653 = vadd.f32 %v8113, %v8479
      %v8654 = vadd.f32 %v8118, %v8484
      %v8655 = vadd.f32 %v8121, %v8487
      %v8656 = vadd.f32 %v8126, %v8492
      %v8657 = vadd.f32 %v8129, %v8495
      %v8658 = vadd.f32 %v8134, %v8500
      %v8659 = vadd.f32 %v8137, %v8503
      %v8660 = vadd.f32 %v8142, %v8508
      %v8661 = vadd.f32 %v8145, %v8511
      %v8662 = vadd.f32 %v8150, %v8516
      %v8663 = vadd.f32 %v8153, %v8519
      %v8664 = vadd.f32 %v8158, %v8524
      %v8665 = vadd.f32 %v8161, %v8527
      %v8666 = vadd.f32 %v8166, %v8532
      %v8667 = vadd.f32 %v8169, %v8535
      %v8668 = vadd.f32 %v8174, %v8540
      %v8669 = vadd.f32 %v8177, %v8543
      %v8670 = vadd.f32 %v8182, %v8548
      %v8671 = vadd.f32 %v8185, %v8551
      %v8672 = vadd.f32 %v8190, %v8556
      %v8673 = vadd.f32 %v8193, %v8559
      %v8674 = vadd.f32 %v8198, %v8564
      %v8675 = vadd.f32 %v8201, %v8567
      %v8676 = vadd.f32 %v8206, %v8572
      %v8677 = vadd.f32 %v8209, %v8575
      %v8678 = vadd.f32 %v8214, %v8580
      %v8679 = vadd.f32 %v8217, %v8583
      %v8680 = vadd.f32 %v8222, %v8588
      %v8681 = vadd.f32 %v8225, %v8591
      %v8682 = vadd.f32 %v8230, %v8596
      %v8683 = vadd.f32 %v8233, %v8599
      %v8684 = vadd.f32 %v8238, %v8604
      %v8685 = vadd.f32 %v8241, %v8607
      %v8686 = vadd.f32 %v8246, %v8612
      %v8687 = vadd.f32 %v8249, %v8615
      %v8688 = vadd.f32 %v8254, %v8620
      %v8689 = vadd.f32 %v8257, %v8623
      %v8691 = vshrl.u32 %v7259, 16
      %v8693 = vrot.slane %v8691, 4
      %v8694 = vshll.u32 %v7259, 16
      %v8696 = vrot.slane %v8694, 5
      %v8697 = vor.u32 %v8693, %v8696
      %v8698 = vrot.slane %v8697, 4
      %v8700 = vshll.u32 %v7260, 16
      %v8702 = vrot.slane %v8700, 5
      %v8703 = vsel %vm1782, %v8698, %v8702
      %v8704 = vshrl.u32 %v7260, 16
      %v8706 = vrot.slane %v8704, 4
      %v8707 = vor.u32 %v8706, %v8702
      %v8708 = vrot.slane %v8707, 4
      %v8710 = vshll.u32 %v7261, 16
      %v8712 = vrot.slane %v8710, 5
      %v8713 = vsel %vm1782, %v8708, %v8712
      %v8714 = vshrl.u32 %v7261, 16
      %v8716 = vrot.slane %v8714, 4
      %v8717 = vor.u32 %v8716, %v8712
      %v8718 = vrot.slane %v8717, 4
      %v8720 = vshll.u32 %v7262, 16
      %v8722 = vrot.slane %v8720, 5
      %v8723 = vsel %vm1782, %v8718, %v8722
      %v8724 = vshrl.u32 %v7262, 16
      %v8726 = vrot.slane %v8724, 4
      %v8727 = vor.u32 %v8726, %v8722
      %v8728 = vrot.slane %v8727, 4
      %v8730 = vshll.u32 %v7263, 16
      %v8732 = vrot.slane %v8730, 5
      %v8733 = vsel %vm1782, %v8728, %v8732
      %v8735 = vshrl.u32 %v7264, 16
      %v8737 = vrot.slane %v8735, 4
      %v8738 = vshll.u32 %v7264, 16
      %v8740 = vrot.slane %v8738, 5
      %v8741 = vor.u32 %v8737, %v8740
      %v8742 = vrot.slane %v8741, 4
      %v8744 = vshll.u32 %v7265, 16
      %v8746 = vrot.slane %v8744, 5
      %v8747 = vsel %vm1782, %v8742, %v8746
      %v8748 = vshrl.u32 %v7265, 16
      %v8750 = vrot.slane %v8748, 4
      %v8751 = vor.u32 %v8750, %v8746
      %v8752 = vrot.slane %v8751, 4
      %v8754 = vshll.u32 %v7266, 16
      %v8756 = vrot.slane %v8754, 5
      %v8757 = vsel %vm1782, %v8752, %v8756
      %v8758 = vshrl.u32 %v7266, 16
      %v8760 = vrot.slane %v8758, 4
      %v8761 = vor.u32 %v8760, %v8756
      %v8762 = vrot.slane %v8761, 4
      %v8764 = vshll.u32 %v7267, 16
      %v8766 = vrot.slane %v8764, 5
      %v8767 = vsel %vm1782, %v8762, %v8766
      %v8768 = vshrl.u32 %v7267, 16
      %v8770 = vrot.slane %v8768, 4
      %v8771 = vor.u32 %v8770, %v8766
      %v8772 = vrot.slane %v8771, 4
      %v8774 = vshll.u32 %v7268, 16
      %v8776 = vrot.slane %v8774, 5
      %v8777 = vsel %vm1782, %v8772, %v8776
      %v8779 = vshrl.u32 %v7269, 16
      %v8781 = vrot.slane %v8779, 4
      %v8782 = vshll.u32 %v7269, 16
      %v8784 = vrot.slane %v8782, 5
      %v8785 = vor.u32 %v8781, %v8784
      %v8786 = vrot.slane %v8785, 4
      %v8788 = vshll.u32 %v7270, 16
      %v8790 = vrot.slane %v8788, 5
      %v8791 = vsel %vm1782, %v8786, %v8790
      %v8792 = vshrl.u32 %v7270, 16
      %v8794 = vrot.slane %v8792, 4
      %v8795 = vor.u32 %v8794, %v8790
      %v8796 = vrot.slane %v8795, 4
      %v8798 = vshll.u32 %v7271, 16
      %v8800 = vrot.slane %v8798, 5
      %v8801 = vsel %vm1782, %v8796, %v8800
      %v8802 = vshrl.u32 %v7271, 16
      %v8804 = vrot.slane %v8802, 4
      %v8805 = vor.u32 %v8804, %v8800
      %v8806 = vrot.slane %v8805, 4
      %v8808 = vshll.u32 %v7272, 16
      %v8810 = vrot.slane %v8808, 5
      %v8811 = vsel %vm1782, %v8806, %v8810
      %v8812 = vshrl.u32 %v7272, 16
      %v8814 = vrot.slane %v8812, 4
      %v8815 = vor.u32 %v8814, %v8810
      %v8816 = vrot.slane %v8815, 4
      %v8818 = vshll.u32 %v7273, 16
      %v8820 = vrot.slane %v8818, 5
      %v8821 = vsel %vm1782, %v8816, %v8820
      %v8823 = vshrl.u32 %v7274, 16
      %v8825 = vrot.slane %v8823, 4
      %v8826 = vshll.u32 %v7274, 16
      %v8828 = vrot.slane %v8826, 5
      %v8829 = vor.u32 %v8825, %v8828
      %v8830 = vrot.slane %v8829, 4
      %v8832 = vshll.u32 %v7275, 16
      %v8834 = vrot.slane %v8832, 5
      %v8835 = vsel %vm1782, %v8830, %v8834
      %v8836 = vshrl.u32 %v7275, 16
      %v8838 = vrot.slane %v8836, 4
      %v8839 = vor.u32 %v8838, %v8834
      %v8840 = vrot.slane %v8839, 4
      %v8842 = vshll.u32 %v7276, 16
      %v8844 = vrot.slane %v8842, 5
      %v8845 = vsel %vm1782, %v8840, %v8844
      %v8846 = vshrl.u32 %v7276, 16
      %v8848 = vrot.slane %v8846, 4
      %v8849 = vor.u32 %v8848, %v8844
      %v8850 = vrot.slane %v8849, 4
      %v8852 = vshll.u32 %v7277, 16
      %v8854 = vrot.slane %v8852, 5
      %v8855 = vsel %vm1782, %v8850, %v8854
      %v8856 = vshrl.u32 %v7277, 16
      %v8858 = vrot.slane %v8856, 4
      %v8859 = vor.u32 %v8858, %v8854
      %v8860 = vrot.slane %v8859, 4
      %v8862 = vshll.u32 %v7278, 16
      %v8864 = vrot.slane %v8862, 5
      %v8865 = vsel %vm1782, %v8860, %v8864
      %v8867 = vshrl.u32 %v7279, 16
      %v8869 = vrot.slane %v8867, 4
      %v8870 = vshll.u32 %v7279, 16
      %v8872 = vrot.slane %v8870, 5
      %v8873 = vor.u32 %v8869, %v8872
      %v8874 = vrot.slane %v8873, 4
      %v8876 = vshll.u32 %v7280, 16
      %v8878 = vrot.slane %v8876, 5
      %v8879 = vsel %vm1782, %v8874, %v8878
      %v8880 = vshrl.u32 %v7280, 16
      %v8882 = vrot.slane %v8880, 4
      %v8883 = vor.u32 %v8882, %v8878
      %v8884 = vrot.slane %v8883, 4
      %v8886 = vshll.u32 %v7281, 16
      %v8888 = vrot.slane %v8886, 5
      %v8889 = vsel %vm1782, %v8884, %v8888
      %v8890 = vshrl.u32 %v7281, 16
      %v8892 = vrot.slane %v8890, 4
      %v8893 = vor.u32 %v8892, %v8888
      %v8894 = vrot.slane %v8893, 4
      %v8896 = vshll.u32 %v7282, 16
      %v8898 = vrot.slane %v8896, 5
      %v8899 = vsel %vm1782, %v8894, %v8898
      %v8900 = vshrl.u32 %v7282, 16
      %v8902 = vrot.slane %v8900, 4
      %v8903 = vor.u32 %v8902, %v8898
      %v8904 = vrot.slane %v8903, 4
      %v8906 = vshll.u32 %v7283, 16
      %v8908 = vrot.slane %v8906, 5
      %v8909 = vsel %vm1782, %v8904, %v8908
      %v8911 = vshrl.u32 %v7284, 16
      %v8913 = vrot.slane %v8911, 4
      %v8914 = vshll.u32 %v7284, 16
      %v8916 = vrot.slane %v8914, 5
      %v8917 = vor.u32 %v8913, %v8916
      %v8918 = vrot.slane %v8917, 4
      %v8920 = vshll.u32 %v7285, 16
      %v8922 = vrot.slane %v8920, 5
      %v8923 = vsel %vm1782, %v8918, %v8922
      %v8924 = vshrl.u32 %v7285, 16
      %v8926 = vrot.slane %v8924, 4
      %v8927 = vor.u32 %v8926, %v8922
      %v8928 = vrot.slane %v8927, 4
      %v8930 = vshll.u32 %v7286, 16
      %v8932 = vrot.slane %v8930, 5
      %v8933 = vsel %vm1782, %v8928, %v8932
      %v8934 = vshrl.u32 %v7286, 16
      %v8936 = vrot.slane %v8934, 4
      %v8937 = vor.u32 %v8936, %v8932
      %v8938 = vrot.slane %v8937, 4
      %v8940 = vshll.u32 %v7287, 16
      %v8942 = vrot.slane %v8940, 5
      %v8943 = vsel %vm1782, %v8938, %v8942
      %v8944 = vshrl.u32 %v7287, 16
      %v8946 = vrot.slane %v8944, 4
      %v8947 = vor.u32 %v8946, %v8942
      %v8948 = vrot.slane %v8947, 4
      %v8950 = vshll.u32 %v7288, 16
      %v8952 = vrot.slane %v8950, 5
      %v8953 = vsel %vm1782, %v8948, %v8952
      %v8955 = vshrl.u32 %v7289, 16
      %v8957 = vrot.slane %v8955, 4
      %v8958 = vshll.u32 %v7289, 16
      %v8960 = vrot.slane %v8958, 5
      %v8961 = vor.u32 %v8957, %v8960
      %v8962 = vrot.slane %v8961, 4
      %v8964 = vshll.u32 %v7290, 16
      %v8966 = vrot.slane %v8964, 5
      %v8967 = vsel %vm1782, %v8962, %v8966
      %v8968 = vshrl.u32 %v7290, 16
      %v8970 = vrot.slane %v8968, 4
      %v8971 = vor.u32 %v8970, %v8966
      %v8972 = vrot.slane %v8971, 4
      %v8974 = vshll.u32 %v7291, 16
      %v8976 = vrot.slane %v8974, 5
      %v8977 = vsel %vm1782, %v8972, %v8976
      %v8978 = vshrl.u32 %v7291, 16
      %v8980 = vrot.slane %v8978, 4
      %v8981 = vor.u32 %v8980, %v8976
      %v8982 = vrot.slane %v8981, 4
      %v8984 = vshll.u32 %v7292, 16
      %v8986 = vrot.slane %v8984, 5
      %v8987 = vsel %vm1782, %v8982, %v8986
      %v8988 = vshrl.u32 %v7292, 16
      %v8990 = vrot.slane %v8988, 4
      %v8991 = vor.u32 %v8990, %v8986
      %v8992 = vrot.slane %v8991, 4
      %v8994 = vshll.u32 %v7293, 16
      %v8996 = vrot.slane %v8994, 5
      %v8997 = vsel %vm1782, %v8992, %v8996
      %v8999 = vshrl.u32 %v7294, 16
      %v9001 = vrot.slane %v8999, 4
      %v9002 = vshll.u32 %v7294, 16
      %v9004 = vrot.slane %v9002, 5
      %v9005 = vor.u32 %v9001, %v9004
      %v9006 = vrot.slane %v9005, 4
      %v9008 = vshll.u32 %v7295, 16
      %v9010 = vrot.slane %v9008, 5
      %v9011 = vsel %vm1782, %v9006, %v9010
      %v9012 = vshrl.u32 %v7295, 16
      %v9014 = vrot.slane %v9012, 4
      %v9015 = vor.u32 %v9014, %v9010
      %v9016 = vrot.slane %v9015, 4
      %v9018 = vshll.u32 %v7296, 16
      %v9020 = vrot.slane %v9018, 5
      %v9021 = vsel %vm1782, %v9016, %v9020
      %v9022 = vshrl.u32 %v7296, 16
      %v9024 = vrot.slane %v9022, 4
      %v9025 = vor.u32 %v9024, %v9020
      %v9026 = vrot.slane %v9025, 4
      %v9028 = vshll.u32 %v7297, 16
      %v9030 = vrot.slane %v9028, 5
      %v9031 = vsel %vm1782, %v9026, %v9030
      %v9032 = vshrl.u32 %v7297, 16
      %v9034 = vrot.slane %v9032, 4
      %v9035 = vor.u32 %v9034, %v9030
      %v9036 = vrot.slane %v9035, 4
      %v9038 = vshll.u32 %v7298, 16
      %v9040 = vrot.slane %v9038, 5
      %v9041 = vsel %vm1782, %v9036, %v9040
      %v9043 = vshrl.u32 %v7299, 16
      %v9045 = vrot.slane %v9043, 4
      %v9046 = vshll.u32 %v7299, 16
      %v9048 = vrot.slane %v9046, 5
      %v9049 = vor.u32 %v9045, %v9048
      %v9050 = vrot.slane %v9049, 4
      %v9052 = vshll.u32 %v7300, 16
      %v9054 = vrot.slane %v9052, 5
      %v9055 = vsel %vm1782, %v9050, %v9054
      %v9056 = vshrl.u32 %v7300, 16
      %v9058 = vrot.slane %v9056, 4
      %v9059 = vor.u32 %v9058, %v9054
      %v9060 = vrot.slane %v9059, 4
      %v9062 = vshll.u32 %v7301, 16
      %v9064 = vrot.slane %v9062, 5
      %v9065 = vsel %vm1782, %v9060, %v9064
      %v9066 = vshrl.u32 %v7301, 16
      %v9068 = vrot.slane %v9066, 4
      %v9069 = vor.u32 %v9068, %v9064
      %v9070 = vrot.slane %v9069, 4
      %v9072 = vshll.u32 %v7302, 16
      %v9074 = vrot.slane %v9072, 5
      %v9075 = vsel %vm1782, %v9070, %v9074
      %v9076 = vshrl.u32 %v7302, 16
      %v9078 = vrot.slane %v9076, 4
      %v9079 = vor.u32 %v9078, %v9074
      %v9080 = vrot.slane %v9079, 4
      %v9082 = vshll.u32 %v7303, 16
      %v9084 = vrot.slane %v9082, 5
      %v9085 = vsel %vm1782, %v9080, %v9084
      %v9087 = vshrl.u32 %v7304, 16
      %v9089 = vrot.slane %v9087, 4
      %v9090 = vshll.u32 %v7304, 16
      %v9092 = vrot.slane %v9090, 5
      %v9093 = vor.u32 %v9089, %v9092
      %v9094 = vrot.slane %v9093, 4
      %v9096 = vshll.u32 %v7305, 16
      %v9098 = vrot.slane %v9096, 5
      %v9099 = vsel %vm1782, %v9094, %v9098
      %v9100 = vshrl.u32 %v7305, 16
      %v9102 = vrot.slane %v9100, 4
      %v9103 = vor.u32 %v9102, %v9098
      %v9104 = vrot.slane %v9103, 4
      %v9106 = vshll.u32 %v7306, 16
      %v9108 = vrot.slane %v9106, 5
      %v9109 = vsel %vm1782, %v9104, %v9108
      %v9110 = vshrl.u32 %v7306, 16
      %v9112 = vrot.slane %v9110, 4
      %v9113 = vor.u32 %v9112, %v9108
      %v9114 = vrot.slane %v9113, 4
      %v9116 = vshll.u32 %v7307, 16
      %v9118 = vrot.slane %v9116, 5
      %v9119 = vsel %vm1782, %v9114, %v9118
      %v9120 = vshrl.u32 %v7307, 16
      %v9122 = vrot.slane %v9120, 4
      %v9123 = vor.u32 %v9122, %v9118
      %v9124 = vrot.slane %v9123, 4
      %v9126 = vshll.u32 %v7308, 16
      %v9128 = vrot.slane %v9126, 5
      %v9129 = vsel %vm1782, %v9124, %v9128
      %v9131 = vshrl.u32 %v7309, 16
      %v9133 = vrot.slane %v9131, 4
      %v9134 = vshll.u32 %v7309, 16
      %v9136 = vrot.slane %v9134, 5
      %v9137 = vor.u32 %v9133, %v9136
      %v9138 = vrot.slane %v9137, 4
      %v9140 = vshll.u32 %v7310, 16
      %v9142 = vrot.slane %v9140, 5
      %v9143 = vsel %vm1782, %v9138, %v9142
      %v9144 = vshrl.u32 %v7310, 16
      %v9146 = vrot.slane %v9144, 4
      %v9147 = vor.u32 %v9146, %v9142
      %v9148 = vrot.slane %v9147, 4
      %v9150 = vshll.u32 %v7311, 16
      %v9152 = vrot.slane %v9150, 5
      %v9153 = vsel %vm1782, %v9148, %v9152
      %v9154 = vshrl.u32 %v7311, 16
      %v9156 = vrot.slane %v9154, 4
      %v9157 = vor.u32 %v9156, %v9152
      %v9158 = vrot.slane %v9157, 4
      %v9160 = vshll.u32 %v7312, 16
      %v9162 = vrot.slane %v9160, 5
      %v9163 = vsel %vm1782, %v9158, %v9162
      %v9164 = vshrl.u32 %v7312, 16
      %v9166 = vrot.slane %v9164, 4
      %v9167 = vor.u32 %v9166, %v9162
      %v9168 = vrot.slane %v9167, 4
      %v9170 = vshll.u32 %v7313, 16
      %v9172 = vrot.slane %v9170, 5
      %v9173 = vsel %vm1782, %v9168, %v9172
      %v9175 = vshrl.u32 %v7314, 16
      %v9177 = vrot.slane %v9175, 4
      %v9178 = vshll.u32 %v7314, 16
      %v9180 = vrot.slane %v9178, 5
      %v9181 = vor.u32 %v9177, %v9180
      %v9182 = vrot.slane %v9181, 4
      %v9184 = vshll.u32 %v7315, 16
      %v9186 = vrot.slane %v9184, 5
      %v9187 = vsel %vm1782, %v9182, %v9186
      %v9188 = vshrl.u32 %v7315, 16
      %v9190 = vrot.slane %v9188, 4
      %v9191 = vor.u32 %v9190, %v9186
      %v9192 = vrot.slane %v9191, 4
      %v9194 = vshll.u32 %v7316, 16
      %v9196 = vrot.slane %v9194, 5
      %v9197 = vsel %vm1782, %v9192, %v9196
      %v9198 = vshrl.u32 %v7316, 16
      %v9200 = vrot.slane %v9198, 4
      %v9201 = vor.u32 %v9200, %v9196
      %v9202 = vrot.slane %v9201, 4
      %v9204 = vshll.u32 %v7317, 16
      %v9206 = vrot.slane %v9204, 5
      %v9207 = vsel %vm1782, %v9202, %v9206
      %v9208 = vshrl.u32 %v7317, 16
      %v9210 = vrot.slane %v9208, 4
      %v9211 = vor.u32 %v9210, %v9206
      %v9212 = vrot.slane %v9211, 4
      %v9214 = vshll.u32 %v7318, 16
      %v9216 = vrot.slane %v9214, 5
      %v9217 = vsel %vm1782, %v9212, %v9216
      %v9219 = vshrl.u32 %v7319, 16
      %v9221 = vrot.slane %v9219, 4
      %v9222 = vshll.u32 %v7319, 16
      %v9224 = vrot.slane %v9222, 5
      %v9225 = vor.u32 %v9221, %v9224
      %v9226 = vrot.slane %v9225, 4
      %v9228 = vshll.u32 %v7320, 16
      %v9230 = vrot.slane %v9228, 5
      %v9231 = vsel %vm1782, %v9226, %v9230
      %v9232 = vshrl.u32 %v7320, 16
      %v9234 = vrot.slane %v9232, 4
      %v9235 = vor.u32 %v9234, %v9230
      %v9236 = vrot.slane %v9235, 4
      %v9238 = vshll.u32 %v7321, 16
      %v9240 = vrot.slane %v9238, 5
      %v9241 = vsel %vm1782, %v9236, %v9240
      %v9242 = vshrl.u32 %v7321, 16
      %v9244 = vrot.slane %v9242, 4
      %v9245 = vor.u32 %v9244, %v9240
      %v9246 = vrot.slane %v9245, 4
      %v9248 = vshll.u32 %v7322, 16
      %v9250 = vrot.slane %v9248, 5
      %v9251 = vsel %vm1782, %v9246, %v9250
      %v9252 = vshrl.u32 %v7322, 16
      %v9254 = vrot.slane %v9252, 4
      %v9255 = vor.u32 %v9254, %v9250
      %v9256 = vrot.slane %v9255, 4
      %v9258 = vshll.u32 %v7323, 16
      %v9260 = vrot.slane %v9258, 5
      %v9261 = vsel %vm1782, %v9256, %v9260
      %v9263 = vshrl.u32 %v7324, 16
      %v9265 = vrot.slane %v9263, 4
      %v9266 = vshll.u32 %v7324, 16
      %v9268 = vrot.slane %v9266, 5
      %v9269 = vor.u32 %v9265, %v9268
      %v9270 = vrot.slane %v9269, 4
      %v9272 = vshll.u32 %v7325, 16
      %v9274 = vrot.slane %v9272, 5
      %v9275 = vsel %vm1782, %v9270, %v9274
      %v9276 = vshrl.u32 %v7325, 16
      %v9278 = vrot.slane %v9276, 4
      %v9279 = vor.u32 %v9278, %v9274
      %v9280 = vrot.slane %v9279, 4
      %v9282 = vshll.u32 %v7326, 16
      %v9284 = vrot.slane %v9282, 5
      %v9285 = vsel %vm1782, %v9280, %v9284
      %v9286 = vshrl.u32 %v7326, 16
      %v9288 = vrot.slane %v9286, 4
      %v9289 = vor.u32 %v9288, %v9284
      %v9290 = vrot.slane %v9289, 4
      %v9292 = vshll.u32 %v7327, 16
      %v9294 = vrot.slane %v9292, 5
      %v9295 = vsel %vm1782, %v9290, %v9294
      %v9296 = vshrl.u32 %v7327, 16
      %v9298 = vrot.slane %v9296, 4
      %v9299 = vor.u32 %v9298, %v9294
      %v9300 = vrot.slane %v9299, 4
      %v9302 = vshll.u32 %v7328, 16
      %v9304 = vrot.slane %v9302, 5
      %v9305 = vsel %vm1782, %v9300, %v9304
      %v9307 = vshrl.u32 %v7329, 16
      %v9309 = vrot.slane %v9307, 4
      %v9310 = vshll.u32 %v7329, 16
      %v9312 = vrot.slane %v9310, 5
      %v9313 = vor.u32 %v9309, %v9312
      %v9314 = vrot.slane %v9313, 4
      %v9316 = vshll.u32 %v7330, 16
      %v9318 = vrot.slane %v9316, 5
      %v9319 = vsel %vm1782, %v9314, %v9318
      %v9320 = vshrl.u32 %v7330, 16
      %v9322 = vrot.slane %v9320, 4
      %v9323 = vor.u32 %v9322, %v9318
      %v9324 = vrot.slane %v9323, 4
      %v9326 = vshll.u32 %v7331, 16
      %v9328 = vrot.slane %v9326, 5
      %v9329 = vsel %vm1782, %v9324, %v9328
      %v9330 = vshrl.u32 %v7331, 16
      %v9332 = vrot.slane %v9330, 4
      %v9333 = vor.u32 %v9332, %v9328
      %v9334 = vrot.slane %v9333, 4
      %v9336 = vshll.u32 %v7332, 16
      %v9338 = vrot.slane %v9336, 5
      %v9339 = vsel %vm1782, %v9334, %v9338
      %v9340 = vshrl.u32 %v7332, 16
      %v9342 = vrot.slane %v9340, 4
      %v9343 = vor.u32 %v9342, %v9338
      %v9344 = vrot.slane %v9343, 4
      %v9346 = vshll.u32 %v7333, 16
      %v9348 = vrot.slane %v9346, 5
      %v9349 = vsel %vm1782, %v9344, %v9348
      %v9351 = vshrl.u32 %v7334, 16
      %v9353 = vrot.slane %v9351, 4
      %v9354 = vshll.u32 %v7334, 16
      %v9356 = vrot.slane %v9354, 5
      %v9357 = vor.u32 %v9353, %v9356
      %v9358 = vrot.slane %v9357, 4
      %v9360 = vshll.u32 %v7335, 16
      %v9362 = vrot.slane %v9360, 5
      %v9363 = vsel %vm1782, %v9358, %v9362
      %v9364 = vshrl.u32 %v7335, 16
      %v9366 = vrot.slane %v9364, 4
      %v9367 = vor.u32 %v9366, %v9362
      %v9368 = vrot.slane %v9367, 4
      %v9370 = vshll.u32 %v7336, 16
      %v9372 = vrot.slane %v9370, 5
      %v9373 = vsel %vm1782, %v9368, %v9372
      %v9374 = vshrl.u32 %v7336, 16
      %v9376 = vrot.slane %v9374, 4
      %v9377 = vor.u32 %v9376, %v9372
      %v9378 = vrot.slane %v9377, 4
      %v9380 = vshll.u32 %v7337, 16
      %v9382 = vrot.slane %v9380, 5
      %v9383 = vsel %vm1782, %v9378, %v9382
      %v9384 = vshrl.u32 %v7337, 16
      %v9386 = vrot.slane %v9384, 4
      %v9387 = vor.u32 %v9386, %v9382
      %v9388 = vrot.slane %v9387, 4
      %v9390 = vshll.u32 %v7338, 16
      %v9392 = vrot.slane %v9390, 5
      %v9393 = vsel %vm1782, %v9388, %v9392
      %s9394 = scalar_lea.vmem %s4, 64
      %v9395 = vld [vmem:[%s9394] sm:$0xf]
      %v9396 = vld [vmem:[%s9394 + $0x4] sm:$0xf]
      %v9397 = vld [vmem:[%s9394 + $0x8] sm:$0xf]
      %v9398 = vld [vmem:[%s9394 + $0xc] sm:$0xf]
      %v9399 = vld [vmem:[%s9394 + $0x10] sm:$0xf]
      %v9400 = vld [vmem:[%s9394 + $0x14] sm:$0xf]
      %v9401 = vld [vmem:[%s9394 + $0x18] sm:$0xf]
      %v9402 = vld [vmem:[%s9394 + $0x1c] sm:$0xf]
      %v9403 = vld [vmem:[%s9394 + $0x20] sm:$0xf]
      %v9404 = vld [vmem:[%s9394 + $0x24] sm:$0xf]
      %v9405 = vld [vmem:[%s9394 + $0x28] sm:$0xf]
      %v9406 = vld [vmem:[%s9394 + $0x2c] sm:$0xf]
      %v9407 = vld [vmem:[%s9394 + $0x30] sm:$0xf]
      %v9408 = vld [vmem:[%s9394 + $0x34] sm:$0xf]
      %v9409 = vld [vmem:[%s9394 + $0x38] sm:$0xf]
      %v9410 = vld [vmem:[%s9394 + $0x3c] sm:$0xf]
      %v9411 = vunpack.c.l.b16 %v8703
      %v9412 = vunpack.c.l.b16 %v8713
      %v9413 = vunpack.c.l.b16 %v8723
      %v9414 = vunpack.c.l.b16 %v8733
      %v9415 = vunpack.c.l.b16 %v8747
      %v9416 = vunpack.c.l.b16 %v8757
      %v9417 = vunpack.c.l.b16 %v8767
      %v9418 = vunpack.c.l.b16 %v8777
      %v9419 = vunpack.c.l.b16 %v8791
      %v9420 = vunpack.c.l.b16 %v8801
      %v9421 = vunpack.c.l.b16 %v8811
      %v9422 = vunpack.c.l.b16 %v8821
      %v9423 = vunpack.c.l.b16 %v8835
      %v9424 = vunpack.c.l.b16 %v8845
      %v9425 = vunpack.c.l.b16 %v8855
      %v9426 = vunpack.c.l.b16 %v8865
      %v9427 = vunpack.c.l.b16 %v8879
      %v9428 = vunpack.c.l.b16 %v8889
      %v9429 = vunpack.c.l.b16 %v8899
      %v9430 = vunpack.c.l.b16 %v8909
      %v9431 = vunpack.c.l.b16 %v8923
      %v9432 = vunpack.c.l.b16 %v8933
      %v9433 = vunpack.c.l.b16 %v8943
      %v9434 = vunpack.c.l.b16 %v8953
      %v9435 = vunpack.c.l.b16 %v8967
      %v9436 = vunpack.c.l.b16 %v8977
      %v9437 = vunpack.c.l.b16 %v8987
      %v9438 = vunpack.c.l.b16 %v8997
      %v9439 = vunpack.c.l.b16 %v9011
      %v9440 = vunpack.c.l.b16 %v9021
      %v9441 = vunpack.c.l.b16 %v9031
      %v9442 = vunpack.c.l.b16 %v9041
      %v9443 = vunpack.c.l.b16 %v9055
      %v9444 = vunpack.c.l.b16 %v9065
      %v9445 = vunpack.c.l.b16 %v9075
      %v9446 = vunpack.c.l.b16 %v9085
      %v9447 = vunpack.c.l.b16 %v9099
      %v9448 = vunpack.c.l.b16 %v9109
      %v9449 = vunpack.c.l.b16 %v9119
      %v9450 = vunpack.c.l.b16 %v9129
      %v9451 = vunpack.c.l.b16 %v9143
      %v9452 = vunpack.c.l.b16 %v9153
      %v9453 = vunpack.c.l.b16 %v9163
      %v9454 = vunpack.c.l.b16 %v9173
      %v9455 = vunpack.c.l.b16 %v9187
      %v9456 = vunpack.c.l.b16 %v9197
      %v9457 = vunpack.c.l.b16 %v9207
      %v9458 = vunpack.c.l.b16 %v9217
      %v9459 = vunpack.c.l.b16 %v9231
      %v9460 = vunpack.c.l.b16 %v9241
      %v9461 = vunpack.c.l.b16 %v9251
      %v9462 = vunpack.c.l.b16 %v9261
      %v9463 = vunpack.c.l.b16 %v9275
      %v9464 = vunpack.c.l.b16 %v9285
      %v9465 = vunpack.c.l.b16 %v9295
      %v9466 = vunpack.c.l.b16 %v9305
      %v9467 = vunpack.c.l.b16 %v9319
      %v9468 = vunpack.c.l.b16 %v9329
      %v9469 = vunpack.c.l.b16 %v9339
      %v9470 = vunpack.c.l.b16 %v9349
      %v9471 = vunpack.c.l.b16 %v9363
      %v9472 = vunpack.c.l.b16 %v9373
      %v9473 = vunpack.c.l.b16 %v9383
      %v9474 = vunpack.c.l.b16 %v9393
      %v9475 = vpack.c.b16 %v9412, %v9411
      %v9476 = vpack.c.b16 %v9414, %v9413
      %v9477 = vpack.c.b16 %v9416, %v9415
      %v9478 = vpack.c.b16 %v9418, %v9417
      %v9479 = vpack.c.b16 %v9420, %v9419
      %v9480 = vpack.c.b16 %v9422, %v9421
      %v9481 = vpack.c.b16 %v9424, %v9423
      %v9482 = vpack.c.b16 %v9426, %v9425
      %v9483 = vpack.c.b16 %v9428, %v9427
      %v9484 = vpack.c.b16 %v9430, %v9429
      %v9485 = vpack.c.b16 %v9432, %v9431
      %v9486 = vpack.c.b16 %v9434, %v9433
      %v9487 = vpack.c.b16 %v9436, %v9435
      %v9488 = vpack.c.b16 %v9438, %v9437
      %v9489 = vpack.c.b16 %v9440, %v9439
      %v9490 = vpack.c.b16 %v9442, %v9441
      %v9491 = vpack.c.b16 %v9444, %v9443
      %v9492 = vpack.c.b16 %v9446, %v9445
      %v9493 = vpack.c.b16 %v9448, %v9447
      %v9494 = vpack.c.b16 %v9450, %v9449
      %v9495 = vpack.c.b16 %v9452, %v9451
      %v9496 = vpack.c.b16 %v9454, %v9453
      %v9497 = vpack.c.b16 %v9456, %v9455
      %v9498 = vpack.c.b16 %v9458, %v9457
      %v9499 = vpack.c.b16 %v9460, %v9459
      %v9500 = vpack.c.b16 %v9462, %v9461
      %v9501 = vpack.c.b16 %v9464, %v9463
      %v9502 = vpack.c.b16 %v9466, %v9465
      %v9503 = vpack.c.b16 %v9468, %v9467
      %v9504 = vpack.c.b16 %v9470, %v9469
      %v9505 = vpack.c.b16 %v9472, %v9471
      %v9506 = vpack.c.b16 %v9474, %v9473
      %v9555 = vunpack.c.l.b16 %v9395
      %v9556 = vunpack.c.l.b16 %v9396
      %v9557 = vunpack.c.l.b16 %v9397
      %v9558 = vunpack.c.l.b16 %v9398
      %v9559 = vunpack.c.l.b16 %v9399
      %v9560 = vunpack.c.l.b16 %v9400
      %v9561 = vunpack.c.l.b16 %v9401
      %v9562 = vunpack.c.l.b16 %v9402
      %v9563 = vunpack.c.l.b16 %v9403
      %v9564 = vunpack.c.l.b16 %v9404
      %v9565 = vunpack.c.l.b16 %v9405
      %v9566 = vunpack.c.l.b16 %v9406
      %v9567 = vunpack.c.l.b16 %v9407
      %v9568 = vunpack.c.l.b16 %v9408
      %v9569 = vunpack.c.l.b16 %v9409
      %v9570 = vunpack.c.l.b16 %v9410
      %v9571 = vpack.c.b16 %v9556, %v9555
      %v9572 = vpack.c.b16 %v9558, %v9557
      %v9573 = vpack.c.b16 %v9560, %v9559
      %v9574 = vpack.c.b16 %v9562, %v9561
      %v9575 = vpack.c.b16 %v9564, %v9563
      %v9576 = vpack.c.b16 %v9566, %v9565
      %v9577 = vpack.c.b16 %v9568, %v9567
      %v9578 = vpack.c.b16 %v9570, %v9569
      %9587 = vmatprep.subr.bf16.mxu0 0
      %9588 = vmatpush1.bf16.msra.mxu0 %v9571
      %9589 = vmatprep.subr.bf16.mxu0 0
      %9590 = vmatpush1.bf16.msra.mxu0 %v9572
      %9591 = vmatprep.subr.bf16.mxu0 0
      %9592 = vmatpush1.bf16.msra.mxu0 %v9573
      %9593 = vmatprep.subr.bf16.mxu0 0
      %9594 = vmatpush1.bf16.msra.mxu0 %v9574
      %9595 = vmatprep.subr.bf16.mxu0 0
      %9596 = vmatpush1.bf16.msra.mxu0 %v9575
      %9597 = vmatprep.subr.bf16.mxu0 0
      %9598 = vmatpush1.bf16.msra.mxu0 %v9576
      %9599 = vmatprep.subr.bf16.mxu0 0
      %9600 = vmatpush1.bf16.msra.mxu0 %v9577
      %9601 = vmatprep.subr.bf16.mxu0 0
      %9602 = vmatpush1.bf16.msra.mxu0 %v9578
      %9603 = vmatprep.subr.bf16.mxu0 0
      %9604 = vmatpush1.bf16.msra.mxu0 0
      %9605 = vmatprep.subr.bf16.mxu0 0
      %9606 = vmatpush1.bf16.msra.mxu0 0
      %9607 = vmatprep.subr.bf16.mxu0 0
      %9608 = vmatpush1.bf16.msra.mxu0 0
      %9609 = vmatprep.subr.bf16.mxu0 0
      %9610 = vmatpush1.bf16.msra.mxu0 0
      %9611 = vmatprep.subr.bf16.mxu0 0
      %9612 = vmatpush1.bf16.msra.mxu0 0
      %9613 = vmatprep.subr.bf16.mxu0 0
      %9614 = vmatpush1.bf16.msra.mxu0 0
      %9615 = vmatprep.subr.bf16.mxu0 0
      %9616 = vmatpush1.bf16.msra.mxu0 0
      %9617 = vmatprep.subr.bf16.mxu0 0
      %9618 = vmatpush1.bf16.msra.mxu0 0
      %9619 = vmatprep.mubr.bf16.mxu0 0
      %9620 = vmatmul.mubr.bf16.gmra.mrb[0].mxu0 %v9475
      %v9621 = vpop.f32.mrb[0].mxu0
      %v9622 = vadd.f32 0.0, %v9621
      %v9623 = vpop.f32.mrb[0].mxu0
      %v9624 = vpop.f32.mrb[0].mxu0
      %v9625 = vadd.f32 0.0, %v9624
      %v9626 = vpop.f32.mrb[0].mxu0
      %9627 = vmatprep.mubr.bf16.mxu0 0
      %9628 = vmatmul.mubr.bf16.gmra.mrb[0].mxu0 %v9476
      %v9629 = vpop.f32.mrb[0].mxu0
      %v9630 = vadd.f32 0.0, %v9629
      %v9631 = vpop.f32.mrb[0].mxu0
      %v9632 = vpop.f32.mrb[0].mxu0
      %v9633 = vadd.f32 0.0, %v9632
      %v9634 = vpop.f32.mrb[0].mxu0
      %9635 = vmatprep.mubr.bf16.mxu0 0
      %9636 = vmatmul.mubr.bf16.gmra.mrb[0].mxu0 %v9477
      %v9637 = vpop.f32.mrb[0].mxu0
      %v9638 = vadd.f32 0.0, %v9637
      %v9639 = vpop.f32.mrb[0].mxu0
      %v9640 = vpop.f32.mrb[0].mxu0
      %v9641 = vadd.f32 0.0, %v9640
      %v9642 = vpop.f32.mrb[0].mxu0
      %9643 = vmatprep.mubr.bf16.mxu0 0
      %9644 = vmatmul.mubr.bf16.gmra.mrb[0].mxu0 %v9478
      %v9645 = vpop.f32.mrb[0].mxu0
      %v9646 = vadd.f32 0.0, %v9645
      %v9647 = vpop.f32.mrb[0].mxu0
      %v9648 = vpop.f32.mrb[0].mxu0
      %v9649 = vadd.f32 0.0, %v9648
      %v9650 = vpop.f32.mrb[0].mxu0
      %9651 = vmatprep.mubr.bf16.mxu0 0
      %9652 = vmatmul.mubr.bf16.gmra.mrb[0].mxu0 %v9479
      %v9653 = vpop.f32.mrb[0].mxu0
      %v9654 = vadd.f32 0.0, %v9653
      %v9655 = vpop.f32.mrb[0].mxu0
      %v9656 = vpop.f32.mrb[0].mxu0
      %v9657 = vadd.f32 0.0, %v9656
      %v9658 = vpop.f32.mrb[0].mxu0
      %9659 = vmatprep.mubr.bf16.mxu0 0
      %9660 = vmatmul.mubr.bf16.gmra.mrb[0].mxu0 %v9480
      %v9661 = vpop.f32.mrb[0].mxu0
      %v9662 = vadd.f32 0.0, %v9661
      %v9663 = vpop.f32.mrb[0].mxu0
      %v9664 = vpop.f32.mrb[0].mxu0
      %v9665 = vadd.f32 0.0, %v9664
      %v9666 = vpop.f32.mrb[0].mxu0
      %9667 = vmatprep.mubr.bf16.mxu0 0
      %9668 = vmatmul.mubr.bf16.gmra.mrb[0].mxu0 %v9481
      %v9669 = vpop.f32.mrb[0].mxu0
      %v9670 = vadd.f32 0.0, %v9669
      %v9671 = vpop.f32.mrb[0].mxu0
      %v9672 = vpop.f32.mrb[0].mxu0
      %v9673 = vadd.f32 0.0, %v9672
      %v9674 = vpop.f32.mrb[0].mxu0
      %9675 = vmatprep.mubr.bf16.mxu0 0
      %9676 = vmatmul.mubr.bf16.gmra.mrb[0].mxu0 %v9482
      %v9677 = vpop.f32.mrb[0].mxu0
      %v9678 = vadd.f32 0.0, %v9677
      %v9679 = vpop.f32.mrb[0].mxu0
      %v9680 = vpop.f32.mrb[0].mxu0
      %v9681 = vadd.f32 0.0, %v9680
      %v9682 = vpop.f32.mrb[0].mxu0
      %9683 = vmatprep.mubr.bf16.mxu0 0
      %9684 = vmatmul.mubr.bf16.gmra.mrb[0].mxu0 %v9483
      %v9685 = vpop.f32.mrb[0].mxu0
      %v9686 = vadd.f32 0.0, %v9685
      %v9687 = vpop.f32.mrb[0].mxu0
      %v9688 = vpop.f32.mrb[0].mxu0
      %v9689 = vadd.f32 0.0, %v9688
      %v9690 = vpop.f32.mrb[0].mxu0
      %9691 = vmatprep.mubr.bf16.mxu0 0
      %9692 = vmatmul.mubr.bf16.gmra.mrb[0].mxu0 %v9484
      %v9693 = vpop.f32.mrb[0].mxu0
      %v9694 = vadd.f32 0.0, %v9693
      %v9695 = vpop.f32.mrb[0].mxu0
      %v9696 = vpop.f32.mrb[0].mxu0
      %v9697 = vadd.f32 0.0, %v9696
      %v9698 = vpop.f32.mrb[0].mxu0
      %9699 = vmatprep.mubr.bf16.mxu0 0
      %9700 = vmatmul.mubr.bf16.gmra.mrb[0].mxu0 %v9485
      %v9701 = vpop.f32.mrb[0].mxu0
      %v9702 = vadd.f32 0.0, %v9701
      %v9703 = vpop.f32.mrb[0].mxu0
      %v9704 = vpop.f32.mrb[0].mxu0
      %v9705 = vadd.f32 0.0, %v9704
      %v9706 = vpop.f32.mrb[0].mxu0
      %9707 = vmatprep.mubr.bf16.mxu0 0
      %9708 = vmatmul.mubr.bf16.gmra.mrb[0].mxu0 %v9486
      %v9709 = vpop.f32.mrb[0].mxu0
      %v9710 = vadd.f32 0.0, %v9709
      %v9711 = vpop.f32.mrb[0].mxu0
      %v9712 = vpop.f32.mrb[0].mxu0
      %v9713 = vadd.f32 0.0, %v9712
      %v9714 = vpop.f32.mrb[0].mxu0
      %9715 = vmatprep.mubr.bf16.mxu0 0
      %9716 = vmatmul.mubr.bf16.gmra.mrb[0].mxu0 %v9487
      %v9717 = vpop.f32.mrb[0].mxu0
      %v9718 = vadd.f32 0.0, %v9717
      %v9719 = vpop.f32.mrb[0].mxu0
      %v9720 = vpop.f32.mrb[0].mxu0
      %v9721 = vadd.f32 0.0, %v9720
      %v9722 = vpop.f32.mrb[0].mxu0
      %9723 = vmatprep.mubr.bf16.mxu0 0
      %9724 = vmatmul.mubr.bf16.gmra.mrb[0].mxu0 %v9488
      %v9725 = vpop.f32.mrb[0].mxu0
      %v9726 = vadd.f32 0.0, %v9725
      %v9727 = vpop.f32.mrb[0].mxu0
      %v9728 = vpop.f32.mrb[0].mxu0
      %v9729 = vadd.f32 0.0, %v9728
      %v9730 = vpop.f32.mrb[0].mxu0
      %9731 = vmatprep.mubr.bf16.mxu0 0
      %9732 = vmatmul.mubr.bf16.gmra.mrb[0].mxu0 %v9489
      %v9733 = vpop.f32.mrb[0].mxu0
      %v9734 = vadd.f32 0.0, %v9733
      %v9735 = vpop.f32.mrb[0].mxu0
      %v9736 = vpop.f32.mrb[0].mxu0
      %v9737 = vadd.f32 0.0, %v9736
      %v9738 = vpop.f32.mrb[0].mxu0
      %9739 = vmatprep.mubr.bf16.mxu0 0
      %9740 = vmatmul.mubr.bf16.gmra.mrb[0].mxu0 %v9490
      %v9741 = vpop.f32.mrb[0].mxu0
      %v9742 = vadd.f32 0.0, %v9741
      %v9743 = vpop.f32.mrb[0].mxu0
      %v9744 = vpop.f32.mrb[0].mxu0
      %v9745 = vadd.f32 0.0, %v9744
      %v9746 = vpop.f32.mrb[0].mxu0
      %9747 = vmatprep.mubr.bf16.mxu0 0
      %9748 = vmatmul.mubr.bf16.gmra.mrb[0].mxu0 %v9491
      %v9749 = vpop.f32.mrb[0].mxu0
      %v9750 = vadd.f32 0.0, %v9749
      %v9751 = vpop.f32.mrb[0].mxu0
      %v9752 = vpop.f32.mrb[0].mxu0
      %v9753 = vadd.f32 0.0, %v9752
      %v9754 = vpop.f32.mrb[0].mxu0
      %9755 = vmatprep.mubr.bf16.mxu0 0
      %9756 = vmatmul.mubr.bf16.gmra.mrb[0].mxu0 %v9492
      %v9757 = vpop.f32.mrb[0].mxu0
      %v9758 = vadd.f32 0.0, %v9757
      %v9759 = vpop.f32.mrb[0].mxu0
      %v9760 = vpop.f32.mrb[0].mxu0
      %v9761 = vadd.f32 0.0, %v9760
      %v9762 = vpop.f32.mrb[0].mxu0
      %9763 = vmatprep.mubr.bf16.mxu0 0
      %9764 = vmatmul.mubr.bf16.gmra.mrb[0].mxu0 %v9493
      %v9765 = vpop.f32.mrb[0].mxu0
      %v9766 = vadd.f32 0.0, %v9765
      %v9767 = vpop.f32.mrb[0].mxu0
      %v9768 = vpop.f32.mrb[0].mxu0
      %v9769 = vadd.f32 0.0, %v9768
      %v9770 = vpop.f32.mrb[0].mxu0
      %9771 = vmatprep.mubr.bf16.mxu0 0
      %9772 = vmatmul.mubr.bf16.gmra.mrb[0].mxu0 %v9494
      %v9773 = vpop.f32.mrb[0].mxu0
      %v9774 = vadd.f32 0.0, %v9773
      %v9775 = vpop.f32.mrb[0].mxu0
      %v9776 = vpop.f32.mrb[0].mxu0
      %v9777 = vadd.f32 0.0, %v9776
      %v9778 = vpop.f32.mrb[0].mxu0
      %9779 = vmatprep.mubr.bf16.mxu0 0
      %9780 = vmatmul.mubr.bf16.gmra.mrb[0].mxu0 %v9495
      %v9781 = vpop.f32.mrb[0].mxu0
      %v9782 = vadd.f32 0.0, %v9781
      %v9783 = vpop.f32.mrb[0].mxu0
      %v9784 = vpop.f32.mrb[0].mxu0
      %v9785 = vadd.f32 0.0, %v9784
      %v9786 = vpop.f32.mrb[0].mxu0
      %9787 = vmatprep.mubr.bf16.mxu0 0
      %9788 = vmatmul.mubr.bf16.gmra.mrb[0].mxu0 %v9496
      %v9789 = vpop.f32.mrb[0].mxu0
      %v9790 = vadd.f32 0.0, %v9789
      %v9791 = vpop.f32.mrb[0].mxu0
      %v9792 = vpop.f32.mrb[0].mxu0
      %v9793 = vadd.f32 0.0, %v9792
      %v9794 = vpop.f32.mrb[0].mxu0
      %9795 = vmatprep.mubr.bf16.mxu0 0
      %9796 = vmatmul.mubr.bf16.gmra.mrb[0].mxu0 %v9497
      %v9797 = vpop.f32.mrb[0].mxu0
      %v9798 = vadd.f32 0.0, %v9797
      %v9799 = vpop.f32.mrb[0].mxu0
      %v9800 = vpop.f32.mrb[0].mxu0
      %v9801 = vadd.f32 0.0, %v9800
      %v9802 = vpop.f32.mrb[0].mxu0
      %9803 = vmatprep.mubr.bf16.mxu0 0
      %9804 = vmatmul.mubr.bf16.gmra.mrb[0].mxu0 %v9498
      %v9805 = vpop.f32.mrb[0].mxu0
      %v9806 = vadd.f32 0.0, %v9805
      %v9807 = vpop.f32.mrb[0].mxu0
      %v9808 = vpop.f32.mrb[0].mxu0
      %v9809 = vadd.f32 0.0, %v9808
      %v9810 = vpop.f32.mrb[0].mxu0
      %9811 = vmatprep.mubr.bf16.mxu0 0
      %9812 = vmatmul.mubr.bf16.gmra.mrb[0].mxu0 %v9499
      %v9813 = vpop.f32.mrb[0].mxu0
      %v9814 = vadd.f32 0.0, %v9813
      %v9815 = vpop.f32.mrb[0].mxu0
      %v9816 = vpop.f32.mrb[0].mxu0
      %v9817 = vadd.f32 0.0, %v9816
      %v9818 = vpop.f32.mrb[0].mxu0
      %9819 = vmatprep.mubr.bf16.mxu0 0
      %9820 = vmatmul.mubr.bf16.gmra.mrb[0].mxu0 %v9500
      %v9821 = vpop.f32.mrb[0].mxu0
      %v9822 = vadd.f32 0.0, %v9821
      %v9823 = vpop.f32.mrb[0].mxu0
      %v9824 = vpop.f32.mrb[0].mxu0
      %v9825 = vadd.f32 0.0, %v9824
      %v9826 = vpop.f32.mrb[0].mxu0
      %9827 = vmatprep.mubr.bf16.mxu0 0
      %9828 = vmatmul.mubr.bf16.gmra.mrb[0].mxu0 %v9501
      %v9829 = vpop.f32.mrb[0].mxu0
      %v9830 = vadd.f32 0.0, %v9829
      %v9831 = vpop.f32.mrb[0].mxu0
      %v9832 = vpop.f32.mrb[0].mxu0
      %v9833 = vadd.f32 0.0, %v9832
      %v9834 = vpop.f32.mrb[0].mxu0
      %9835 = vmatprep.mubr.bf16.mxu0 0
      %9836 = vmatmul.mubr.bf16.gmra.mrb[0].mxu0 %v9502
      %v9837 = vpop.f32.mrb[0].mxu0
      %v9838 = vadd.f32 0.0, %v9837
      %v9839 = vpop.f32.mrb[0].mxu0
      %v9840 = vpop.f32.mrb[0].mxu0
      %v9841 = vadd.f32 0.0, %v9840
      %v9842 = vpop.f32.mrb[0].mxu0
      %9843 = vmatprep.mubr.bf16.mxu0 0
      %9844 = vmatmul.mubr.bf16.gmra.mrb[0].mxu0 %v9503
      %v9845 = vpop.f32.mrb[0].mxu0
      %v9846 = vadd.f32 0.0, %v9845
      %v9847 = vpop.f32.mrb[0].mxu0
      %v9848 = vpop.f32.mrb[0].mxu0
      %v9849 = vadd.f32 0.0, %v9848
      %v9850 = vpop.f32.mrb[0].mxu0
      %9851 = vmatprep.mubr.bf16.mxu0 0
      %9852 = vmatmul.mubr.bf16.gmra.mrb[0].mxu0 %v9504
      %v9853 = vpop.f32.mrb[0].mxu0
      %v9854 = vadd.f32 0.0, %v9853
      %v9855 = vpop.f32.mrb[0].mxu0
      %v9856 = vpop.f32.mrb[0].mxu0
      %v9857 = vadd.f32 0.0, %v9856
      %v9858 = vpop.f32.mrb[0].mxu0
      %9859 = vmatprep.mubr.bf16.mxu0 0
      %9860 = vmatmul.mubr.bf16.gmra.mrb[0].mxu0 %v9505
      %v9861 = vpop.f32.mrb[0].mxu0
      %v9862 = vadd.f32 0.0, %v9861
      %v9863 = vpop.f32.mrb[0].mxu0
      %v9864 = vpop.f32.mrb[0].mxu0
      %v9865 = vadd.f32 0.0, %v9864
      %v9866 = vpop.f32.mrb[0].mxu0
      %9867 = vmatprep.mubr.bf16.mxu0 0
      %9868 = vmatmul.mubr.bf16.gmra.mrb[0].mxu0 %v9506
      %v9869 = vpop.f32.mrb[0].mxu0
      %v9870 = vadd.f32 0.0, %v9869
      %v9871 = vpop.f32.mrb[0].mxu0
      %v9872 = vpop.f32.mrb[0].mxu0
      %v9873 = vadd.f32 0.0, %v9872
      %v9874 = vpop.f32.mrb[0].mxu0
      %9875 = vdwg.mxu0
      %v9876 = vadd.f32 %v8626, %v9622
      %v9877 = vadd.f32 %v8627, %v9625
      %v9878 = vadd.f32 %v8628, %v9630
      %v9879 = vadd.f32 %v8629, %v9633
      %v9880 = vadd.f32 %v8630, %v9638
      %v9881 = vadd.f32 %v8631, %v9641
      %v9882 = vadd.f32 %v8632, %v9646
      %v9883 = vadd.f32 %v8633, %v9649
      %v9884 = vadd.f32 %v8634, %v9654
      %v9885 = vadd.f32 %v8635, %v9657
      %v9886 = vadd.f32 %v8636, %v9662
      %v9887 = vadd.f32 %v8637, %v9665
      %v9888 = vadd.f32 %v8638, %v9670
      %v9889 = vadd.f32 %v8639, %v9673
      %v9890 = vadd.f32 %v8640, %v9678
      %v9891 = vadd.f32 %v8641, %v9681
      %v9892 = vadd.f32 %v8642, %v9686
      %v9893 = vadd.f32 %v8643, %v9689
      %v9894 = vadd.f32 %v8644, %v9694
      %v9895 = vadd.f32 %v8645, %v9697
      %v9896 = vadd.f32 %v8646, %v9702
      %v9897 = vadd.f32 %v8647, %v9705
      %v9898 = vadd.f32 %v8648, %v9710
      %v9899 = vadd.f32 %v8649, %v9713
      %v9900 = vadd.f32 %v8650, %v9718
      %v9901 = vadd.f32 %v8651, %v9721
      %v9902 = vadd.f32 %v8652, %v9726
      %v9903 = vadd.f32 %v8653, %v9729
      %v9904 = vadd.f32 %v8654, %v9734
      %v9905 = vadd.f32 %v8655, %v9737
      %v9906 = vadd.f32 %v8656, %v9742
      %v9907 = vadd.f32 %v8657, %v9745
      %v9908 = vadd.f32 %v8658, %v9750
      %v9909 = vadd.f32 %v8659, %v9753
      %v9910 = vadd.f32 %v8660, %v9758
      %v9911 = vadd.f32 %v8661, %v9761
      %v9912 = vadd.f32 %v8662, %v9766
      %v9913 = vadd.f32 %v8663, %v9769
      %v9914 = vadd.f32 %v8664, %v9774
      %v9915 = vadd.f32 %v8665, %v9777
      %v9916 = vadd.f32 %v8666, %v9782
      %v9917 = vadd.f32 %v8667, %v9785
      %v9918 = vadd.f32 %v8668, %v9790
      %v9919 = vadd.f32 %v8669, %v9793
      %v9920 = vadd.f32 %v8670, %v9798
      %v9921 = vadd.f32 %v8671, %v9801
      %v9922 = vadd.f32 %v8672, %v9806
      %v9923 = vadd.f32 %v8673, %v9809
      %v9924 = vadd.f32 %v8674, %v9814
      %v9925 = vadd.f32 %v8675, %v9817
      %v9926 = vadd.f32 %v8676, %v9822
      %v9927 = vadd.f32 %v8677, %v9825
      %v9928 = vadd.f32 %v8678, %v9830
      %v9929 = vadd.f32 %v8679, %v9833
      %v9930 = vadd.f32 %v8680, %v9838
      %v9931 = vadd.f32 %v8681, %v9841
      %v9932 = vadd.f32 %v8682, %v9846
      %v9933 = vadd.f32 %v8683, %v9849
      %v9934 = vadd.f32 %v8684, %v9854
      %v9935 = vadd.f32 %v8685, %v9857
      %v9936 = vadd.f32 %v8686, %v9862
      %v9937 = vadd.f32 %v8687, %v9865
      %v9938 = vadd.f32 %v8688, %v9870
      %v9939 = vadd.f32 %v8689, %v9873
      %v9941 = vshrl.u32 %v7339, 16
      %v9943 = vrot.slane %v9941, 4
      %v9944 = vshll.u32 %v7339, 16
      %v9946 = vrot.slane %v9944, 5
      %v9947 = vor.u32 %v9943, %v9946
      %v9948 = vrot.slane %v9947, 4
      %v9950 = vshll.u32 %v7340, 16
      %v9952 = vrot.slane %v9950, 5
      %v9953 = vsel %vm1782, %v9948, %v9952
      %v9954 = vshrl.u32 %v7340, 16
      %v9956 = vrot.slane %v9954, 4
      %v9957 = vor.u32 %v9956, %v9952
      %v9958 = vrot.slane %v9957, 4
      %v9960 = vshll.u32 %v7341, 16
      %v9962 = vrot.slane %v9960, 5
      %v9963 = vsel %vm1782, %v9958, %v9962
      %v9964 = vshrl.u32 %v7341, 16
      %v9966 = vrot.slane %v9964, 4
      %v9967 = vor.u32 %v9966, %v9962
      %v9968 = vrot.slane %v9967, 4
      %v9970 = vshll.u32 %v7342, 16
      %v9972 = vrot.slane %v9970, 5
      %v9973 = vsel %vm1782, %v9968, %v9972
      %v9974 = vshrl.u32 %v7342, 16
      %v9976 = vrot.slane %v9974, 4
      %v9977 = vor.u32 %v9976, %v9972
      %v9978 = vrot.slane %v9977, 4
      %v9980 = vshll.u32 %v7343, 16
      %v9982 = vrot.slane %v9980, 5
      %v9983 = vsel %vm1782, %v9978, %v9982
      %s9984 = scalar_lea.vmem %s4, 256
      %v9985 = vld [vmem:[%s9984] sm:$0xf]
      %v9986 = vld [vmem:[%s9984 + $0x4] sm:$0xf]
      %v9987 = vld [vmem:[%s9984 + $0x8] sm:$0xf]
      %v9988 = vld [vmem:[%s9984 + $0xc] sm:$0xf]
      %v9989 = vld [vmem:[%s9984 + $0x10] sm:$0xf]
      %v9990 = vld [vmem:[%s9984 + $0x14] sm:$0xf]
      %v9991 = vld [vmem:[%s9984 + $0x18] sm:$0xf]
      %v9992 = vld [vmem:[%s9984 + $0x1c] sm:$0xf]
      %v9993 = vld [vmem:[%s9984 + $0x20] sm:$0xf]
      %v9994 = vld [vmem:[%s9984 + $0x24] sm:$0xf]
      %v9995 = vld [vmem:[%s9984 + $0x28] sm:$0xf]
      %v9996 = vld [vmem:[%s9984 + $0x2c] sm:$0xf]
      %v9997 = vld [vmem:[%s9984 + $0x30] sm:$0xf]
      %v9998 = vld [vmem:[%s9984 + $0x34] sm:$0xf]
      %v9999 = vld [vmem:[%s9984 + $0x38] sm:$0xf]
      %v10000 = vld [vmem:[%s9984 + $0x3c] sm:$0xf]
      %v10001 = vunpack.c.l.b16 %v9953
      %v10002 = vunpack.c.l.b16 %v9963
      %v10003 = vunpack.c.l.b16 %v9973
      %v10004 = vunpack.c.l.b16 %v9983
      %v10005 = vpack.c.b16 %v10002, %v10001
      %v10006 = vpack.c.b16 %v10004, %v10003
      %v10025 = vunpack.c.l.b16 %v9985
      %v10026 = vunpack.c.l.b16 %v9986
      %v10027 = vunpack.c.l.b16 %v9987
      %v10028 = vunpack.c.l.b16 %v9988
      %v10029 = vunpack.c.l.b16 %v9989
      %v10030 = vunpack.c.l.b16 %v9990
      %v10031 = vunpack.c.l.b16 %v9991
      %v10032 = vunpack.c.l.b16 %v9992
      %v10033 = vunpack.c.l.b16 %v9993
      %v10034 = vunpack.c.l.b16 %v9994
      %v10035 = vunpack.c.l.b16 %v9995
      %v10036 = vunpack.c.l.b16 %v9996
      %v10037 = vunpack.c.l.b16 %v9997
      %v10038 = vunpack.c.l.b16 %v9998
      %v10039 = vunpack.c.l.b16 %v9999
      %v10040 = vunpack.c.l.b16 %v10000
      %v10041 = vpack.c.b16 %v10026, %v10025
      %v10042 = vpack.c.b16 %v10028, %v10027
      %v10043 = vpack.c.b16 %v10030, %v10029
      %v10044 = vpack.c.b16 %v10032, %v10031
      %v10045 = vpack.c.b16 %v10034, %v10033
      %v10046 = vpack.c.b16 %v10036, %v10035
      %v10047 = vpack.c.b16 %v10038, %v10037
      %v10048 = vpack.c.b16 %v10040, %v10039
      %10057 = vmatprep.subr.bf16.mxu0 0
      %10058 = vmatpush1.bf16.msra.mxu0 %v10041
      %10059 = vmatprep.subr.bf16.mxu0 0
      %10060 = vmatpush1.bf16.msra.mxu0 %v10042
      %10061 = vmatprep.subr.bf16.mxu0 0
      %10062 = vmatpush1.bf16.msra.mxu0 %v10043
      %10063 = vmatprep.subr.bf16.mxu0 0
      %10064 = vmatpush1.bf16.msra.mxu0 %v10044
      %10065 = vmatprep.subr.bf16.mxu0 0
      %10066 = vmatpush1.bf16.msra.mxu0 %v10045
      %10067 = vmatprep.subr.bf16.mxu0 0
      %10068 = vmatpush1.bf16.msra.mxu0 %v10046
      %10069 = vmatprep.subr.bf16.mxu0 0
      %10070 = vmatpush1.bf16.msra.mxu0 %v10047
      %10071 = vmatprep.subr.bf16.mxu0 0
      %10072 = vmatpush1.bf16.msra.mxu0 %v10048
      %10073 = vmatprep.subr.bf16.mxu0 0
      %10074 = vmatpush1.bf16.msra.mxu0 0
      %10075 = vmatprep.subr.bf16.mxu0 0
      %10076 = vmatpush1.bf16.msra.mxu0 0
      %10077 = vmatprep.subr.bf16.mxu0 0
      %10078 = vmatpush1.bf16.msra.mxu0 0
      %10079 = vmatprep.subr.bf16.mxu0 0
      %10080 = vmatpush1.bf16.msra.mxu0 0
      %10081 = vmatprep.subr.bf16.mxu0 0
      %10082 = vmatpush1.bf16.msra.mxu0 0
      %10083 = vmatprep.subr.bf16.mxu0 0
      %10084 = vmatpush1.bf16.msra.mxu0 0
      %10085 = vmatprep.subr.bf16.mxu0 0
      %10086 = vmatpush1.bf16.msra.mxu0 0
      %10087 = vmatprep.subr.bf16.mxu0 0
      %10088 = vmatpush1.bf16.msra.mxu0 0
      %10089 = vmatprep.mubr.bf16.mxu0 0
      %10090 = vmatmul.mubr.bf16.gmra.mrb[0].mxu0 %v9477
      %v10091 = vpop.f32.mrb[0].mxu0
      %v10092 = vadd.f32 0.0, %v10091
      %v10093 = vpop.f32.mrb[0].mxu0
      %v10094 = vpop.f32.mrb[0].mxu0
      %v10095 = vadd.f32 0.0, %v10094
      %v10096 = vpop.f32.mrb[0].mxu0
      %10097 = vmatprep.mubr.bf16.mxu0 0
      %10098 = vmatmul.mubr.bf16.gmra.mrb[0].mxu0 %v9478
      %v10099 = vpop.f32.mrb[0].mxu0
      %v10100 = vadd.f32 0.0, %v10099
      %v10101 = vpop.f32.mrb[0].mxu0
      %v10102 = vpop.f32.mrb[0].mxu0
      %v10103 = vadd.f32 0.0, %v10102
      %v10104 = vpop.f32.mrb[0].mxu0
      %10105 = vmatprep.mubr.bf16.mxu0 0
      %10106 = vmatmul.mubr.bf16.gmra.mrb[0].mxu0 %v9479
      %v10107 = vpop.f32.mrb[0].mxu0
      %v10108 = vadd.f32 0.0, %v10107
      %v10109 = vpop.f32.mrb[0].mxu0
      %v10110 = vpop.f32.mrb[0].mxu0
      %v10111 = vadd.f32 0.0, %v10110
      %v10112 = vpop.f32.mrb[0].mxu0
      %10113 = vmatprep.mubr.bf16.mxu0 0
      %10114 = vmatmul.mubr.bf16.gmra.mrb[0].mxu0 %v9480
      %v10115 = vpop.f32.mrb[0].mxu0
      %v10116 = vadd.f32 0.0, %v10115
      %v10117 = vpop.f32.mrb[0].mxu0
      %v10118 = vpop.f32.mrb[0].mxu0
      %v10119 = vadd.f32 0.0, %v10118
      %v10120 = vpop.f32.mrb[0].mxu0
      %10121 = vmatprep.mubr.bf16.mxu0 0
      %10122 = vmatmul.mubr.bf16.gmra.mrb[0].mxu0 %v9481
      %v10123 = vpop.f32.mrb[0].mxu0
      %v10124 = vadd.f32 0.0, %v10123
      %v10125 = vpop.f32.mrb[0].mxu0
      %v10126 = vpop.f32.mrb[0].mxu0
      %v10127 = vadd.f32 0.0, %v10126
      %v10128 = vpop.f32.mrb[0].mxu0
      %10129 = vmatprep.mubr.bf16.mxu0 0
      %10130 = vmatmul.mubr.bf16.gmra.mrb[0].mxu0 %v9482
      %v10131 = vpop.f32.mrb[0].mxu0
      %v10132 = vadd.f32 0.0, %v10131
      %v10133 = vpop.f32.mrb[0].mxu0
      %v10134 = vpop.f32.mrb[0].mxu0
      %v10135 = vadd.f32 0.0, %v10134
      %v10136 = vpop.f32.mrb[0].mxu0
      %10137 = vmatprep.mubr.bf16.mxu0 0
      %10138 = vmatmul.mubr.bf16.gmra.mrb[0].mxu0 %v9483
      %v10139 = vpop.f32.mrb[0].mxu0
      %v10140 = vadd.f32 0.0, %v10139
      %v10141 = vpop.f32.mrb[0].mxu0
      %v10142 = vpop.f32.mrb[0].mxu0
      %v10143 = vadd.f32 0.0, %v10142
      %v10144 = vpop.f32.mrb[0].mxu0
      %10145 = vmatprep.mubr.bf16.mxu0 0
      %10146 = vmatmul.mubr.bf16.gmra.mrb[0].mxu0 %v9484
      %v10147 = vpop.f32.mrb[0].mxu0
      %v10148 = vadd.f32 0.0, %v10147
      %v10149 = vpop.f32.mrb[0].mxu0
      %v10150 = vpop.f32.mrb[0].mxu0
      %v10151 = vadd.f32 0.0, %v10150
      %v10152 = vpop.f32.mrb[0].mxu0
      %10153 = vmatprep.mubr.bf16.mxu0 0
      %10154 = vmatmul.mubr.bf16.gmra.mrb[0].mxu0 %v9485
      %v10155 = vpop.f32.mrb[0].mxu0
      %v10156 = vadd.f32 0.0, %v10155
      %v10157 = vpop.f32.mrb[0].mxu0
      %v10158 = vpop.f32.mrb[0].mxu0
      %v10159 = vadd.f32 0.0, %v10158
      %v10160 = vpop.f32.mrb[0].mxu0
      %10161 = vmatprep.mubr.bf16.mxu0 0
      %10162 = vmatmul.mubr.bf16.gmra.mrb[0].mxu0 %v9486
      %v10163 = vpop.f32.mrb[0].mxu0
      %v10164 = vadd.f32 0.0, %v10163
      %v10165 = vpop.f32.mrb[0].mxu0
      %v10166 = vpop.f32.mrb[0].mxu0
      %v10167 = vadd.f32 0.0, %v10166
      %v10168 = vpop.f32.mrb[0].mxu0
      %10169 = vmatprep.mubr.bf16.mxu0 0
      %10170 = vmatmul.mubr.bf16.gmra.mrb[0].mxu0 %v9487
      %v10171 = vpop.f32.mrb[0].mxu0
      %v10172 = vadd.f32 0.0, %v10171
      %v10173 = vpop.f32.mrb[0].mxu0
      %v10174 = vpop.f32.mrb[0].mxu0
      %v10175 = vadd.f32 0.0, %v10174
      %v10176 = vpop.f32.mrb[0].mxu0
      %10177 = vmatprep.mubr.bf16.mxu0 0
      %10178 = vmatmul.mubr.bf16.gmra.mrb[0].mxu0 %v9488
      %v10179 = vpop.f32.mrb[0].mxu0
      %v10180 = vadd.f32 0.0, %v10179
      %v10181 = vpop.f32.mrb[0].mxu0
      %v10182 = vpop.f32.mrb[0].mxu0
      %v10183 = vadd.f32 0.0, %v10182
      %v10184 = vpop.f32.mrb[0].mxu0
      %10185 = vmatprep.mubr.bf16.mxu0 0
      %10186 = vmatmul.mubr.bf16.gmra.mrb[0].mxu0 %v9489
      %v10187 = vpop.f32.mrb[0].mxu0
      %v10188 = vadd.f32 0.0, %v10187
      %v10189 = vpop.f32.mrb[0].mxu0
      %v10190 = vpop.f32.mrb[0].mxu0
      %v10191 = vadd.f32 0.0, %v10190
      %v10192 = vpop.f32.mrb[0].mxu0
      %10193 = vmatprep.mubr.bf16.mxu0 0
      %10194 = vmatmul.mubr.bf16.gmra.mrb[0].mxu0 %v9490
      %v10195 = vpop.f32.mrb[0].mxu0
      %v10196 = vadd.f32 0.0, %v10195
      %v10197 = vpop.f32.mrb[0].mxu0
      %v10198 = vpop.f32.mrb[0].mxu0
      %v10199 = vadd.f32 0.0, %v10198
      %v10200 = vpop.f32.mrb[0].mxu0
      %10201 = vmatprep.mubr.bf16.mxu0 0
      %10202 = vmatmul.mubr.bf16.gmra.mrb[0].mxu0 %v9491
      %v10203 = vpop.f32.mrb[0].mxu0
      %v10204 = vadd.f32 0.0, %v10203
      %v10205 = vpop.f32.mrb[0].mxu0
      %v10206 = vpop.f32.mrb[0].mxu0
      %v10207 = vadd.f32 0.0, %v10206
      %v10208 = vpop.f32.mrb[0].mxu0
      %10209 = vmatprep.mubr.bf16.mxu0 0
      %10210 = vmatmul.mubr.bf16.gmra.mrb[0].mxu0 %v9492
      %v10211 = vpop.f32.mrb[0].mxu0
      %v10212 = vadd.f32 0.0, %v10211
      %v10213 = vpop.f32.mrb[0].mxu0
      %v10214 = vpop.f32.mrb[0].mxu0
      %v10215 = vadd.f32 0.0, %v10214
      %v10216 = vpop.f32.mrb[0].mxu0
      %10217 = vmatprep.mubr.bf16.mxu0 0
      %10218 = vmatmul.mubr.bf16.gmra.mrb[0].mxu0 %v9493
      %v10219 = vpop.f32.mrb[0].mxu0
      %v10220 = vadd.f32 0.0, %v10219
      %v10221 = vpop.f32.mrb[0].mxu0
      %v10222 = vpop.f32.mrb[0].mxu0
      %v10223 = vadd.f32 0.0, %v10222
      %v10224 = vpop.f32.mrb[0].mxu0
      %10225 = vmatprep.mubr.bf16.mxu0 0
      %10226 = vmatmul.mubr.bf16.gmra.mrb[0].mxu0 %v9494
      %v10227 = vpop.f32.mrb[0].mxu0
      %v10228 = vadd.f32 0.0, %v10227
      %v10229 = vpop.f32.mrb[0].mxu0
      %v10230 = vpop.f32.mrb[0].mxu0
      %v10231 = vadd.f32 0.0, %v10230
      %v10232 = vpop.f32.mrb[0].mxu0
      %10233 = vmatprep.mubr.bf16.mxu0 0
      %10234 = vmatmul.mubr.bf16.gmra.mrb[0].mxu0 %v9495
      %v10235 = vpop.f32.mrb[0].mxu0
      %v10236 = vadd.f32 0.0, %v10235
      %v10237 = vpop.f32.mrb[0].mxu0
      %v10238 = vpop.f32.mrb[0].mxu0
      %v10239 = vadd.f32 0.0, %v10238
      %v10240 = vpop.f32.mrb[0].mxu0
      %10241 = vmatprep.mubr.bf16.mxu0 0
      %10242 = vmatmul.mubr.bf16.gmra.mrb[0].mxu0 %v9496
      %v10243 = vpop.f32.mrb[0].mxu0
      %v10244 = vadd.f32 0.0, %v10243
      %v10245 = vpop.f32.mrb[0].mxu0
      %v10246 = vpop.f32.mrb[0].mxu0
      %v10247 = vadd.f32 0.0, %v10246
      %v10248 = vpop.f32.mrb[0].mxu0
      %10249 = vmatprep.mubr.bf16.mxu0 0
      %10250 = vmatmul.mubr.bf16.gmra.mrb[0].mxu0 %v9497
      %v10251 = vpop.f32.mrb[0].mxu0
      %v10252 = vadd.f32 0.0, %v10251
      %v10253 = vpop.f32.mrb[0].mxu0
      %v10254 = vpop.f32.mrb[0].mxu0
      %v10255 = vadd.f32 0.0, %v10254
      %v10256 = vpop.f32.mrb[0].mxu0
      %10257 = vmatprep.mubr.bf16.mxu0 0
      %10258 = vmatmul.mubr.bf16.gmra.mrb[0].mxu0 %v9498
      %v10259 = vpop.f32.mrb[0].mxu0
      %v10260 = vadd.f32 0.0, %v10259
      %v10261 = vpop.f32.mrb[0].mxu0
      %v10262 = vpop.f32.mrb[0].mxu0
      %v10263 = vadd.f32 0.0, %v10262
      %v10264 = vpop.f32.mrb[0].mxu0
      %10265 = vmatprep.mubr.bf16.mxu0 0
      %10266 = vmatmul.mubr.bf16.gmra.mrb[0].mxu0 %v9499
      %v10267 = vpop.f32.mrb[0].mxu0
      %v10268 = vadd.f32 0.0, %v10267
      %v10269 = vpop.f32.mrb[0].mxu0
      %v10270 = vpop.f32.mrb[0].mxu0
      %v10271 = vadd.f32 0.0, %v10270
      %v10272 = vpop.f32.mrb[0].mxu0
      %10273 = vmatprep.mubr.bf16.mxu0 0
      %10274 = vmatmul.mubr.bf16.gmra.mrb[0].mxu0 %v9500
      %v10275 = vpop.f32.mrb[0].mxu0
      %v10276 = vadd.f32 0.0, %v10275
      %v10277 = vpop.f32.mrb[0].mxu0
      %v10278 = vpop.f32.mrb[0].mxu0
      %v10279 = vadd.f32 0.0, %v10278
      %v10280 = vpop.f32.mrb[0].mxu0
      %10281 = vmatprep.mubr.bf16.mxu0 0
      %10282 = vmatmul.mubr.bf16.gmra.mrb[0].mxu0 %v9501
      %v10283 = vpop.f32.mrb[0].mxu0
      %v10284 = vadd.f32 0.0, %v10283
      %v10285 = vpop.f32.mrb[0].mxu0
      %v10286 = vpop.f32.mrb[0].mxu0
      %v10287 = vadd.f32 0.0, %v10286
      %v10288 = vpop.f32.mrb[0].mxu0
      %10289 = vmatprep.mubr.bf16.mxu0 0
      %10290 = vmatmul.mubr.bf16.gmra.mrb[0].mxu0 %v9502
      %v10291 = vpop.f32.mrb[0].mxu0
      %v10292 = vadd.f32 0.0, %v10291
      %v10293 = vpop.f32.mrb[0].mxu0
      %v10294 = vpop.f32.mrb[0].mxu0
      %v10295 = vadd.f32 0.0, %v10294
      %v10296 = vpop.f32.mrb[0].mxu0
      %10297 = vmatprep.mubr.bf16.mxu0 0
      %10298 = vmatmul.mubr.bf16.gmra.mrb[0].mxu0 %v9503
      %v10299 = vpop.f32.mrb[0].mxu0
      %v10300 = vadd.f32 0.0, %v10299
      %v10301 = vpop.f32.mrb[0].mxu0
      %v10302 = vpop.f32.mrb[0].mxu0
      %v10303 = vadd.f32 0.0, %v10302
      %v10304 = vpop.f32.mrb[0].mxu0
      %10305 = vmatprep.mubr.bf16.mxu0 0
      %10306 = vmatmul.mubr.bf16.gmra.mrb[0].mxu0 %v9504
      %v10307 = vpop.f32.mrb[0].mxu0
      %v10308 = vadd.f32 0.0, %v10307
      %v10309 = vpop.f32.mrb[0].mxu0
      %v10310 = vpop.f32.mrb[0].mxu0
      %v10311 = vadd.f32 0.0, %v10310
      %v10312 = vpop.f32.mrb[0].mxu0
      %10313 = vmatprep.mubr.bf16.mxu0 0
      %10314 = vmatmul.mubr.bf16.gmra.mrb[0].mxu0 %v9505
      %v10315 = vpop.f32.mrb[0].mxu0
      %v10316 = vadd.f32 0.0, %v10315
      %v10317 = vpop.f32.mrb[0].mxu0
      %v10318 = vpop.f32.mrb[0].mxu0
      %v10319 = vadd.f32 0.0, %v10318
      %v10320 = vpop.f32.mrb[0].mxu0
      %10321 = vmatprep.mubr.bf16.mxu0 0
      %10322 = vmatmul.mubr.bf16.gmra.mrb[0].mxu0 %v9506
      %v10323 = vpop.f32.mrb[0].mxu0
      %v10324 = vadd.f32 0.0, %v10323
      %v10325 = vpop.f32.mrb[0].mxu0
      %v10326 = vpop.f32.mrb[0].mxu0
      %v10327 = vadd.f32 0.0, %v10326
      %v10328 = vpop.f32.mrb[0].mxu0
      %10329 = vmatprep.mubr.bf16.mxu0 0
      %10330 = vmatmul.mubr.bf16.gmra.mrb[0].mxu0 %v10005
      %v10331 = vpop.f32.mrb[0].mxu0
      %v10332 = vadd.f32 0.0, %v10331
      %v10333 = vpop.f32.mrb[0].mxu0
      %v10334 = vpop.f32.mrb[0].mxu0
      %v10335 = vadd.f32 0.0, %v10334
      %v10336 = vpop.f32.mrb[0].mxu0
      %10337 = vmatprep.mubr.bf16.mxu0 0
      %10338 = vmatmul.mubr.bf16.gmra.mrb[0].mxu0 %v10006
      %v10339 = vpop.f32.mrb[0].mxu0
      %v10340 = vadd.f32 0.0, %v10339
      %v10341 = vpop.f32.mrb[0].mxu0
      %v10342 = vpop.f32.mrb[0].mxu0
      %v10343 = vadd.f32 0.0, %v10342
      %v10344 = vpop.f32.mrb[0].mxu0
      %10345 = vdwg.mxu0
      %v10346 = vadd.f32 %v9876, %v10092
      %v10347 = vadd.f32 %v9877, %v10095
      %v10348 = vadd.f32 %v9878, %v10100
      %v10349 = vadd.f32 %v9879, %v10103
      %v10350 = vadd.f32 %v9880, %v10108
      %v10351 = vadd.f32 %v9881, %v10111
      %v10352 = vadd.f32 %v9882, %v10116
      %v10353 = vadd.f32 %v9883, %v10119
      %v10354 = vadd.f32 %v9884, %v10124
      %v10355 = vadd.f32 %v9885, %v10127
      %v10356 = vadd.f32 %v9886, %v10132
      %v10357 = vadd.f32 %v9887, %v10135
      %v10358 = vadd.f32 %v9888, %v10140
      %v10359 = vadd.f32 %v9889, %v10143
      %v10360 = vadd.f32 %v9890, %v10148
      %v10361 = vadd.f32 %v9891, %v10151
      %v10362 = vadd.f32 %v9892, %v10156
      %v10363 = vadd.f32 %v9893, %v10159
      %v10364 = vadd.f32 %v9894, %v10164
      %v10365 = vadd.f32 %v9895, %v10167
      %v10366 = vadd.f32 %v9896, %v10172
      %v10367 = vadd.f32 %v9897, %v10175
      %v10368 = vadd.f32 %v9898, %v10180
      %v10369 = vadd.f32 %v9899, %v10183
      %v10370 = vadd.f32 %v9900, %v10188
      %v10371 = vadd.f32 %v9901, %v10191
      %v10372 = vadd.f32 %v9902, %v10196
      %v10373 = vadd.f32 %v9903, %v10199
      %v10374 = vadd.f32 %v9904, %v10204
      %v10375 = vadd.f32 %v9905, %v10207
      %v10376 = vadd.f32 %v9906, %v10212
      %v10377 = vadd.f32 %v9907, %v10215
      %v10378 = vadd.f32 %v9908, %v10220
      %v10379 = vadd.f32 %v9909, %v10223
      %v10380 = vadd.f32 %v9910, %v10228
      %v10381 = vadd.f32 %v9911, %v10231
      %v10382 = vadd.f32 %v9912, %v10236
      %v10383 = vadd.f32 %v9913, %v10239
      %v10384 = vadd.f32 %v9914, %v10244
      %v10385 = vadd.f32 %v9915, %v10247
      %v10386 = vadd.f32 %v9916, %v10252
      %v10387 = vadd.f32 %v9917, %v10255
      %v10388 = vadd.f32 %v9918, %v10260
      %v10389 = vadd.f32 %v9919, %v10263
      %v10390 = vadd.f32 %v9920, %v10268
      %v10391 = vadd.f32 %v9921, %v10271
      %v10392 = vadd.f32 %v9922, %v10276
      %v10393 = vadd.f32 %v9923, %v10279
      %v10394 = vadd.f32 %v9924, %v10284
      %v10395 = vadd.f32 %v9925, %v10287
      %v10396 = vadd.f32 %v9926, %v10292
      %v10397 = vadd.f32 %v9927, %v10295
      %v10398 = vadd.f32 %v9928, %v10300
      %v10399 = vadd.f32 %v9929, %v10303
      %v10400 = vadd.f32 %v9930, %v10308
      %v10401 = vadd.f32 %v9931, %v10311
      %v10402 = vadd.f32 %v9932, %v10316
      %v10403 = vadd.f32 %v9933, %v10319
      %v10404 = vadd.f32 %v9934, %v10324
      %v10405 = vadd.f32 %v9935, %v10327
      %v10406 = vadd.f32 %v9936, %v10332
      %v10407 = vadd.f32 %v9937, %v10335
      %v10408 = vadd.f32 %v9938, %v10340
      %v10409 = vadd.f32 %v9939, %v10343
      %v10411 = vshrl.u32 %v7344, 16
      %v10413 = vrot.slane %v10411, 4
      %v10414 = vshll.u32 %v7344, 16
      %v10416 = vrot.slane %v10414, 5
      %v10417 = vor.u32 %v10413, %v10416
      %v10418 = vrot.slane %v10417, 4
      %v10420 = vshll.u32 %v7345, 16
      %v10422 = vrot.slane %v10420, 5
      %v10423 = vsel %vm1782, %v10418, %v10422
      %v10424 = vshrl.u32 %v7345, 16
      %v10426 = vrot.slane %v10424, 4
      %v10427 = vor.u32 %v10426, %v10422
      %v10428 = vrot.slane %v10427, 4
      %v10430 = vshll.u32 %v7346, 16
      %v10432 = vrot.slane %v10430, 5
      %v10433 = vsel %vm1782, %v10428, %v10432
      %v10434 = vshrl.u32 %v7346, 16
      %v10436 = vrot.slane %v10434, 4
      %v10437 = vor.u32 %v10436, %v10432
      %v10438 = vrot.slane %v10437, 4
      %v10440 = vshll.u32 %v7347, 16
      %v10442 = vrot.slane %v10440, 5
      %v10443 = vsel %vm1782, %v10438, %v10442
      %v10444 = vshrl.u32 %v7347, 16
      %v10446 = vrot.slane %v10444, 4
      %v10447 = vor.u32 %v10446, %v10442
      %v10448 = vrot.slane %v10447, 4
      %v10450 = vshll.u32 %v7348, 16
      %v10452 = vrot.slane %v10450, 5
      %v10453 = vsel %vm1782, %v10448, %v10452
      %s10454 = scalar_lea.vmem %s4, 448
      %v10455 = vld [vmem:[%s10454] sm:$0xf]
      %v10456 = vld [vmem:[%s10454 + $0x4] sm:$0xf]
      %v10457 = vld [vmem:[%s10454 + $0x8] sm:$0xf]
      %v10458 = vld [vmem:[%s10454 + $0xc] sm:$0xf]
      %v10459 = vld [vmem:[%s10454 + $0x10] sm:$0xf]
      %v10460 = vld [vmem:[%s10454 + $0x14] sm:$0xf]
      %v10461 = vld [vmem:[%s10454 + $0x18] sm:$0xf]
      %v10462 = vld [vmem:[%s10454 + $0x1c] sm:$0xf]
      %v10463 = vld [vmem:[%s10454 + $0x20] sm:$0xf]
      %v10464 = vld [vmem:[%s10454 + $0x24] sm:$0xf]
      %v10465 = vld [vmem:[%s10454 + $0x28] sm:$0xf]
      %v10466 = vld [vmem:[%s10454 + $0x2c] sm:$0xf]
      %v10467 = vld [vmem:[%s10454 + $0x30] sm:$0xf]
      %v10468 = vld [vmem:[%s10454 + $0x34] sm:$0xf]
      %v10469 = vld [vmem:[%s10454 + $0x38] sm:$0xf]
      %v10470 = vld [vmem:[%s10454 + $0x3c] sm:$0xf]
      %v10471 = vunpack.c.l.b16 %v10423
      %v10472 = vunpack.c.l.b16 %v10433
      %v10473 = vunpack.c.l.b16 %v10443
      %v10474 = vunpack.c.l.b16 %v10453
      %v10475 = vpack.c.b16 %v10472, %v10471
      %v10476 = vpack.c.b16 %v10474, %v10473
      %v10495 = vunpack.c.l.b16 %v10455
      %v10496 = vunpack.c.l.b16 %v10456
      %v10497 = vunpack.c.l.b16 %v10457
      %v10498 = vunpack.c.l.b16 %v10458
      %v10499 = vunpack.c.l.b16 %v10459
      %v10500 = vunpack.c.l.b16 %v10460
      %v10501 = vunpack.c.l.b16 %v10461
      %v10502 = vunpack.c.l.b16 %v10462
      %v10503 = vunpack.c.l.b16 %v10463
      %v10504 = vunpack.c.l.b16 %v10464
      %v10505 = vunpack.c.l.b16 %v10465
      %v10506 = vunpack.c.l.b16 %v10466
      %v10507 = vunpack.c.l.b16 %v10467
      %v10508 = vunpack.c.l.b16 %v10468
      %v10509 = vunpack.c.l.b16 %v10469
      %v10510 = vunpack.c.l.b16 %v10470
      %v10511 = vpack.c.b16 %v10496, %v10495
      %v10512 = vpack.c.b16 %v10498, %v10497
      %v10513 = vpack.c.b16 %v10500, %v10499
      %v10514 = vpack.c.b16 %v10502, %v10501
      %v10515 = vpack.c.b16 %v10504, %v10503
      %v10516 = vpack.c.b16 %v10506, %v10505
      %v10517 = vpack.c.b16 %v10508, %v10507
      %v10518 = vpack.c.b16 %v10510, %v10509
      %10527 = vmatprep.subr.bf16.mxu0 0
      %10528 = vmatpush1.bf16.msra.mxu0 %v10511
      %10529 = vmatprep.subr.bf16.mxu0 0
      %10530 = vmatpush1.bf16.msra.mxu0 %v10512
      %10531 = vmatprep.subr.bf16.mxu0 0
      %10532 = vmatpush1.bf16.msra.mxu0 %v10513
      %10533 = vmatprep.subr.bf16.mxu0 0
      %10534 = vmatpush1.bf16.msra.mxu0 %v10514
      %10535 = vmatprep.subr.bf16.mxu0 0
      %10536 = vmatpush1.bf16.msra.mxu0 %v10515
      %10537 = vmatprep.subr.bf16.mxu0 0
      %10538 = vmatpush1.bf16.msra.mxu0 %v10516
      %10539 = vmatprep.subr.bf16.mxu0 0
      %10540 = vmatpush1.bf16.msra.mxu0 %v10517
      %10541 = vmatprep.subr.bf16.mxu0 0
      %10542 = vmatpush1.bf16.msra.mxu0 %v10518
      %10543 = vmatprep.subr.bf16.mxu0 0
      %10544 = vmatpush1.bf16.msra.mxu0 0
      %10545 = vmatprep.subr.bf16.mxu0 0
      %10546 = vmatpush1.bf16.msra.mxu0 0
      %10547 = vmatprep.subr.bf16.mxu0 0
      %10548 = vmatpush1.bf16.msra.mxu0 0
      %10549 = vmatprep.subr.bf16.mxu0 0
      %10550 = vmatpush1.bf16.msra.mxu0 0
      %10551 = vmatprep.subr.bf16.mxu0 0
      %10552 = vmatpush1.bf16.msra.mxu0 0
      %10553 = vmatprep.subr.bf16.mxu0 0
      %10554 = vmatpush1.bf16.msra.mxu0 0
      %10555 = vmatprep.subr.bf16.mxu0 0
      %10556 = vmatpush1.bf16.msra.mxu0 0
      %10557 = vmatprep.subr.bf16.mxu0 0
      %10558 = vmatpush1.bf16.msra.mxu0 0
      %10559 = vmatprep.mubr.bf16.mxu0 0
      %10560 = vmatmul.mubr.bf16.gmra.mrb[0].mxu0 %v9479
      %v10561 = vpop.f32.mrb[0].mxu0
      %v10562 = vadd.f32 0.0, %v10561
      %v10563 = vpop.f32.mrb[0].mxu0
      %v10564 = vpop.f32.mrb[0].mxu0
      %v10565 = vadd.f32 0.0, %v10564
      %v10566 = vpop.f32.mrb[0].mxu0
      %10567 = vmatprep.mubr.bf16.mxu0 0
      %10568 = vmatmul.mubr.bf16.gmra.mrb[0].mxu0 %v9480
      %v10569 = vpop.f32.mrb[0].mxu0
      %v10570 = vadd.f32 0.0, %v10569
      %v10571 = vpop.f32.mrb[0].mxu0
      %v10572 = vpop.f32.mrb[0].mxu0
      %v10573 = vadd.f32 0.0, %v10572
      %v10574 = vpop.f32.mrb[0].mxu0
      %10575 = vmatprep.mubr.bf16.mxu0 0
      %10576 = vmatmul.mubr.bf16.gmra.mrb[0].mxu0 %v9481
      %v10577 = vpop.f32.mrb[0].mxu0
      %v10578 = vadd.f32 0.0, %v10577
      %v10579 = vpop.f32.mrb[0].mxu0
      %v10580 = vpop.f32.mrb[0].mxu0
      %v10581 = vadd.f32 0.0, %v10580
      %v10582 = vpop.f32.mrb[0].mxu0
      %10583 = vmatprep.mubr.bf16.mxu0 0
      %10584 = vmatmul.mubr.bf16.gmra.mrb[0].mxu0 %v9482
      %v10585 = vpop.f32.mrb[0].mxu0
      %v10586 = vadd.f32 0.0, %v10585
      %v10587 = vpop.f32.mrb[0].mxu0
      %v10588 = vpop.f32.mrb[0].mxu0
      %v10589 = vadd.f32 0.0, %v10588
      %v10590 = vpop.f32.mrb[0].mxu0
      %10591 = vmatprep.mubr.bf16.mxu0 0
      %10592 = vmatmul.mubr.bf16.gmra.mrb[0].mxu0 %v9483
      %v10593 = vpop.f32.mrb[0].mxu0
      %v10594 = vadd.f32 0.0, %v10593
      %v10595 = vpop.f32.mrb[0].mxu0
      %v10596 = vpop.f32.mrb[0].mxu0
      %v10597 = vadd.f32 0.0, %v10596
      %v10598 = vpop.f32.mrb[0].mxu0
      %10599 = vmatprep.mubr.bf16.mxu0 0
      %10600 = vmatmul.mubr.bf16.gmra.mrb[0].mxu0 %v9484
      %v10601 = vpop.f32.mrb[0].mxu0
      %v10602 = vadd.f32 0.0, %v10601
      %v10603 = vpop.f32.mrb[0].mxu0
      %v10604 = vpop.f32.mrb[0].mxu0
      %v10605 = vadd.f32 0.0, %v10604
      %v10606 = vpop.f32.mrb[0].mxu0
      %10607 = vmatprep.mubr.bf16.mxu0 0
      %10608 = vmatmul.mubr.bf16.gmra.mrb[0].mxu0 %v9485
      %v10609 = vpop.f32.mrb[0].mxu0
      %v10610 = vadd.f32 0.0, %v10609
      %v10611 = vpop.f32.mrb[0].mxu0
      %v10612 = vpop.f32.mrb[0].mxu0
      %v10613 = vadd.f32 0.0, %v10612
      %v10614 = vpop.f32.mrb[0].mxu0
      %10615 = vmatprep.mubr.bf16.mxu0 0
      %10616 = vmatmul.mubr.bf16.gmra.mrb[0].mxu0 %v9486
      %v10617 = vpop.f32.mrb[0].mxu0
      %v10618 = vadd.f32 0.0, %v10617
      %v10619 = vpop.f32.mrb[0].mxu0
      %v10620 = vpop.f32.mrb[0].mxu0
      %v10621 = vadd.f32 0.0, %v10620
      %v10622 = vpop.f32.mrb[0].mxu0
      %10623 = vmatprep.mubr.bf16.mxu0 0
      %10624 = vmatmul.mubr.bf16.gmra.mrb[0].mxu0 %v9487
      %v10625 = vpop.f32.mrb[0].mxu0
      %v10626 = vadd.f32 0.0, %v10625
      %v10627 = vpop.f32.mrb[0].mxu0
      %v10628 = vpop.f32.mrb[0].mxu0
      %v10629 = vadd.f32 0.0, %v10628
      %v10630 = vpop.f32.mrb[0].mxu0
      %10631 = vmatprep.mubr.bf16.mxu0 0
      %10632 = vmatmul.mubr.bf16.gmra.mrb[0].mxu0 %v9488
      %v10633 = vpop.f32.mrb[0].mxu0
      %v10634 = vadd.f32 0.0, %v10633
      %v10635 = vpop.f32.mrb[0].mxu0
      %v10636 = vpop.f32.mrb[0].mxu0
      %v10637 = vadd.f32 0.0, %v10636
      %v10638 = vpop.f32.mrb[0].mxu0
      %10639 = vmatprep.mubr.bf16.mxu0 0
      %10640 = vmatmul.mubr.bf16.gmra.mrb[0].mxu0 %v9489
      %v10641 = vpop.f32.mrb[0].mxu0
      %v10642 = vadd.f32 0.0, %v10641
      %v10643 = vpop.f32.mrb[0].mxu0
      %v10644 = vpop.f32.mrb[0].mxu0
      %v10645 = vadd.f32 0.0, %v10644
      %v10646 = vpop.f32.mrb[0].mxu0
      %10647 = vmatprep.mubr.bf16.mxu0 0
      %10648 = vmatmul.mubr.bf16.gmra.mrb[0].mxu0 %v9490
      %v10649 = vpop.f32.mrb[0].mxu0
      %v10650 = vadd.f32 0.0, %v10649
      %v10651 = vpop.f32.mrb[0].mxu0
      %v10652 = vpop.f32.mrb[0].mxu0
      %v10653 = vadd.f32 0.0, %v10652
      %v10654 = vpop.f32.mrb[0].mxu0
      %10655 = vmatprep.mubr.bf16.mxu0 0
      %10656 = vmatmul.mubr.bf16.gmra.mrb[0].mxu0 %v9491
      %v10657 = vpop.f32.mrb[0].mxu0
      %v10658 = vadd.f32 0.0, %v10657
      %v10659 = vpop.f32.mrb[0].mxu0
      %v10660 = vpop.f32.mrb[0].mxu0
      %v10661 = vadd.f32 0.0, %v10660
      %v10662 = vpop.f32.mrb[0].mxu0
      %10663 = vmatprep.mubr.bf16.mxu0 0
      %10664 = vmatmul.mubr.bf16.gmra.mrb[0].mxu0 %v9492
      %v10665 = vpop.f32.mrb[0].mxu0
      %v10666 = vadd.f32 0.0, %v10665
      %v10667 = vpop.f32.mrb[0].mxu0
      %v10668 = vpop.f32.mrb[0].mxu0
      %v10669 = vadd.f32 0.0, %v10668
      %v10670 = vpop.f32.mrb[0].mxu0
      %10671 = vmatprep.mubr.bf16.mxu0 0
      %10672 = vmatmul.mubr.bf16.gmra.mrb[0].mxu0 %v9493
      %v10673 = vpop.f32.mrb[0].mxu0
      %v10674 = vadd.f32 0.0, %v10673
      %v10675 = vpop.f32.mrb[0].mxu0
      %v10676 = vpop.f32.mrb[0].mxu0
      %v10677 = vadd.f32 0.0, %v10676
      %v10678 = vpop.f32.mrb[0].mxu0
      %10679 = vmatprep.mubr.bf16.mxu0 0
      %10680 = vmatmul.mubr.bf16.gmra.mrb[0].mxu0 %v9494
      %v10681 = vpop.f32.mrb[0].mxu0
      %v10682 = vadd.f32 0.0, %v10681
      %v10683 = vpop.f32.mrb[0].mxu0
      %v10684 = vpop.f32.mrb[0].mxu0
      %v10685 = vadd.f32 0.0, %v10684
      %v10686 = vpop.f32.mrb[0].mxu0
      %10687 = vmatprep.mubr.bf16.mxu0 0
      %10688 = vmatmul.mubr.bf16.gmra.mrb[0].mxu0 %v9495
      %v10689 = vpop.f32.mrb[0].mxu0
      %v10690 = vadd.f32 0.0, %v10689
      %v10691 = vpop.f32.mrb[0].mxu0
      %v10692 = vpop.f32.mrb[0].mxu0
      %v10693 = vadd.f32 0.0, %v10692
      %v10694 = vpop.f32.mrb[0].mxu0
      %10695 = vmatprep.mubr.bf16.mxu0 0
      %10696 = vmatmul.mubr.bf16.gmra.mrb[0].mxu0 %v9496
      %v10697 = vpop.f32.mrb[0].mxu0
      %v10698 = vadd.f32 0.0, %v10697
      %v10699 = vpop.f32.mrb[0].mxu0
      %v10700 = vpop.f32.mrb[0].mxu0
      %v10701 = vadd.f32 0.0, %v10700
      %v10702 = vpop.f32.mrb[0].mxu0
      %10703 = vmatprep.mubr.bf16.mxu0 0
      %10704 = vmatmul.mubr.bf16.gmra.mrb[0].mxu0 %v9497
      %v10705 = vpop.f32.mrb[0].mxu0
      %v10706 = vadd.f32 0.0, %v10705
      %v10707 = vpop.f32.mrb[0].mxu0
      %v10708 = vpop.f32.mrb[0].mxu0
      %v10709 = vadd.f32 0.0, %v10708
      %v10710 = vpop.f32.mrb[0].mxu0
      %10711 = vmatprep.mubr.bf16.mxu0 0
      %10712 = vmatmul.mubr.bf16.gmra.mrb[0].mxu0 %v9498
      %v10713 = vpop.f32.mrb[0].mxu0
      %v10714 = vadd.f32 0.0, %v10713
      %v10715 = vpop.f32.mrb[0].mxu0
      %v10716 = vpop.f32.mrb[0].mxu0
      %v10717 = vadd.f32 0.0, %v10716
      %v10718 = vpop.f32.mrb[0].mxu0
      %10719 = vmatprep.mubr.bf16.mxu0 0
      %10720 = vmatmul.mubr.bf16.gmra.mrb[0].mxu0 %v9499
      %v10721 = vpop.f32.mrb[0].mxu0
      %v10722 = vadd.f32 0.0, %v10721
      %v10723 = vpop.f32.mrb[0].mxu0
      %v10724 = vpop.f32.mrb[0].mxu0
      %v10725 = vadd.f32 0.0, %v10724
      %v10726 = vpop.f32.mrb[0].mxu0
      %10727 = vmatprep.mubr.bf16.mxu0 0
      %10728 = vmatmul.mubr.bf16.gmra.mrb[0].mxu0 %v9500
      %v10729 = vpop.f32.mrb[0].mxu0
      %v10730 = vadd.f32 0.0, %v10729
      %v10731 = vpop.f32.mrb[0].mxu0
      %v10732 = vpop.f32.mrb[0].mxu0
      %v10733 = vadd.f32 0.0, %v10732
      %v10734 = vpop.f32.mrb[0].mxu0
      %10735 = vmatprep.mubr.bf16.mxu0 0
      %10736 = vmatmul.mubr.bf16.gmra.mrb[0].mxu0 %v9501
      %v10737 = vpop.f32.mrb[0].mxu0
      %v10738 = vadd.f32 0.0, %v10737
      %v10739 = vpop.f32.mrb[0].mxu0
      %v10740 = vpop.f32.mrb[0].mxu0
      %v10741 = vadd.f32 0.0, %v10740
      %v10742 = vpop.f32.mrb[0].mxu0
      %10743 = vmatprep.mubr.bf16.mxu0 0
      %10744 = vmatmul.mubr.bf16.gmra.mrb[0].mxu0 %v9502
      %v10745 = vpop.f32.mrb[0].mxu0
      %v10746 = vadd.f32 0.0, %v10745
      %v10747 = vpop.f32.mrb[0].mxu0
      %v10748 = vpop.f32.mrb[0].mxu0
      %v10749 = vadd.f32 0.0, %v10748
      %v10750 = vpop.f32.mrb[0].mxu0
      %10751 = vmatprep.mubr.bf16.mxu0 0
      %10752 = vmatmul.mubr.bf16.gmra.mrb[0].mxu0 %v9503
      %v10753 = vpop.f32.mrb[0].mxu0
      %v10754 = vadd.f32 0.0, %v10753
      %v10755 = vpop.f32.mrb[0].mxu0
      %v10756 = vpop.f32.mrb[0].mxu0
      %v10757 = vadd.f32 0.0, %v10756
      %v10758 = vpop.f32.mrb[0].mxu0
      %10759 = vmatprep.mubr.bf16.mxu0 0
      %10760 = vmatmul.mubr.bf16.gmra.mrb[0].mxu0 %v9504
      %v10761 = vpop.f32.mrb[0].mxu0
      %v10762 = vadd.f32 0.0, %v10761
      %v10763 = vpop.f32.mrb[0].mxu0
      %v10764 = vpop.f32.mrb[0].mxu0
      %v10765 = vadd.f32 0.0, %v10764
      %v10766 = vpop.f32.mrb[0].mxu0
      %10767 = vmatprep.mubr.bf16.mxu0 0
      %10768 = vmatmul.mubr.bf16.gmra.mrb[0].mxu0 %v9505
      %v10769 = vpop.f32.mrb[0].mxu0
      %v10770 = vadd.f32 0.0, %v10769
      %v10771 = vpop.f32.mrb[0].mxu0
      %v10772 = vpop.f32.mrb[0].mxu0
      %v10773 = vadd.f32 0.0, %v10772
      %v10774 = vpop.f32.mrb[0].mxu0
      %10775 = vmatprep.mubr.bf16.mxu0 0
      %10776 = vmatmul.mubr.bf16.gmra.mrb[0].mxu0 %v9506
      %v10777 = vpop.f32.mrb[0].mxu0
      %v10778 = vadd.f32 0.0, %v10777
      %v10779 = vpop.f32.mrb[0].mxu0
      %v10780 = vpop.f32.mrb[0].mxu0
      %v10781 = vadd.f32 0.0, %v10780
      %v10782 = vpop.f32.mrb[0].mxu0
      %10783 = vmatprep.mubr.bf16.mxu0 0
      %10784 = vmatmul.mubr.bf16.gmra.mrb[0].mxu0 %v10005
      %v10785 = vpop.f32.mrb[0].mxu0
      %v10786 = vadd.f32 0.0, %v10785
      %v10787 = vpop.f32.mrb[0].mxu0
      %v10788 = vpop.f32.mrb[0].mxu0
      %v10789 = vadd.f32 0.0, %v10788
      %v10790 = vpop.f32.mrb[0].mxu0
      %10791 = vmatprep.mubr.bf16.mxu0 0
      %10792 = vmatmul.mubr.bf16.gmra.mrb[0].mxu0 %v10006
      %v10793 = vpop.f32.mrb[0].mxu0
      %v10794 = vadd.f32 0.0, %v10793
      %v10795 = vpop.f32.mrb[0].mxu0
      %v10796 = vpop.f32.mrb[0].mxu0
      %v10797 = vadd.f32 0.0, %v10796
      %v10798 = vpop.f32.mrb[0].mxu0
      %10799 = vmatprep.mubr.bf16.mxu0 0
      %10800 = vmatmul.mubr.bf16.gmra.mrb[0].mxu0 %v10475
      %v10801 = vpop.f32.mrb[0].mxu0
      %v10802 = vadd.f32 0.0, %v10801
      %v10803 = vpop.f32.mrb[0].mxu0
      %v10804 = vpop.f32.mrb[0].mxu0
      %v10805 = vadd.f32 0.0, %v10804
      %v10806 = vpop.f32.mrb[0].mxu0
      %10807 = vmatprep.mubr.bf16.mxu0 0
      %10808 = vmatmul.mubr.bf16.gmra.mrb[0].mxu0 %v10476
      %v10809 = vpop.f32.mrb[0].mxu0
      %v10810 = vadd.f32 0.0, %v10809
      %v10811 = vpop.f32.mrb[0].mxu0
      %v10812 = vpop.f32.mrb[0].mxu0
      %v10813 = vadd.f32 0.0, %v10812
      %v10814 = vpop.f32.mrb[0].mxu0
      %10815 = vdwg.mxu0
      %v10816 = vadd.f32 %v10346, %v10562
      %v10817 = vadd.f32 %v10347, %v10565
      %v10818 = vadd.f32 %v10348, %v10570
      %v10819 = vadd.f32 %v10349, %v10573
      %v10820 = vadd.f32 %v10350, %v10578
      %v10821 = vadd.f32 %v10351, %v10581
      %v10822 = vadd.f32 %v10352, %v10586
      %v10823 = vadd.f32 %v10353, %v10589
      %v10824 = vadd.f32 %v10354, %v10594
      %v10825 = vadd.f32 %v10355, %v10597
      %v10826 = vadd.f32 %v10356, %v10602
      %v10827 = vadd.f32 %v10357, %v10605
      %v10828 = vadd.f32 %v10358, %v10610
      %v10829 = vadd.f32 %v10359, %v10613
      %v10830 = vadd.f32 %v10360, %v10618
      %v10831 = vadd.f32 %v10361, %v10621
      %v10832 = vadd.f32 %v10362, %v10626
      %v10833 = vadd.f32 %v10363, %v10629
      %v10834 = vadd.f32 %v10364, %v10634
      %v10835 = vadd.f32 %v10365, %v10637
      %v10836 = vadd.f32 %v10366, %v10642
      %v10837 = vadd.f32 %v10367, %v10645
      %v10838 = vadd.f32 %v10368, %v10650
      %v10839 = vadd.f32 %v10369, %v10653
      %v10840 = vadd.f32 %v10370, %v10658
      %v10841 = vadd.f32 %v10371, %v10661
      %v10842 = vadd.f32 %v10372, %v10666
      %v10843 = vadd.f32 %v10373, %v10669
      %v10844 = vadd.f32 %v10374, %v10674
      %v10845 = vadd.f32 %v10375, %v10677
      %v10846 = vadd.f32 %v10376, %v10682
      %v10847 = vadd.f32 %v10377, %v10685
      %v10848 = vadd.f32 %v10378, %v10690
      %v10849 = vadd.f32 %v10379, %v10693
      %v10850 = vadd.f32 %v10380, %v10698
      %v10851 = vadd.f32 %v10381, %v10701
      %v10852 = vadd.f32 %v10382, %v10706
      %v10853 = vadd.f32 %v10383, %v10709
      %v10854 = vadd.f32 %v10384, %v10714
      %v10855 = vadd.f32 %v10385, %v10717
      %v10856 = vadd.f32 %v10386, %v10722
      %v10857 = vadd.f32 %v10387, %v10725
      %v10858 = vadd.f32 %v10388, %v10730
      %v10859 = vadd.f32 %v10389, %v10733
      %v10860 = vadd.f32 %v10390, %v10738
      %v10861 = vadd.f32 %v10391, %v10741
      %v10862 = vadd.f32 %v10392, %v10746
      %v10863 = vadd.f32 %v10393, %v10749
      %v10864 = vadd.f32 %v10394, %v10754
      %v10865 = vadd.f32 %v10395, %v10757
      %v10866 = vadd.f32 %v10396, %v10762
      %v10867 = vadd.f32 %v10397, %v10765
      %v10868 = vadd.f32 %v10398, %v10770
      %v10869 = vadd.f32 %v10399, %v10773
      %v10870 = vadd.f32 %v10400, %v10778
      %v10871 = vadd.f32 %v10401, %v10781
      %v10872 = vadd.f32 %v10402, %v10786
      %v10873 = vadd.f32 %v10403, %v10789
      %v10874 = vadd.f32 %v10404, %v10794
      %v10875 = vadd.f32 %v10405, %v10797
      %v10876 = vadd.f32 %v10406, %v10802
      %v10877 = vadd.f32 %v10407, %v10805
      %v10878 = vadd.f32 %v10408, %v10810
      %v10879 = vadd.f32 %v10409, %v10813
      %v10896 = vrot.slane %v7259, 5
      %v10897 = vrot.slane %v10896, 4
      %v10898 = vrot.slane %v7260, 5
      %v10899 = vsel %vm4117, %v10897, %v10898
      %v10900 = vrot.slane %v10898, 4
      %v10901 = vrot.slane %v7261, 5
      %v10902 = vsel %vm4117, %v10900, %v10901
      %v10903 = vrot.slane %v10901, 4
      %v10904 = vrot.slane %v7262, 5
      %v10905 = vsel %vm4117, %v10903, %v10904
      %v10906 = vrot.slane %v10904, 4
      %v10907 = vrot.slane %v7263, 5
      %v10908 = vsel %vm4117, %v10906, %v10907
      %v10909 = vrot.slane %v7264, 5
      %v10910 = vrot.slane %v10909, 4
      %v10911 = vrot.slane %v7265, 5
      %v10912 = vsel %vm4117, %v10910, %v10911
      %v10913 = vrot.slane %v10911, 4
      %v10914 = vrot.slane %v7266, 5
      %v10915 = vsel %vm4117, %v10913, %v10914
      %v10916 = vrot.slane %v10914, 4
      %v10917 = vrot.slane %v7267, 5
      %v10918 = vsel %vm4117, %v10916, %v10917
      %v10919 = vrot.slane %v10917, 4
      %v10920 = vrot.slane %v7268, 5
      %v10921 = vsel %vm4117, %v10919, %v10920
      %v10922 = vrot.slane %v7269, 5
      %v10923 = vrot.slane %v10922, 4
      %v10924 = vrot.slane %v7270, 5
      %v10925 = vsel %vm4117, %v10923, %v10924
      %v10926 = vrot.slane %v10924, 4
      %v10927 = vrot.slane %v7271, 5
      %v10928 = vsel %vm4117, %v10926, %v10927
      %v10929 = vrot.slane %v10927, 4
      %v10930 = vrot.slane %v7272, 5
      %v10931 = vsel %vm4117, %v10929, %v10930
      %v10932 = vrot.slane %v10930, 4
      %v10933 = vrot.slane %v7273, 5
      %v10934 = vsel %vm4117, %v10932, %v10933
      %v10935 = vrot.slane %v7274, 5
      %v10936 = vrot.slane %v10935, 4
      %v10937 = vrot.slane %v7275, 5
      %v10938 = vsel %vm4117, %v10936, %v10937
      %v10939 = vrot.slane %v10937, 4
      %v10940 = vrot.slane %v7276, 5
      %v10941 = vsel %vm4117, %v10939, %v10940
      %v10942 = vrot.slane %v10940, 4
      %v10943 = vrot.slane %v7277, 5
      %v10944 = vsel %vm4117, %v10942, %v10943
      %v10945 = vrot.slane %v10943, 4
      %v10946 = vrot.slane %v7278, 5
      %v10947 = vsel %vm4117, %v10945, %v10946
      %v10948 = vrot.slane %v7279, 5
      %v10949 = vrot.slane %v10948, 4
      %v10950 = vrot.slane %v7280, 5
      %v10951 = vsel %vm4117, %v10949, %v10950
      %v10952 = vrot.slane %v10950, 4
      %v10953 = vrot.slane %v7281, 5
      %v10954 = vsel %vm4117, %v10952, %v10953
      %v10955 = vrot.slane %v10953, 4
      %v10956 = vrot.slane %v7282, 5
      %v10957 = vsel %vm4117, %v10955, %v10956
      %v10958 = vrot.slane %v10956, 4
      %v10959 = vrot.slane %v7283, 5
      %v10960 = vsel %vm4117, %v10958, %v10959
      %v10961 = vrot.slane %v7284, 5
      %v10962 = vrot.slane %v10961, 4
      %v10963 = vrot.slane %v7285, 5
      %v10964 = vsel %vm4117, %v10962, %v10963
      %v10965 = vrot.slane %v10963, 4
      %v10966 = vrot.slane %v7286, 5
      %v10967 = vsel %vm4117, %v10965, %v10966
      %v10968 = vrot.slane %v10966, 4
      %v10969 = vrot.slane %v7287, 5
      %v10970 = vsel %vm4117, %v10968, %v10969
      %v10971 = vrot.slane %v10969, 4
      %v10972 = vrot.slane %v7288, 5
      %v10973 = vsel %vm4117, %v10971, %v10972
      %v10974 = vrot.slane %v7289, 5
      %v10975 = vrot.slane %v10974, 4
      %v10976 = vrot.slane %v7290, 5
      %v10977 = vsel %vm4117, %v10975, %v10976
      %v10978 = vrot.slane %v10976, 4
      %v10979 = vrot.slane %v7291, 5
      %v10980 = vsel %vm4117, %v10978, %v10979
      %v10981 = vrot.slane %v10979, 4
      %v10982 = vrot.slane %v7292, 5
      %v10983 = vsel %vm4117, %v10981, %v10982
      %v10984 = vrot.slane %v10982, 4
      %v10985 = vrot.slane %v7293, 5
      %v10986 = vsel %vm4117, %v10984, %v10985
      %v10987 = vrot.slane %v7294, 5
      %v10988 = vrot.slane %v10987, 4
      %v10989 = vrot.slane %v7295, 5
      %v10990 = vsel %vm4117, %v10988, %v10989
      %v10991 = vrot.slane %v10989, 4
      %v10992 = vrot.slane %v7296, 5
      %v10993 = vsel %vm4117, %v10991, %v10992
      %v10994 = vrot.slane %v10992, 4
      %v10995 = vrot.slane %v7297, 5
      %v10996 = vsel %vm4117, %v10994, %v10995
      %v10997 = vrot.slane %v10995, 4
      %v10998 = vrot.slane %v7298, 5
      %v10999 = vsel %vm4117, %v10997, %v10998
      %v11000 = vrot.slane %v7299, 5
      %v11001 = vrot.slane %v11000, 4
      %v11002 = vrot.slane %v7300, 5
      %v11003 = vsel %vm4117, %v11001, %v11002
      %v11004 = vrot.slane %v11002, 4
      %v11005 = vrot.slane %v7301, 5
      %v11006 = vsel %vm4117, %v11004, %v11005
      %v11007 = vrot.slane %v11005, 4
      %v11008 = vrot.slane %v7302, 5
      %v11009 = vsel %vm4117, %v11007, %v11008
      %v11010 = vrot.slane %v11008, 4
      %v11011 = vrot.slane %v7303, 5
      %v11012 = vsel %vm4117, %v11010, %v11011
      %v11013 = vrot.slane %v7304, 5
      %v11014 = vrot.slane %v11013, 4
      %v11015 = vrot.slane %v7305, 5
      %v11016 = vsel %vm4117, %v11014, %v11015
      %v11017 = vrot.slane %v11015, 4
      %v11018 = vrot.slane %v7306, 5
      %v11019 = vsel %vm4117, %v11017, %v11018
      %v11020 = vrot.slane %v11018, 4
      %v11021 = vrot.slane %v7307, 5
      %v11022 = vsel %vm4117, %v11020, %v11021
      %v11023 = vrot.slane %v11021, 4
      %v11024 = vrot.slane %v7308, 5
      %v11025 = vsel %vm4117, %v11023, %v11024
      %v11026 = vrot.slane %v7309, 5
      %v11027 = vrot.slane %v11026, 4
      %v11028 = vrot.slane %v7310, 5
      %v11029 = vsel %vm4117, %v11027, %v11028
      %v11030 = vrot.slane %v11028, 4
      %v11031 = vrot.slane %v7311, 5
      %v11032 = vsel %vm4117, %v11030, %v11031
      %v11033 = vrot.slane %v11031, 4
      %v11034 = vrot.slane %v7312, 5
      %v11035 = vsel %vm4117, %v11033, %v11034
      %v11036 = vrot.slane %v11034, 4
      %v11037 = vrot.slane %v7313, 5
      %v11038 = vsel %vm4117, %v11036, %v11037
      %v11039 = vrot.slane %v7314, 5
      %v11040 = vrot.slane %v11039, 4
      %v11041 = vrot.slane %v7315, 5
      %v11042 = vsel %vm4117, %v11040, %v11041
      %v11043 = vrot.slane %v11041, 4
      %v11044 = vrot.slane %v7316, 5
      %v11045 = vsel %vm4117, %v11043, %v11044
      %v11046 = vrot.slane %v11044, 4
      %v11047 = vrot.slane %v7317, 5
      %v11048 = vsel %vm4117, %v11046, %v11047
      %v11049 = vrot.slane %v11047, 4
      %v11050 = vrot.slane %v7318, 5
      %v11051 = vsel %vm4117, %v11049, %v11050
      %v11052 = vrot.slane %v7319, 5
      %v11053 = vrot.slane %v11052, 4
      %v11054 = vrot.slane %v7320, 5
      %v11055 = vsel %vm4117, %v11053, %v11054
      %v11056 = vrot.slane %v11054, 4
      %v11057 = vrot.slane %v7321, 5
      %v11058 = vsel %vm4117, %v11056, %v11057
      %v11059 = vrot.slane %v11057, 4
      %v11060 = vrot.slane %v7322, 5
      %v11061 = vsel %vm4117, %v11059, %v11060
      %v11062 = vrot.slane %v11060, 4
      %v11063 = vrot.slane %v7323, 5
      %v11064 = vsel %vm4117, %v11062, %v11063
      %v11065 = vrot.slane %v7324, 5
      %v11066 = vrot.slane %v11065, 4
      %v11067 = vrot.slane %v7325, 5
      %v11068 = vsel %vm4117, %v11066, %v11067
      %v11069 = vrot.slane %v11067, 4
      %v11070 = vrot.slane %v7326, 5
      %v11071 = vsel %vm4117, %v11069, %v11070
      %v11072 = vrot.slane %v11070, 4
      %v11073 = vrot.slane %v7327, 5
      %v11074 = vsel %vm4117, %v11072, %v11073
      %v11075 = vrot.slane %v11073, 4
      %v11076 = vrot.slane %v7328, 5
      %v11077 = vsel %vm4117, %v11075, %v11076
      %v11078 = vrot.slane %v7329, 5
      %v11079 = vrot.slane %v11078, 4
      %v11080 = vrot.slane %v7330, 5
      %v11081 = vsel %vm4117, %v11079, %v11080
      %v11082 = vrot.slane %v11080, 4
      %v11083 = vrot.slane %v7331, 5
      %v11084 = vsel %vm4117, %v11082, %v11083
      %v11085 = vrot.slane %v11083, 4
      %v11086 = vrot.slane %v7332, 5
      %v11087 = vsel %vm4117, %v11085, %v11086
      %v11088 = vrot.slane %v11086, 4
      %v11089 = vrot.slane %v7333, 5
      %v11090 = vsel %vm4117, %v11088, %v11089
      %v11091 = vrot.slane %v7334, 5
      %v11092 = vrot.slane %v11091, 4
      %v11093 = vrot.slane %v7335, 5
      %v11094 = vsel %vm4117, %v11092, %v11093
      %v11095 = vrot.slane %v11093, 4
      %v11096 = vrot.slane %v7336, 5
      %v11097 = vsel %vm4117, %v11095, %v11096
      %v11098 = vrot.slane %v11096, 4
      %v11099 = vrot.slane %v7337, 5
      %v11100 = vsel %vm4117, %v11098, %v11099
      %v11101 = vrot.slane %v11099, 4
      %v11102 = vrot.slane %v7338, 5
      %v11103 = vsel %vm4117, %v11101, %v11102
      %s11104 = scalar_lea.vmem %s4, 128
      %v11105 = vld [vmem:[%s11104] sm:$0xf]
      %v11106 = vld [vmem:[%s11104 + $0x4] sm:$0xf]
      %v11107 = vld [vmem:[%s11104 + $0x8] sm:$0xf]
      %v11108 = vld [vmem:[%s11104 + $0xc] sm:$0xf]
      %v11109 = vld [vmem:[%s11104 + $0x10] sm:$0xf]
      %v11110 = vld [vmem:[%s11104 + $0x14] sm:$0xf]
      %v11111 = vld [vmem:[%s11104 + $0x18] sm:$0xf]
      %v11112 = vld [vmem:[%s11104 + $0x1c] sm:$0xf]
      %v11113 = vld [vmem:[%s11104 + $0x20] sm:$0xf]
      %v11114 = vld [vmem:[%s11104 + $0x24] sm:$0xf]
      %v11115 = vld [vmem:[%s11104 + $0x28] sm:$0xf]
      %v11116 = vld [vmem:[%s11104 + $0x2c] sm:$0xf]
      %v11117 = vld [vmem:[%s11104 + $0x30] sm:$0xf]
      %v11118 = vld [vmem:[%s11104 + $0x34] sm:$0xf]
      %v11119 = vld [vmem:[%s11104 + $0x38] sm:$0xf]
      %v11120 = vld [vmem:[%s11104 + $0x3c] sm:$0xf]
      %v11121 = vunpack.c.l.b16 %v10899
      %v11122 = vunpack.c.l.b16 %v10902
      %v11123 = vunpack.c.l.b16 %v10905
      %v11124 = vunpack.c.l.b16 %v10908
      %v11125 = vunpack.c.l.b16 %v10912
      %v11126 = vunpack.c.l.b16 %v10915
      %v11127 = vunpack.c.l.b16 %v10918
      %v11128 = vunpack.c.l.b16 %v10921
      %v11129 = vunpack.c.l.b16 %v10925
      %v11130 = vunpack.c.l.b16 %v10928
      %v11131 = vunpack.c.l.b16 %v10931
      %v11132 = vunpack.c.l.b16 %v10934
      %v11133 = vunpack.c.l.b16 %v10938
      %v11134 = vunpack.c.l.b16 %v10941
      %v11135 = vunpack.c.l.b16 %v10944
      %v11136 = vunpack.c.l.b16 %v10947
      %v11137 = vunpack.c.l.b16 %v10951
      %v11138 = vunpack.c.l.b16 %v10954
      %v11139 = vunpack.c.l.b16 %v10957
      %v11140 = vunpack.c.l.b16 %v10960
      %v11141 = vunpack.c.l.b16 %v10964
      %v11142 = vunpack.c.l.b16 %v10967
      %v11143 = vunpack.c.l.b16 %v10970
      %v11144 = vunpack.c.l.b16 %v10973
      %v11145 = vunpack.c.l.b16 %v10977
      %v11146 = vunpack.c.l.b16 %v10980
      %v11147 = vunpack.c.l.b16 %v10983
      %v11148 = vunpack.c.l.b16 %v10986
      %v11149 = vunpack.c.l.b16 %v10990
      %v11150 = vunpack.c.l.b16 %v10993
      %v11151 = vunpack.c.l.b16 %v10996
      %v11152 = vunpack.c.l.b16 %v10999
      %v11153 = vunpack.c.l.b16 %v11003
      %v11154 = vunpack.c.l.b16 %v11006
      %v11155 = vunpack.c.l.b16 %v11009
      %v11156 = vunpack.c.l.b16 %v11012
      %v11157 = vunpack.c.l.b16 %v11016
      %v11158 = vunpack.c.l.b16 %v11019
      %v11159 = vunpack.c.l.b16 %v11022
      %v11160 = vunpack.c.l.b16 %v11025
      %v11161 = vunpack.c.l.b16 %v11029
      %v11162 = vunpack.c.l.b16 %v11032
      %v11163 = vunpack.c.l.b16 %v11035
      %v11164 = vunpack.c.l.b16 %v11038
      %v11165 = vunpack.c.l.b16 %v11042
      %v11166 = vunpack.c.l.b16 %v11045
      %v11167 = vunpack.c.l.b16 %v11048
      %v11168 = vunpack.c.l.b16 %v11051
      %v11169 = vunpack.c.l.b16 %v11055
      %v11170 = vunpack.c.l.b16 %v11058
      %v11171 = vunpack.c.l.b16 %v11061
      %v11172 = vunpack.c.l.b16 %v11064
      %v11173 = vunpack.c.l.b16 %v11068
      %v11174 = vunpack.c.l.b16 %v11071
      %v11175 = vunpack.c.l.b16 %v11074
      %v11176 = vunpack.c.l.b16 %v11077
      %v11177 = vunpack.c.l.b16 %v11081
      %v11178 = vunpack.c.l.b16 %v11084
      %v11179 = vunpack.c.l.b16 %v11087
      %v11180 = vunpack.c.l.b16 %v11090
      %v11181 = vunpack.c.l.b16 %v11094
      %v11182 = vunpack.c.l.b16 %v11097
      %v11183 = vunpack.c.l.b16 %v11100
      %v11184 = vunpack.c.l.b16 %v11103
      %v11185 = vpack.c.b16 %v11122, %v11121
      %v11186 = vpack.c.b16 %v11124, %v11123
      %v11187 = vpack.c.b16 %v11126, %v11125
      %v11188 = vpack.c.b16 %v11128, %v11127
      %v11189 = vpack.c.b16 %v11130, %v11129
      %v11190 = vpack.c.b16 %v11132, %v11131
      %v11191 = vpack.c.b16 %v11134, %v11133
      %v11192 = vpack.c.b16 %v11136, %v11135
      %v11193 = vpack.c.b16 %v11138, %v11137
      %v11194 = vpack.c.b16 %v11140, %v11139
      %v11195 = vpack.c.b16 %v11142, %v11141
      %v11196 = vpack.c.b16 %v11144, %v11143
      %v11197 = vpack.c.b16 %v11146, %v11145
      %v11198 = vpack.c.b16 %v11148, %v11147
      %v11199 = vpack.c.b16 %v11150, %v11149
      %v11200 = vpack.c.b16 %v11152, %v11151
      %v11201 = vpack.c.b16 %v11154, %v11153
      %v11202 = vpack.c.b16 %v11156, %v11155
      %v11203 = vpack.c.b16 %v11158, %v11157
      %v11204 = vpack.c.b16 %v11160, %v11159
      %v11205 = vpack.c.b16 %v11162, %v11161
      %v11206 = vpack.c.b16 %v11164, %v11163
      %v11207 = vpack.c.b16 %v11166, %v11165
      %v11208 = vpack.c.b16 %v11168, %v11167
      %v11209 = vpack.c.b16 %v11170, %v11169
      %v11210 = vpack.c.b16 %v11172, %v11171
      %v11211 = vpack.c.b16 %v11174, %v11173
      %v11212 = vpack.c.b16 %v11176, %v11175
      %v11213 = vpack.c.b16 %v11178, %v11177
      %v11214 = vpack.c.b16 %v11180, %v11179
      %v11215 = vpack.c.b16 %v11182, %v11181
      %v11216 = vpack.c.b16 %v11184, %v11183
      %v11265 = vunpack.c.l.b16 %v11105
      %v11266 = vunpack.c.l.b16 %v11106
      %v11267 = vunpack.c.l.b16 %v11107
      %v11268 = vunpack.c.l.b16 %v11108
      %v11269 = vunpack.c.l.b16 %v11109
      %v11270 = vunpack.c.l.b16 %v11110
      %v11271 = vunpack.c.l.b16 %v11111
      %v11272 = vunpack.c.l.b16 %v11112
      %v11273 = vunpack.c.l.b16 %v11113
      %v11274 = vunpack.c.l.b16 %v11114
      %v11275 = vunpack.c.l.b16 %v11115
      %v11276 = vunpack.c.l.b16 %v11116
      %v11277 = vunpack.c.l.b16 %v11117
      %v11278 = vunpack.c.l.b16 %v11118
      %v11279 = vunpack.c.l.b16 %v11119
      %v11280 = vunpack.c.l.b16 %v11120
      %v11281 = vpack.c.b16 %v11266, %v11265
      %v11282 = vpack.c.b16 %v11268, %v11267
      %v11283 = vpack.c.b16 %v11270, %v11269
      %v11284 = vpack.c.b16 %v11272, %v11271
      %v11285 = vpack.c.b16 %v11274, %v11273
      %v11286 = vpack.c.b16 %v11276, %v11275
      %v11287 = vpack.c.b16 %v11278, %v11277
      %v11288 = vpack.c.b16 %v11280, %v11279
      %11297 = vmatprep.subr.bf16.mxu0 0
      %11298 = vmatpush1.bf16.msra.mxu0 %v11281
      %11299 = vmatprep.subr.bf16.mxu0 0
      %11300 = vmatpush1.bf16.msra.mxu0 %v11282
      %11301 = vmatprep.subr.bf16.mxu0 0
      %11302 = vmatpush1.bf16.msra.mxu0 %v11283
      %11303 = vmatprep.subr.bf16.mxu0 0
      %11304 = vmatpush1.bf16.msra.mxu0 %v11284
      %11305 = vmatprep.subr.bf16.mxu0 0
      %11306 = vmatpush1.bf16.msra.mxu0 %v11285
      %11307 = vmatprep.subr.bf16.mxu0 0
      %11308 = vmatpush1.bf16.msra.mxu0 %v11286
      %11309 = vmatprep.subr.bf16.mxu0 0
      %11310 = vmatpush1.bf16.msra.mxu0 %v11287
      %11311 = vmatprep.subr.bf16.mxu0 0
      %11312 = vmatpush1.bf16.msra.mxu0 %v11288
      %11313 = vmatprep.subr.bf16.mxu0 0
      %11314 = vmatpush1.bf16.msra.mxu0 0
      %11315 = vmatprep.subr.bf16.mxu0 0
      %11316 = vmatpush1.bf16.msra.mxu0 0
      %11317 = vmatprep.subr.bf16.mxu0 0
      %11318 = vmatpush1.bf16.msra.mxu0 0
      %11319 = vmatprep.subr.bf16.mxu0 0
      %11320 = vmatpush1.bf16.msra.mxu0 0
      %11321 = vmatprep.subr.bf16.mxu0 0
      %11322 = vmatpush1.bf16.msra.mxu0 0
      %11323 = vmatprep.subr.bf16.mxu0 0
      %11324 = vmatpush1.bf16.msra.mxu0 0
      %11325 = vmatprep.subr.bf16.mxu0 0
      %11326 = vmatpush1.bf16.msra.mxu0 0
      %11327 = vmatprep.subr.bf16.mxu0 0
      %11328 = vmatpush1.bf16.msra.mxu0 0
      %11329 = vmatprep.mubr.bf16.mxu0 0
      %11330 = vmatmul.mubr.bf16.gmra.mrb[0].mxu0 %v11185
      %v11331 = vpop.f32.mrb[0].mxu0
      %v11332 = vadd.f32 0.0, %v11331
      %v11333 = vpop.f32.mrb[0].mxu0
      %v11334 = vpop.f32.mrb[0].mxu0
      %v11335 = vadd.f32 0.0, %v11334
      %v11336 = vpop.f32.mrb[0].mxu0
      %11337 = vmatprep.mubr.bf16.mxu0 0
      %11338 = vmatmul.mubr.bf16.gmra.mrb[0].mxu0 %v11186
      %v11339 = vpop.f32.mrb[0].mxu0
      %v11340 = vadd.f32 0.0, %v11339
      %v11341 = vpop.f32.mrb[0].mxu0
      %v11342 = vpop.f32.mrb[0].mxu0
      %v11343 = vadd.f32 0.0, %v11342
      %v11344 = vpop.f32.mrb[0].mxu0
      %11345 = vmatprep.mubr.bf16.mxu0 0
      %11346 = vmatmul.mubr.bf16.gmra.mrb[0].mxu0 %v11187
      %v11347 = vpop.f32.mrb[0].mxu0
      %v11348 = vadd.f32 0.0, %v11347
      %v11349 = vpop.f32.mrb[0].mxu0
      %v11350 = vpop.f32.mrb[0].mxu0
      %v11351 = vadd.f32 0.0, %v11350
      %v11352 = vpop.f32.mrb[0].mxu0
      %11353 = vmatprep.mubr.bf16.mxu0 0
      %11354 = vmatmul.mubr.bf16.gmra.mrb[0].mxu0 %v11188
      %v11355 = vpop.f32.mrb[0].mxu0
      %v11356 = vadd.f32 0.0, %v11355
      %v11357 = vpop.f32.mrb[0].mxu0
      %v11358 = vpop.f32.mrb[0].mxu0
      %v11359 = vadd.f32 0.0, %v11358
      %v11360 = vpop.f32.mrb[0].mxu0
      %11361 = vmatprep.mubr.bf16.mxu0 0
      %11362 = vmatmul.mubr.bf16.gmra.mrb[0].mxu0 %v11189
      %v11363 = vpop.f32.mrb[0].mxu0
      %v11364 = vadd.f32 0.0, %v11363
      %v11365 = vpop.f32.mrb[0].mxu0
      %v11366 = vpop.f32.mrb[0].mxu0
      %v11367 = vadd.f32 0.0, %v11366
      %v11368 = vpop.f32.mrb[0].mxu0
      %11369 = vmatprep.mubr.bf16.mxu0 0
      %11370 = vmatmul.mubr.bf16.gmra.mrb[0].mxu0 %v11190
      %v11371 = vpop.f32.mrb[0].mxu0
      %v11372 = vadd.f32 0.0, %v11371
      %v11373 = vpop.f32.mrb[0].mxu0
      %v11374 = vpop.f32.mrb[0].mxu0
      %v11375 = vadd.f32 0.0, %v11374
      %v11376 = vpop.f32.mrb[0].mxu0
      %11377 = vmatprep.mubr.bf16.mxu0 0
      %11378 = vmatmul.mubr.bf16.gmra.mrb[0].mxu0 %v11191
      %v11379 = vpop.f32.mrb[0].mxu0
      %v11380 = vadd.f32 0.0, %v11379
      %v11381 = vpop.f32.mrb[0].mxu0
      %v11382 = vpop.f32.mrb[0].mxu0
      %v11383 = vadd.f32 0.0, %v11382
      %v11384 = vpop.f32.mrb[0].mxu0
      %11385 = vmatprep.mubr.bf16.mxu0 0
      %11386 = vmatmul.mubr.bf16.gmra.mrb[0].mxu0 %v11192
      %v11387 = vpop.f32.mrb[0].mxu0
      %v11388 = vadd.f32 0.0, %v11387
      %v11389 = vpop.f32.mrb[0].mxu0
      %v11390 = vpop.f32.mrb[0].mxu0
      %v11391 = vadd.f32 0.0, %v11390
      %v11392 = vpop.f32.mrb[0].mxu0
      %11393 = vmatprep.mubr.bf16.mxu0 0
      %11394 = vmatmul.mubr.bf16.gmra.mrb[0].mxu0 %v11193
      %v11395 = vpop.f32.mrb[0].mxu0
      %v11396 = vadd.f32 0.0, %v11395
      %v11397 = vpop.f32.mrb[0].mxu0
      %v11398 = vpop.f32.mrb[0].mxu0
      %v11399 = vadd.f32 0.0, %v11398
      %v11400 = vpop.f32.mrb[0].mxu0
      %11401 = vmatprep.mubr.bf16.mxu0 0
      %11402 = vmatmul.mubr.bf16.gmra.mrb[0].mxu0 %v11194
      %v11403 = vpop.f32.mrb[0].mxu0
      %v11404 = vadd.f32 0.0, %v11403
      %v11405 = vpop.f32.mrb[0].mxu0
      %v11406 = vpop.f32.mrb[0].mxu0
      %v11407 = vadd.f32 0.0, %v11406
      %v11408 = vpop.f32.mrb[0].mxu0
      %11409 = vmatprep.mubr.bf16.mxu0 0
      %11410 = vmatmul.mubr.bf16.gmra.mrb[0].mxu0 %v11195
      %v11411 = vpop.f32.mrb[0].mxu0
      %v11412 = vadd.f32 0.0, %v11411
      %v11413 = vpop.f32.mrb[0].mxu0
      %v11414 = vpop.f32.mrb[0].mxu0
      %v11415 = vadd.f32 0.0, %v11414
      %v11416 = vpop.f32.mrb[0].mxu0
      %11417 = vmatprep.mubr.bf16.mxu0 0
      %11418 = vmatmul.mubr.bf16.gmra.mrb[0].mxu0 %v11196
      %v11419 = vpop.f32.mrb[0].mxu0
      %v11420 = vadd.f32 0.0, %v11419
      %v11421 = vpop.f32.mrb[0].mxu0
      %v11422 = vpop.f32.mrb[0].mxu0
      %v11423 = vadd.f32 0.0, %v11422
      %v11424 = vpop.f32.mrb[0].mxu0
      %11425 = vmatprep.mubr.bf16.mxu0 0
      %11426 = vmatmul.mubr.bf16.gmra.mrb[0].mxu0 %v11197
      %v11427 = vpop.f32.mrb[0].mxu0
      %v11428 = vadd.f32 0.0, %v11427
      %v11429 = vpop.f32.mrb[0].mxu0
      %v11430 = vpop.f32.mrb[0].mxu0
      %v11431 = vadd.f32 0.0, %v11430
      %v11432 = vpop.f32.mrb[0].mxu0
      %11433 = vmatprep.mubr.bf16.mxu0 0
      %11434 = vmatmul.mubr.bf16.gmra.mrb[0].mxu0 %v11198
      %v11435 = vpop.f32.mrb[0].mxu0
      %v11436 = vadd.f32 0.0, %v11435
      %v11437 = vpop.f32.mrb[0].mxu0
      %v11438 = vpop.f32.mrb[0].mxu0
      %v11439 = vadd.f32 0.0, %v11438
      %v11440 = vpop.f32.mrb[0].mxu0
      %11441 = vmatprep.mubr.bf16.mxu0 0
      %11442 = vmatmul.mubr.bf16.gmra.mrb[0].mxu0 %v11199
      %v11443 = vpop.f32.mrb[0].mxu0
      %v11444 = vadd.f32 0.0, %v11443
      %v11445 = vpop.f32.mrb[0].mxu0
      %v11446 = vpop.f32.mrb[0].mxu0
      %v11447 = vadd.f32 0.0, %v11446
      %v11448 = vpop.f32.mrb[0].mxu0
      %11449 = vmatprep.mubr.bf16.mxu0 0
      %11450 = vmatmul.mubr.bf16.gmra.mrb[0].mxu0 %v11200
      %v11451 = vpop.f32.mrb[0].mxu0
      %v11452 = vadd.f32 0.0, %v11451
      %v11453 = vpop.f32.mrb[0].mxu0
      %v11454 = vpop.f32.mrb[0].mxu0
      %v11455 = vadd.f32 0.0, %v11454
      %v11456 = vpop.f32.mrb[0].mxu0
      %11457 = vmatprep.mubr.bf16.mxu0 0
      %11458 = vmatmul.mubr.bf16.gmra.mrb[0].mxu0 %v11201
      %v11459 = vpop.f32.mrb[0].mxu0
      %v11460 = vadd.f32 0.0, %v11459
      %v11461 = vpop.f32.mrb[0].mxu0
      %v11462 = vpop.f32.mrb[0].mxu0
      %v11463 = vadd.f32 0.0, %v11462
      %v11464 = vpop.f32.mrb[0].mxu0
      %11465 = vmatprep.mubr.bf16.mxu0 0
      %11466 = vmatmul.mubr.bf16.gmra.mrb[0].mxu0 %v11202
      %v11467 = vpop.f32.mrb[0].mxu0
      %v11468 = vadd.f32 0.0, %v11467
      %v11469 = vpop.f32.mrb[0].mxu0
      %v11470 = vpop.f32.mrb[0].mxu0
      %v11471 = vadd.f32 0.0, %v11470
      %v11472 = vpop.f32.mrb[0].mxu0
      %11473 = vmatprep.mubr.bf16.mxu0 0
      %11474 = vmatmul.mubr.bf16.gmra.mrb[0].mxu0 %v11203
      %v11475 = vpop.f32.mrb[0].mxu0
      %v11476 = vadd.f32 0.0, %v11475
      %v11477 = vpop.f32.mrb[0].mxu0
      %v11478 = vpop.f32.mrb[0].mxu0
      %v11479 = vadd.f32 0.0, %v11478
      %v11480 = vpop.f32.mrb[0].mxu0
      %11481 = vmatprep.mubr.bf16.mxu0 0
      %11482 = vmatmul.mubr.bf16.gmra.mrb[0].mxu0 %v11204
      %v11483 = vpop.f32.mrb[0].mxu0
      %v11484 = vadd.f32 0.0, %v11483
      %v11485 = vpop.f32.mrb[0].mxu0
      %v11486 = vpop.f32.mrb[0].mxu0
      %v11487 = vadd.f32 0.0, %v11486
      %v11488 = vpop.f32.mrb[0].mxu0
      %11489 = vmatprep.mubr.bf16.mxu0 0
      %11490 = vmatmul.mubr.bf16.gmra.mrb[0].mxu0 %v11205
      %v11491 = vpop.f32.mrb[0].mxu0
      %v11492 = vadd.f32 0.0, %v11491
      %v11493 = vpop.f32.mrb[0].mxu0
      %v11494 = vpop.f32.mrb[0].mxu0
      %v11495 = vadd.f32 0.0, %v11494
      %v11496 = vpop.f32.mrb[0].mxu0
      %11497 = vmatprep.mubr.bf16.mxu0 0
      %11498 = vmatmul.mubr.bf16.gmra.mrb[0].mxu0 %v11206
      %v11499 = vpop.f32.mrb[0].mxu0
      %v11500 = vadd.f32 0.0, %v11499
      %v11501 = vpop.f32.mrb[0].mxu0
      %v11502 = vpop.f32.mrb[0].mxu0
      %v11503 = vadd.f32 0.0, %v11502
      %v11504 = vpop.f32.mrb[0].mxu0
      %11505 = vmatprep.mubr.bf16.mxu0 0
      %11506 = vmatmul.mubr.bf16.gmra.mrb[0].mxu0 %v11207
      %v11507 = vpop.f32.mrb[0].mxu0
      %v11508 = vadd.f32 0.0, %v11507
      %v11509 = vpop.f32.mrb[0].mxu0
      %v11510 = vpop.f32.mrb[0].mxu0
      %v11511 = vadd.f32 0.0, %v11510
      %v11512 = vpop.f32.mrb[0].mxu0
      %11513 = vmatprep.mubr.bf16.mxu0 0
      %11514 = vmatmul.mubr.bf16.gmra.mrb[0].mxu0 %v11208
      %v11515 = vpop.f32.mrb[0].mxu0
      %v11516 = vadd.f32 0.0, %v11515
      %v11517 = vpop.f32.mrb[0].mxu0
      %v11518 = vpop.f32.mrb[0].mxu0
      %v11519 = vadd.f32 0.0, %v11518
      %v11520 = vpop.f32.mrb[0].mxu0
      %11521 = vmatprep.mubr.bf16.mxu0 0
      %11522 = vmatmul.mubr.bf16.gmra.mrb[0].mxu0 %v11209
      %v11523 = vpop.f32.mrb[0].mxu0
      %v11524 = vadd.f32 0.0, %v11523
      %v11525 = vpop.f32.mrb[0].mxu0
      %v11526 = vpop.f32.mrb[0].mxu0
      %v11527 = vadd.f32 0.0, %v11526
      %v11528 = vpop.f32.mrb[0].mxu0
      %11529 = vmatprep.mubr.bf16.mxu0 0
      %11530 = vmatmul.mubr.bf16.gmra.mrb[0].mxu0 %v11210
      %v11531 = vpop.f32.mrb[0].mxu0
      %v11532 = vadd.f32 0.0, %v11531
      %v11533 = vpop.f32.mrb[0].mxu0
      %v11534 = vpop.f32.mrb[0].mxu0
      %v11535 = vadd.f32 0.0, %v11534
      %v11536 = vpop.f32.mrb[0].mxu0
      %11537 = vmatprep.mubr.bf16.mxu0 0
      %11538 = vmatmul.mubr.bf16.gmra.mrb[0].mxu0 %v11211
      %v11539 = vpop.f32.mrb[0].mxu0
      %v11540 = vadd.f32 0.0, %v11539
      %v11541 = vpop.f32.mrb[0].mxu0
      %v11542 = vpop.f32.mrb[0].mxu0
      %v11543 = vadd.f32 0.0, %v11542
      %v11544 = vpop.f32.mrb[0].mxu0
      %11545 = vmatprep.mubr.bf16.mxu0 0
      %11546 = vmatmul.mubr.bf16.gmra.mrb[0].mxu0 %v11212
      %v11547 = vpop.f32.mrb[0].mxu0
      %v11548 = vadd.f32 0.0, %v11547
      %v11549 = vpop.f32.mrb[0].mxu0
      %v11550 = vpop.f32.mrb[0].mxu0
      %v11551 = vadd.f32 0.0, %v11550
      %v11552 = vpop.f32.mrb[0].mxu0
      %11553 = vmatprep.mubr.bf16.mxu0 0
      %11554 = vmatmul.mubr.bf16.gmra.mrb[0].mxu0 %v11213
      %v11555 = vpop.f32.mrb[0].mxu0
      %v11556 = vadd.f32 0.0, %v11555
      %v11557 = vpop.f32.mrb[0].mxu0
      %v11558 = vpop.f32.mrb[0].mxu0
      %v11559 = vadd.f32 0.0, %v11558
      %v11560 = vpop.f32.mrb[0].mxu0
      %11561 = vmatprep.mubr.bf16.mxu0 0
      %11562 = vmatmul.mubr.bf16.gmra.mrb[0].mxu0 %v11214
      %v11563 = vpop.f32.mrb[0].mxu0
      %v11564 = vadd.f32 0.0, %v11563
      %v11565 = vpop.f32.mrb[0].mxu0
      %v11566 = vpop.f32.mrb[0].mxu0
      %v11567 = vadd.f32 0.0, %v11566
      %v11568 = vpop.f32.mrb[0].mxu0
      %11569 = vmatprep.mubr.bf16.mxu0 0
      %11570 = vmatmul.mubr.bf16.gmra.mrb[0].mxu0 %v11215
      %v11571 = vpop.f32.mrb[0].mxu0
      %v11572 = vadd.f32 0.0, %v11571
      %v11573 = vpop.f32.mrb[0].mxu0
      %v11574 = vpop.f32.mrb[0].mxu0
      %v11575 = vadd.f32 0.0, %v11574
      %v11576 = vpop.f32.mrb[0].mxu0
      %11577 = vmatprep.mubr.bf16.mxu0 0
      %11578 = vmatmul.mubr.bf16.gmra.mrb[0].mxu0 %v11216
      %v11579 = vpop.f32.mrb[0].mxu0
      %v11580 = vadd.f32 0.0, %v11579
      %v11581 = vpop.f32.mrb[0].mxu0
      %v11582 = vpop.f32.mrb[0].mxu0
      %v11583 = vadd.f32 0.0, %v11582
      %v11584 = vpop.f32.mrb[0].mxu0
      %11585 = vdwg.mxu0
      %v11586 = vadd.f32 %v10816, %v11332
      %v11587 = vadd.f32 %v10817, %v11335
      %v11588 = vadd.f32 %v10818, %v11340
      %v11589 = vadd.f32 %v10819, %v11343
      %v11590 = vadd.f32 %v10820, %v11348
      %v11591 = vadd.f32 %v10821, %v11351
      %v11592 = vadd.f32 %v10822, %v11356
      %v11593 = vadd.f32 %v10823, %v11359
      %v11594 = vadd.f32 %v10824, %v11364
      %v11595 = vadd.f32 %v10825, %v11367
      %v11596 = vadd.f32 %v10826, %v11372
      %v11597 = vadd.f32 %v10827, %v11375
      %v11598 = vadd.f32 %v10828, %v11380
      %v11599 = vadd.f32 %v10829, %v11383
      %v11600 = vadd.f32 %v10830, %v11388
      %v11601 = vadd.f32 %v10831, %v11391
      %v11602 = vadd.f32 %v10832, %v11396
      %v11603 = vadd.f32 %v10833, %v11399
      %v11604 = vadd.f32 %v10834, %v11404
      %v11605 = vadd.f32 %v10835, %v11407
      %v11606 = vadd.f32 %v10836, %v11412
      %v11607 = vadd.f32 %v10837, %v11415
      %v11608 = vadd.f32 %v10838, %v11420
      %v11609 = vadd.f32 %v10839, %v11423
      %v11610 = vadd.f32 %v10840, %v11428
      %v11611 = vadd.f32 %v10841, %v11431
      %v11612 = vadd.f32 %v10842, %v11436
      %v11613 = vadd.f32 %v10843, %v11439
      %v11614 = vadd.f32 %v10844, %v11444
      %v11615 = vadd.f32 %v10845, %v11447
      %v11616 = vadd.f32 %v10846, %v11452
      %v11617 = vadd.f32 %v10847, %v11455
      %v11618 = vadd.f32 %v10848, %v11460
      %v11619 = vadd.f32 %v10849, %v11463
      %v11620 = vadd.f32 %v10850, %v11468
      %v11621 = vadd.f32 %v10851, %v11471
      %v11622 = vadd.f32 %v10852, %v11476
      %v11623 = vadd.f32 %v10853, %v11479
      %v11624 = vadd.f32 %v10854, %v11484
      %v11625 = vadd.f32 %v10855, %v11487
      %v11626 = vadd.f32 %v10856, %v11492
      %v11627 = vadd.f32 %v10857, %v11495
      %v11628 = vadd.f32 %v10858, %v11500
      %v11629 = vadd.f32 %v10859, %v11503
      %v11630 = vadd.f32 %v10860, %v11508
      %v11631 = vadd.f32 %v10861, %v11511
      %v11632 = vadd.f32 %v10862, %v11516
      %v11633 = vadd.f32 %v10863, %v11519
      %v11634 = vadd.f32 %v10864, %v11524
      %v11635 = vadd.f32 %v10865, %v11527
      %v11636 = vadd.f32 %v10866, %v11532
      %v11637 = vadd.f32 %v10867, %v11535
      %v11638 = vadd.f32 %v10868, %v11540
      %v11639 = vadd.f32 %v10869, %v11543
      %v11640 = vadd.f32 %v10870, %v11548
      %v11641 = vadd.f32 %v10871, %v11551
      %v11642 = vadd.f32 %v10872, %v11556
      %v11643 = vadd.f32 %v10873, %v11559
      %v11644 = vadd.f32 %v10874, %v11564
      %v11645 = vadd.f32 %v10875, %v11567
      %v11646 = vadd.f32 %v10876, %v11572
      %v11647 = vadd.f32 %v10877, %v11575
      %v11648 = vadd.f32 %v10878, %v11580
      %v11649 = vadd.f32 %v10879, %v11583
      %v11651 = vrot.slane %v7339, 5
      %v11652 = vrot.slane %v11651, 4
      %v11653 = vrot.slane %v7340, 5
      %v11654 = vsel %vm4117, %v11652, %v11653
      %v11655 = vrot.slane %v11653, 4
      %v11656 = vrot.slane %v7341, 5
      %v11657 = vsel %vm4117, %v11655, %v11656
      %v11658 = vrot.slane %v11656, 4
      %v11659 = vrot.slane %v7342, 5
      %v11660 = vsel %vm4117, %v11658, %v11659
      %v11661 = vrot.slane %v11659, 4
      %v11662 = vrot.slane %v7343, 5
      %v11663 = vsel %vm4117, %v11661, %v11662
      %s11664 = scalar_lea.vmem %s4, 320
      %v11665 = vld [vmem:[%s11664] sm:$0xf]
      %v11666 = vld [vmem:[%s11664 + $0x4] sm:$0xf]
      %v11667 = vld [vmem:[%s11664 + $0x8] sm:$0xf]
      %v11668 = vld [vmem:[%s11664 + $0xc] sm:$0xf]
      %v11669 = vld [vmem:[%s11664 + $0x10] sm:$0xf]
      %v11670 = vld [vmem:[%s11664 + $0x14] sm:$0xf]
      %v11671 = vld [vmem:[%s11664 + $0x18] sm:$0xf]
      %v11672 = vld [vmem:[%s11664 + $0x1c] sm:$0xf]
      %v11673 = vld [vmem:[%s11664 + $0x20] sm:$0xf]
      %v11674 = vld [vmem:[%s11664 + $0x24] sm:$0xf]
      %v11675 = vld [vmem:[%s11664 + $0x28] sm:$0xf]
      %v11676 = vld [vmem:[%s11664 + $0x2c] sm:$0xf]
      %v11677 = vld [vmem:[%s11664 + $0x30] sm:$0xf]
      %v11678 = vld [vmem:[%s11664 + $0x34] sm:$0xf]
      %v11679 = vld [vmem:[%s11664 + $0x38] sm:$0xf]
      %v11680 = vld [vmem:[%s11664 + $0x3c] sm:$0xf]
      %v11681 = vunpack.c.l.b16 %v11654
      %v11682 = vunpack.c.l.b16 %v11657
      %v11683 = vunpack.c.l.b16 %v11660
      %v11684 = vunpack.c.l.b16 %v11663
      %v11685 = vpack.c.b16 %v11682, %v11681
      %v11686 = vpack.c.b16 %v11684, %v11683
      %v11705 = vunpack.c.l.b16 %v11665
      %v11706 = vunpack.c.l.b16 %v11666
      %v11707 = vunpack.c.l.b16 %v11667
      %v11708 = vunpack.c.l.b16 %v11668
      %v11709 = vunpack.c.l.b16 %v11669
      %v11710 = vunpack.c.l.b16 %v11670
      %v11711 = vunpack.c.l.b16 %v11671
      %v11712 = vunpack.c.l.b16 %v11672
      %v11713 = vunpack.c.l.b16 %v11673
      %v11714 = vunpack.c.l.b16 %v11674
      %v11715 = vunpack.c.l.b16 %v11675
      %v11716 = vunpack.c.l.b16 %v11676
      %v11717 = vunpack.c.l.b16 %v11677
      %v11718 = vunpack.c.l.b16 %v11678
      %v11719 = vunpack.c.l.b16 %v11679
      %v11720 = vunpack.c.l.b16 %v11680
      %v11721 = vpack.c.b16 %v11706, %v11705
      %v11722 = vpack.c.b16 %v11708, %v11707
      %v11723 = vpack.c.b16 %v11710, %v11709
      %v11724 = vpack.c.b16 %v11712, %v11711
      %v11725 = vpack.c.b16 %v11714, %v11713
      %v11726 = vpack.c.b16 %v11716, %v11715
      %v11727 = vpack.c.b16 %v11718, %v11717
      %v11728 = vpack.c.b16 %v11720, %v11719
      %11737 = vmatprep.subr.bf16.mxu0 0
      %11738 = vmatpush1.bf16.msra.mxu0 %v11721
      %11739 = vmatprep.subr.bf16.mxu0 0
      %11740 = vmatpush1.bf16.msra.mxu0 %v11722
      %11741 = vmatprep.subr.bf16.mxu0 0
      %11742 = vmatpush1.bf16.msra.mxu0 %v11723
      %11743 = vmatprep.subr.bf16.mxu0 0
      %11744 = vmatpush1.bf16.msra.mxu0 %v11724
      %11745 = vmatprep.subr.bf16.mxu0 0
      %11746 = vmatpush1.bf16.msra.mxu0 %v11725
      %11747 = vmatprep.subr.bf16.mxu0 0
      %11748 = vmatpush1.bf16.msra.mxu0 %v11726
      %11749 = vmatprep.subr.bf16.mxu0 0
      %11750 = vmatpush1.bf16.msra.mxu0 %v11727
      %11751 = vmatprep.subr.bf16.mxu0 0
      %11752 = vmatpush1.bf16.msra.mxu0 %v11728
      %11753 = vmatprep.subr.bf16.mxu0 0
      %11754 = vmatpush1.bf16.msra.mxu0 0
      %11755 = vmatprep.subr.bf16.mxu0 0
      %11756 = vmatpush1.bf16.msra.mxu0 0
      %11757 = vmatprep.subr.bf16.mxu0 0
      %11758 = vmatpush1.bf16.msra.mxu0 0
      %11759 = vmatprep.subr.bf16.mxu0 0
      %11760 = vmatpush1.bf16.msra.mxu0 0
      %11761 = vmatprep.subr.bf16.mxu0 0
      %11762 = vmatpush1.bf16.msra.mxu0 0
      %11763 = vmatprep.subr.bf16.mxu0 0
      %11764 = vmatpush1.bf16.msra.mxu0 0
      %11765 = vmatprep.subr.bf16.mxu0 0
      %11766 = vmatpush1.bf16.msra.mxu0 0
      %11767 = vmatprep.subr.bf16.mxu0 0
      %11768 = vmatpush1.bf16.msra.mxu0 0
      %11769 = vmatprep.mubr.bf16.mxu0 0
      %11770 = vmatmul.mubr.bf16.gmra.mrb[0].mxu0 %v11187
      %v11771 = vpop.f32.mrb[0].mxu0
      %v11772 = vadd.f32 0.0, %v11771
      %v11773 = vpop.f32.mrb[0].mxu0
      %v11774 = vpop.f32.mrb[0].mxu0
      %v11775 = vadd.f32 0.0, %v11774
      %v11776 = vpop.f32.mrb[0].mxu0
      %11777 = vmatprep.mubr.bf16.mxu0 0
      %11778 = vmatmul.mubr.bf16.gmra.mrb[0].mxu0 %v11188
      %v11779 = vpop.f32.mrb[0].mxu0
      %v11780 = vadd.f32 0.0, %v11779
      %v11781 = vpop.f32.mrb[0].mxu0
      %v11782 = vpop.f32.mrb[0].mxu0
      %v11783 = vadd.f32 0.0, %v11782
      %v11784 = vpop.f32.mrb[0].mxu0
      %11785 = vmatprep.mubr.bf16.mxu0 0
      %11786 = vmatmul.mubr.bf16.gmra.mrb[0].mxu0 %v11189
      %v11787 = vpop.f32.mrb[0].mxu0
      %v11788 = vadd.f32 0.0, %v11787
      %v11789 = vpop.f32.mrb[0].mxu0
      %v11790 = vpop.f32.mrb[0].mxu0
      %v11791 = vadd.f32 0.0, %v11790
      %v11792 = vpop.f32.mrb[0].mxu0
      %11793 = vmatprep.mubr.bf16.mxu0 0
      %11794 = vmatmul.mubr.bf16.gmra.mrb[0].mxu0 %v11190
      %v11795 = vpop.f32.mrb[0].mxu0
      %v11796 = vadd.f32 0.0, %v11795
      %v11797 = vpop.f32.mrb[0].mxu0
      %v11798 = vpop.f32.mrb[0].mxu0
      %v11799 = vadd.f32 0.0, %v11798
      %v11800 = vpop.f32.mrb[0].mxu0
      %11801 = vmatprep.mubr.bf16.mxu0 0
      %11802 = vmatmul.mubr.bf16.gmra.mrb[0].mxu0 %v11191
      %v11803 = vpop.f32.mrb[0].mxu0
      %v11804 = vadd.f32 0.0, %v11803
      %v11805 = vpop.f32.mrb[0].mxu0
      %v11806 = vpop.f32.mrb[0].mxu0
      %v11807 = vadd.f32 0.0, %v11806
      %v11808 = vpop.f32.mrb[0].mxu0
      %11809 = vmatprep.mubr.bf16.mxu0 0
      %11810 = vmatmul.mubr.bf16.gmra.mrb[0].mxu0 %v11192
      %v11811 = vpop.f32.mrb[0].mxu0
      %v11812 = vadd.f32 0.0, %v11811
      %v11813 = vpop.f32.mrb[0].mxu0
      %v11814 = vpop.f32.mrb[0].mxu0
      %v11815 = vadd.f32 0.0, %v11814
      %v11816 = vpop.f32.mrb[0].mxu0
      %11817 = vmatprep.mubr.bf16.mxu0 0
      %11818 = vmatmul.mubr.bf16.gmra.mrb[0].mxu0 %v11193
      %v11819 = vpop.f32.mrb[0].mxu0
      %v11820 = vadd.f32 0.0, %v11819
      %v11821 = vpop.f32.mrb[0].mxu0
      %v11822 = vpop.f32.mrb[0].mxu0
      %v11823 = vadd.f32 0.0, %v11822
      %v11824 = vpop.f32.mrb[0].mxu0
      %11825 = vmatprep.mubr.bf16.mxu0 0
      %11826 = vmatmul.mubr.bf16.gmra.mrb[0].mxu0 %v11194
      %v11827 = vpop.f32.mrb[0].mxu0
      %v11828 = vadd.f32 0.0, %v11827
      %v11829 = vpop.f32.mrb[0].mxu0
      %v11830 = vpop.f32.mrb[0].mxu0
      %v11831 = vadd.f32 0.0, %v11830
      %v11832 = vpop.f32.mrb[0].mxu0
      %11833 = vmatprep.mubr.bf16.mxu0 0
      %11834 = vmatmul.mubr.bf16.gmra.mrb[0].mxu0 %v11195
      %v11835 = vpop.f32.mrb[0].mxu0
      %v11836 = vadd.f32 0.0, %v11835
      %v11837 = vpop.f32.mrb[0].mxu0
      %v11838 = vpop.f32.mrb[0].mxu0
      %v11839 = vadd.f32 0.0, %v11838
      %v11840 = vpop.f32.mrb[0].mxu0
      %11841 = vmatprep.mubr.bf16.mxu0 0
      %11842 = vmatmul.mubr.bf16.gmra.mrb[0].mxu0 %v11196
      %v11843 = vpop.f32.mrb[0].mxu0
      %v11844 = vadd.f32 0.0, %v11843
      %v11845 = vpop.f32.mrb[0].mxu0
      %v11846 = vpop.f32.mrb[0].mxu0
      %v11847 = vadd.f32 0.0, %v11846
      %v11848 = vpop.f32.mrb[0].mxu0
      %11849 = vmatprep.mubr.bf16.mxu0 0
      %11850 = vmatmul.mubr.bf16.gmra.mrb[0].mxu0 %v11197
      %v11851 = vpop.f32.mrb[0].mxu0
      %v11852 = vadd.f32 0.0, %v11851
      %v11853 = vpop.f32.mrb[0].mxu0
      %v11854 = vpop.f32.mrb[0].mxu0
      %v11855 = vadd.f32 0.0, %v11854
      %v11856 = vpop.f32.mrb[0].mxu0
      %11857 = vmatprep.mubr.bf16.mxu0 0
      %11858 = vmatmul.mubr.bf16.gmra.mrb[0].mxu0 %v11198
      %v11859 = vpop.f32.mrb[0].mxu0
      %v11860 = vadd.f32 0.0, %v11859
      %v11861 = vpop.f32.mrb[0].mxu0
      %v11862 = vpop.f32.mrb[0].mxu0
      %v11863 = vadd.f32 0.0, %v11862
      %v11864 = vpop.f32.mrb[0].mxu0
      %11865 = vmatprep.mubr.bf16.mxu0 0
      %11866 = vmatmul.mubr.bf16.gmra.mrb[0].mxu0 %v11199
      %v11867 = vpop.f32.mrb[0].mxu0
      %v11868 = vadd.f32 0.0, %v11867
      %v11869 = vpop.f32.mrb[0].mxu0
      %v11870 = vpop.f32.mrb[0].mxu0
      %v11871 = vadd.f32 0.0, %v11870
      %v11872 = vpop.f32.mrb[0].mxu0
      %11873 = vmatprep.mubr.bf16.mxu0 0
      %11874 = vmatmul.mubr.bf16.gmra.mrb[0].mxu0 %v11200
      %v11875 = vpop.f32.mrb[0].mxu0
      %v11876 = vadd.f32 0.0, %v11875
      %v11877 = vpop.f32.mrb[0].mxu0
      %v11878 = vpop.f32.mrb[0].mxu0
      %v11879 = vadd.f32 0.0, %v11878
      %v11880 = vpop.f32.mrb[0].mxu0
      %11881 = vmatprep.mubr.bf16.mxu0 0
      %11882 = vmatmul.mubr.bf16.gmra.mrb[0].mxu0 %v11201
      %v11883 = vpop.f32.mrb[0].mxu0
      %v11884 = vadd.f32 0.0, %v11883
      %v11885 = vpop.f32.mrb[0].mxu0
      %v11886 = vpop.f32.mrb[0].mxu0
      %v11887 = vadd.f32 0.0, %v11886
      %v11888 = vpop.f32.mrb[0].mxu0
      %11889 = vmatprep.mubr.bf16.mxu0 0
      %11890 = vmatmul.mubr.bf16.gmra.mrb[0].mxu0 %v11202
      %v11891 = vpop.f32.mrb[0].mxu0
      %v11892 = vadd.f32 0.0, %v11891
      %v11893 = vpop.f32.mrb[0].mxu0
      %v11894 = vpop.f32.mrb[0].mxu0
      %v11895 = vadd.f32 0.0, %v11894
      %v11896 = vpop.f32.mrb[0].mxu0
      %11897 = vmatprep.mubr.bf16.mxu0 0
      %11898 = vmatmul.mubr.bf16.gmra.mrb[0].mxu0 %v11203
      %v11899 = vpop.f32.mrb[0].mxu0
      %v11900 = vadd.f32 0.0, %v11899
      %v11901 = vpop.f32.mrb[0].mxu0
      %v11902 = vpop.f32.mrb[0].mxu0
      %v11903 = vadd.f32 0.0, %v11902
      %v11904 = vpop.f32.mrb[0].mxu0
      %11905 = vmatprep.mubr.bf16.mxu0 0
      %11906 = vmatmul.mubr.bf16.gmra.mrb[0].mxu0 %v11204
      %v11907 = vpop.f32.mrb[0].mxu0
      %v11908 = vadd.f32 0.0, %v11907
      %v11909 = vpop.f32.mrb[0].mxu0
      %v11910 = vpop.f32.mrb[0].mxu0
      %v11911 = vadd.f32 0.0, %v11910
      %v11912 = vpop.f32.mrb[0].mxu0
      %11913 = vmatprep.mubr.bf16.mxu0 0
      %11914 = vmatmul.mubr.bf16.gmra.mrb[0].mxu0 %v11205
      %v11915 = vpop.f32.mrb[0].mxu0
      %v11916 = vadd.f32 0.0, %v11915
      %v11917 = vpop.f32.mrb[0].mxu0
      %v11918 = vpop.f32.mrb[0].mxu0
      %v11919 = vadd.f32 0.0, %v11918
      %v11920 = vpop.f32.mrb[0].mxu0
      %11921 = vmatprep.mubr.bf16.mxu0 0
      %11922 = vmatmul.mubr.bf16.gmra.mrb[0].mxu0 %v11206
      %v11923 = vpop.f32.mrb[0].mxu0
      %v11924 = vadd.f32 0.0, %v11923
      %v11925 = vpop.f32.mrb[0].mxu0
      %v11926 = vpop.f32.mrb[0].mxu0
      %v11927 = vadd.f32 0.0, %v11926
      %v11928 = vpop.f32.mrb[0].mxu0
      %11929 = vmatprep.mubr.bf16.mxu0 0
      %11930 = vmatmul.mubr.bf16.gmra.mrb[0].mxu0 %v11207
      %v11931 = vpop.f32.mrb[0].mxu0
      %v11932 = vadd.f32 0.0, %v11931
      %v11933 = vpop.f32.mrb[0].mxu0
      %v11934 = vpop.f32.mrb[0].mxu0
      %v11935 = vadd.f32 0.0, %v11934
      %v11936 = vpop.f32.mrb[0].mxu0
      %11937 = vmatprep.mubr.bf16.mxu0 0
      %11938 = vmatmul.mubr.bf16.gmra.mrb[0].mxu0 %v11208
      %v11939 = vpop.f32.mrb[0].mxu0
      %v11940 = vadd.f32 0.0, %v11939
      %v11941 = vpop.f32.mrb[0].mxu0
      %v11942 = vpop.f32.mrb[0].mxu0
      %v11943 = vadd.f32 0.0, %v11942
      %v11944 = vpop.f32.mrb[0].mxu0
      %11945 = vmatprep.mubr.bf16.mxu0 0
      %11946 = vmatmul.mubr.bf16.gmra.mrb[0].mxu0 %v11209
      %v11947 = vpop.f32.mrb[0].mxu0
      %v11948 = vadd.f32 0.0, %v11947
      %v11949 = vpop.f32.mrb[0].mxu0
      %v11950 = vpop.f32.mrb[0].mxu0
      %v11951 = vadd.f32 0.0, %v11950
      %v11952 = vpop.f32.mrb[0].mxu0
      %11953 = vmatprep.mubr.bf16.mxu0 0
      %11954 = vmatmul.mubr.bf16.gmra.mrb[0].mxu0 %v11210
      %v11955 = vpop.f32.mrb[0].mxu0
      %v11956 = vadd.f32 0.0, %v11955
      %v11957 = vpop.f32.mrb[0].mxu0
      %v11958 = vpop.f32.mrb[0].mxu0
      %v11959 = vadd.f32 0.0, %v11958
      %v11960 = vpop.f32.mrb[0].mxu0
      %11961 = vmatprep.mubr.bf16.mxu0 0
      %11962 = vmatmul.mubr.bf16.gmra.mrb[0].mxu0 %v11211
      %v11963 = vpop.f32.mrb[0].mxu0
      %v11964 = vadd.f32 0.0, %v11963
      %v11965 = vpop.f32.mrb[0].mxu0
      %v11966 = vpop.f32.mrb[0].mxu0
      %v11967 = vadd.f32 0.0, %v11966
      %v11968 = vpop.f32.mrb[0].mxu0
      %11969 = vmatprep.mubr.bf16.mxu0 0
      %11970 = vmatmul.mubr.bf16.gmra.mrb[0].mxu0 %v11212
      %v11971 = vpop.f32.mrb[0].mxu0
      %v11972 = vadd.f32 0.0, %v11971
      %v11973 = vpop.f32.mrb[0].mxu0
      %v11974 = vpop.f32.mrb[0].mxu0
      %v11975 = vadd.f32 0.0, %v11974
      %v11976 = vpop.f32.mrb[0].mxu0
      %11977 = vmatprep.mubr.bf16.mxu0 0
      %11978 = vmatmul.mubr.bf16.gmra.mrb[0].mxu0 %v11213
      %v11979 = vpop.f32.mrb[0].mxu0
      %v11980 = vadd.f32 0.0, %v11979
      %v11981 = vpop.f32.mrb[0].mxu0
      %v11982 = vpop.f32.mrb[0].mxu0
      %v11983 = vadd.f32 0.0, %v11982
      %v11984 = vpop.f32.mrb[0].mxu0
      %11985 = vmatprep.mubr.bf16.mxu0 0
      %11986 = vmatmul.mubr.bf16.gmra.mrb[0].mxu0 %v11214
      %v11987 = vpop.f32.mrb[0].mxu0
      %v11988 = vadd.f32 0.0, %v11987
      %v11989 = vpop.f32.mrb[0].mxu0
      %v11990 = vpop.f32.mrb[0].mxu0
      %v11991 = vadd.f32 0.0, %v11990
      %v11992 = vpop.f32.mrb[0].mxu0
      %11993 = vmatprep.mubr.bf16.mxu0 0
      %11994 = vmatmul.mubr.bf16.gmra.mrb[0].mxu0 %v11215
      %v11995 = vpop.f32.mrb[0].mxu0
      %v11996 = vadd.f32 0.0, %v11995
      %v11997 = vpop.f32.mrb[0].mxu0
      %v11998 = vpop.f32.mrb[0].mxu0
      %v11999 = vadd.f32 0.0, %v11998
      %v12000 = vpop.f32.mrb[0].mxu0
      %12001 = vmatprep.mubr.bf16.mxu0 0
      %12002 = vmatmul.mubr.bf16.gmra.mrb[0].mxu0 %v11216
      %v12003 = vpop.f32.mrb[0].mxu0
      %v12004 = vadd.f32 0.0, %v12003
      %v12005 = vpop.f32.mrb[0].mxu0
      %v12006 = vpop.f32.mrb[0].mxu0
      %v12007 = vadd.f32 0.0, %v12006
      %v12008 = vpop.f32.mrb[0].mxu0
      %12009 = vmatprep.mubr.bf16.mxu0 0
      %12010 = vmatmul.mubr.bf16.gmra.mrb[0].mxu0 %v11685
      %v12011 = vpop.f32.mrb[0].mxu0
      %v12012 = vadd.f32 0.0, %v12011
      %v12013 = vpop.f32.mrb[0].mxu0
      %v12014 = vpop.f32.mrb[0].mxu0
      %v12015 = vadd.f32 0.0, %v12014
      %v12016 = vpop.f32.mrb[0].mxu0
      %12017 = vmatprep.mubr.bf16.mxu0 0
      %12018 = vmatmul.mubr.bf16.gmra.mrb[0].mxu0 %v11686
      %v12019 = vpop.f32.mrb[0].mxu0
      %v12020 = vadd.f32 0.0, %v12019
      %v12021 = vpop.f32.mrb[0].mxu0
      %v12022 = vpop.f32.mrb[0].mxu0
      %v12023 = vadd.f32 0.0, %v12022
      %v12024 = vpop.f32.mrb[0].mxu0
      %12025 = vdwg.mxu0
      %v12026 = vadd.f32 %v11586, %v11772
      %v12027 = vadd.f32 %v11587, %v11775
      %v12028 = vadd.f32 %v11588, %v11780
      %v12029 = vadd.f32 %v11589, %v11783
      %v12030 = vadd.f32 %v11590, %v11788
      %v12031 = vadd.f32 %v11591, %v11791
      %v12032 = vadd.f32 %v11592, %v11796
      %v12033 = vadd.f32 %v11593, %v11799
      %v12034 = vadd.f32 %v11594, %v11804
      %v12035 = vadd.f32 %v11595, %v11807
      %v12036 = vadd.f32 %v11596, %v11812
      %v12037 = vadd.f32 %v11597, %v11815
      %v12038 = vadd.f32 %v11598, %v11820
      %v12039 = vadd.f32 %v11599, %v11823
      %v12040 = vadd.f32 %v11600, %v11828
      %v12041 = vadd.f32 %v11601, %v11831
      %v12042 = vadd.f32 %v11602, %v11836
      %v12043 = vadd.f32 %v11603, %v11839
      %v12044 = vadd.f32 %v11604, %v11844
      %v12045 = vadd.f32 %v11605, %v11847
      %v12046 = vadd.f32 %v11606, %v11852
      %v12047 = vadd.f32 %v11607, %v11855
      %v12048 = vadd.f32 %v11608, %v11860
      %v12049 = vadd.f32 %v11609, %v11863
      %v12050 = vadd.f32 %v11610, %v11868
      %v12051 = vadd.f32 %v11611, %v11871
      %v12052 = vadd.f32 %v11612, %v11876
      %v12053 = vadd.f32 %v11613, %v11879
      %v12054 = vadd.f32 %v11614, %v11884
      %v12055 = vadd.f32 %v11615, %v11887
      %v12056 = vadd.f32 %v11616, %v11892
      %v12057 = vadd.f32 %v11617, %v11895
      %v12058 = vadd.f32 %v11618, %v11900
      %v12059 = vadd.f32 %v11619, %v11903
      %v12060 = vadd.f32 %v11620, %v11908
      %v12061 = vadd.f32 %v11621, %v11911
      %v12062 = vadd.f32 %v11622, %v11916
      %v12063 = vadd.f32 %v11623, %v11919
      %v12064 = vadd.f32 %v11624, %v11924
      %v12065 = vadd.f32 %v11625, %v11927
      %v12066 = vadd.f32 %v11626, %v11932
      %v12067 = vadd.f32 %v11627, %v11935
      %v12068 = vadd.f32 %v11628, %v11940
      %v12069 = vadd.f32 %v11629, %v11943
      %v12070 = vadd.f32 %v11630, %v11948
      %v12071 = vadd.f32 %v11631, %v11951
      %v12072 = vadd.f32 %v11632, %v11956
      %v12073 = vadd.f32 %v11633, %v11959
      %v12074 = vadd.f32 %v11634, %v11964
      %v12075 = vadd.f32 %v11635, %v11967
      %v12076 = vadd.f32 %v11636, %v11972
      %v12077 = vadd.f32 %v11637, %v11975
      %v12078 = vadd.f32 %v11638, %v11980
      %v12079 = vadd.f32 %v11639, %v11983
      %v12080 = vadd.f32 %v11640, %v11988
      %v12081 = vadd.f32 %v11641, %v11991
      %v12082 = vadd.f32 %v11642, %v11996
      %v12083 = vadd.f32 %v11643, %v11999
      %v12084 = vadd.f32 %v11644, %v12004
      %v12085 = vadd.f32 %v11645, %v12007
      %v12086 = vadd.f32 %v11646, %v12012
      %v12087 = vadd.f32 %v11647, %v12015
      %v12088 = vadd.f32 %v11648, %v12020
      %v12089 = vadd.f32 %v11649, %v12023
      %v12091 = vrot.slane %v7344, 5
      %v12092 = vrot.slane %v12091, 4
      %v12093 = vrot.slane %v7345, 5
      %v12094 = vsel %vm4117, %v12092, %v12093
      %v12095 = vrot.slane %v12093, 4
      %v12096 = vrot.slane %v7346, 5
      %v12097 = vsel %vm4117, %v12095, %v12096
      %v12098 = vrot.slane %v12096, 4
      %v12099 = vrot.slane %v7347, 5
      %v12100 = vsel %vm4117, %v12098, %v12099
      %v12101 = vrot.slane %v12099, 4
      %v12102 = vrot.slane %v7348, 5
      %v12103 = vsel %vm4117, %v12101, %v12102
      %s12104 = scalar_lea.vmem %s4, 512
      %v12105 = vld [vmem:[%s12104] sm:$0xf]
      %v12106 = vld [vmem:[%s12104 + $0x4] sm:$0xf]
      %v12107 = vld [vmem:[%s12104 + $0x8] sm:$0xf]
      %v12108 = vld [vmem:[%s12104 + $0xc] sm:$0xf]
      %v12109 = vld [vmem:[%s12104 + $0x10] sm:$0xf]
      %v12110 = vld [vmem:[%s12104 + $0x14] sm:$0xf]
      %v12111 = vld [vmem:[%s12104 + $0x18] sm:$0xf]
      %v12112 = vld [vmem:[%s12104 + $0x1c] sm:$0xf]
      %v12113 = vld [vmem:[%s12104 + $0x20] sm:$0xf]
      %v12114 = vld [vmem:[%s12104 + $0x24] sm:$0xf]
      %v12115 = vld [vmem:[%s12104 + $0x28] sm:$0xf]
      %v12116 = vld [vmem:[%s12104 + $0x2c] sm:$0xf]
      %v12117 = vld [vmem:[%s12104 + $0x30] sm:$0xf]
      %v12118 = vld [vmem:[%s12104 + $0x34] sm:$0xf]
      %v12119 = vld [vmem:[%s12104 + $0x38] sm:$0xf]
      %v12120 = vld [vmem:[%s12104 + $0x3c] sm:$0xf]
      %v12121 = vunpack.c.l.b16 %v12094
      %v12122 = vunpack.c.l.b16 %v12097
      %v12123 = vunpack.c.l.b16 %v12100
      %v12124 = vunpack.c.l.b16 %v12103
      %v12125 = vpack.c.b16 %v12122, %v12121
      %v12126 = vpack.c.b16 %v12124, %v12123
      %v12145 = vunpack.c.l.b16 %v12105
      %v12146 = vunpack.c.l.b16 %v12106
      %v12147 = vunpack.c.l.b16 %v12107
      %v12148 = vunpack.c.l.b16 %v12108
      %v12149 = vunpack.c.l.b16 %v12109
      %v12150 = vunpack.c.l.b16 %v12110
      %v12151 = vunpack.c.l.b16 %v12111
      %v12152 = vunpack.c.l.b16 %v12112
      %v12153 = vunpack.c.l.b16 %v12113
      %v12154 = vunpack.c.l.b16 %v12114
      %v12155 = vunpack.c.l.b16 %v12115
      %v12156 = vunpack.c.l.b16 %v12116
      %v12157 = vunpack.c.l.b16 %v12117
      %v12158 = vunpack.c.l.b16 %v12118
      %v12159 = vunpack.c.l.b16 %v12119
      %v12160 = vunpack.c.l.b16 %v12120
      %v12161 = vpack.c.b16 %v12146, %v12145
      %v12162 = vpack.c.b16 %v12148, %v12147
      %v12163 = vpack.c.b16 %v12150, %v12149
      %v12164 = vpack.c.b16 %v12152, %v12151
      %v12165 = vpack.c.b16 %v12154, %v12153
      %v12166 = vpack.c.b16 %v12156, %v12155
      %v12167 = vpack.c.b16 %v12158, %v12157
      %v12168 = vpack.c.b16 %v12160, %v12159
      %12177 = vmatprep.subr.bf16.mxu0 0
      %12178 = vmatpush1.bf16.msra.mxu0 %v12161
      %12179 = vmatprep.subr.bf16.mxu0 0
      %12180 = vmatpush1.bf16.msra.mxu0 %v12162
      %12181 = vmatprep.subr.bf16.mxu0 0
      %12182 = vmatpush1.bf16.msra.mxu0 %v12163
      %12183 = vmatprep.subr.bf16.mxu0 0
      %12184 = vmatpush1.bf16.msra.mxu0 %v12164
      %12185 = vmatprep.subr.bf16.mxu0 0
      %12186 = vmatpush1.bf16.msra.mxu0 %v12165
      %12187 = vmatprep.subr.bf16.mxu0 0
      %12188 = vmatpush1.bf16.msra.mxu0 %v12166
      %12189 = vmatprep.subr.bf16.mxu0 0
      %12190 = vmatpush1.bf16.msra.mxu0 %v12167
      %12191 = vmatprep.subr.bf16.mxu0 0
      %12192 = vmatpush1.bf16.msra.mxu0 %v12168
      %12193 = vmatprep.subr.bf16.mxu0 0
      %12194 = vmatpush1.bf16.msra.mxu0 0
      %12195 = vmatprep.subr.bf16.mxu0 0
      %12196 = vmatpush1.bf16.msra.mxu0 0
      %12197 = vmatprep.subr.bf16.mxu0 0
      %12198 = vmatpush1.bf16.msra.mxu0 0
      %12199 = vmatprep.subr.bf16.mxu0 0
      %12200 = vmatpush1.bf16.msra.mxu0 0
      %12201 = vmatprep.subr.bf16.mxu0 0
      %12202 = vmatpush1.bf16.msra.mxu0 0
      %12203 = vmatprep.subr.bf16.mxu0 0
      %12204 = vmatpush1.bf16.msra.mxu0 0
      %12205 = vmatprep.subr.bf16.mxu0 0
      %12206 = vmatpush1.bf16.msra.mxu0 0
      %12207 = vmatprep.subr.bf16.mxu0 0
      %12208 = vmatpush1.bf16.msra.mxu0 0
      %12209 = vmatprep.mubr.bf16.mxu0 0
      %12210 = vmatmul.mubr.bf16.gmra.mrb[0].mxu0 %v11189
      %v12211 = vpop.f32.mrb[0].mxu0
      %v12212 = vadd.f32 0.0, %v12211
      %v12213 = vpop.f32.mrb[0].mxu0
      %v12214 = vpop.f32.mrb[0].mxu0
      %v12215 = vadd.f32 0.0, %v12214
      %v12216 = vpop.f32.mrb[0].mxu0
      %12217 = vmatprep.mubr.bf16.mxu0 0
      %12218 = vmatmul.mubr.bf16.gmra.mrb[0].mxu0 %v11190
      %v12219 = vpop.f32.mrb[0].mxu0
      %v12220 = vadd.f32 0.0, %v12219
      %v12221 = vpop.f32.mrb[0].mxu0
      %v12222 = vpop.f32.mrb[0].mxu0
      %v12223 = vadd.f32 0.0, %v12222
      %v12224 = vpop.f32.mrb[0].mxu0
      %12225 = vmatprep.mubr.bf16.mxu0 0
      %12226 = vmatmul.mubr.bf16.gmra.mrb[0].mxu0 %v11191
      %v12227 = vpop.f32.mrb[0].mxu0
      %v12228 = vadd.f32 0.0, %v12227
      %v12229 = vpop.f32.mrb[0].mxu0
      %v12230 = vpop.f32.mrb[0].mxu0
      %v12231 = vadd.f32 0.0, %v12230
      %v12232 = vpop.f32.mrb[0].mxu0
      %12233 = vmatprep.mubr.bf16.mxu0 0
      %12234 = vmatmul.mubr.bf16.gmra.mrb[0].mxu0 %v11192
      %v12235 = vpop.f32.mrb[0].mxu0
      %v12236 = vadd.f32 0.0, %v12235
      %v12237 = vpop.f32.mrb[0].mxu0
      %v12238 = vpop.f32.mrb[0].mxu0
      %v12239 = vadd.f32 0.0, %v12238
      %v12240 = vpop.f32.mrb[0].mxu0
      %12241 = vmatprep.mubr.bf16.mxu0 0
      %12242 = vmatmul.mubr.bf16.gmra.mrb[0].mxu0 %v11193
      %v12243 = vpop.f32.mrb[0].mxu0
      %v12244 = vadd.f32 0.0, %v12243
      %v12245 = vpop.f32.mrb[0].mxu0
      %v12246 = vpop.f32.mrb[0].mxu0
      %v12247 = vadd.f32 0.0, %v12246
      %v12248 = vpop.f32.mrb[0].mxu0
      %12249 = vmatprep.mubr.bf16.mxu0 0
      %12250 = vmatmul.mubr.bf16.gmra.mrb[0].mxu0 %v11194
      %v12251 = vpop.f32.mrb[0].mxu0
      %v12252 = vadd.f32 0.0, %v12251
      %v12253 = vpop.f32.mrb[0].mxu0
      %v12254 = vpop.f32.mrb[0].mxu0
      %v12255 = vadd.f32 0.0, %v12254
      %v12256 = vpop.f32.mrb[0].mxu0
      %12257 = vmatprep.mubr.bf16.mxu0 0
      %12258 = vmatmul.mubr.bf16.gmra.mrb[0].mxu0 %v11195
      %v12259 = vpop.f32.mrb[0].mxu0
      %v12260 = vadd.f32 0.0, %v12259
      %v12261 = vpop.f32.mrb[0].mxu0
      %v12262 = vpop.f32.mrb[0].mxu0
      %v12263 = vadd.f32 0.0, %v12262
      %v12264 = vpop.f32.mrb[0].mxu0
      %12265 = vmatprep.mubr.bf16.mxu0 0
      %12266 = vmatmul.mubr.bf16.gmra.mrb[0].mxu0 %v11196
      %v12267 = vpop.f32.mrb[0].mxu0
      %v12268 = vadd.f32 0.0, %v12267
      %v12269 = vpop.f32.mrb[0].mxu0
      %v12270 = vpop.f32.mrb[0].mxu0
      %v12271 = vadd.f32 0.0, %v12270
      %v12272 = vpop.f32.mrb[0].mxu0
      %12273 = vmatprep.mubr.bf16.mxu0 0
      %12274 = vmatmul.mubr.bf16.gmra.mrb[0].mxu0 %v11197
      %v12275 = vpop.f32.mrb[0].mxu0
      %v12276 = vadd.f32 0.0, %v12275
      %v12277 = vpop.f32.mrb[0].mxu0
      %v12278 = vpop.f32.mrb[0].mxu0
      %v12279 = vadd.f32 0.0, %v12278
      %v12280 = vpop.f32.mrb[0].mxu0
      %12281 = vmatprep.mubr.bf16.mxu0 0
      %12282 = vmatmul.mubr.bf16.gmra.mrb[0].mxu0 %v11198
      %v12283 = vpop.f32.mrb[0].mxu0
      %v12284 = vadd.f32 0.0, %v12283
      %v12285 = vpop.f32.mrb[0].mxu0
      %v12286 = vpop.f32.mrb[0].mxu0
      %v12287 = vadd.f32 0.0, %v12286
      %v12288 = vpop.f32.mrb[0].mxu0
      %12289 = vmatprep.mubr.bf16.mxu0 0
      %12290 = vmatmul.mubr.bf16.gmra.mrb[0].mxu0 %v11199
      %v12291 = vpop.f32.mrb[0].mxu0
      %v12292 = vadd.f32 0.0, %v12291
      %v12293 = vpop.f32.mrb[0].mxu0
      %v12294 = vpop.f32.mrb[0].mxu0
      %v12295 = vadd.f32 0.0, %v12294
      %v12296 = vpop.f32.mrb[0].mxu0
      %12297 = vmatprep.mubr.bf16.mxu0 0
      %12298 = vmatmul.mubr.bf16.gmra.mrb[0].mxu0 %v11200
      %v12299 = vpop.f32.mrb[0].mxu0
      %v12300 = vadd.f32 0.0, %v12299
      %v12301 = vpop.f32.mrb[0].mxu0
      %v12302 = vpop.f32.mrb[0].mxu0
      %v12303 = vadd.f32 0.0, %v12302
      %v12304 = vpop.f32.mrb[0].mxu0
      %12305 = vmatprep.mubr.bf16.mxu0 0
      %12306 = vmatmul.mubr.bf16.gmra.mrb[0].mxu0 %v11201
      %v12307 = vpop.f32.mrb[0].mxu0
      %v12308 = vadd.f32 0.0, %v12307
      %v12309 = vpop.f32.mrb[0].mxu0
      %v12310 = vpop.f32.mrb[0].mxu0
      %v12311 = vadd.f32 0.0, %v12310
      %v12312 = vpop.f32.mrb[0].mxu0
      %12313 = vmatprep.mubr.bf16.mxu0 0
      %12314 = vmatmul.mubr.bf16.gmra.mrb[0].mxu0 %v11202
      %v12315 = vpop.f32.mrb[0].mxu0
      %v12316 = vadd.f32 0.0, %v12315
      %v12317 = vpop.f32.mrb[0].mxu0
      %v12318 = vpop.f32.mrb[0].mxu0
      %v12319 = vadd.f32 0.0, %v12318
      %v12320 = vpop.f32.mrb[0].mxu0
      %12321 = vmatprep.mubr.bf16.mxu0 0
      %12322 = vmatmul.mubr.bf16.gmra.mrb[0].mxu0 %v11203
      %v12323 = vpop.f32.mrb[0].mxu0
      %v12324 = vadd.f32 0.0, %v12323
      %v12325 = vpop.f32.mrb[0].mxu0
      %v12326 = vpop.f32.mrb[0].mxu0
      %v12327 = vadd.f32 0.0, %v12326
      %v12328 = vpop.f32.mrb[0].mxu0
      %12329 = vmatprep.mubr.bf16.mxu0 0
      %12330 = vmatmul.mubr.bf16.gmra.mrb[0].mxu0 %v11204
      %v12331 = vpop.f32.mrb[0].mxu0
      %v12332 = vadd.f32 0.0, %v12331
      %v12333 = vpop.f32.mrb[0].mxu0
      %v12334 = vpop.f32.mrb[0].mxu0
      %v12335 = vadd.f32 0.0, %v12334
      %v12336 = vpop.f32.mrb[0].mxu0
      %12337 = vmatprep.mubr.bf16.mxu0 0
      %12338 = vmatmul.mubr.bf16.gmra.mrb[0].mxu0 %v11205
      %v12339 = vpop.f32.mrb[0].mxu0
      %v12340 = vadd.f32 0.0, %v12339
      %v12341 = vpop.f32.mrb[0].mxu0
      %v12342 = vpop.f32.mrb[0].mxu0
      %v12343 = vadd.f32 0.0, %v12342
      %v12344 = vpop.f32.mrb[0].mxu0
      %12345 = vmatprep.mubr.bf16.mxu0 0
      %12346 = vmatmul.mubr.bf16.gmra.mrb[0].mxu0 %v11206
      %v12347 = vpop.f32.mrb[0].mxu0
      %v12348 = vadd.f32 0.0, %v12347
      %v12349 = vpop.f32.mrb[0].mxu0
      %v12350 = vpop.f32.mrb[0].mxu0
      %v12351 = vadd.f32 0.0, %v12350
      %v12352 = vpop.f32.mrb[0].mxu0
      %12353 = vmatprep.mubr.bf16.mxu0 0
      %12354 = vmatmul.mubr.bf16.gmra.mrb[0].mxu0 %v11207
      %v12355 = vpop.f32.mrb[0].mxu0
      %v12356 = vadd.f32 0.0, %v12355
      %v12357 = vpop.f32.mrb[0].mxu0
      %v12358 = vpop.f32.mrb[0].mxu0
      %v12359 = vadd.f32 0.0, %v12358
      %v12360 = vpop.f32.mrb[0].mxu0
      %12361 = vmatprep.mubr.bf16.mxu0 0
      %12362 = vmatmul.mubr.bf16.gmra.mrb[0].mxu0 %v11208
      %v12363 = vpop.f32.mrb[0].mxu0
      %v12364 = vadd.f32 0.0, %v12363
      %v12365 = vpop.f32.mrb[0].mxu0
      %v12366 = vpop.f32.mrb[0].mxu0
      %v12367 = vadd.f32 0.0, %v12366
      %v12368 = vpop.f32.mrb[0].mxu0
      %12369 = vmatprep.mubr.bf16.mxu0 0
      %12370 = vmatmul.mubr.bf16.gmra.mrb[0].mxu0 %v11209
      %v12371 = vpop.f32.mrb[0].mxu0
      %v12372 = vadd.f32 0.0, %v12371
      %v12373 = vpop.f32.mrb[0].mxu0
      %v12374 = vpop.f32.mrb[0].mxu0
      %v12375 = vadd.f32 0.0, %v12374
      %v12376 = vpop.f32.mrb[0].mxu0
      %12377 = vmatprep.mubr.bf16.mxu0 0
      %12378 = vmatmul.mubr.bf16.gmra.mrb[0].mxu0 %v11210
      %v12379 = vpop.f32.mrb[0].mxu0
      %v12380 = vadd.f32 0.0, %v12379
      %v12381 = vpop.f32.mrb[0].mxu0
      %v12382 = vpop.f32.mrb[0].mxu0
      %v12383 = vadd.f32 0.0, %v12382
      %v12384 = vpop.f32.mrb[0].mxu0
      %12385 = vmatprep.mubr.bf16.mxu0 0
      %12386 = vmatmul.mubr.bf16.gmra.mrb[0].mxu0 %v11211
      %v12387 = vpop.f32.mrb[0].mxu0
      %v12388 = vadd.f32 0.0, %v12387
      %v12389 = vpop.f32.mrb[0].mxu0
      %v12390 = vpop.f32.mrb[0].mxu0
      %v12391 = vadd.f32 0.0, %v12390
      %v12392 = vpop.f32.mrb[0].mxu0
      %12393 = vmatprep.mubr.bf16.mxu0 0
      %12394 = vmatmul.mubr.bf16.gmra.mrb[0].mxu0 %v11212
      %v12395 = vpop.f32.mrb[0].mxu0
      %v12396 = vadd.f32 0.0, %v12395
      %v12397 = vpop.f32.mrb[0].mxu0
      %v12398 = vpop.f32.mrb[0].mxu0
      %v12399 = vadd.f32 0.0, %v12398
      %v12400 = vpop.f32.mrb[0].mxu0
      %12401 = vmatprep.mubr.bf16.mxu0 0
      %12402 = vmatmul.mubr.bf16.gmra.mrb[0].mxu0 %v11213
      %v12403 = vpop.f32.mrb[0].mxu0
      %v12404 = vadd.f32 0.0, %v12403
      %v12405 = vpop.f32.mrb[0].mxu0
      %v12406 = vpop.f32.mrb[0].mxu0
      %v12407 = vadd.f32 0.0, %v12406
      %v12408 = vpop.f32.mrb[0].mxu0
      %12409 = vmatprep.mubr.bf16.mxu0 0
      %12410 = vmatmul.mubr.bf16.gmra.mrb[0].mxu0 %v11214
      %v12411 = vpop.f32.mrb[0].mxu0
      %v12412 = vadd.f32 0.0, %v12411
      %v12413 = vpop.f32.mrb[0].mxu0
      %v12414 = vpop.f32.mrb[0].mxu0
      %v12415 = vadd.f32 0.0, %v12414
      %v12416 = vpop.f32.mrb[0].mxu0
      %12417 = vmatprep.mubr.bf16.mxu0 0
      %12418 = vmatmul.mubr.bf16.gmra.mrb[0].mxu0 %v11215
      %v12419 = vpop.f32.mrb[0].mxu0
      %v12420 = vadd.f32 0.0, %v12419
      %v12421 = vpop.f32.mrb[0].mxu0
      %v12422 = vpop.f32.mrb[0].mxu0
      %v12423 = vadd.f32 0.0, %v12422
      %v12424 = vpop.f32.mrb[0].mxu0
      %12425 = vmatprep.mubr.bf16.mxu0 0
      %12426 = vmatmul.mubr.bf16.gmra.mrb[0].mxu0 %v11216
      %v12427 = vpop.f32.mrb[0].mxu0
      %v12428 = vadd.f32 0.0, %v12427
      %v12429 = vpop.f32.mrb[0].mxu0
      %v12430 = vpop.f32.mrb[0].mxu0
      %v12431 = vadd.f32 0.0, %v12430
      %v12432 = vpop.f32.mrb[0].mxu0
      %12433 = vmatprep.mubr.bf16.mxu0 0
      %12434 = vmatmul.mubr.bf16.gmra.mrb[0].mxu0 %v11685
      %v12435 = vpop.f32.mrb[0].mxu0
      %v12436 = vadd.f32 0.0, %v12435
      %v12437 = vpop.f32.mrb[0].mxu0
      %v12438 = vpop.f32.mrb[0].mxu0
      %v12439 = vadd.f32 0.0, %v12438
      %v12440 = vpop.f32.mrb[0].mxu0
      %12441 = vmatprep.mubr.bf16.mxu0 0
      %12442 = vmatmul.mubr.bf16.gmra.mrb[0].mxu0 %v11686
      %v12443 = vpop.f32.mrb[0].mxu0
      %v12444 = vadd.f32 0.0, %v12443
      %v12445 = vpop.f32.mrb[0].mxu0
      %v12446 = vpop.f32.mrb[0].mxu0
      %v12447 = vadd.f32 0.0, %v12446
      %v12448 = vpop.f32.mrb[0].mxu0
      %12449 = vmatprep.mubr.bf16.mxu0 0
      %12450 = vmatmul.mubr.bf16.gmra.mrb[0].mxu0 %v12125
      %v12451 = vpop.f32.mrb[0].mxu0
      %v12452 = vadd.f32 0.0, %v12451
      %v12453 = vpop.f32.mrb[0].mxu0
      %v12454 = vpop.f32.mrb[0].mxu0
      %v12455 = vadd.f32 0.0, %v12454
      %v12456 = vpop.f32.mrb[0].mxu0
      %12457 = vmatprep.mubr.bf16.mxu0 0
      %12458 = vmatmul.mubr.bf16.gmra.mrb[0].mxu0 %v12126
      %v12459 = vpop.f32.mrb[0].mxu0
      %v12460 = vadd.f32 0.0, %v12459
      %v12461 = vpop.f32.mrb[0].mxu0
      %v12462 = vpop.f32.mrb[0].mxu0
      %v12463 = vadd.f32 0.0, %v12462
      %v12464 = vpop.f32.mrb[0].mxu0
      %12465 = vdwg.mxu0
      %v12466 = vadd.f32 %v12026, %v12212
      %v12467 = vadd.f32 %v12027, %v12215
      %v12468 = vadd.f32 %v12028, %v12220
      %v12469 = vadd.f32 %v12029, %v12223
      %v12470 = vadd.f32 %v12030, %v12228
      %v12471 = vadd.f32 %v12031, %v12231
      %v12472 = vadd.f32 %v12032, %v12236
      %v12473 = vadd.f32 %v12033, %v12239
      %v12474 = vadd.f32 %v12034, %v12244
      %v12475 = vadd.f32 %v12035, %v12247
      %v12476 = vadd.f32 %v12036, %v12252
      %v12477 = vadd.f32 %v12037, %v12255
      %v12478 = vadd.f32 %v12038, %v12260
      %v12479 = vadd.f32 %v12039, %v12263
      %v12480 = vadd.f32 %v12040, %v12268
      %v12481 = vadd.f32 %v12041, %v12271
      %v12482 = vadd.f32 %v12042, %v12276
      %v12483 = vadd.f32 %v12043, %v12279
      %v12484 = vadd.f32 %v12044, %v12284
      %v12485 = vadd.f32 %v12045, %v12287
      %v12486 = vadd.f32 %v12046, %v12292
      %v12487 = vadd.f32 %v12047, %v12295
      %v12488 = vadd.f32 %v12048, %v12300
      %v12489 = vadd.f32 %v12049, %v12303
      %v12490 = vadd.f32 %v12050, %v12308
      %v12491 = vadd.f32 %v12051, %v12311
      %v12492 = vadd.f32 %v12052, %v12316
      %v12493 = vadd.f32 %v12053, %v12319
      %v12494 = vadd.f32 %v12054, %v12324
      %v12495 = vadd.f32 %v12055, %v12327
      %v12496 = vadd.f32 %v12056, %v12332
      %v12497 = vadd.f32 %v12057, %v12335
      %v12498 = vadd.f32 %v12058, %v12340
      %v12499 = vadd.f32 %v12059, %v12343
      %v12500 = vadd.f32 %v12060, %v12348
      %v12501 = vadd.f32 %v12061, %v12351
      %v12502 = vadd.f32 %v12062, %v12356
      %v12503 = vadd.f32 %v12063, %v12359
      %v12504 = vadd.f32 %v12064, %v12364
      %v12505 = vadd.f32 %v12065, %v12367
      %v12506 = vadd.f32 %v12066, %v12372
      %v12507 = vadd.f32 %v12067, %v12375
      %v12508 = vadd.f32 %v12068, %v12380
      %v12509 = vadd.f32 %v12069, %v12383
      %v12510 = vadd.f32 %v12070, %v12388
      %v12511 = vadd.f32 %v12071, %v12391
      %v12512 = vadd.f32 %v12072, %v12396
      %v12513 = vadd.f32 %v12073, %v12399
      %v12514 = vadd.f32 %v12074, %v12404
      %v12515 = vadd.f32 %v12075, %v12407
      %v12516 = vadd.f32 %v12076, %v12412
      %v12517 = vadd.f32 %v12077, %v12415
      %v12518 = vadd.f32 %v12078, %v12420
      %v12519 = vadd.f32 %v12079, %v12423
      %v12520 = vadd.f32 %v12080, %v12428
      %v12521 = vadd.f32 %v12081, %v12431
      %v12522 = vadd.f32 %v12082, %v12436
      %v12523 = vadd.f32 %v12083, %v12439
      %v12524 = vadd.f32 %v12084, %v12444
      %v12525 = vadd.f32 %v12085, %v12447
      %v12526 = vadd.f32 %v12086, %v12452
      %v12527 = vadd.f32 %v12087, %v12455
      %v12528 = vadd.f32 %v12088, %v12460
      %v12529 = vadd.f32 %v12089, %v12463
      %v12530 = vld [vmem:[%s5] sm:$0x1]
      %v12532 = vlaneseq
      %v12533 = vshrl.u32 %v12532, 7
      %v12534 = vsub.s32 0, %v12533
      %v12535 = vrot.slane %v12530, %v12534
      %v12537 = vmul.f32 %v12466, %v12535
      %v12538 = vmul.f32 %v12467, %v12535
      %v12539 = vmul.f32 %v12468, %v12535
      %v12540 = vmul.f32 %v12469, %v12535
      %v12541 = vmul.f32 %v12470, %v12535
      %v12542 = vmul.f32 %v12471, %v12535
      %v12543 = vmul.f32 %v12472, %v12535
      %v12544 = vmul.f32 %v12473, %v12535
      %v12545 = vmul.f32 %v12474, %v12535
      %v12546 = vmul.f32 %v12475, %v12535
      %v12547 = vmul.f32 %v12476, %v12535
      %v12548 = vmul.f32 %v12477, %v12535
      %v12549 = vmul.f32 %v12478, %v12535
      %v12550 = vmul.f32 %v12479, %v12535
      %v12551 = vmul.f32 %v12480, %v12535
      %v12552 = vmul.f32 %v12481, %v12535
      %v12553 = vmul.f32 %v12482, %v12535
      %v12554 = vmul.f32 %v12483, %v12535
      %v12555 = vmul.f32 %v12484, %v12535
      %v12556 = vmul.f32 %v12485, %v12535
      %v12557 = vmul.f32 %v12486, %v12535
      %v12558 = vmul.f32 %v12487, %v12535
      %v12559 = vmul.f32 %v12488, %v12535
      %v12560 = vmul.f32 %v12489, %v12535
      %v12561 = vmul.f32 %v12490, %v12535
      %v12562 = vmul.f32 %v12491, %v12535
      %v12563 = vmul.f32 %v12492, %v12535
      %v12564 = vmul.f32 %v12493, %v12535
      %v12565 = vmul.f32 %v12494, %v12535
      %v12566 = vmul.f32 %v12495, %v12535
      %v12567 = vmul.f32 %v12496, %v12535
      %v12568 = vmul.f32 %v12497, %v12535
      %v12569 = vmul.f32 %v12498, %v12535
      %v12570 = vmul.f32 %v12499, %v12535
      %v12571 = vmul.f32 %v12500, %v12535
      %v12572 = vmul.f32 %v12501, %v12535
      %v12573 = vmul.f32 %v12502, %v12535
      %v12574 = vmul.f32 %v12503, %v12535
      %v12575 = vmul.f32 %v12504, %v12535
      %v12576 = vmul.f32 %v12505, %v12535
      %v12577 = vmul.f32 %v12506, %v12535
      %v12578 = vmul.f32 %v12507, %v12535
      %v12579 = vmul.f32 %v12508, %v12535
      %v12580 = vmul.f32 %v12509, %v12535
      %v12581 = vmul.f32 %v12510, %v12535
      %v12582 = vmul.f32 %v12511, %v12535
      %v12583 = vmul.f32 %v12512, %v12535
      %v12584 = vmul.f32 %v12513, %v12535
      %v12585 = vmul.f32 %v12514, %v12535
      %v12586 = vmul.f32 %v12515, %v12535
      %v12587 = vmul.f32 %v12516, %v12535
      %v12588 = vmul.f32 %v12517, %v12535
      %v12589 = vmul.f32 %v12518, %v12535
      %v12590 = vmul.f32 %v12519, %v12535
      %v12591 = vmul.f32 %v12520, %v12535
      %v12592 = vmul.f32 %v12521, %v12535
      %v12593 = vmul.f32 %v12522, %v12535
      %v12594 = vmul.f32 %v12523, %v12535
      %v12595 = vmul.f32 %v12524, %v12535
      %v12596 = vmul.f32 %v12525, %v12535
      %v12597 = vmul.f32 %v12526, %v12535
      %v12598 = vmul.f32 %v12527, %v12535
      %v12599 = vmul.f32 %v12528, %v12535
      %v12600 = vmul.f32 %v12529, %v12535
      %v12601 = vld [vmem:[%s6] sm:$0x1]
      %v12603 = vlaneseq
      %v12604 = vshrl.u32 %v12603, 7
      %v12605 = vsub.s32 0, %v12604
      %v12606 = vrot.slane %v12601, %v12605
      %v12608 = vadd.f32 %v12537, %v12606
      %v12609 = vadd.f32 %v12538, %v12606
      %v12610 = vadd.f32 %v12539, %v12606
      %v12611 = vadd.f32 %v12540, %v12606
      %v12612 = vadd.f32 %v12541, %v12606
      %v12613 = vadd.f32 %v12542, %v12606
      %v12614 = vadd.f32 %v12543, %v12606
      %v12615 = vadd.f32 %v12544, %v12606
      %v12616 = vadd.f32 %v12545, %v12606
      %v12617 = vadd.f32 %v12546, %v12606
      %v12618 = vadd.f32 %v12547, %v12606
      %v12619 = vadd.f32 %v12548, %v12606
      %v12620 = vadd.f32 %v12549, %v12606
      %v12621 = vadd.f32 %v12550, %v12606
      %v12622 = vadd.f32 %v12551, %v12606
      %v12623 = vadd.f32 %v12552, %v12606
      %v12624 = vadd.f32 %v12553, %v12606
      %v12625 = vadd.f32 %v12554, %v12606
      %v12626 = vadd.f32 %v12555, %v12606
      %v12627 = vadd.f32 %v12556, %v12606
      %v12628 = vadd.f32 %v12557, %v12606
      %v12629 = vadd.f32 %v12558, %v12606
      %v12630 = vadd.f32 %v12559, %v12606
      %v12631 = vadd.f32 %v12560, %v12606
      %v12632 = vadd.f32 %v12561, %v12606
      %v12633 = vadd.f32 %v12562, %v12606
      %v12634 = vadd.f32 %v12563, %v12606
      %v12635 = vadd.f32 %v12564, %v12606
      %v12636 = vadd.f32 %v12565, %v12606
      %v12637 = vadd.f32 %v12566, %v12606
      %v12638 = vadd.f32 %v12567, %v12606
      %v12639 = vadd.f32 %v12568, %v12606
      %v12640 = vadd.f32 %v12569, %v12606
      %v12641 = vadd.f32 %v12570, %v12606
      %v12642 = vadd.f32 %v12571, %v12606
      %v12643 = vadd.f32 %v12572, %v12606
      %v12644 = vadd.f32 %v12573, %v12606
      %v12645 = vadd.f32 %v12574, %v12606
      %v12646 = vadd.f32 %v12575, %v12606
      %v12647 = vadd.f32 %v12576, %v12606
      %v12648 = vadd.f32 %v12577, %v12606
      %v12649 = vadd.f32 %v12578, %v12606
      %v12650 = vadd.f32 %v12579, %v12606
      %v12651 = vadd.f32 %v12580, %v12606
      %v12652 = vadd.f32 %v12581, %v12606
      %v12653 = vadd.f32 %v12582, %v12606
      %v12654 = vadd.f32 %v12583, %v12606
      %v12655 = vadd.f32 %v12584, %v12606
      %v12656 = vadd.f32 %v12585, %v12606
      %v12657 = vadd.f32 %v12586, %v12606
      %v12658 = vadd.f32 %v12587, %v12606
      %v12659 = vadd.f32 %v12588, %v12606
      %v12660 = vadd.f32 %v12589, %v12606
      %v12661 = vadd.f32 %v12590, %v12606
      %v12662 = vadd.f32 %v12591, %v12606
      %v12663 = vadd.f32 %v12592, %v12606
      %v12664 = vadd.f32 %v12593, %v12606
      %v12665 = vadd.f32 %v12594, %v12606
      %v12666 = vadd.f32 %v12595, %v12606
      %v12667 = vadd.f32 %v12596, %v12606
      %v12668 = vadd.f32 %v12597, %v12606
      %v12669 = vadd.f32 %v12598, %v12606
      %v12670 = vadd.f32 %v12599, %v12606
      %v12671 = vadd.f32 %v12600, %v12606
      %v12672 = vmax.f32 %v12608, 0.0
      %v12673 = vmax.f32 %v12609, 0.0
      %v12674 = vmax.f32 %v12610, 0.0
      %v12675 = vmax.f32 %v12611, 0.0
      %v12676 = vmax.f32 %v12612, 0.0
      %v12677 = vmax.f32 %v12613, 0.0
      %v12678 = vmax.f32 %v12614, 0.0
      %v12679 = vmax.f32 %v12615, 0.0
      %v12680 = vmax.f32 %v12616, 0.0
      %v12681 = vmax.f32 %v12617, 0.0
      %v12682 = vmax.f32 %v12618, 0.0
      %v12683 = vmax.f32 %v12619, 0.0
      %v12684 = vmax.f32 %v12620, 0.0
      %v12685 = vmax.f32 %v12621, 0.0
      %v12686 = vmax.f32 %v12622, 0.0
      %v12687 = vmax.f32 %v12623, 0.0
      %v12688 = vmax.f32 %v12624, 0.0
      %v12689 = vmax.f32 %v12625, 0.0
      %v12690 = vmax.f32 %v12626, 0.0
      %v12691 = vmax.f32 %v12627, 0.0
      %v12692 = vmax.f32 %v12628, 0.0
      %v12693 = vmax.f32 %v12629, 0.0
      %v12694 = vmax.f32 %v12630, 0.0
      %v12695 = vmax.f32 %v12631, 0.0
      %v12696 = vmax.f32 %v12632, 0.0
      %v12697 = vmax.f32 %v12633, 0.0
      %v12698 = vmax.f32 %v12634, 0.0
      %v12699 = vmax.f32 %v12635, 0.0
      %v12700 = vmax.f32 %v12636, 0.0
      %v12701 = vmax.f32 %v12637, 0.0
      %v12702 = vmax.f32 %v12638, 0.0
      %v12703 = vmax.f32 %v12639, 0.0
      %v12704 = vmax.f32 %v12640, 0.0
      %v12705 = vmax.f32 %v12641, 0.0
      %v12706 = vmax.f32 %v12642, 0.0
      %v12707 = vmax.f32 %v12643, 0.0
      %v12708 = vmax.f32 %v12644, 0.0
      %v12709 = vmax.f32 %v12645, 0.0
      %v12710 = vmax.f32 %v12646, 0.0
      %v12711 = vmax.f32 %v12647, 0.0
      %v12712 = vmax.f32 %v12648, 0.0
      %v12713 = vmax.f32 %v12649, 0.0
      %v12714 = vmax.f32 %v12650, 0.0
      %v12715 = vmax.f32 %v12651, 0.0
      %v12716 = vmax.f32 %v12652, 0.0
      %v12717 = vmax.f32 %v12653, 0.0
      %v12718 = vmax.f32 %v12654, 0.0
      %v12719 = vmax.f32 %v12655, 0.0
      %v12720 = vmax.f32 %v12656, 0.0
      %v12721 = vmax.f32 %v12657, 0.0
      %v12722 = vmax.f32 %v12658, 0.0
      %v12723 = vmax.f32 %v12659, 0.0
      %v12724 = vmax.f32 %v12660, 0.0
      %v12725 = vmax.f32 %v12661, 0.0
      %v12726 = vmax.f32 %v12662, 0.0
      %v12727 = vmax.f32 %v12663, 0.0
      %v12728 = vmax.f32 %v12664, 0.0
      %v12729 = vmax.f32 %v12665, 0.0
      %v12730 = vmax.f32 %v12666, 0.0
      %v12731 = vmax.f32 %v12667, 0.0
      %v12732 = vmax.f32 %v12668, 0.0
      %v12733 = vmax.f32 %v12669, 0.0
      %v12734 = vmax.f32 %v12670, 0.0
      %v12735 = vmax.f32 %v12671, 0.0
      %12736 = vst [vmem:[%s302] sm:$0xff] %v12672
      %12737 = vst [vmem:[%s302 + $0x8] sm:$0xff] %v12673
      %12738 = vst [vmem:[%s302 + $0x10] sm:$0xff] %v12674
      %12739 = vst [vmem:[%s302 + $0x18] sm:$0xff] %v12675
      %12740 = vst [vmem:[%s302 + $0x20] sm:$0xff] %v12676
      %12741 = vst [vmem:[%s302 + $0x28] sm:$0xff] %v12677
      %12742 = vst [vmem:[%s302 + $0x30] sm:$0xff] %v12678
      %12743 = vst [vmem:[%s302 + $0x38] sm:$0xff] %v12679
      %12744 = vst [vmem:[%s302 + $0x40] sm:$0xff] %v12680
      %12745 = vst [vmem:[%s302 + $0x48] sm:$0xff] %v12681
      %12746 = vst [vmem:[%s302 + $0x50] sm:$0xff] %v12682
      %12747 = vst [vmem:[%s302 + $0x58] sm:$0xff] %v12683
      %12748 = vst [vmem:[%s302 + $0x60] sm:$0xff] %v12684
      %12749 = vst [vmem:[%s302 + $0x68] sm:$0xff] %v12685
      %12750 = vst [vmem:[%s302 + $0x70] sm:$0xff] %v12686
      %12751 = vst [vmem:[%s302 + $0x78] sm:$0xff] %v12687
      %12752 = vst [vmem:[%s302 + $0x80] sm:$0xff] %v12688
      %12753 = vst [vmem:[%s302 + $0x88] sm:$0xff] %v12689
      %12754 = vst [vmem:[%s302 + $0x90] sm:$0xff] %v12690
      %12755 = vst [vmem:[%s302 + $0x98] sm:$0xff] %v12691
      %12756 = vst [vmem:[%s302 + $0xa0] sm:$0xff] %v12692
      %12757 = vst [vmem:[%s302 + $0xa8] sm:$0xff] %v12693
      %12758 = vst [vmem:[%s302 + $0xb0] sm:$0xff] %v12694
      %12759 = vst [vmem:[%s302 + $0xb8] sm:$0xff] %v12695
      %12760 = vst [vmem:[%s302 + $0xc0] sm:$0xff] %v12696
      %12761 = vst [vmem:[%s302 + $0xc8] sm:$0xff] %v12697
      %12762 = vst [vmem:[%s302 + $0xd0] sm:$0xff] %v12698
      %12763 = vst [vmem:[%s302 + $0xd8] sm:$0xff] %v12699
      %12764 = vst [vmem:[%s302 + $0xe0] sm:$0xff] %v12700
      %12765 = vst [vmem:[%s302 + $0xe8] sm:$0xff] %v12701
      %12766 = vst [vmem:[%s302 + $0xf0] sm:$0xff] %v12702
      %12767 = vst [vmem:[%s302 + $0xf8] sm:$0xff] %v12703
      %12768 = vst [vmem:[%s302 + $0x100] sm:$0xff] %v12704
      %12769 = vst [vmem:[%s302 + $0x108] sm:$0xff] %v12705
      %12770 = vst [vmem:[%s302 + $0x110] sm:$0xff] %v12706
      %12771 = vst [vmem:[%s302 + $0x118] sm:$0xff] %v12707
      %12772 = vst [vmem:[%s302 + $0x120] sm:$0xff] %v12708
      %12773 = vst [vmem:[%s302 + $0x128] sm:$0xff] %v12709
      %12774 = vst [vmem:[%s302 + $0x130] sm:$0xff] %v12710
      %12775 = vst [vmem:[%s302 + $0x138] sm:$0xff] %v12711
      %12776 = vst [vmem:[%s302 + $0x140] sm:$0xff] %v12712
      %12777 = vst [vmem:[%s302 + $0x148] sm:$0xff] %v12713
      %12778 = vst [vmem:[%s302 + $0x150] sm:$0xff] %v12714
      %12779 = vst [vmem:[%s302 + $0x158] sm:$0xff] %v12715
      %12780 = vst [vmem:[%s302 + $0x160] sm:$0xff] %v12716
      %12781 = vst [vmem:[%s302 + $0x168] sm:$0xff] %v12717
      %12782 = vst [vmem:[%s302 + $0x170] sm:$0xff] %v12718
      %12783 = vst [vmem:[%s302 + $0x178] sm:$0xff] %v12719
      %12784 = vst [vmem:[%s302 + $0x180] sm:$0xff] %v12720
      %12785 = vst [vmem:[%s302 + $0x188] sm:$0xff] %v12721
      %12786 = vst [vmem:[%s302 + $0x190] sm:$0xff] %v12722
      %12787 = vst [vmem:[%s302 + $0x198] sm:$0xff] %v12723
      %12788 = vst [vmem:[%s302 + $0x1a0] sm:$0xff] %v12724
      %12789 = vst [vmem:[%s302 + $0x1a8] sm:$0xff] %v12725
      %12790 = vst [vmem:[%s302 + $0x1b0] sm:$0xff] %v12726
      %12791 = vst [vmem:[%s302 + $0x1b8] sm:$0xff] %v12727
      %12792 = vst [vmem:[%s302 + $0x1c0] sm:$0xff] %v12728
      %12793 = vst [vmem:[%s302 + $0x1c8] sm:$0xff] %v12729
      %12794 = vst [vmem:[%s302 + $0x1d0] sm:$0xff] %v12730
      %12795 = vst [vmem:[%s302 + $0x1d8] sm:$0xff] %v12731
      %12796 = vst [vmem:[%s302 + $0x1e0] sm:$0xff] %v12732
      %12797 = vst [vmem:[%s302 + $0x1e8] sm:$0xff] %v12733
      %12798 = vst [vmem:[%s302 + $0x1f0] sm:$0xff] %v12734
      %12799 = vst [vmem:[%s302 + $0x1f8] sm:$0xff] %v12735
      %s12800 = smul.u32 16, %s23
      %p12801 = scmp.lt.s32.totalorder %s22, 1
      %s12802 = scalar_select %p12801, %s22, 1
      %p12803 = scmp.lt.s32.totalorder %s12800, 31
      %s12804 = scalar_select %p12803, %s12800, 31
      %s12805 = smul.addr %s12804, 4
      %s12806 = smul.addr %s12802, 128
      %s12807 = sadd.s32 %s12805, %s12806
      %s12808 = smul.addr %s12807, 8
      %s12809 = scalar_lea.vmem %s7, %s12808
      // Predicated region
      $region57: #{up_forward.1} parent=47 // pred_check
        %p12810 = pneg %p202
      $region58: #{up_forward.1} parent=47 // pred_check_branch
        %12812 = sbr.rel (%p12810) target = $region60
      $region59: #{up_forward.1} parent=47 // pred_region
        %s12813 = smul.u32 16, %s23
      $region60: #{up_forward.1} parent=47 // pred_fallthru
        _
    $region48: #{up_forward.1} parent=5 // pred_fallthru
      _
    %p12814 = scmp.le.s32.totalorder 2, %s13
    // Predicated region
    $region61: #{up_forward.1} parent=5 // pred_check
      %p12815 = pneg %p12814
    $region62: #{up_forward.1} parent=5 // pred_check_branch
      %12817 = sbr.rel (%p12815) target = $region64
    $region63: #{up_forward.1} parent=5 // pred_region
      %s12818 = ssub.s32 %s13, 2
      // Predicated region
      $region65: #{up_forward.1} parent=63 // pred_check
        %p12819 = pneg %p208
      $region66: #{up_forward.1} parent=63 // pred_check_branch
        %12821 = sbr.rel (%p12819) target = $region68
      $region67: #{up_forward.1} parent=63 // pred_region
        %s12822 = smul.u32 16, %s25
        %p12823 = scmp.lt.s32.totalorder %s24, 1
        %s12824 = scalar_select %p12823, %s24, 1
        %p12825 = scmp.lt.s32.totalorder %s12822, 31
        %s12826 = scalar_select %p12825, %s12822, 31
        %s12827 = smul.addr %s12826, 4
        %s12828 = smul.addr %s12824, 128
        %s12829 = sadd.s32 %s12827, %s12828
        %s12830 = smul.addr %s12829, 8
        %s12831 = scalar_lea.vmem %s7, %s12830
      $region68: #{up_forward.1} parent=63 // pred_fallthru
        _
    $region64: #{up_forward.1} parent=5 // pred_fallthru
      _
  $region6: #{up_forward.1} parent=0 // loop_footer
    %s17 = sadd.s32 1, %s13
  $region7: #{up_forward.1} parent=0 // loop_footer_branch
    %12 = sbr.rel target = $region3
  $region8: #{up_forward.1} parent=0 // loop_exit
    _

</llo_original>
